<compile_context>
chip_gen: v7x
topology: tpu7x:2x2x1
jax: 0.10.0
libtpu: 0.0.40
codegen_flags: <defaults>
</compile_context>

<pallas_src>
import jax
import jax.numpy as jnp
import numpy as np
from jax.experimental import pallas as pl
from jax.experimental.pallas import tpu as pltpu


_VMEM_LIMIT_CACHE = []


def _vmem_limit_bytes():
    """~3/4 of physical VMEM (v5e/v6e: 128 MiB, v7x: 64 MiB)."""
    if not _VMEM_LIMIT_CACHE:
        cap = 128 * 1024 * 1024
        try:
            cap = int(getattr(pltpu.get_tpu_info(), "vmem_capacity_bytes", cap))
        except Exception:
            pass
        _VMEM_LIMIT_CACHE.append((cap * 3) // 4)
    return _VMEM_LIMIT_CACHE[0]


def _pick_tile(dim, target, align):
    """Largest multiple of `align`, <= min(target, dim), dividing `dim`.
    Returns None if no such tile exists (caller falls back to full blocks)."""
    t = min(target, dim)
    t -= t % align
    while t >= align:
        if dim % t == 0:
            return t
        t -= align
    return None


# ----------------------------------------------------------------------------
# Kernel 1: fused style-side 1x1 projections (flash path)
#   G^T  = g_w @ style_key_native + g_b       -> (B, Ck, hwg)  bf16, lane-dense
#   Hcat = [h(style) || h(style)^2]           -> (B, hwg, 2C)  bf16
# ----------------------------------------------------------------------------
def _style_proj_kernel(sk_ref, s_ref, gw_ref, gb_ref, hwT_ref, hb_ref,
                       gt_ref, hcat_ref):
    gt = jnp.dot(gw_ref[...], sk_ref[0],
                 preferred_element_type=jnp.float32) + gb_ref[...]
    gt_ref[0] = gt.astype(jnp.bfloat16)                         # (Ck, tkv)
    hs = jnp.dot(s_ref[0], hwT_ref[...],
                 preferred_element_type=jnp.float32) + hb_ref[...]
    hcat_ref[0] = jnp.concatenate([hs, hs * hs], axis=-1).astype(jnp.bfloat16)


def style_projection(sk_t, s_flat, gw_bf, gb, hwT_bf, hb, tkv):
    B, Ck, hwg = sk_t.shape
    C = s_flat.shape[2]
    nkv = hwg // tkv
    return pl.pallas_call(
        _style_proj_kernel,
        out_shape=(jax.ShapeDtypeStruct((B, Ck, hwg), jnp.bfloat16),
                   jax.ShapeDtypeStruct((B, hwg, 2 * C), jnp.bfloat16)),
        grid=(B, nkv),
        in_specs=[
            pl.BlockSpec((1, Ck, tkv), lambda b, i: (b, 0, i)),
            pl.BlockSpec((1, tkv, C), lambda b, i: (b, i, 0)),
            pl.BlockSpec((Ck, Ck), lambda b, i: (0, 0)),
            pl.BlockSpec((Ck, 1), lambda b, i: (0, 0)),
            pl.BlockSpec((C, C), lambda b, i: (0, 0)),
            pl.BlockSpec((1, C), lambda b, i: (0, 0)),
        ],
        out_specs=(pl.BlockSpec((1, Ck, tkv), lambda b, i: (b, 0, i)),
                   pl.BlockSpec((1, tkv, 2 * C), lambda b, i: (b, i, 0))),
        compiler_params=pltpu.CompilerParams(
            dimension_semantics=("parallel", "parallel"),
            vmem_limit_bytes=_vmem_limit_bytes()),
    )(sk_t, s_flat, gw_bf, gb, hwT_bf, hb)


# ----------------------------------------------------------------------------
# Kernel 2: flash-style AdaAttN attention (online softmax, deferred exact
#           normalisation, fused F projection, fused mean-variance-norm blend)
# ----------------------------------------------------------------------------
def _adaattn_flash_kernel(ck_ref, gt_ref, hcat_ref, c_ref, cmean_ref, cinv_ref,
                          fwT_ref, fb_ref, o_ref, f_scr, m_scr, l_scr, acc_scr):
    ki = pl.program_id(2)
    C = c_ref.shape[-1]

    @pl.when(ki == 0)
    def _init():
        f = jnp.dot(ck_ref[0], fwT_ref[...],
                    preferred_element_type=jnp.float32) + fb_ref[...]
        f_scr[...] = f.astype(jnp.bfloat16)
        m_scr[...] = jnp.full(m_scr.shape, -jnp.inf, jnp.float32)
        l_scr[...] = jnp.zeros(l_scr.shape, jnp.float32)
        acc_scr[...] = jnp.zeros(acc_scr.shape, jnp.float32)

    # plain NN score matmul against the pre-transposed G tile (Ck, tk)
    s = jnp.dot(f_scr[...], gt_ref[0], preferred_element_type=jnp.float32)

    m_prev = m_scr[...]
    m_new = jnp.maximum(m_prev, jnp.max(s, axis=-1, keepdims=True))
    alpha = jnp.exp(m_prev - m_new)                        # (tq,1) f32 (cheap)
    p = jnp.exp((s - m_new).astype(jnp.bfloat16))          # (tq,tk) bf16 exp
    l_scr[...] = alpha * l_scr[...] + jnp.sum(p.astype(jnp.float32),
                                              axis=-1, keepdims=True)
    acc_scr[...] = alpha * acc_scr[...] + jnp.dot(
        p, hcat_ref[0], preferred_element_type=jnp.float32)
    m_scr[...] = m_new

    @pl.when(ki == pl.num_programs(2) - 1)
    def _finalize():
        ms = acc_scr[...] / l_scr[...]                     # exact normalisation
        mean = ms[:, :C]
        m2 = ms[:, C:]
        std = jnp.sqrt(jnp.maximum(m2 - mean * mean, 0.0))
        cn = (c_ref[0].astype(jnp.float32) - cmean_ref[0]) * cinv_ref[0]
        o_ref[0] = (std * cn + mean).astype(o_ref.dtype)


def adaattn_attention(ck_flat, g_t, hcat, c_flat, c_mean, c_invstd,
                      fwT_bf, fb, tq, tk):
    B, hwc, Ck = ck_flat.shape
    hwg = g_t.shape[2]
    C = c_flat.shape[2]
    nq, nk = hwc // tq, hwg // tk
    return pl.pallas_call(
        _adaattn_flash_kernel,
        out_shape=jax.ShapeDtypeStruct((B, hwc, C), jnp.bfloat16),
        grid=(B, nq, nk),
        in_specs=[
            pl.BlockSpec((1, tq, Ck), lambda b, q, k: (b, q, 0)),
            pl.BlockSpec((1, Ck, tk), lambda b, q, k: (b, 0, k)),
            pl.BlockSpec((1, tk, 2 * C), lambda b, q, k: (b, k, 0)),
            pl.BlockSpec((1, tq, C), lambda b, q, k: (b, q, 0)),
            pl.BlockSpec((1, 1, C), lambda b, q, k: (b, 0, 0)),
            pl.BlockSpec((1, 1, C), lambda b, q, k: (b, 0, 0)),
            pl.BlockSpec((Ck, Ck), lambda b, q, k: (0, 0)),
            pl.BlockSpec((1, Ck), lambda b, q, k: (0, 0)),
        ],
        out_specs=pl.BlockSpec((1, tq, C), lambda b, q, k: (b, q, 0)),
        scratch_shapes=[
            pltpu.VMEM((tq, Ck), jnp.bfloat16),    # F (query projection) cache
            pltpu.VMEM((tq, 1), jnp.float32),      # running max
            pltpu.VMEM((tq, 1), jnp.float32),      # running sum of exp
            pltpu.VMEM((tq, 2 * C), jnp.float32),  # [mean || m2] accumulator
        ],
        compiler_params=pltpu.CompilerParams(
            dimension_semantics=("parallel", "parallel", "arbitrary"),
            vmem_limit_bytes=_vmem_limit_bytes()),
    )(ck_flat, g_t, hcat, c_flat, c_mean, c_invstd, fwT_bf, fb)


# ----------------------------------------------------------------------------
# Kernel 2b: fused projections + attention for small spatial sizes
#            (one grid step per batch element; everything lives in VMEM)
# ----------------------------------------------------------------------------
def _adaattn_fused_kernel(ck_ref, sk_ref, s_ref, c_ref, cmean_ref, cinv_ref,
                          fwT_ref, fb_ref, gw_ref, gb_ref, hwT_ref, hb_ref,
                          o_ref):
    C = c_ref.shape[-1]
    f = (jnp.dot(ck_ref[0], fwT_ref[...], preferred_element_type=jnp.float32)
         + fb_ref[...]).astype(jnp.bfloat16)                       # (hwc, Ck)
    gt = (jnp.dot(gw_ref[...], sk_ref[0], preferred_element_type=jnp.float32)
          + gb_ref[...]).astype(jnp.bfloat16)                      # (Ck, hwg)
    hs = jnp.dot(s_ref[0], hwT_ref[...],
                 preferred_element_type=jnp.float32) + hb_ref[...]
    hcat = jnp.concatenate([hs, hs * hs], axis=-1).astype(jnp.bfloat16)
    s = jnp.dot(f, gt, preferred_element_type=jnp.float32)         # (hwc, hwg)
    m = jnp.max(s, axis=-1, keepdims=True)
    p = jnp.exp((s - m).astype(jnp.bfloat16))
    l = jnp.sum(p.astype(jnp.float32), axis=-1, keepdims=True)
    ms = jnp.dot(p, hcat, preferred_element_type=jnp.float32) / l  # (hwc, 2C)
    mean = ms[:, :C]
    m2 = ms[:, C:]
    std = jnp.sqrt(jnp.maximum(m2 - mean * mean, 0.0))
    cn = (c_ref[0].astype(jnp.float32) - cmean_ref[0]) * cinv_ref[0]
    o_ref[0] = (std * cn + mean).astype(o_ref.dtype)


def adaattn_fused(ck_flat, sk_t, s_flat, c_flat, c_mean, c_invstd,
                  fwT_bf, fb, gw_bf, gb, hwT_bf, hb):
    B, hwc, Ck = ck_flat.shape
    hwg = sk_t.shape[2]
    C = c_flat.shape[2]
    return pl.pallas_call(
        _adaattn_fused_kernel,
        out_shape=jax.ShapeDtypeStruct((B, hwc, C), jnp.bfloat16),
        grid=(B,),
        in_specs=[
            pl.BlockSpec((1, hwc, Ck), lambda b: (b, 0, 0)),
            pl.BlockSpec((1, Ck, hwg), lambda b: (b, 0, 0)),
            pl.BlockSpec((1, hwg, C), lambda b: (b, 0, 0)),
            pl.BlockSpec((1, hwc, C), lambda b: (b, 0, 0)),
            pl.BlockSpec((1, 1, C), lambda b: (b, 0, 0)),
            pl.BlockSpec((1, 1, C), lambda b: (b, 0, 0)),
            pl.BlockSpec((Ck, Ck), lambda b: (0, 0)),
            pl.BlockSpec((1, Ck), lambda b: (0, 0)),
            pl.BlockSpec((Ck, Ck), lambda b: (0, 0)),
            pl.BlockSpec((Ck, 1), lambda b: (0, 0)),
            pl.BlockSpec((C, C), lambda b: (0, 0)),
            pl.BlockSpec((1, C), lambda b: (0, 0)),
        ],
        out_specs=pl.BlockSpec((1, hwc, C), lambda b: (b, 0, 0)),
        compiler_params=pltpu.CompilerParams(
            dimension_semantics=("parallel",),
            vmem_limit_bytes=_vmem_limit_bytes()),
    )(ck_flat, sk_t, s_flat, c_flat, c_mean, c_invstd,
      fwT_bf, fb, gw_bf, gb, hwT_bf, hb)


# ----------------------------------------------------------------------------
# Kernel 3: 3x3 merge conv on a reflection-padded NHWC image.
#   Builds the (HW, 9C) patch matrix in VMEM and does ONE K=9C MXU dot.
# ----------------------------------------------------------------------------
def _merge_conv_kernel(pad_ref, w_ref, b_ref, o_ref):
    Hp, Wp, C = pad_ref.shape[1], pad_ref.shape[2], pad_ref.shape[3]
    H, W = Hp - 2, Wp - 2
    x = pad_ref[0]                                           # (Hp, Wp, C) bf16
    taps = [x[ky:ky + H, kx:kx + W, :] for ky in range(3) for kx in range(3)]
    patches = jnp.concatenate(taps, axis=-1).reshape(H * W, 9 * C)
    o_ref[0] = jnp.dot(patches, w_ref[...],
                       preferred_element_type=jnp.float32) + b_ref[...]


def merge_conv3x3(padded_nhwc, w2_bf, bias):
    """padded:(B,H+2,W+2,C) bf16, w2:(9C,Cout) bf16 -> (B,H*W,Cout) f32."""
    B, Hp, Wp, C = padded_nhwc.shape
    H, W = Hp - 2, Wp - 2
    Cout = w2_bf.shape[1]
    b2 = bias.reshape(1, Cout).astype(jnp.float32)
    return pl.pallas_call(
        _merge_conv_kernel,
        out_shape=jax.ShapeDtypeStruct((B, H * W, Cout), jnp.float32),
        grid=(B,),
        in_specs=[
            pl.BlockSpec((1, Hp, Wp, C), lambda b: (b, 0, 0, 0)),
            pl.BlockSpec((9 * C, Cout), lambda b: (0, 0)),
            pl.BlockSpec((1, Cout), lambda b: (0, 0)),
        ],
        out_specs=pl.BlockSpec((1, H * W, Cout), lambda b: (b, 0, 0)),
        compiler_params=pltpu.CompilerParams(
            dimension_semantics=("parallel",),
            vmem_limit_bytes=_vmem_limit_bytes()),
    )(padded_nhwc, w2_bf, b2)


# ----------------------------------------------------------------------------
# Module-level wrappers (layout glue only)
# ----------------------------------------------------------------------------
def _nchw_to_flat(x):
    b, c, h, w = x.shape
    return x.reshape(b, c, h * w).transpose(0, 2, 1)             # (B, HW, C)


def adaattn_forward(p, content, style, content_key, style_key):
    """AdaAttN block. Returns channels-last flat output (B, HW, C) in bf16."""
    B, C, H, W = content.shape
    hwc = H * W
    hwg = style.shape[2] * style.shape[3]
    Ck = content_key.shape[1]

    # bf16 streamed operands (halves HBM->VMEM DMA into the kernels)
    ck_flat = _nchw_to_flat(content_key).astype(jnp.bfloat16)    # (B, hwc, Ck)
    sk_t = style_key.reshape(B, Ck, hwg).astype(jnp.bfloat16)    # (B, Ck, hwg)
    s_flat = _nchw_to_flat(style).astype(jnp.bfloat16)           # (B, hwg, C)
    c_flat = _nchw_to_flat(content).astype(jnp.bfloat16)         # (B, hwc, C)

    # mean_variance_norm stats (per (B,C), unbiased var); fused into finalize.
    cf = content.astype(jnp.float32)
    c_mean = jnp.mean(cf, axis=(2, 3)).reshape(B, 1, C)
    c_var = jnp.var(cf, axis=(2, 3), ddof=1).reshape(B, 1, C) + 1e-5
    c_invstd = 1.0 / jnp.sqrt(c_var)

    fwT = p["f_w"].T.astype(jnp.bfloat16)                        # (Ck, Ck)
    fb = p["f_b"].reshape(1, Ck).astype(jnp.float32)
    gw = p["g_w"].astype(jnp.bfloat16)                           # (Ck, Ck)
    gb = p["g_b"].reshape(Ck, 1).astype(jnp.float32)
    hwT = p["h_w"].T.astype(jnp.bfloat16)                        # (C, C)
    hb = p["h_b"].reshape(1, C).astype(jnp.float32)

    tq = _pick_tile(hwc, 512, 16)     # q tiles: 16-sublane aligned (bf16)
    tk = _pick_tile(hwg, 512, 128)    # kv tiles: 128-lane aligned (G^T lanes)

    if hwc * hwg <= 128 * 128 or tq is None or tk is None:
        # Small-spatial (or awkward-shape) branch: one fused kernel per batch.
        return adaattn_fused(ck_flat, sk_t, s_flat, c_flat, c_mean, c_invstd,
                             fwT, fb, gw, gb, hwT, hb)

    g_t, hcat = style_projection(sk_t, s_flat, gw, gb, hwT, hb, tk)
    return adaattn_attention(ck_flat, g_t, hcat, c_flat, c_mean, c_invstd,
                             fwT, fb, tq, tk)


def transformer_forward(params, c4, s4, c5, s5, c4k, s4k, c5k, s5k):
    B, C, H4, W4 = c4.shape
    H5, W5 = c5.shape[2], c5.shape[3]

    a4 = adaattn_forward(params["attn4"], c4, s4, c4k, s4k)      # bf16
    a5 = adaattn_forward(params["attn5"], c5, s5, c5k, s5k)      # bf16

    a4_nhwc = a4.reshape(B, H4, W4, C)
    a5_nhwc = a5.reshape(B, H5, W5, C)
    a5_up = jnp.repeat(jnp.repeat(a5_nhwc, 2, axis=1), 2, axis=2)
    combined = (a4_nhwc + a5_up).astype(jnp.bfloat16)            # (B,H4,W4,C)

    padded = jnp.pad(combined, ((0, 0), (1, 1), (1, 1), (0, 0)), mode="reflect")
    Cout = params["merge_w"].shape[0]
    w2 = jnp.transpose(params["merge_w"], (2, 3, 1, 0)).reshape(9 * C, Cout)
    y = merge_conv3x3(padded, w2.astype(jnp.bfloat16), params["merge_b"])
    return y.reshape(B, H4, W4, Cout).transpose(0, 3, 1, 2)      # NCHW f32


# ----------------------------------------------------------------------------
# Pure-JAX f32 reference (mirrors the PyTorch math) for a correctness check
# ----------------------------------------------------------------------------
def _ref_adaattn(p, content, style, content_key, style_key):
    def c1x1(x, w, b):
        return jnp.einsum("bchw,oc->bohw", x, w) + b[None, :, None, None]

    F = c1x1(content_key, p["f_w"], p["f_b"])
    G = c1x1(style_key, p["g_w"], p["g_b"])
    Hh = c1x1(style, p["h_w"], p["h_b"])
    b, _, hg, wg = G.shape
    Gm = G.reshape(b, -1, hg * wg)
    style_flat = Hh.reshape(b, -1, hg * wg).transpose(0, 2, 1)
    _, _, h, w = F.shape
    Fm = F.reshape(b, -1, h * w).transpose(0, 2, 1)
    S = jax.nn.softmax(jnp.einsum("bqc,bcg->bqg", Fm, Gm), axis=-1)
    mean = jnp.einsum("bqg,bgc->bqc", S, style_flat)
    std = jnp.sqrt(jnp.maximum(
        jnp.einsum("bqg,bgc->bqc", S, style_flat ** 2) - mean ** 2, 0.0))
    mean = mean.reshape(b, h, w, -1).transpose(0, 3, 1, 2)
    std = std.reshape(b, h, w, -1).transpose(0, 3, 1, 2)
    C = content.shape[1]
    cm = content.reshape(b, C, -1).mean(axis=2)[:, :, None, None]
    cv = content.reshape(b, C, -1).var(axis=2, ddof=1)[:, :, None, None] + 1e-5
    cn = (content - cm) / jnp.sqrt(cv)
    return std * cn + mean


def _ref_transformer(params, c4, s4, c5, s5, c4k, s4k, c5k, s5k):
    a4 = _ref_adaattn(params["attn4"], c4, s4, c4k, s4k)
    a5 = _ref_adaattn(params["attn5"], c5, s5, c5k, s5k)
    a5_up = jnp.repeat(jnp.repeat(a5, 2, axis=2), 2, axis=3)
    combined = a4 + a5_up
    B, C, H, W = combined.shape
    padded = jnp.pad(combined, ((0, 0), (0, 0), (1, 1), (1, 1)), mode="reflect")
    patches = jnp.stack(
        [padded[:, :, ky:ky + H, kx:kx + W] for ky in range(3) for kx in range(3)],
        axis=2,
    ).transpose(0, 3, 4, 1, 2).reshape(B * H * W, C * 9)
    w = params["merge_w"].reshape(params["merge_w"].shape[0], -1).T
    y = patches @ w + params["merge_b"][None, :]
    return y.reshape(B, H, W, -1).transpose(0, 3, 1, 2)


# ----------------------------------------------------------------------------
# Deterministic parameter / input construction and test
# ----------------------------------------------------------------------------
def _make_params(key, in_planes, key_planes):
    def adaattn_params(k):
        ks = jax.random.split(k, 6)
        return {
            "f_w": 0.05 * jax.random.normal(ks[0], (key_planes, key_planes), jnp.float32),
            "f_b": 0.01 * jax.random.normal(ks[1], (key_planes,), jnp.float32),
            "g_w": 0.05 * jax.random.normal(ks[2], (key_planes, key_planes), jnp.float32),
            "g_b": 0.01 * jax.random.normal(ks[3], (key_planes,), jnp.float32),
            "h_w": 0.05 * jax.random.normal(ks[4], (in_planes, in_planes), jnp.float32),
            "h_b": 0.01 * jax.random.normal(ks[5], (in_planes,), jnp.float32),
        }

    k4, k5, km1, km2 = jax.random.split(key, 4)
    return {
        "attn4": adaattn_params(k4),
        "attn5": adaattn_params(k5),  # shallow_layer=False -> same key_planes
        "merge_w": 0.05 * jax.random.normal(km1, (in_planes, in_planes, 3, 3), jnp.float32),
        "merge_b": 0.01 * jax.random.normal(km2, (in_planes,), jnp.float32),
    }


if __name__ == "__main__":
    B = 2
    in_planes = 32
    key_planes = 32
    H4, W4 = 16, 16      # 4_1-level spatial -> flash-attention path
    H5, W5 = 8, 8        # 5_1-level spatial -> fused small-kernel path

    root = jax.random.PRNGKey(0)
    kp, *kin = jax.random.split(root, 9)
    params = _make_params(kp, in_planes, key_planes)

    content4_1 = jax.random.normal(kin[0], (B, in_planes, H4, W4), jnp.float32)
    style4_1 = jax.random.normal(kin[1], (B, in_planes, H4, W4), jnp.float32)
    content5_1 = jax.random.normal(kin[2], (B, in_planes, H5, W5), jnp.float32)
    style5_1 = jax.random.normal(kin[3], (B, in_planes, H5, W5), jnp.float32)
    content4_1_key = jax.random.normal(kin[4], (B, key_planes, H4, W4), jnp.float32)
    style4_1_key = jax.random.normal(kin[5], (B, key_planes, H4, W4), jnp.float32)
    content5_1_key = jax.random.normal(kin[6], (B, key_planes, H5, W5), jnp.float32)
    style5_1_key = jax.random.normal(kin[7], (B, key_planes, H5, W5), jnp.float32)

    args = (content4_1, style4_1, content5_1, style5_1,
            content4_1_key, style4_1_key, content5_1_key, style5_1_key)

    out = jax.jit(transformer_forward)(params, *args)
    out = jax.block_until_ready(out)
    assert out.shape == (B, in_planes, H4, W4), out.shape

    ref = jax.block_until_ready(_ref_transformer(params, *args))
    out_np = np.asarray(out, dtype=np.float32)
    ref_np = np.asarray(ref, dtype=np.float32)
    max_err = float(np.max(np.abs(out_np - ref_np)))
    assert np.allclose(out_np, ref_np, rtol=5e-2, atol=5e-2), max_err

    print("KERNEL_OK")
</pallas_src>

<mosaic_0001>
module attributes {stable_mosaic.version = 11 : i64} {
  func.func @_style_proj_kernel(%arg0: i32, %arg1: i32, %arg2: memref<1x32x256xbf16, #tpu.memory_space<vmem>>, %arg3: memref<1x256x32xbf16, #tpu.memory_space<vmem>>, %arg4: memref<32x32xbf16, #tpu.memory_space<vmem>>, %arg5: memref<32x1xf32, #tpu.memory_space<vmem>>, %arg6: memref<32x32xbf16, #tpu.memory_space<vmem>>, %arg7: memref<1x32xf32, #tpu.memory_space<vmem>>, %arg8: memref<1x32x256xbf16, #tpu.memory_space<vmem>>, %arg9: memref<1x256x64xbf16, #tpu.memory_space<vmem>>) attributes {dimension_semantics = [#tpu.dimension_semantics<parallel>, #tpu.dimension_semantics<parallel>], iteration_bounds = array<i64: 2, 1>, scalar_prefetch = 0 : i64, scratch_operands = 0 : i64, tpu.core_type = #tpu.core_type<tc>, window_params = [{transform_indices = @transform_0, window_bounds = array<i64: 1, 32, 256>}, {transform_indices = @transform_1, window_bounds = array<i64: 1, 256, 32>}, {pipeline_mode = #tpu.pipeline_mode<synchronous>, transform_indices = @transform_2, window_bounds = array<i64: 32, 32>}, {pipeline_mode = #tpu.pipeline_mode<synchronous>, transform_indices = @transform_3, window_bounds = array<i64: 32, 1>}, {pipeline_mode = #tpu.pipeline_mode<synchronous>, transform_indices = @transform_4, window_bounds = array<i64: 32, 32>}, {pipeline_mode = #tpu.pipeline_mode<synchronous>, transform_indices = @transform_5, window_bounds = array<i64: 1, 32>}, {transform_indices = @transform_6, window_bounds = array<i64: 1, 32, 256>}, {transform_indices = @transform_7, window_bounds = array<i64: 1, 256, 64>}]} {
    %c0 = arith.constant 0 : index
    %c0_0 = arith.constant 0 : index
    %0 = vector.load %arg4[%c0, %c0_0] : memref<32x32xbf16, #tpu.memory_space<vmem>>, vector<32x32xbf16>
    %c0_1 = arith.constant 0 : index
    %c0_2 = arith.constant 0 : index
    %c0_3 = arith.constant 0 : index
    %1 = vector.load %arg2[%c0_1, %c0_2, %c0_3] : memref<1x32x256xbf16, #tpu.memory_space<vmem>>, vector<1x32x256xbf16>
    %2 = vector.shape_cast %1 : vector<1x32x256xbf16> to vector<32x256xbf16>
    %cst = arith.constant dense<0.000000e+00> : vector<32x256xf32>
    %3 = tpu.matmul %0, %2, %cst {dimension_numbers = #tpu.dot_dimension_numbers<[1], [0], [0], [1], [0, 0, 1, 1], [], []>} : vector<32x32xbf16>, vector<32x256xbf16>, vector<32x256xf32> -> vector<32x256xf32>
    %c0_4 = arith.constant 0 : index
    %c0_5 = arith.constant 0 : index
    %4 = vector.load %arg5[%c0_4, %c0_5] : memref<32x1xf32, #tpu.memory_space<vmem>>, vector<32x1xf32>
    %5 = vector.broadcast %4 : vector<32x1xf32> to vector<32x256xf32>
    %6 = arith.addf %3, %5 : vector<32x256xf32>
    %7 = arith.truncf %6 : vector<32x256xf32> to vector<32x256xbf16>
    %c0_6 = arith.constant 0 : index
    %c0_7 = arith.constant 0 : index
    %c0_8 = arith.constant 0 : index
    %8 = vector.load %arg8[%c0_6, %c0_7, %c0_8] : memref<1x32x256xbf16, #tpu.memory_space<vmem>>, vector<1x32x256xbf16>
    %9 = vector.shape_cast %8 : vector<1x32x256xbf16> to vector<32x256xbf16>
    %10 = vector.shape_cast %7 : vector<32x256xbf16> to vector<1x32x256xbf16>
    tpu.vector_store %arg8[%c0_6, %c0_7, %c0_8], %10 {strides = array<i32>} : memref<1x32x256xbf16, #tpu.memory_space<vmem>>, vector<1x32x256xbf16>,
    %c0_9 = arith.constant 0 : index
    %c0_10 = arith.constant 0 : index
    %c0_11 = arith.constant 0 : index
    %11 = vector.load %arg3[%c0_9, %c0_10, %c0_11] : memref<1x256x32xbf16, #tpu.memory_space<vmem>>, vector<1x256x32xbf16>
    %12 = vector.shape_cast %11 : vector<1x256x32xbf16> to vector<256x32xbf16>
    %c0_12 = arith.constant 0 : index
    %c0_13 = arith.constant 0 : index
    %13 = vector.load %arg6[%c0_12, %c0_13] : memref<32x32xbf16, #tpu.memory_space<vmem>>, vector<32x32xbf16>
    %cst_14 = arith.constant dense<0.000000e+00> : vector<256x32xf32>
    %14 = tpu.matmul %12, %13, %cst_14 {dimension_numbers = #tpu.dot_dimension_numbers<[1], [0], [0], [1], [0, 0, 1, 1], [], []>} : vector<256x32xbf16>, vector<32x32xbf16>, vector<256x32xf32> -> vector<256x32xf32>
    %c0_15 = arith.constant 0 : index
    %c0_16 = arith.constant 0 : index
    %15 = vector.load %arg7[%c0_15, %c0_16] : memref<1x32xf32, #tpu.memory_space<vmem>>, vector<1x32xf32>
    %16 = vector.broadcast %15 : vector<1x32xf32> to vector<256x32xf32>
    %17 = arith.addf %14, %16 : vector<256x32xf32>
    %18 = arith.mulf %17, %17 : vector<256x32xf32>
    %19 = tpu.concatenate %17, %18 in 1 : vector<256x32xf32>, vector<256x32xf32> -> vector<256x64xf32>
    %20 = arith.truncf %19 : vector<256x64xf32> to vector<256x64xbf16>
    %c0_17 = arith.constant 0 : index
    %c0_18 = arith.constant 0 : index
    %c0_19 = arith.constant 0 : index
    %21 = vector.load %arg9[%c0_17, %c0_18, %c0_19] : memref<1x256x64xbf16, #tpu.memory_space<vmem>>, vector<1x256x64xbf16>
    %22 = vector.shape_cast %21 : vector<1x256x64xbf16> to vector<256x64xbf16>
    %23 = vector.shape_cast %20 : vector<256x64xbf16> to vector<1x256x64xbf16>
    tpu.vector_store %arg9[%c0_17, %c0_18, %c0_19], %23 {strides = array<i32>} : memref<1x256x64xbf16, #tpu.memory_space<vmem>>, vector<1x256x64xbf16>,
    return
  }
  func.func @transform_0(%arg0: i32, %arg1: i32) -> (i32, i32, i32) {
    %c0_i32 = arith.constant 0 : i32
    %c0_i32_0 = arith.constant 0 : i32
    return %arg0, %c0_i32, %arg1 : i32, i32, i32
  }
  func.func @transform_1(%arg0: i32, %arg1: i32) -> (i32, i32, i32) {
    %c0_i32 = arith.constant 0 : i32
    %c0_i32_0 = arith.constant 0 : i32
    return %arg0, %arg1, %c0_i32 : i32, i32, i32
  }
  func.func @transform_2(%arg0: i32, %arg1: i32) -> (i32, i32) {
    %c0_i32 = arith.constant 0 : i32
    %c0_i32_0 = arith.constant 0 : i32
    %c0_i32_1 = arith.constant 0 : i32
    return %c0_i32, %c0_i32_0 : i32, i32
  }
  func.func @transform_3(%arg0: i32, %arg1: i32) -> (i32, i32) {
    %c0_i32 = arith.constant 0 : i32
    %c0_i32_0 = arith.constant 0 : i32
    %c0_i32_1 = arith.constant 0 : i32
    return %c0_i32, %c0_i32_0 : i32, i32
  }
  func.func @transform_4(%arg0: i32, %arg1: i32) -> (i32, i32) {
    %c0_i32 = arith.constant 0 : i32
    %c0_i32_0 = arith.constant 0 : i32
    %c0_i32_1 = arith.constant 0 : i32
    return %c0_i32, %c0_i32_0 : i32, i32
  }
  func.func @transform_5(%arg0: i32, %arg1: i32) -> (i32, i32) {
    %c0_i32 = arith.constant 0 : i32
    %c0_i32_0 = arith.constant 0 : i32
    %c0_i32_1 = arith.constant 0 : i32
    return %c0_i32, %c0_i32_0 : i32, i32
  }
  func.func @transform_6(%arg0: i32, %arg1: i32) -> (i32, i32, i32) {
    %c0_i32 = arith.constant 0 : i32
    %c0_i32_0 = arith.constant 0 : i32
    return %arg0, %c0_i32, %arg1 : i32, i32, i32
  }
  func.func @transform_7(%arg0: i32, %arg1: i32) -> (i32, i32, i32) {
    %c0_i32 = arith.constant 0 : i32
    %c0_i32_0 = arith.constant 0 : i32
    return %arg0, %arg1, %c0_i32 : i32, i32, i32
  }
}

module attributes {stable_mosaic.version = 11 : i64} {
  func.func @_adaattn_flash_kernel(%arg0: i32, %arg1: i32, %arg2: i32, %arg3: memref<1x256x32xbf16, #tpu.memory_space<vmem>>, %arg4: memref<1x32x256xbf16, #tpu.memory_space<vmem>>, %arg5: memref<1x256x64xbf16, #tpu.memory_space<vmem>>, %arg6: memref<1x256x32xbf16, #tpu.memory_space<vmem>>, %arg7: memref<1x1x32xf32, #tpu.memory_space<vmem>>, %arg8: memref<1x1x32xf32, #tpu.memory_space<vmem>>, %arg9: memref<32x32xbf16, #tpu.memory_space<vmem>>, %arg10: memref<1x32xf32, #tpu.memory_space<vmem>>, %arg11: memref<1x256x32xbf16, #tpu.memory_space<vmem>>, %arg12: memref<256x32xbf16, #tpu.memory_space<vmem>>, %arg13: memref<256x1xf32, #tpu.memory_space<vmem>>, %arg14: memref<256x1xf32, #tpu.memory_space<vmem>>, %arg15: memref<256x64xf32, #tpu.memory_space<vmem>>) attributes {dimension_semantics = [#tpu.dimension_semantics<parallel>, #tpu.dimension_semantics<parallel>, #tpu.dimension_semantics<arbitrary>], iteration_bounds = array<i64: 2, 1, 1>, scalar_prefetch = 0 : i64, scratch_operands = 4 : i64, tpu.core_type = #tpu.core_type<tc>, window_params = [{transform_indices = @transform_0, window_bounds = array<i64: 1, 256, 32>}, {transform_indices = @transform_1, window_bounds = array<i64: 1, 32, 256>}, {transform_indices = @transform_2, window_bounds = array<i64: 1, 256, 64>}, {transform_indices = @transform_3, window_bounds = array<i64: 1, 256, 32>}, {transform_indices = @transform_4, window_bounds = array<i64: 1, 1, 32>}, {transform_indices = @transform_5, window_bounds = array<i64: 1, 1, 32>}, {pipeline_mode = #tpu.pipeline_mode<synchronous>, transform_indices = @transform_6, window_bounds = array<i64: 32, 32>}, {pipeline_mode = #tpu.pipeline_mode<synchronous>, transform_indices = @transform_7, window_bounds = array<i64: 1, 32>}, {transform_indices = @transform_8, window_bounds = array<i64: 1, 256, 32>}]} {
    %c0_i32 = arith.constant 0 : i32
    %0 = arith.cmpi eq, %arg2, %c0_i32 : i32
    %1 = arith.extui %0 : i1 to i32
    %c0_i32_0 = arith.constant 0 : i32
    %2 = arith.cmpi ne, %1, %c0_i32_0 : i32
    scf.if %2 {
      %c0_25 = arith.constant 0 : index
      %c0_26 = arith.constant 0 : index
      %c0_27 = arith.constant 0 : index
      %36 = vector.load %arg3[%c0_25, %c0_26, %c0_27] : memref<1x256x32xbf16, #tpu.memory_space<vmem>>, vector<1x256x32xbf16>
      %37 = vector.shape_cast %36 : vector<1x256x32xbf16> to vector<256x32xbf16>
      %c0_28 = arith.constant 0 : index
      %c0_29 = arith.constant 0 : index
      %38 = vector.load %arg9[%c0_28, %c0_29] : memref<32x32xbf16, #tpu.memory_space<vmem>>, vector<32x32xbf16>
      %cst_30 = arith.constant dense<0.000000e+00> : vector<256x32xf32>
      %39 = tpu.matmul %37, %38, %cst_30 {dimension_numbers = #tpu.dot_dimension_numbers<[1], [0], [0], [1], [0, 0, 1, 1], [], []>} : vector<256x32xbf16>, vector<32x32xbf16>, vector<256x32xf32> -> vector<256x32xf32>
      %c0_31 = arith.constant 0 : index
      %c0_32 = arith.constant 0 : index
      %40 = vector.load %arg10[%c0_31, %c0_32] : memref<1x32xf32, #tpu.memory_space<vmem>>, vector<1x32xf32>
      %41 = vector.broadcast %40 : vector<1x32xf32> to vector<256x32xf32>
      %42 = arith.addf %39, %41 : vector<256x32xf32>
      %43 = arith.truncf %42 : vector<256x32xf32> to vector<256x32xbf16>
      %c0_33 = arith.constant 0 : index
      %c0_34 = arith.constant 0 : index
      %44 = vector.load %arg12[%c0_33, %c0_34] : memref<256x32xbf16, #tpu.memory_space<vmem>>, vector<256x32xbf16>
      tpu.vector_store %arg12[%c0_33, %c0_34], %43 {strides = array<i32>} : memref<256x32xbf16, #tpu.memory_space<vmem>>, vector<256x32xbf16>,
      %cst_35 = arith.constant 0xFF800000 : f32
      %45 = vector.broadcast %cst_35 : f32 to vector<256x1xf32>
      %c0_36 = arith.constant 0 : index
      %c0_37 = arith.constant 0 : index
      %46 = vector.load %arg13[%c0_36, %c0_37] : memref<256x1xf32, #tpu.memory_space<vmem>>, vector<256x1xf32>
      tpu.vector_store %arg13[%c0_36, %c0_37], %45 {strides = array<i32>} : memref<256x1xf32, #tpu.memory_space<vmem>>, vector<256x1xf32>,
      %cst_38 = arith.constant 0.000000e+00 : f32
      %47 = vector.broadcast %cst_38 : f32 to vector<256x1xf32>
      %c0_39 = arith.constant 0 : index
      %c0_40 = arith.constant 0 : index
      %48 = vector.load %arg14[%c0_39, %c0_40] : memref<256x1xf32, #tpu.memory_space<vmem>>, vector<256x1xf32>
      tpu.vector_store %arg14[%c0_39, %c0_40], %47 {strides = array<i32>} : memref<256x1xf32, #tpu.memory_space<vmem>>, vector<256x1xf32>,
      %cst_41 = arith.constant 0.000000e+00 : f32
      %49 = vector.broadcast %cst_41 : f32 to vector<256x64xf32>
      %c0_42 = arith.constant 0 : index
      %c0_43 = arith.constant 0 : index
      %50 = vector.load %arg15[%c0_42, %c0_43] : memref<256x64xf32, #tpu.memory_space<vmem>>, vector<256x64xf32>
      tpu.vector_store %arg15[%c0_42, %c0_43], %49 {strides = array<i32>} : memref<256x64xf32, #tpu.memory_space<vmem>>, vector<256x64xf32>,
    } else {
    }
    %c0 = arith.constant 0 : index
    %c0_1 = arith.constant 0 : index
    %3 = vector.load %arg12[%c0, %c0_1] : memref<256x32xbf16, #tpu.memory_space<vmem>>, vector<256x32xbf16>
    %c0_2 = arith.constant 0 : index
    %c0_3 = arith.constant 0 : index
    %c0_4 = arith.constant 0 : index
    %4 = vector.load %arg4[%c0_2, %c0_3, %c0_4] : memref<1x32x256xbf16, #tpu.memory_space<vmem>>, vector<1x32x256xbf16>
    %5 = vector.shape_cast %4 : vector<1x32x256xbf16> to vector<32x256xbf16>
    %cst = arith.constant dense<0.000000e+00> : vector<256x256xf32>
    %6 = tpu.matmul %3, %5, %cst {dimension_numbers = #tpu.dot_dimension_numbers<[1], [0], [0], [1], [0, 0, 1, 1], [], []>} : vector<256x32xbf16>, vector<32x256xbf16>, vector<256x256xf32> -> vector<256x256xf32>
    %c0_5 = arith.constant 0 : index
    %c0_6 = arith.constant 0 : index
    %7 = vector.load %arg13[%c0_5, %c0_6] : memref<256x1xf32, #tpu.memory_space<vmem>>, vector<256x1xf32>
    %cst_7 = arith.constant dense<0xFF800000> : vector<256xf32>
    %8 = vector.multi_reduction <maximumf>, %6, %cst_7 [1] : vector<256x256xf32> to vector<256xf32>
    %9 = vector.shape_cast %8 : vector<256xf32> to vector<256x1xf32>
    %10 = arith.maximumf %7, %9 : vector<256x1xf32>
    %11 = arith.subf %7, %10 : vector<256x1xf32>
    %12 = math.exp %11 : vector<256x1xf32>
    %13 = vector.broadcast %10 : vector<256x1xf32> to vector<256x256xf32>
    %14 = arith.subf %6, %13 : vector<256x256xf32>
    %15 = arith.truncf %14 : vector<256x256xf32> to vector<256x256xbf16>
    %16 = math.exp %15 : vector<256x256xbf16>
    %c0_8 = arith.constant 0 : index
    %c0_9 = arith.constant 0 : index
    %17 = vector.load %arg14[%c0_8, %c0_9] : memref<256x1xf32, #tpu.memory_space<vmem>>, vector<256x1xf32>
    %18 = arith.mulf %12, %17 : vector<256x1xf32>
    %19 = arith.extf %16 : vector<256x256xbf16> to vector<256x256xf32>
    %cst_10 = arith.constant dense<0.000000e+00> : vector<256xf32>
    %20 = vector.multi_reduction <add>, %19, %cst_10 [1] : vector<256x256xf32> to vector<256xf32>
    %21 = vector.shape_cast %20 : vector<256xf32> to vector<256x1xf32>
    %22 = arith.addf %18, %21 : vector<256x1xf32>
    %c0_11 = arith.constant 0 : index
    %c0_12 = arith.constant 0 : index
    %23 = vector.load %arg14[%c0_11, %c0_12] : memref<256x1xf32, #tpu.memory_space<vmem>>, vector<256x1xf32>
    tpu.vector_store %arg14[%c0_11, %c0_12], %22 {strides = array<i32>} : memref<256x1xf32, #tpu.memory_space<vmem>>, vector<256x1xf32>,
    %c0_13 = arith.constant 0 : index
    %c0_14 = arith.constant 0 : index
    %24 = vector.load %arg15[%c0_13, %c0_14] : memref<256x64xf32, #tpu.memory_space<vmem>>, vector<256x64xf32>
    %25 = vector.broadcast %12 : vector<256x1xf32> to vector<256x64xf32>
    %26 = arith.mulf %25, %24 : vector<256x64xf32>
    %c0_15 = arith.constant 0 : index
    %c0_16 = arith.constant 0 : index
    %c0_17 = arith.constant 0 : index
    %27 = vector.load %arg5[%c0_15, %c0_16, %c0_17] : memref<1x256x64xbf16, #tpu.memory_space<vmem>>, vector<1x256x64xbf16>
    %28 = vector.shape_cast %27 : vector<1x256x64xbf16> to vector<256x64xbf16>
    %cst_18 = arith.constant dense<0.000000e+00> : vector<256x64xf32>
    %29 = tpu.matmul %16, %28, %cst_18 {dimension_numbers = #tpu.dot_dimension_numbers<[1], [0], [0], [1], [0, 0, 1, 1], [], []>} : vector<256x256xbf16>, vector<256x64xbf16>, vector<256x64xf32> -> vector<256x64xf32>
    %30 = arith.addf %26, %29 : vector<256x64xf32>
    %c0_19 = arith.constant 0 : index
    %c0_20 = arith.constant 0 : index
    %31 = vector.load %arg15[%c0_19, %c0_20] : memref<256x64xf32, #tpu.memory_space<vmem>>, vector<256x64xf32>
    tpu.vector_store %arg15[%c0_19, %c0_20], %30 {strides = array<i32>} : memref<256x64xf32, #tpu.memory_space<vmem>>, vector<256x64xf32>,
    %c0_21 = arith.constant 0 : index
    %c0_22 = arith.constant 0 : index
    %32 = vector.load %arg13[%c0_21, %c0_22] : memref<256x1xf32, #tpu.memory_space<vmem>>, vector<256x1xf32>
    tpu.vector_store %arg13[%c0_21, %c0_22], %10 {strides = array<i32>} : memref<256x1xf32, #tpu.memory_space<vmem>>, vector<256x1xf32>,
    %c0_i32_23 = arith.constant 0 : i32
    %33 = arith.cmpi eq, %arg2, %c0_i32_23 : i32
    %34 = arith.extui %33 : i1 to i32
    %c0_i32_24 = arith.constant 0 : i32
    %35 = arith.cmpi ne, %34, %c0_i32_24 : i32
    scf.if %35 {
      %c0_25 = arith.constant 0 : index
      %c0_26 = arith.constant 0 : index
      %36 = vector.load %arg15[%c0_25, %c0_26] : memref<256x64xf32, #tpu.memory_space<vmem>>, vector<256x64xf32>
      %c0_27 = arith.constant 0 : index
      %c0_28 = arith.constant 0 : index
      %37 = vector.load %arg14[%c0_27, %c0_28] : memref<256x1xf32, #tpu.memory_space<vmem>>, vector<256x1xf32>
      %38 = vector.broadcast %37 : vector<256x1xf32> to vector<256x64xf32>
      %39 = arith.divf %36, %38 : vector<256x64xf32>
      %40 = vector.extract_strided_slice %39 {offsets = [0, 0], sizes = [256, 32], strides = [1, 1]} : vector<256x64xf32> to vector<256x32xf32>
      %41 = vector.extract_strided_slice %39 {offsets = [0, 32], sizes = [256, 32], strides = [1, 1]} : vector<256x64xf32> to vector<256x32xf32>
      %42 = arith.mulf %40, %40 : vector<256x32xf32>
      %43 = arith.subf %41, %42 : vector<256x32xf32>
      %cst_29 = arith.constant 0.000000e+00 : f32
      %44 = vector.broadcast %cst_29 : f32 to vector<256x32xf32>
      %45 = arith.maximumf %43, %44 : vector<256x32xf32>
      %46 = math.sqrt %45 : vector<256x32xf32>
      %c0_30 = arith.constant 0 : index
      %c0_31 = arith.constant 0 : index
      %c0_32 = arith.constant 0 : index
      %47 = vector.load %arg6[%c0_30, %c0_31, %c0_32] : memref<1x256x32xbf16, #tpu.memory_space<vmem>>, vector<1x256x32xbf16>
      %48 = vector.shape_cast %47 : vector<1x256x32xbf16> to vector<256x32xbf16>
      %49 = arith.extf %48 : vector<256x32xbf16> to vector<256x32xf32>
      %c0_33 = arith.constant 0 : index
      %c0_34 = arith.constant 0 : index
      %c0_35 = arith.constant 0 : index
      %50 = vector.load %arg7[%c0_33, %c0_34, %c0_35] : memref<1x1x32xf32, #tpu.memory_space<vmem>>, vector<1x1x32xf32>
      %51 = vector.shape_cast %50 : vector<1x1x32xf32> to vector<1x32xf32>
      %52 = vector.broadcast %51 : vector<1x32xf32> to vector<256x32xf32>
      %53 = arith.subf %49, %52 : vector<256x32xf32>
      %c0_36 = arith.constant 0 : index
      %c0_37 = arith.constant 0 : index
      %c0_38 = arith.constant 0 : index
      %54 = vector.load %arg8[%c0_36, %c0_37, %c0_38] : memref<1x1x32xf32, #tpu.memory_space<vmem>>, vector<1x1x32xf32>
      %55 = vector.shape_cast %54 : vector<1x1x32xf32> to vector<1x32xf32>
      %56 = vector.broadcast %55 : vector<1x32xf32> to vector<256x32xf32>
      %57 = arith.mulf %53, %56 : vector<256x32xf32>
      %58 = arith.mulf %46, %57 : vector<256x32xf32>
      %59 = arith.addf %58, %40 : vector<256x32xf32>
      %60 = arith.truncf %59 : vector<256x32xf32> to vector<256x32xbf16>
      %c0_39 = arith.constant 0 : index
      %c0_40 = arith.constant 0 : index
      %c0_41 = arith.constant 0 : index
      %61 = vector.load %arg11[%c0_39, %c0_40, %c0_41] : memref<1x256x32xbf16, #tpu.memory_space<vmem>>, vector<1x256x32xbf16>
      %62 = vector.shape_cast %61 : vector<1x256x32xbf16> to vector<256x32xbf16>
      %63 = vector.shape_cast %60 : vector<256x32xbf16> to vector<1x256x32xbf16>
      tpu.vector_store %arg11[%c0_39, %c0_40, %c0_41], %63 {strides = array<i32>} : memref<1x256x32xbf16, #tpu.memory_space<vmem>>, vector<1x256x32xbf16>,
    } else {
    }
    return
  }
  func.func @transform_0(%arg0: i32, %arg1: i32, %arg2: i32) -> (i32, i32, i32) {
    %c0_i32 = arith.constant 0 : i32
    %c0_i32_0 = arith.constant 0 : i32
    return %arg0, %arg1, %c0_i32 : i32, i32, i32
  }
  func.func @transform_1(%arg0: i32, %arg1: i32, %arg2: i32) -> (i32, i32, i32) {
    %c0_i32 = arith.constant 0 : i32
    %c0_i32_0 = arith.constant 0 : i32
    return %arg0, %c0_i32, %arg2 : i32, i32, i32
  }
  func.func @transform_2(%arg0: i32, %arg1: i32, %arg2: i32) -> (i32, i32, i32) {
    %c0_i32 = arith.constant 0 : i32
    %c0_i32_0 = arith.constant 0 : i32
    return %arg0, %arg2, %c0_i32 : i32, i32, i32
  }
  func.func @transform_3(%arg0: i32, %arg1: i32, %arg2: i32) -> (i32, i32, i32) {
    %c0_i32 = arith.constant 0 : i32
    %c0_i32_0 = arith.constant 0 : i32
    return %arg0, %arg1, %c0_i32 : i32, i32, i32
  }
  func.func @transform_4(%arg0: i32, %arg1: i32, %arg2: i32) -> (i32, i32, i32) {
    %c0_i32 = arith.constant 0 : i32
    %c0_i32_0 = arith.constant 0 : i32
    %c0_i32_1 = arith.constant 0 : i32
    return %arg0, %c0_i32, %c0_i32_0 : i32, i32, i32
  }
  func.func @transform_5(%arg0: i32, %arg1: i32, %arg2: i32) -> (i32, i32, i32) {
    %c0_i32 = arith.constant 0 : i32
    %c0_i32_0 = arith.constant 0 : i32
    %c0_i32_1 = arith.constant 0 : i32
    return %arg0, %c0_i32, %c0_i32_0 : i32, i32, i32
  }
  func.func @transform_6(%arg0: i32, %arg1: i32, %arg2: i32) -> (i32, i32) {
    %c0_i32 = arith.constant 0 : i32
    %c0_i32_0 = arith.constant 0 : i32
    %c0_i32_1 = arith.constant 0 : i32
    return %c0_i32, %c0_i32_0 : i32, i32
  }
  func.func @transform_7(%arg0: i32, %arg1: i32, %arg2: i32) -> (i32, i32) {
    %c0_i32 = arith.constant 0 : i32
    %c0_i32_0 = arith.constant 0 : i32
    %c0_i32_1 = arith.constant 0 : i32
    return %c0_i32, %c0_i32_0 : i32, i32
  }
  func.func @transform_8(%arg0: i32, %arg1: i32, %arg2: i32) -> (i32, i32, i32) {
    %c0_i32 = arith.constant 0 : i32
    %c0_i32_0 = arith.constant 0 : i32
    return %arg0, %arg1, %c0_i32 : i32, i32, i32
  }
}

module attributes {stable_mosaic.version = 11 : i64} {
  func.func @_adaattn_fused_kernel(%arg0: i32, %arg1: memref<1x64x32xbf16, #tpu.memory_space<vmem>>, %arg2: memref<1x32x64xbf16, #tpu.memory_space<vmem>>, %arg3: memref<1x64x32xbf16, #tpu.memory_space<vmem>>, %arg4: memref<1x64x32xbf16, #tpu.memory_space<vmem>>, %arg5: memref<1x1x32xf32, #tpu.memory_space<vmem>>, %arg6: memref<1x1x32xf32, #tpu.memory_space<vmem>>, %arg7: memref<32x32xbf16, #tpu.memory_space<vmem>>, %arg8: memref<1x32xf32, #tpu.memory_space<vmem>>, %arg9: memref<32x32xbf16, #tpu.memory_space<vmem>>, %arg10: memref<32x1xf32, #tpu.memory_space<vmem>>, %arg11: memref<32x32xbf16, #tpu.memory_space<vmem>>, %arg12: memref<1x32xf32, #tpu.memory_space<vmem>>, %arg13: memref<1x64x32xbf16, #tpu.memory_space<vmem>>) attributes {dimension_semantics = [#tpu.dimension_semantics<parallel>], iteration_bounds = array<i64: 2>, scalar_prefetch = 0 : i64, scratch_operands = 0 : i64, tpu.core_type = #tpu.core_type<tc>, window_params = [{transform_indices = @transform_0, window_bounds = array<i64: 1, 64, 32>}, {transform_indices = @transform_1, window_bounds = array<i64: 1, 32, 64>}, {transform_indices = @transform_2, window_bounds = array<i64: 1, 64, 32>}, {transform_indices = @transform_3, window_bounds = array<i64: 1, 64, 32>}, {transform_indices = @transform_4, window_bounds = array<i64: 1, 1, 32>}, {transform_indices = @transform_5, window_bounds = array<i64: 1, 1, 32>}, {pipeline_mode = #tpu.pipeline_mode<synchronous>, transform_indices = @transform_6, window_bounds = array<i64: 32, 32>}, {pipeline_mode = #tpu.pipeline_mode<synchronous>, transform_indices = @transform_7, window_bounds = array<i64: 1, 32>}, {pipeline_mode = #tpu.pipeline_mode<synchronous>, transform_indices = @transform_8, window_bounds = array<i64: 32, 32>}, {pipeline_mode = #tpu.pipeline_mode<synchronous>, transform_indices = @transform_9, window_bounds = array<i64: 32, 1>}, {pipeline_mode = #tpu.pipeline_mode<synchronous>, transform_indices = @transform_10, window_bounds = array<i64: 32, 32>}, {pipeline_mode = #tpu.pipeline_mode<synchronous>, transform_indices = @transform_11, window_bounds = array<i64: 1, 32>}, {transform_indices = @transform_12, window_bounds = array<i64: 1, 64, 32>}]} {
    %c0 = arith.constant 0 : index
    %c0_0 = arith.constant 0 : index
    %c0_1 = arith.constant 0 : index
    %0 = vector.load %arg1[%c0, %c0_0, %c0_1] : memref<1x64x32xbf16, #tpu.memory_space<vmem>>, vector<1x64x32xbf16>
    %1 = vector.shape_cast %0 : vector<1x64x32xbf16> to vector<64x32xbf16>
    %c0_2 = arith.constant 0 : index
    %c0_3 = arith.constant 0 : index
    %2 = vector.load %arg7[%c0_2, %c0_3] : memref<32x32xbf16, #tpu.memory_space<vmem>>, vector<32x32xbf16>
    %cst = arith.constant dense<0.000000e+00> : vector<64x32xf32>
    %3 = tpu.matmul %1, %2, %cst {dimension_numbers = #tpu.dot_dimension_numbers<[1], [0], [0], [1], [0, 0, 1, 1], [], []>} : vector<64x32xbf16>, vector<32x32xbf16>, vector<64x32xf32> -> vector<64x32xf32>
    %c0_4 = arith.constant 0 : index
    %c0_5 = arith.constant 0 : index
    %4 = vector.load %arg8[%c0_4, %c0_5] : memref<1x32xf32, #tpu.memory_space<vmem>>, vector<1x32xf32>
    %5 = vector.broadcast %4 : vector<1x32xf32> to vector<64x32xf32>
    %6 = arith.addf %3, %5 : vector<64x32xf32>
    %7 = arith.truncf %6 : vector<64x32xf32> to vector<64x32xbf16>
    %c0_6 = arith.constant 0 : index
    %c0_7 = arith.constant 0 : index
    %8 = vector.load %arg9[%c0_6, %c0_7] : memref<32x32xbf16, #tpu.memory_space<vmem>>, vector<32x32xbf16>
    %c0_8 = arith.constant 0 : index
    %c0_9 = arith.constant 0 : index
    %c0_10 = arith.constant 0 : index
    %9 = vector.load %arg2[%c0_8, %c0_9, %c0_10] : memref<1x32x64xbf16, #tpu.memory_space<vmem>>, vector<1x32x64xbf16>
    %10 = vector.shape_cast %9 : vector<1x32x64xbf16> to vector<32x64xbf16>
    %cst_11 = arith.constant dense<0.000000e+00> : vector<32x64xf32>
    %11 = tpu.matmul %8, %10, %cst_11 {dimension_numbers = #tpu.dot_dimension_numbers<[1], [0], [0], [1], [0, 0, 1, 1], [], []>} : vector<32x32xbf16>, vector<32x64xbf16>, vector<32x64xf32> -> vector<32x64xf32>
    %c0_12 = arith.constant 0 : index
    %c0_13 = arith.constant 0 : index
    %12 = vector.load %arg10[%c0_12, %c0_13] : memref<32x1xf32, #tpu.memory_space<vmem>>, vector<32x1xf32>
    %13 = vector.broadcast %12 : vector<32x1xf32> to vector<32x64xf32>
    %14 = arith.addf %11, %13 : vector<32x64xf32>
    %15 = arith.truncf %14 : vector<32x64xf32> to vector<32x64xbf16>
    %c0_14 = arith.constant 0 : index
    %c0_15 = arith.constant 0 : index
    %c0_16 = arith.constant 0 : index
    %16 = vector.load %arg3[%c0_14, %c0_15, %c0_16] : memref<1x64x32xbf16, #tpu.memory_space<vmem>>, vector<1x64x32xbf16>
    %17 = vector.shape_cast %16 : vector<1x64x32xbf16> to vector<64x32xbf16>
    %c0_17 = arith.constant 0 : index
    %c0_18 = arith.constant 0 : index
    %18 = vector.load %arg11[%c0_17, %c0_18] : memref<32x32xbf16, #tpu.memory_space<vmem>>, vector<32x32xbf16>
    %cst_19 = arith.constant dense<0.000000e+00> : vector<64x32xf32>
    %19 = tpu.matmul %17, %18, %cst_19 {dimension_numbers = #tpu.dot_dimension_numbers<[1], [0], [0], [1], [0, 0, 1, 1], [], []>} : vector<64x32xbf16>, vector<32x32xbf16>, vector<64x32xf32> -> vector<64x32xf32>
    %c0_20 = arith.constant 0 : index
    %c0_21 = arith.constant 0 : index
    %20 = vector.load %arg12[%c0_20, %c0_21] : memref<1x32xf32, #tpu.memory_space<vmem>>, vector<1x32xf32>
    %21 = vector.broadcast %20 : vector<1x32xf32> to vector<64x32xf32>
    %22 = arith.addf %19, %21 : vector<64x32xf32>
    %23 = arith.mulf %22, %22 : vector<64x32xf32>
    %24 = tpu.concatenate %22, %23 in 1 : vector<64x32xf32>, vector<64x32xf32> -> vector<64x64xf32>
    %25 = arith.truncf %24 : vector<64x64xf32> to vector<64x64xbf16>
    %cst_22 = arith.constant dense<0.000000e+00> : vector<64x64xf32>
    %26 = tpu.matmul %7, %15, %cst_22 {dimension_numbers = #tpu.dot_dimension_numbers<[1], [0], [0], [1], [0, 0, 1, 1], [], []>} : vector<64x32xbf16>, vector<32x64xbf16>, vector<64x64xf32> -> vector<64x64xf32>
    %cst_23 = arith.constant dense<0xFF800000> : vector<64xf32>
    %27 = vector.multi_reduction <maximumf>, %26, %cst_23 [1] : vector<64x64xf32> to vector<64xf32>
    %28 = vector.shape_cast %27 : vector<64xf32> to vector<64x1xf32>
    %29 = vector.broadcast %28 : vector<64x1xf32> to vector<64x64xf32>
    %30 = arith.subf %26, %29 : vector<64x64xf32>
    %31 = arith.truncf %30 : vector<64x64xf32> to vector<64x64xbf16>
    %32 = math.exp %31 : vector<64x64xbf16>
    %33 = arith.extf %32 : vector<64x64xbf16> to vector<64x64xf32>
    %cst_24 = arith.constant dense<0.000000e+00> : vector<64xf32>
    %34 = vector.multi_reduction <add>, %33, %cst_24 [1] : vector<64x64xf32> to vector<64xf32>
    %35 = vector.shape_cast %34 : vector<64xf32> to vector<64x1xf32>
    %cst_25 = arith.constant dense<0.000000e+00> : vector<64x64xf32>
    %36 = tpu.matmul %32, %25, %cst_25 {dimension_numbers = #tpu.dot_dimension_numbers<[1], [0], [0], [1], [0, 0, 1, 1], [], []>} : vector<64x64xbf16>, vector<64x64xbf16>, vector<64x64xf32> -> vector<64x64xf32>
    %37 = vector.broadcast %35 : vector<64x1xf32> to vector<64x64xf32>
    %38 = arith.divf %36, %37 : vector<64x64xf32>
    %39 = vector.extract_strided_slice %38 {offsets = [0, 0], sizes = [64, 32], strides = [1, 1]} : vector<64x64xf32> to vector<64x32xf32>
    %40 = vector.extract_strided_slice %38 {offsets = [0, 32], sizes = [64, 32], strides = [1, 1]} : vector<64x64xf32> to vector<64x32xf32>
    %41 = arith.mulf %39, %39 : vector<64x32xf32>
    %42 = arith.subf %40, %41 : vector<64x32xf32>
    %cst_26 = arith.constant 0.000000e+00 : f32
    %43 = vector.broadcast %cst_26 : f32 to vector<64x32xf32>
    %44 = arith.maximumf %42, %43 : vector<64x32xf32>
    %45 = math.sqrt %44 : vector<64x32xf32>
    %c0_27 = arith.constant 0 : index
    %c0_28 = arith.constant 0 : index
    %c0_29 = arith.constant 0 : index
    %46 = vector.load %arg4[%c0_27, %c0_28, %c0_29] : memref<1x64x32xbf16, #tpu.memory_space<vmem>>, vector<1x64x32xbf16>
    %47 = vector.shape_cast %46 : vector<1x64x32xbf16> to vector<64x32xbf16>
    %48 = arith.extf %47 : vector<64x32xbf16> to vector<64x32xf32>
    %c0_30 = arith.constant 0 : index
    %c0_31 = arith.constant 0 : index
    %c0_32 = arith.constant 0 : index
    %49 = vector.load %arg5[%c0_30, %c0_31, %c0_32] : memref<1x1x32xf32, #tpu.memory_space<vmem>>, vector<1x1x32xf32>
    %50 = vector.shape_cast %49 : vector<1x1x32xf32> to vector<1x32xf32>
    %51 = vector.broadcast %50 : vector<1x32xf32> to vector<64x32xf32>
    %52 = arith.subf %48, %51 : vector<64x32xf32>
    %c0_33 = arith.constant 0 : index
    %c0_34 = arith.constant 0 : index
    %c0_35 = arith.constant 0 : index
    %53 = vector.load %arg6[%c0_33, %c0_34, %c0_35] : memref<1x1x32xf32, #tpu.memory_space<vmem>>, vector<1x1x32xf32>
    %54 = vector.shape_cast %53 : vector<1x1x32xf32> to vector<1x32xf32>
    %55 = vector.broadcast %54 : vector<1x32xf32> to vector<64x32xf32>
    %56 = arith.mulf %52, %55 : vector<64x32xf32>
    %57 = arith.mulf %45, %56 : vector<64x32xf32>
    %58 = arith.addf %57, %39 : vector<64x32xf32>
    %59 = arith.truncf %58 : vector<64x32xf32> to vector<64x32xbf16>
    %c0_36 = arith.constant 0 : index
    %c0_37 = arith.constant 0 : index
    %c0_38 = arith.constant 0 : index
    %60 = vector.load %arg13[%c0_36, %c0_37, %c0_38] : memref<1x64x32xbf16, #tpu.memory_space<vmem>>, vector<1x64x32xbf16>
    %61 = vector.shape_cast %60 : vector<1x64x32xbf16> to vector<64x32xbf16>
    %62 = vector.shape_cast %59 : vector<64x32xbf16> to vector<1x64x32xbf16>
    tpu.vector_store %arg13[%c0_36, %c0_37, %c0_38], %62 {strides = array<i32>} : memref<1x64x32xbf16, #tpu.memory_space<vmem>>, vector<1x64x32xbf16>,
    return
  }
  func.func @transform_0(%arg0: i32) -> (i32, i32, i32) {
    %c0_i32 = arith.constant 0 : i32
    %c0_i32_0 = arith.constant 0 : i32
    %c0_i32_1 = arith.constant 0 : i32
    return %arg0, %c0_i32, %c0_i32_0 : i32, i32, i32
  }
  func.func @transform_1(%arg0: i32) -> (i32, i32, i32) {
    %c0_i32 = arith.constant 0 : i32
    %c0_i32_0 = arith.constant 0 : i32
    %c0_i32_1 = arith.constant 0 : i32
    return %arg0, %c0_i32, %c0_i32_0 : i32, i32, i32
  }
  func.func @transform_2(%arg0: i32) -> (i32, i32, i32) {
    %c0_i32 = arith.constant 0 : i32
    %c0_i32_0 = arith.constant 0 : i32
    %c0_i32_1 = arith.constant 0 : i32
    return %arg0, %c0_i32, %c0_i32_0 : i32, i32, i32
  }
  func.func @transform_3(%arg0: i32) -> (i32, i32, i32) {
    %c0_i32 = arith.constant 0 : i32
    %c0_i32_0 = arith.constant 0 : i32
    %c0_i32_1 = arith.constant 0 : i32
    return %arg0, %c0_i32, %c0_i32_0 : i32, i32, i32
  }
  func.func @transform_4(%arg0: i32) -> (i32, i32, i32) {
    %c0_i32 = arith.constant 0 : i32
    %c0_i32_0 = arith.constant 0 : i32
    %c0_i32_1 = arith.constant 0 : i32
    return %arg0, %c0_i32, %c0_i32_0 : i32, i32, i32
  }
  func.func @transform_5(%arg0: i32) -> (i32, i32, i32) {
    %c0_i32 = arith.constant 0 : i32
    %c0_i32_0 = arith.constant 0 : i32
    %c0_i32_1 = arith.constant 0 : i32
    return %arg0, %c0_i32, %c0_i32_0 : i32, i32, i32
  }
  func.func @transform_6(%arg0: i32) -> (i32, i32) {
    %c0_i32 = arith.constant 0 : i32
    %c0_i32_0 = arith.constant 0 : i32
    %c0_i32_1 = arith.constant 0 : i32
    return %c0_i32, %c0_i32_0 : i32, i32
  }
  func.func @transform_7(%arg0: i32) -> (i32, i32) {
    %c0_i32 = arith.constant 0 : i32
    %c0_i32_0 = arith.constant 0 : i32
    %c0_i32_1 = arith.constant 0 : i32
    return %c0_i32, %c0_i32_0 : i32, i32
  }
  func.func @transform_8(%arg0: i32) -> (i32, i32) {
    %c0_i32 = arith.constant 0 : i32
    %c0_i32_0 = arith.constant 0 : i32
    %c0_i32_1 = arith.constant 0 : i32
    return %c0_i32, %c0_i32_0 : i32, i32
  }
  func.func @transform_9(%arg0: i32) -> (i32, i32) {
    %c0_i32 = arith.constant 0 : i32
    %c0_i32_0 = arith.constant 0 : i32
    %c0_i32_1 = arith.constant 0 : i32
    return %c0_i32, %c0_i32_0 : i32, i32
  }
  func.func @transform_10(%arg0: i32) -> (i32, i32) {
    %c0_i32 = arith.constant 0 : i32
    %c0_i32_0 = arith.constant 0 : i32
    %c0_i32_1 = arith.constant 0 : i32
    return %c0_i32, %c0_i32_0 : i32, i32
  }
  func.func @transform_11(%arg0: i32) -> (i32, i32) {
    %c0_i32 = arith.constant 0 : i32
    %c0_i32_0 = arith.constant 0 : i32
    %c0_i32_1 = arith.constant 0 : i32
    return %c0_i32, %c0_i32_0 : i32, i32
  }
  func.func @transform_12(%arg0: i32) -> (i32, i32, i32) {
    %c0_i32 = arith.constant 0 : i32
    %c0_i32_0 = arith.constant 0 : i32
    %c0_i32_1 = arith.constant 0 : i32
    return %arg0, %c0_i32, %c0_i32_0 : i32, i32, i32
  }
}

module attributes {stable_mosaic.version = 11 : i64} {
  func.func @_merge_conv_kernel(%arg0: i32, %arg1: memref<1x18x18x32xbf16, #tpu.memory_space<vmem>>, %arg2: memref<288x32xbf16, #tpu.memory_space<vmem>>, %arg3: memref<1x32xf32, #tpu.memory_space<vmem>>, %arg4: memref<1x256x32xf32, #tpu.memory_space<vmem>>) attributes {dimension_semantics = [#tpu.dimension_semantics<parallel>], iteration_bounds = array<i64: 2>, scalar_prefetch = 0 : i64, scratch_operands = 0 : i64, tpu.core_type = #tpu.core_type<tc>, window_params = [{transform_indices = @transform_0, window_bounds = array<i64: 1, 18, 18, 32>}, {pipeline_mode = #tpu.pipeline_mode<synchronous>, transform_indices = @transform_1, window_bounds = array<i64: 288, 32>}, {pipeline_mode = #tpu.pipeline_mode<synchronous>, transform_indices = @transform_2, window_bounds = array<i64: 1, 32>}, {transform_indices = @transform_3, window_bounds = array<i64: 1, 256, 32>}]} {
    %c0 = arith.constant 0 : index
    %c0_0 = arith.constant 0 : index
    %c0_1 = arith.constant 0 : index
    %c0_2 = arith.constant 0 : index
    %0 = vector.load %arg1[%c0, %c0_0, %c0_1, %c0_2] : memref<1x18x18x32xbf16, #tpu.memory_space<vmem>>, vector<1x18x18x32xbf16>
    %1 = vector.shape_cast %0 : vector<1x18x18x32xbf16> to vector<18x18x32xbf16>
    %2 = vector.extract_strided_slice %1 {offsets = [0, 0, 0], sizes = [16, 16, 32], strides = [1, 1, 1]} : vector<18x18x32xbf16> to vector<16x16x32xbf16>
    %3 = vector.extract_strided_slice %1 {offsets = [0, 1, 0], sizes = [16, 16, 32], strides = [1, 1, 1]} : vector<18x18x32xbf16> to vector<16x16x32xbf16>
    %4 = vector.extract_strided_slice %1 {offsets = [0, 2, 0], sizes = [16, 16, 32], strides = [1, 1, 1]} : vector<18x18x32xbf16> to vector<16x16x32xbf16>
    %5 = vector.extract_strided_slice %1 {offsets = [1, 0, 0], sizes = [16, 16, 32], strides = [1, 1, 1]} : vector<18x18x32xbf16> to vector<16x16x32xbf16>
    %6 = vector.extract_strided_slice %1 {offsets = [1, 1, 0], sizes = [16, 16, 32], strides = [1, 1, 1]} : vector<18x18x32xbf16> to vector<16x16x32xbf16>
    %7 = vector.extract_strided_slice %1 {offsets = [1, 2, 0], sizes = [16, 16, 32], strides = [1, 1, 1]} : vector<18x18x32xbf16> to vector<16x16x32xbf16>
    %8 = vector.extract_strided_slice %1 {offsets = [2, 0, 0], sizes = [16, 16, 32], strides = [1, 1, 1]} : vector<18x18x32xbf16> to vector<16x16x32xbf16>
    %9 = vector.extract_strided_slice %1 {offsets = [2, 1, 0], sizes = [16, 16, 32], strides = [1, 1, 1]} : vector<18x18x32xbf16> to vector<16x16x32xbf16>
    %10 = vector.extract_strided_slice %1 {offsets = [2, 2, 0], sizes = [16, 16, 32], strides = [1, 1, 1]} : vector<18x18x32xbf16> to vector<16x16x32xbf16>
    %11 = tpu.concatenate %2, %3, %4, %5, %6, %7, %8, %9, %10 in 2 : vector<16x16x32xbf16>, vector<16x16x32xbf16>, vector<16x16x32xbf16>, vector<16x16x32xbf16>, vector<16x16x32xbf16>, vector<16x16x32xbf16>, vector<16x16x32xbf16>, vector<16x16x32xbf16>, vector<16x16x32xbf16> -> vector<16x16x288xbf16>
    %12 = vector.shape_cast %11 : vector<16x16x288xbf16> to vector<256x288xbf16>
    %c0_3 = arith.constant 0 : index
    %c0_4 = arith.constant 0 : index
    %13 = vector.load %arg2[%c0_3, %c0_4] : memref<288x32xbf16, #tpu.memory_space<vmem>>, vector<288x32xbf16>
    %cst = arith.constant dense<0.000000e+00> : vector<256x32xf32>
    %14 = tpu.matmul %12, %13, %cst {dimension_numbers = #tpu.dot_dimension_numbers<[1], [0], [0], [1], [0, 0, 1, 1], [], []>} : vector<256x288xbf16>, vector<288x32xbf16>, vector<256x32xf32> -> vector<256x32xf32>
    %c0_5 = arith.constant 0 : index
    %c0_6 = arith.constant 0 : index
    %15 = vector.load %arg3[%c0_5, %c0_6] : memref<1x32xf32, #tpu.memory_space<vmem>>, vector<1x32xf32>
    %16 = vector.broadcast %15 : vector<1x32xf32> to vector<256x32xf32>
    %17 = arith.addf %14, %16 : vector<256x32xf32>
    %c0_7 = arith.constant 0 : index
    %c0_8 = arith.constant 0 : index
    %c0_9 = arith.constant 0 : index
    %18 = vector.load %arg4[%c0_7, %c0_8, %c0_9] : memref<1x256x32xf32, #tpu.memory_space<vmem>>, vector<1x256x32xf32>
    %19 = vector.shape_cast %18 : vector<1x256x32xf32> to vector<256x32xf32>
    %20 = vector.shape_cast %17 : vector<256x32xf32> to vector<1x256x32xf32>
    tpu.vector_store %arg4[%c0_7, %c0_8, %c0_9], %20 {strides = array<i32>} : memref<1x256x32xf32, #tpu.memory_space<vmem>>, vector<1x256x32xf32>,
    return
  }
  func.func @transform_0(%arg0: i32) -> (i32, i32, i32, i32) {
    %c0_i32 = arith.constant 0 : i32
    %c0_i32_0 = arith.constant 0 : i32
    %c0_i32_1 = arith.constant 0 : i32
    %c0_i32_2 = arith.constant 0 : i32
    return %arg0, %c0_i32, %c0_i32_0, %c0_i32_1 : i32, i32, i32, i32
  }
  func.func @transform_1(%arg0: i32) -> (i32, i32) {
    %c0_i32 = arith.constant 0 : i32
    %c0_i32_0 = arith.constant 0 : i32
    %c0_i32_1 = arith.constant 0 : i32
    return %c0_i32, %c0_i32_0 : i32, i32
  }
  func.func @transform_2(%arg0: i32) -> (i32, i32) {
    %c0_i32 = arith.constant 0 : i32
    %c0_i32_0 = arith.constant 0 : i32
    %c0_i32_1 = arith.constant 0 : i32
    return %c0_i32, %c0_i32_0 : i32, i32
  }
  func.func @transform_3(%arg0: i32) -> (i32, i32, i32) {
    %c0_i32 = arith.constant 0 : i32
    %c0_i32_0 = arith.constant 0 : i32
    %c0_i32_1 = arith.constant 0 : i32
    return %arg0, %c0_i32, %c0_i32_0 : i32, i32, i32
  }
}

</mosaic_0001>

<llo_original>
// kernel: transformer_forward.4
$region0: #{transformer_forward.4}
  #allocation0 [shape = 'u32[]', space=smem, size = 0x4, offset = 0x4, fixed_abs, tag = 'smem constant byte address 0x4 - core index']
  #allocation1 [shape = 'u32[144,128]{1,0:T(1,128)}', space=vmem, size = 0x12000, scoped, tag = 'internal scratch']
  %s0 = inlined_call_operand.hbm [shape: bf16[2,32,256], index: 0, kind: input, shape index: {}]
  %s1 = inlined_call_operand.hbm [shape: bf16[2,256,32], index: 1, kind: input, shape index: {}]
  %s2 = inlined_call_operand.hbm [shape: bf16[32,32], index: 2, kind: input, shape index: {}]
  %s3 = inlined_call_operand.hbm [shape: f32[32,1], index: 3, kind: input, shape index: {}]
  %s4 = inlined_call_operand.hbm [shape: bf16[32,32], index: 4, kind: input, shape index: {}]
  %s5 = inlined_call_operand.hbm [shape: f32[1,32], index: 5, kind: input, shape index: {}]
  %s6 = inlined_call_operand.hbm [shape: bf16[2,32,256], index: 6, kind: output, shape index: {0}]
  %s7 = inlined_call_operand.hbm [shape: bf16[2,256,64], index: 7, kind: output, shape index: {1}]
  %8 = xla_tuple %s6, %s7
  %s9 = sld [smem:[#allocation0]]
  $region89: #{transformer_forward.4} parent=0
    _
  %s11 = ssub.s32 1, %s9
  %s12 = scalar_select 0, %s11, %s9
  $region1: #{transformer_forward.4} parent=0
    #allocation2 [shape = 'u8[32768]{0}', space=vmem, size = 0x8000, scoped, tag = 'input window, operand 0']
    #allocation3 [shape = 's32[2]{0}', space=sflag, size = 0x8, scoped, tag = 'scoped memory for transformer_forward.4']
    #allocation4 [shape = 's32[2]{0}', space=sflag, size = 0x8, scoped, tag = 'scoped memory for transformer_forward.4']
    #allocation5 [shape = 'u8[131072]{0}', space=vmem, size = 0x20000, scoped, tag = 'input window, operand 1']
    #allocation6 [shape = 's32[2]{0}', space=sflag, size = 0x8, scoped, tag = 'scoped memory for transformer_forward.4']
    #allocation7 [shape = 'u8[8192]{0}', space=vmem, size = 0x2000, scoped, tag = 'input window, operand 2, single buffered']
    #allocation8 [shape = 'u8[16384]{0}', space=vmem, size = 0x4000, scoped, tag = 'input window, operand 3, single buffered']
    #allocation9 [shape = 's32[1]{0}', space=sflag, size = 0x4, scoped, tag = 'scoped memory for transformer_forward.4']
    #allocation10 [shape = 'u8[8192]{0}', space=vmem, size = 0x2000, scoped, tag = 'input window, operand 4, single buffered']
    #allocation11 [shape = 'u8[512]{0}', space=vmem, size = 0x400, scoped, tag = 'input window, operand 5, single buffered']
    #allocation12 [shape = 's32[1]{0}', space=sflag, size = 0x4, scoped, tag = 'scoped memory for transformer_forward.4']
    #allocation13 [shape = 'u8[32768]{0}', space=vmem, size = 0x8000, scoped, tag = 'output window, operand 0']
    #allocation14 [shape = 'u8[131072]{0}', space=vmem, size = 0x20000, scoped, tag = 'output window, operand 1']
    #allocation15 [shape = 's32[2]{0}', space=sflag, size = 0x8, scoped, tag = 'scoped memory for transformer_forward.4']
    %13 = vsyncpa [#allocation3], 0
    %s14 = scalar_lea.sflag [#allocation3], 1
    %15 = vsyncpa %s14, 0
    %16 = vsyncpa [#allocation6], 0
    %s17 = scalar_lea.sflag [#allocation6], 1
    %18 = vsyncpa %s17, 0
    %19 = vsyncpa [#allocation9], 0
    %20 = vsyncpa [#allocation12], 0
    %21 = vsyncpa [#allocation4], 0
    %s22 = scalar_lea.sflag [#allocation4], 1
    %23 = vsyncpa %s22, 0
    %24 = vsyncpa [#allocation15], 0
    %s25 = scalar_lea.sflag [#allocation15], 1
    %26 = vsyncpa %s25, 0
    loop: start=0, step=1, limit=4
    $region2: #{transformer_forward.4} parent=1 // loop_pre_header
      _
    $region3: #{transformer_forward.4} parent=1 // loop_header
      %s28 = sphi 0, %s32
      %p29 = scmp.ge.s32.totalorder %s28, 4
      %s35 = sphi 0, %s47
      %s36 = sphi 0, %s43
      %s37 = sphi 0, %s35
      %s38 = sphi 0, %s36
      %s39 = sphi 0, %s37
      %s40 = sphi 0, %s38
      %s52 = sphi 0, %s54
      %s55 = sphi 0, %s52
      %s56 = sphi 0, %s55
      %s72 = sphi 0, %s56
      %s80 = sphi 0, %s82
      %s83 = sphi 0, %s80
      %s84 = sphi 0, %s83
      %s100 = sphi 0, %s84
      %s104 = sphi 0, %s104
      %s106 = sphi 0, %s104
      %s107 = sphi 0, %s106
      %s121 = sphi 0, %s107
      %s125 = sphi 0, %s125
      %s127 = sphi 0, %s125
      %s128 = sphi 0, %s127
      %s142 = sphi 0, %s128
      %s146 = sphi 0, %s146
      %s148 = sphi 0, %s146
      %s149 = sphi 0, %s148
      %s163 = sphi 0, %s149
      %s167 = sphi 0, %s167
      %s169 = sphi 0, %s167
      %s170 = sphi 0, %s169
      %s184 = sphi 0, %s170
      %s192 = sphi 0, %s194
      %s195 = sphi 0, %s192
      %s196 = sphi 0, %s195
      %s212 = sphi 0, %s196
      %s220 = sphi 0, %s222
      %s223 = sphi 0, %s220
      %s224 = sphi 0, %s223
      %s240 = sphi 0, %s224
    $region4: #{transformer_forward.4} parent=1 // loop_header_branch
      %31 = sbr.rel (%p29) target = $region8
    $region5: #{transformer_forward.4} parent=1 // loop_body
      %s33 = ssub.s32 %s28, 1
      %s34 = ssub.s32 %s28, 2
      %s41 = sadd.s32 1, %s36
      %p42 = scmp.ge.s32.totalorder %s41, 1
      %s43 = scalar_select %p42, 0, %s41
      %s44 = sadd.s32 1, %s35
      %s45 = scalar_select %p42, %s44, %s35
      %p46 = scmp.ge.s32.totalorder %s45, 2
      %s47 = scalar_select %p46, 0, %s45
      %s48 = ssub.s32 %s35, %s47
      %s49 = ssub.s32 %s36, %s43
      %s50 = sor.u32 %s48, %s49
      %p51 = scmp.eq.s32.totalorder %s50, 0
      %s53 = sadd.s32 %s52, 1
      %s54 = scalar_select %p51, %s52, %s53
      %p57 = pneg %p51
      %p58 = scmp.eq.s32.totalorder %s28, 1
      %p59 = por %p57, %p58
      %p60 = scmp.ne.s32.totalorder %s52, %s55
      %p61 = scmp.eq.s32.totalorder %s28, 0
      %p62 = por %p60, %p61
      %p63 = scmp.ne.s32.totalorder %s52, %s55
      %p64 = scmp.eq.s32.totalorder %s33, 1
      %p65 = por %p63, %p64
      %p66 = scmp.ne.s32.totalorder %s55, %s56
      %p67 = scmp.eq.s32.totalorder %s33, 0
      %p68 = por %p66, %p67
      %p69 = scmp.ne.s32.totalorder %s55, %s56
      %p70 = scmp.eq.s32.totalorder %s34, 1
      %p71 = por %p69, %p70
      %p73 = scmp.ne.s32.totalorder %s56, %s72
      %p74 = scmp.eq.s32.totalorder %s34, 0
      %p75 = por %p73, %p74
      %s76 = ssub.s32 %s35, %s47
      %s77 = ssub.s32 %s36, %s43
      %s78 = sor.u32 %s76, %s77
      %p79 = scmp.eq.s32.totalorder %s78, 0
      %s81 = sadd.s32 %s80, 1
      %s82 = scalar_select %p79, %s80, %s81
      %p85 = pneg %p79
      %p86 = scmp.eq.s32.totalorder %s28, 1
      %p87 = por %p85, %p86
      %p88 = scmp.ne.s32.totalorder %s80, %s83
      %p89 = scmp.eq.s32.totalorder %s28, 0
      %p90 = por %p88, %p89
      %p91 = scmp.ne.s32.totalorder %s80, %s83
      %p92 = scmp.eq.s32.totalorder %s33, 1
      %p93 = por %p91, %p92
      %p94 = scmp.ne.s32.totalorder %s83, %s84
      %p95 = scmp.eq.s32.totalorder %s33, 0
      %p96 = por %p94, %p95
      %p97 = scmp.ne.s32.totalorder %s83, %s84
      %p98 = scmp.eq.s32.totalorder %s34, 1
      %p99 = por %p97, %p98
      %p101 = scmp.ne.s32.totalorder %s84, %s100
      %p102 = scmp.eq.s32.totalorder %s34, 0
      %p103 = por %p101, %p102
      %s105 = sadd.s32 %s104, 1
      %p108 = scmp.eq.s32.totalorder %s28, 1
      %p109 = scmp.ne.s32.totalorder %s104, %s106
      %p110 = scmp.eq.s32.totalorder %s28, 0
      %p111 = por %p109, %p110
      %p112 = scmp.ne.s32.totalorder %s104, %s106
      %p113 = scmp.eq.s32.totalorder %s33, 1
      %p114 = por %p112, %p113
      %p115 = scmp.ne.s32.totalorder %s106, %s107
      %p116 = scmp.eq.s32.totalorder %s33, 0
      %p117 = por %p115, %p116
      %p118 = scmp.ne.s32.totalorder %s106, %s107
      %p119 = scmp.eq.s32.totalorder %s34, 1
      %p120 = por %p118, %p119
      %p122 = scmp.ne.s32.totalorder %s107, %s121
      %p123 = scmp.eq.s32.totalorder %s34, 0
      %p124 = por %p122, %p123
      %s126 = sadd.s32 %s125, 1
      %p129 = scmp.eq.s32.totalorder %s28, 1
      %p130 = scmp.ne.s32.totalorder %s125, %s127
      %p131 = scmp.eq.s32.totalorder %s28, 0
      %p132 = por %p130, %p131
      %p133 = scmp.ne.s32.totalorder %s125, %s127
      %p134 = scmp.eq.s32.totalorder %s33, 1
      %p135 = por %p133, %p134
      %p136 = scmp.ne.s32.totalorder %s127, %s128
      %p137 = scmp.eq.s32.totalorder %s33, 0
      %p138 = por %p136, %p137
      %p139 = scmp.ne.s32.totalorder %s127, %s128
      %p140 = scmp.eq.s32.totalorder %s34, 1
      %p141 = por %p139, %p140
      %p143 = scmp.ne.s32.totalorder %s128, %s142
      %p144 = scmp.eq.s32.totalorder %s34, 0
      %p145 = por %p143, %p144
      %s147 = sadd.s32 %s146, 1
      %p150 = scmp.eq.s32.totalorder %s28, 1
      %p151 = scmp.ne.s32.totalorder %s146, %s148
      %p152 = scmp.eq.s32.totalorder %s28, 0
      %p153 = por %p151, %p152
      %p154 = scmp.ne.s32.totalorder %s146, %s148
      %p155 = scmp.eq.s32.totalorder %s33, 1
      %p156 = por %p154, %p155
      %p157 = scmp.ne.s32.totalorder %s148, %s149
      %p158 = scmp.eq.s32.totalorder %s33, 0
      %p159 = por %p157, %p158
      %p160 = scmp.ne.s32.totalorder %s148, %s149
      %p161 = scmp.eq.s32.totalorder %s34, 1
      %p162 = por %p160, %p161
      %p164 = scmp.ne.s32.totalorder %s149, %s163
      %p165 = scmp.eq.s32.totalorder %s34, 0
      %p166 = por %p164, %p165
      %s168 = sadd.s32 %s167, 1
      %p171 = scmp.eq.s32.totalorder %s28, 1
      %p172 = scmp.ne.s32.totalorder %s167, %s169
      %p173 = scmp.eq.s32.totalorder %s28, 0
      %p174 = por %p172, %p173
      %p175 = scmp.ne.s32.totalorder %s167, %s169
      %p176 = scmp.eq.s32.totalorder %s33, 1
      %p177 = por %p175, %p176
      %p178 = scmp.ne.s32.totalorder %s169, %s170
      %p179 = scmp.eq.s32.totalorder %s33, 0
      %p180 = por %p178, %p179
      %p181 = scmp.ne.s32.totalorder %s169, %s170
      %p182 = scmp.eq.s32.totalorder %s34, 1
      %p183 = por %p181, %p182
      %p185 = scmp.ne.s32.totalorder %s170, %s184
      %p186 = scmp.eq.s32.totalorder %s34, 0
      %p187 = por %p185, %p186
      %s188 = ssub.s32 %s35, %s47
      %s189 = ssub.s32 %s36, %s43
      %s190 = sor.u32 %s188, %s189
      %p191 = scmp.eq.s32.totalorder %s190, 0
      %s193 = sadd.s32 %s192, 1
      %s194 = scalar_select %p191, %s192, %s193
      %p197 = pneg %p191
      %p198 = scmp.eq.s32.totalorder %s28, 1
      %p199 = por %p197, %p198
      %p200 = scmp.ne.s32.totalorder %s192, %s195
      %p201 = scmp.eq.s32.totalorder %s28, 0
      %p202 = por %p200, %p201
      %p203 = scmp.ne.s32.totalorder %s192, %s195
      %p204 = scmp.eq.s32.totalorder %s33, 1
      %p205 = por %p203, %p204
      %p206 = scmp.ne.s32.totalorder %s195, %s196
      %p207 = scmp.eq.s32.totalorder %s33, 0
      %p208 = por %p206, %p207
      %p209 = scmp.ne.s32.totalorder %s195, %s196
      %p210 = scmp.eq.s32.totalorder %s34, 1
      %p211 = por %p209, %p210
      %p213 = scmp.ne.s32.totalorder %s196, %s212
      %p214 = scmp.eq.s32.totalorder %s34, 0
      %p215 = por %p213, %p214
      %s216 = ssub.s32 %s35, %s47
      %s217 = ssub.s32 %s36, %s43
      %s218 = sor.u32 %s216, %s217
      %p219 = scmp.eq.s32.totalorder %s218, 0
      %s221 = sadd.s32 %s220, 1
      %s222 = scalar_select %p219, %s220, %s221
      %p225 = pneg %p219
      %p226 = scmp.eq.s32.totalorder %s28, 1
      %p227 = por %p225, %p226
      %p228 = scmp.ne.s32.totalorder %s220, %s223
      %p229 = scmp.eq.s32.totalorder %s28, 0
      %p230 = por %p228, %p229
      %p231 = scmp.ne.s32.totalorder %s220, %s223
      %p232 = scmp.eq.s32.totalorder %s33, 1
      %p233 = por %p231, %p232
      %p234 = scmp.ne.s32.totalorder %s223, %s224
      %p235 = scmp.eq.s32.totalorder %s33, 0
      %p236 = por %p234, %p235
      %p237 = scmp.ne.s32.totalorder %s223, %s224
      %p238 = scmp.eq.s32.totalorder %s34, 1
      %p239 = por %p237, %p238
      %p241 = scmp.ne.s32.totalorder %s224, %s240
      %p242 = scmp.eq.s32.totalorder %s34, 0
      %p243 = por %p241, %p242
      %p244 = scmp.le.s32.totalorder 1, %s28
      %p245 = scmp.lt.s32.totalorder %s28, 3
      %p246 = pnand %p244, %p245
      %p247 = pneg %p246
      // Predicated region
      $region9: #{transformer_forward.4} parent=5 // pred_check
        _
      $region10: #{transformer_forward.4} parent=5 // pred_check_branch
        %249 = sbr.rel (%p246) target = $region12
      $region11: #{transformer_forward.4} parent=5 // pred_region
        %s250 = ssub.s32 %s28, 1
        // Predicated region
        $region13: #{transformer_forward.4} parent=11 // pred_check
          %p251 = pneg %p117
        $region14: #{transformer_forward.4} parent=11 // pred_check_branch
          %253 = sbr.rel (%p251) target = $region16
        $region15: #{transformer_forward.4} parent=11 // pred_region
          %s255 = ssub.s32 256, 256
          %256 = vsyncadd [#allocation6], %s255
          %s257 = sshll.u32 [#allocation7], 4
          %s258 = int_to_ptr.vmem [resolvable:$true] %s257
          %263 = dma.hbm_to_vmem [thread:$0]  %s2, 256, %s258, [#allocation6], 64, 64, 4
        $region16: #{transformer_forward.4} parent=11 // pred_fallthru
          _
        // Predicated region
        $region17: #{transformer_forward.4} parent=11 // pred_check
          %p264 = pneg %p138
        $region18: #{transformer_forward.4} parent=11 // pred_check_branch
          %266 = sbr.rel (%p264) target = $region20
        $region19: #{transformer_forward.4} parent=11 // pred_region
          %s268 = ssub.s32 512, 512
          %269 = vsyncadd [#allocation9], %s268
          %s270 = sshll.u32 [#allocation8], 4
          %s271 = int_to_ptr.vmem [resolvable:$true] %s270
          %276 = dma.hbm_to_vmem [thread:$0]  %s3, 512, %s271, [#allocation9], 128, 128, 8
        $region20: #{transformer_forward.4} parent=11 // pred_fallthru
          _
        // Predicated region
        $region21: #{transformer_forward.4} parent=11 // pred_check
          %p277 = pneg %p159
        $region22: #{transformer_forward.4} parent=11 // pred_check_branch
          %279 = sbr.rel (%p277) target = $region24
        $region23: #{transformer_forward.4} parent=11 // pred_region
          %s281 = ssub.s32 256, 256
          %282 = vsyncadd [#allocation9], %s281
          %s283 = sshll.u32 [#allocation10], 4
          %s284 = int_to_ptr.vmem [resolvable:$true] %s283
          %289 = dma.hbm_to_vmem [thread:$0]  %s4, 256, %s284, [#allocation9], 64, 64, 4
        $region24: #{transformer_forward.4} parent=11 // pred_fallthru
          _
        // Predicated region
        $region25: #{transformer_forward.4} parent=11 // pred_check
          %p290 = pneg %p180
        $region26: #{transformer_forward.4} parent=11 // pred_check_branch
          %292 = sbr.rel (%p290) target = $region28
        $region27: #{transformer_forward.4} parent=11 // pred_region
          %s294 = ssub.s32 16, 16
          %295 = vsyncadd [#allocation12], %s294
          %s297 = sshll.u32 [#allocation11], 4
          %s298 = int_to_ptr.vmem [resolvable:$true] %s297
          %300 = dma.hbm_to_vmem [thread:$0]  %s5, 16, %s298, [#allocation12]
        $region28: #{transformer_forward.4} parent=11 // pred_fallthru
          _
      $region12: #{transformer_forward.4} parent=5 // pred_fallthru
        _
      %p301 = scmp.lt.s32.totalorder %s28, 2
      // Predicated region
      $region29: #{transformer_forward.4} parent=5 // pred_check
        %p302 = pneg %p301
      $region30: #{transformer_forward.4} parent=5 // pred_check_branch
        %304 = sbr.rel (%p302) target = $region32
      $region31: #{transformer_forward.4} parent=5 // pred_region
        // Predicated region
        $region33: #{transformer_forward.4} parent=31 // pred_check
          %p305 = pneg %p62
        $region34: #{transformer_forward.4} parent=31 // pred_check_branch
          %307 = sbr.rel (%p305) target = $region36
        $region35: #{transformer_forward.4} parent=31 // pred_region
          %s308 = sand.u32 %s52, 1
          %s309 = scalar_lea.sflag [#allocation3], %s308
          %s310 = sand.u32 %s52, 1
          %s311 = smul.addr %s310, 32
          %s312 = scalar_lea.vmem [#allocation2], %s311
          %s313 = smul.u32 2, %s36
          %s315 = ssub.s32 512, 512
          %316 = vsyncadd %s309, %s315
          %s317 = smul.addr %s35, 8
          %s318 = sadd.s32 %s313, %s317
          %s319 = smul.addr %s318, 64
          %s320 = scalar_lea.hbm %s0, %s319
          %s321 = sshll.u32 %s312, 4
          %s322 = int_to_ptr.vmem [resolvable:$true] %s321
          %327 = dma.hbm_to_vmem [thread:$0]  %s320, 512, %s322, %s309, 128, 128, 8
        $region36: #{transformer_forward.4} parent=31 // pred_fallthru
          _
        // Predicated region
        $region37: #{transformer_forward.4} parent=31 // pred_check
          %p328 = pneg %p90
        $region38: #{transformer_forward.4} parent=31 // pred_check_branch
          %330 = sbr.rel (%p328) target = $region40
        $region39: #{transformer_forward.4} parent=31 // pred_region
          %s331 = sand.u32 %s28, 1
          %s332 = scalar_lea.sflag [#allocation6], %s331
          %s333 = sand.u32 %s80, 1
          %s334 = smul.addr %s333, 128
          %s335 = scalar_lea.vmem [#allocation5], %s334
          %s336 = smul.u32 32, %s36
          %s338 = ssub.s32 2048, 2048
          %339 = vsyncadd %s332, %s338
          %s340 = smul.addr %s35, 32
          %s341 = sadd.s32 %s336, %s340
          %s342 = smul.addr %s341, 64
          %s343 = scalar_lea.hbm %s1, %s342
          %s344 = sshll.u32 %s335, 4
          %s345 = int_to_ptr.vmem [resolvable:$true] %s344
          %350 = dma.hbm_to_vmem [thread:$0]  %s343, 2048, %s345, %s332, 64, 64, 4
        $region40: #{transformer_forward.4} parent=31 // pred_fallthru
          _
      $region32: #{transformer_forward.4} parent=5 // pred_fallthru
        _
      %p351 = scmp.le.s32.totalorder 1, %s28
      %p352 = scmp.lt.s32.totalorder %s28, 3
      %p353 = pnand %p351, %p352
      %p354 = pneg %p353
      // Predicated region
      $region41: #{transformer_forward.4} parent=5 // pred_check
        _
      $region42: #{transformer_forward.4} parent=5 // pred_check_branch
        %356 = sbr.rel (%p353) target = $region44
      $region43: #{transformer_forward.4} parent=5 // pred_region
        %s357 = ssub.s32 %s28, 1
        %s358 = sand.u32 %s55, 1
        %s359 = scalar_lea.sflag [#allocation3], %s358
        %s360 = sand.u32 %s55, 1
        %s361 = smul.addr %s360, 32
        %s362 = scalar_lea.vmem [#allocation2], %s361
        // Predicated region
        $region45: #{transformer_forward.4} parent=43 // pred_check
          %p363 = pneg %p68
        $region46: #{transformer_forward.4} parent=43 // pred_check_branch
          %365 = sbr.rel (%p363) target = $region48
        $region47: #{transformer_forward.4} parent=43 // pred_region
          %366 = dma.done %s359, 512
        $region48: #{transformer_forward.4} parent=43 // pred_fallthru
          _
        %s367 = sand.u32 %s33, 1
        %s368 = scalar_lea.sflag [#allocation6], %s367
        %s369 = sand.u32 %s83, 1
        %s370 = smul.addr %s369, 128
        %s371 = scalar_lea.vmem [#allocation5], %s370
        // Predicated region
        $region49: #{transformer_forward.4} parent=43 // pred_check
          %p372 = pneg %p96
        $region50: #{transformer_forward.4} parent=43 // pred_check_branch
          %374 = sbr.rel (%p372) target = $region52
        $region51: #{transformer_forward.4} parent=43 // pred_region
          %375 = dma.done %s368, 2048
        $region52: #{transformer_forward.4} parent=43 // pred_fallthru
          _
        // Predicated region
        $region53: #{transformer_forward.4} parent=43 // pred_check
          %p376 = pneg %p117
        $region54: #{transformer_forward.4} parent=43 // pred_check_branch
          %378 = sbr.rel (%p376) target = $region56
        $region55: #{transformer_forward.4} parent=43 // pred_region
          %379 = dma.done [#allocation6], 256
        $region56: #{transformer_forward.4} parent=43 // pred_fallthru
          _
        // Predicated region
        $region57: #{transformer_forward.4} parent=43 // pred_check
          %p380 = pneg %p138
        $region58: #{transformer_forward.4} parent=43 // pred_check_branch
          %382 = sbr.rel (%p380) target = $region60
        $region59: #{transformer_forward.4} parent=43 // pred_region
          %383 = dma.done [#allocation9], 512
        $region60: #{transformer_forward.4} parent=43 // pred_fallthru
          _
        // Predicated region
        $region61: #{transformer_forward.4} parent=43 // pred_check
          %p384 = pneg %p159
        $region62: #{transformer_forward.4} parent=43 // pred_check_branch
          %386 = sbr.rel (%p384) target = $region64
        $region63: #{transformer_forward.4} parent=43 // pred_region
          %387 = dma.done [#allocation9], 256
        $region64: #{transformer_forward.4} parent=43 // pred_fallthru
          _
        // Predicated region
        $region65: #{transformer_forward.4} parent=43 // pred_check
          %p388 = pneg %p180
        $region66: #{transformer_forward.4} parent=43 // pred_check_branch
          %390 = sbr.rel (%p388) target = $region68
        $region67: #{transformer_forward.4} parent=43 // pred_region
          %391 = dma.done [#allocation12], 16
        $region68: #{transformer_forward.4} parent=43 // pred_fallthru
          _
        %s392 = sand.u32 %s55, 1
        %s393 = scalar_lea.sflag [#allocation3], %s392
        %s394 = sand.u32 %s55, 1
        %s395 = smul.addr %s394, 32
        %s396 = scalar_lea.vmem [#allocation2], %s395
        %p397 = pneg %p68
        %p398 = pneg %p65
        %s399 = sand.u32 %s33, 1
        %s400 = scalar_lea.sflag [#allocation6], %s399
        %s401 = sand.u32 %s83, 1
        %s402 = smul.addr %s401, 128
        %s403 = scalar_lea.vmem [#allocation5], %s402
        %p404 = pneg %p96
        %p405 = pneg %p93
        %p406 = pneg %p117
        %p407 = pneg %p114
        %p408 = pneg %p138
        %p409 = pneg %p135
        %p410 = pneg %p159
        %p411 = pneg %p156
        %p412 = pneg %p180
        %p413 = pneg %p177
        %p414 = pneg %p208
        %p415 = pneg %p205
        %s416 = sand.u32 %s195, 1
        %s417 = scalar_lea.sflag [#allocation4], %s416
        %s418 = sand.u32 %s195, 1
        %s419 = smul.addr %s418, 32
        %s420 = scalar_lea.vmem [#allocation13], %s419
        %p421 = pneg %p236
        %p422 = pneg %p233
        %s423 = sand.u32 %s223, 1
        %s424 = scalar_lea.sflag [#allocation15], %s423
        %s425 = sand.u32 %s223, 1
        %s426 = smul.addr %s425, 128
        %s427 = scalar_lea.vmem [#allocation14], %s426
        %s428 = smul.u32 2, %s38
        %s429 = smul.u32 32, %s38
        %s430 = smul.u32 2, %s38
        %s431 = smul.u32 32, %s38
        %v433 = vld [vmem:[#allocation7] sm:$0xf]
        %v434 = vld [vmem:[#allocation7 + $0x4] sm:$0xf]
        %v435 = vld [vmem:[#allocation7 + $0x8] sm:$0xf]
        %v436 = vld [vmem:[#allocation7 + $0xc] sm:$0xf]
        %v437 = vld [vmem:[%s362] sm:$0xff]
        %v438 = vld [vmem:[%s362 + $0x8] sm:$0xff]
        %v439 = vld [vmem:[%s362 + $0x10] sm:$0xff]
        %v440 = vld [vmem:[%s362 + $0x18] sm:$0xff]
        %v441 = vld [vmem:[#allocation8] sm:$0xff]
        %v442 = vld [vmem:[#allocation8 + $0x8] sm:$0xff]
        %v443 = vld [vmem:[#allocation8 + $0x10] sm:$0xff]
        %v444 = vld [vmem:[#allocation8 + $0x18] sm:$0xff]
        %446 = vset.pattern.permute.xlu0 0
        %447 = vperm.xlu0 %446, %v441
        %v448 = vpop.permute.xlu0 %447
        %451 = vset.pattern.permute.xlu0 0
        %452 = vperm.xlu0 %451, %v442
        %v453 = vpop.permute.xlu0 %452
        %456 = vset.pattern.permute.xlu0 0
        %457 = vperm.xlu0 %456, %v443
        %v458 = vpop.permute.xlu0 %457
        %461 = vset.pattern.permute.xlu0 0
        %462 = vperm.xlu0 %461, %v444
        %v463 = vpop.permute.xlu0 %462
        %v469 = vunpack.c.l.b16 %v433
        %v470 = vunpack.c.l.b16 %v434
        %v471 = vunpack.c.l.b16 %v435
        %v472 = vunpack.c.l.b16 %v436
        %v473 = vpack.c.b16 %v470, %v469
        %v474 = vpack.c.b16 %v472, %v471
        %v479 = vunpack.c.l.b16 %v437
        %v480 = vunpack.c.h.b16 %v437
        %v481 = vunpack.c.l.b16 %v438
        %v482 = vunpack.c.h.b16 %v438
        %v483 = vunpack.c.l.b16 %v439
        %v484 = vunpack.c.h.b16 %v439
        %v485 = vunpack.c.l.b16 %v440
        %v486 = vunpack.c.h.b16 %v440
        %v487 = vpack.c.b16 %v481, %v479
        %v488 = vpack.c.b16 %v482, %v480
        %v489 = vpack.c.b16 %v485, %v483
        %v490 = vpack.c.b16 %v486, %v484
        %vm495 = vcmask 261120
        %v497 = vsel %vm495, %v473, 0
        %v500 = vsel %vm495, %v474, 0
        %502 = vmatprep.subr.bf16.mxu0 %v488
        %503 = vmatpush1.bf16.msra.mxu0 %v487
        %504 = vmatprep.subr.bf16.mxu0 %v490
        %505 = vmatpush1.bf16.msra.mxu0 %v489
        %506 = vmatprep.subr.bf16.mxu0 0
        %507 = vmatpush1.bf16.msra.mxu0 0
        %508 = vmatprep.subr.bf16.mxu0 0
        %509 = vmatpush1.bf16.msra.mxu0 0
        %510 = vmatprep.subr.bf16.mxu0 0
        %511 = vmatpush1.bf16.msra.mxu0 0
        %512 = vmatprep.subr.bf16.mxu0 0
        %513 = vmatpush1.bf16.msra.mxu0 0
        %514 = vmatprep.subr.bf16.mxu0 0
        %515 = vmatpush1.bf16.msra.mxu0 0
        %516 = vmatprep.subr.bf16.mxu0 0
        %517 = vmatpush1.bf16.msra.mxu0 0
        %518 = vmatprep.subr.bf16.mxu0 0
        %519 = vmatpush1.bf16.msra.mxu0 0
        %520 = vmatprep.subr.bf16.mxu0 0
        %521 = vmatpush1.bf16.msra.mxu0 0
        %522 = vmatprep.subr.bf16.mxu0 0
        %523 = vmatpush1.bf16.msra.mxu0 0
        %524 = vmatprep.subr.bf16.mxu0 0
        %525 = vmatpush1.bf16.msra.mxu0 0
        %526 = vmatprep.subr.bf16.mxu0 0
        %527 = vmatpush1.bf16.msra.mxu0 0
        %528 = vmatprep.subr.bf16.mxu0 0
        %529 = vmatpush1.bf16.msra.mxu0 0
        %530 = vmatprep.subr.bf16.mxu0 0
        %531 = vmatpush1.bf16.msra.mxu0 0
        %532 = vmatprep.subr.bf16.mxu0 0
        %533 = vmatpush1.bf16.msra.mxu0 0
        %534 = vmatprep.mubr.bf16.mxu0 0
        %535 = vmatmul.mubr.bf16.gmra.mrb[0].mxu0 %v497
        %v536 = vpop.f32.mrb[0].mxu0
        %v537 = vadd.f32 %v448, %v536
        %v538 = vpop.f32.mrb[0].mxu0
        %v539 = vadd.f32 %v448, %v538
        %v540 = vpop.f32.mrb[0].mxu0
        %v541 = vadd.f32 %v453, %v540
        %v542 = vpop.f32.mrb[0].mxu0
        %v543 = vadd.f32 %v453, %v542
        %544 = vmatprep.mubr.bf16.mxu0 0
        %545 = vmatmul.mubr.bf16.gmra.mrb[0].mxu0 %v500
        %v546 = vpop.f32.mrb[0].mxu0
        %v547 = vadd.f32 %v458, %v546
        %v548 = vpop.f32.mrb[0].mxu0
        %v549 = vadd.f32 %v458, %v548
        %v550 = vpop.f32.mrb[0].mxu0
        %v551 = vadd.f32 %v463, %v550
        %v552 = vpop.f32.mrb[0].mxu0
        %v553 = vadd.f32 %v463, %v552
        %554 = vdwg.mxu0
        %v555 = vpack.c.bf16 %v541, %v537
        %v556 = vpack.c.bf16 %v543, %v539
        %v557 = vpack.c.bf16 %v551, %v547
        %v558 = vpack.c.bf16 %v553, %v549
        %v563 = vunpack.c.l.b16 %v555
        %v564 = vunpack.c.l.b16 %v556
        %v565 = vunpack.c.h.b16 %v555
        %v566 = vunpack.c.h.b16 %v556
        %v567 = vunpack.c.l.b16 %v557
        %v568 = vunpack.c.l.b16 %v558
        %v569 = vunpack.c.h.b16 %v557
        %v570 = vunpack.c.h.b16 %v558
        %v571 = vpack.c.b16 %v564, %v563
        %v572 = vpack.c.b16 %v566, %v565
        %v573 = vpack.c.b16 %v568, %v567
        %v574 = vpack.c.b16 %v570, %v569
        %579 = vst [vmem:[%s420] sm:$0xff] %v571
        %580 = vst [vmem:[%s420 + $0x8] sm:$0xff] %v572
        %581 = vst [vmem:[%s420 + $0x10] sm:$0xff] %v573
        %582 = vst [vmem:[%s420 + $0x18] sm:$0xff] %v574
        %v583 = vld [vmem:[%s371] sm:$0xf]
        %v584 = vld [vmem:[%s371 + $0x4] sm:$0xf]
        %v585 = vld [vmem:[%s371 + $0x8] sm:$0xf]
        %v586 = vld [vmem:[%s371 + $0xc] sm:$0xf]
        %v587 = vld [vmem:[%s371 + $0x10] sm:$0xf]
        %v588 = vld [vmem:[%s371 + $0x14] sm:$0xf]
        %v589 = vld [vmem:[%s371 + $0x18] sm:$0xf]
        %v590 = vld [vmem:[%s371 + $0x1c] sm:$0xf]
        %v591 = vld [vmem:[%s371 + $0x20] sm:$0xf]
        %v592 = vld [vmem:[%s371 + $0x24] sm:$0xf]
        %v593 = vld [vmem:[%s371 + $0x28] sm:$0xf]
        %v594 = vld [vmem:[%s371 + $0x2c] sm:$0xf]
        %v595 = vld [vmem:[%s371 + $0x30] sm:$0xf]
        %v596 = vld [vmem:[%s371 + $0x34] sm:$0xf]
        %v597 = vld [vmem:[%s371 + $0x38] sm:$0xf]
        %v598 = vld [vmem:[%s371 + $0x3c] sm:$0xf]
        %v599 = vld [vmem:[%s371 + $0x40] sm:$0xf]
        %v600 = vld [vmem:[%s371 + $0x44] sm:$0xf]
        %v601 = vld [vmem:[%s371 + $0x48] sm:$0xf]
        %v602 = vld [vmem:[%s371 + $0x4c] sm:$0xf]
        %v603 = vld [vmem:[%s371 + $0x50] sm:$0xf]
        %v604 = vld [vmem:[%s371 + $0x54] sm:$0xf]
        %v605 = vld [vmem:[%s371 + $0x58] sm:$0xf]
        %v606 = vld [vmem:[%s371 + $0x5c] sm:$0xf]
        %v607 = vld [vmem:[%s371 + $0x60] sm:$0xf]
        %v608 = vld [vmem:[%s371 + $0x64] sm:$0xf]
        %v609 = vld [vmem:[%s371 + $0x68] sm:$0xf]
        %v610 = vld [vmem:[%s371 + $0x6c] sm:$0xf]
        %v611 = vld [vmem:[%s371 + $0x70] sm:$0xf]
        %v612 = vld [vmem:[%s371 + $0x74] sm:$0xf]
        %v613 = vld [vmem:[%s371 + $0x78] sm:$0xf]
        %v614 = vld [vmem:[%s371 + $0x7c] sm:$0xf]
        %v615 = vld [vmem:[#allocation10] sm:$0xf]
        %v616 = vld [vmem:[#allocation10 + $0x4] sm:$0xf]
        %v617 = vld [vmem:[#allocation10 + $0x8] sm:$0xf]
        %v618 = vld [vmem:[#allocation10 + $0xc] sm:$0xf]
        %v619 = vld [vmem:[#allocation11] sm:$0x1]
        %v621 = vlaneseq
        %v622 = vshrl.u32 %v621, 7
        %v623 = vsub.s32 0, %v622
        %v624 = vrot.slane %v619, %v623
        %v658 = vunpack.c.l.b16 %v583
        %v659 = vunpack.c.l.b16 %v584
        %v660 = vunpack.c.l.b16 %v585
        %v661 = vunpack.c.l.b16 %v586
        %v662 = vunpack.c.l.b16 %v587
        %v663 = vunpack.c.l.b16 %v588
        %v664 = vunpack.c.l.b16 %v589
        %v665 = vunpack.c.l.b16 %v590
        %v666 = vunpack.c.l.b16 %v591
        %v667 = vunpack.c.l.b16 %v592
        %v668 = vunpack.c.l.b16 %v593
        %v669 = vunpack.c.l.b16 %v594
        %v670 = vunpack.c.l.b16 %v595
        %v671 = vunpack.c.l.b16 %v596
        %v672 = vunpack.c.l.b16 %v597
        %v673 = vunpack.c.l.b16 %v598
        %v674 = vunpack.c.l.b16 %v599
        %v675 = vunpack.c.l.b16 %v600
        %v676 = vunpack.c.l.b16 %v601
        %v677 = vunpack.c.l.b16 %v602
        %v678 = vunpack.c.l.b16 %v603
        %v679 = vunpack.c.l.b16 %v604
        %v680 = vunpack.c.l.b16 %v605
        %v681 = vunpack.c.l.b16 %v606
        %v682 = vunpack.c.l.b16 %v607
        %v683 = vunpack.c.l.b16 %v608
        %v684 = vunpack.c.l.b16 %v609
        %v685 = vunpack.c.l.b16 %v610
        %v686 = vunpack.c.l.b16 %v611
        %v687 = vunpack.c.l.b16 %v612
        %v688 = vunpack.c.l.b16 %v613
        %v689 = vunpack.c.l.b16 %v614
        %v690 = vpack.c.b16 %v659, %v658
        %v691 = vpack.c.b16 %v661, %v660
        %v692 = vpack.c.b16 %v663, %v662
        %v693 = vpack.c.b16 %v665, %v664
        %v694 = vpack.c.b16 %v667, %v666
        %v695 = vpack.c.b16 %v669, %v668
        %v696 = vpack.c.b16 %v671, %v670
        %v697 = vpack.c.b16 %v673, %v672
        %v698 = vpack.c.b16 %v675, %v674
        %v699 = vpack.c.b16 %v677, %v676
        %v700 = vpack.c.b16 %v679, %v678
        %v701 = vpack.c.b16 %v681, %v680
        %v702 = vpack.c.b16 %v683, %v682
        %v703 = vpack.c.b16 %v685, %v684
        %v704 = vpack.c.b16 %v687, %v686
        %v705 = vpack.c.b16 %v689, %v688
        %v710 = vunpack.c.l.b16 %v615
        %v711 = vunpack.c.l.b16 %v616
        %v712 = vunpack.c.l.b16 %v617
        %v713 = vunpack.c.l.b16 %v618
        %v714 = vpack.c.b16 %v711, %v710
        %v715 = vpack.c.b16 %v713, %v712
        %v719 = vsel %vm495, %v690, 0
        %v722 = vsel %vm495, %v691, 0
        %v725 = vsel %vm495, %v692, 0
        %v728 = vsel %vm495, %v693, 0
        %v731 = vsel %vm495, %v694, 0
        %v734 = vsel %vm495, %v695, 0
        %v737 = vsel %vm495, %v696, 0
        %v740 = vsel %vm495, %v697, 0
        %v743 = vsel %vm495, %v698, 0
        %v746 = vsel %vm495, %v699, 0
        %v749 = vsel %vm495, %v700, 0
        %v752 = vsel %vm495, %v701, 0
        %v755 = vsel %vm495, %v702, 0
        %v758 = vsel %vm495, %v703, 0
        %v761 = vsel %vm495, %v704, 0
        %v764 = vsel %vm495, %v705, 0
        %766 = vmatprep.subr.bf16.mxu0 0
        %767 = vmatpush1.bf16.msra.mxu0 %v714
        %768 = vmatprep.subr.bf16.mxu0 0
        %769 = vmatpush1.bf16.msra.mxu0 %v715
        %770 = vmatprep.subr.bf16.mxu0 0
        %771 = vmatpush1.bf16.msra.mxu0 0
        %772 = vmatprep.subr.bf16.mxu0 0
        %773 = vmatpush1.bf16.msra.mxu0 0
        %774 = vmatprep.subr.bf16.mxu0 0
        %775 = vmatpush1.bf16.msra.mxu0 0
        %776 = vmatprep.subr.bf16.mxu0 0
        %777 = vmatpush1.bf16.msra.mxu0 0
        %778 = vmatprep.subr.bf16.mxu0 0
        %779 = vmatpush1.bf16.msra.mxu0 0
        %780 = vmatprep.subr.bf16.mxu0 0
        %781 = vmatpush1.bf16.msra.mxu0 0
        %782 = vmatprep.subr.bf16.mxu0 0
        %783 = vmatpush1.bf16.msra.mxu0 0
        %784 = vmatprep.subr.bf16.mxu0 0
        %785 = vmatpush1.bf16.msra.mxu0 0
        %786 = vmatprep.subr.bf16.mxu0 0
        %787 = vmatpush1.bf16.msra.mxu0 0
        %788 = vmatprep.subr.bf16.mxu0 0
        %789 = vmatpush1.bf16.msra.mxu0 0
        %790 = vmatprep.subr.bf16.mxu0 0
        %791 = vmatpush1.bf16.msra.mxu0 0
        %792 = vmatprep.subr.bf16.mxu0 0
        %793 = vmatpush1.bf16.msra.mxu0 0
        %794 = vmatprep.subr.bf16.mxu0 0
        %795 = vmatpush1.bf16.msra.mxu0 0
        %796 = vmatprep.subr.bf16.mxu0 0
        %797 = vmatpush1.bf16.msra.mxu0 0
        %798 = vmatprep.mubr.bf16.mxu0 0
        %799 = vmatmul.mubr.bf16.gmra.mrb[0].mxu0 %v719
        %v800 = vpop.f32.mrb[0].mxu0
        %v801 = vadd.f32 %v624, %v800
        %v802 = vpop.f32.mrb[0].mxu0
        %v803 = vpop.f32.mrb[0].mxu0
        %v804 = vadd.f32 %v624, %v803
        %v805 = vpop.f32.mrb[0].mxu0
        %806 = vmatprep.mubr.bf16.mxu0 0
        %807 = vmatmul.mubr.bf16.gmra.mrb[0].mxu0 %v722
        %v808 = vpop.f32.mrb[0].mxu0
        %v809 = vadd.f32 %v624, %v808
        %v810 = vpop.f32.mrb[0].mxu0
        %v811 = vpop.f32.mrb[0].mxu0
        %v812 = vadd.f32 %v624, %v811
        %v813 = vpop.f32.mrb[0].mxu0
        %814 = vmatprep.mubr.bf16.mxu0 0
        %815 = vmatmul.mubr.bf16.gmra.mrb[0].mxu0 %v725
        %v816 = vpop.f32.mrb[0].mxu0
        %v817 = vadd.f32 %v624, %v816
        %v818 = vpop.f32.mrb[0].mxu0
        %v819 = vpop.f32.mrb[0].mxu0
        %v820 = vadd.f32 %v624, %v819
        %v821 = vpop.f32.mrb[0].mxu0
        %822 = vmatprep.mubr.bf16.mxu0 0
        %823 = vmatmul.mubr.bf16.gmra.mrb[0].mxu0 %v728
        %v824 = vpop.f32.mrb[0].mxu0
        %v825 = vadd.f32 %v624, %v824
        %v826 = vpop.f32.mrb[0].mxu0
        %v827 = vpop.f32.mrb[0].mxu0
        %v828 = vadd.f32 %v624, %v827
        %v829 = vpop.f32.mrb[0].mxu0
        %830 = vmatprep.mubr.bf16.mxu0 0
        %831 = vmatmul.mubr.bf16.gmra.mrb[0].mxu0 %v731
        %v832 = vpop.f32.mrb[0].mxu0
        %v833 = vadd.f32 %v624, %v832
        %v834 = vpop.f32.mrb[0].mxu0
        %v835 = vpop.f32.mrb[0].mxu0
        %v836 = vadd.f32 %v624, %v835
        %v837 = vpop.f32.mrb[0].mxu0
        %838 = vmatprep.mubr.bf16.mxu0 0
        %839 = vmatmul.mubr.bf16.gmra.mrb[0].mxu0 %v734
        %v840 = vpop.f32.mrb[0].mxu0
        %v841 = vadd.f32 %v624, %v840
        %v842 = vpop.f32.mrb[0].mxu0
        %v843 = vpop.f32.mrb[0].mxu0
        %v844 = vadd.f32 %v624, %v843
        %v845 = vpop.f32.mrb[0].mxu0
        %846 = vmatprep.mubr.bf16.mxu0 0
        %847 = vmatmul.mubr.bf16.gmra.mrb[0].mxu0 %v737
        %v848 = vpop.f32.mrb[0].mxu0
        %v849 = vadd.f32 %v624, %v848
        %v850 = vpop.f32.mrb[0].mxu0
        %v851 = vpop.f32.mrb[0].mxu0
        %v852 = vadd.f32 %v624, %v851
        %v853 = vpop.f32.mrb[0].mxu0
        %854 = vmatprep.mubr.bf16.mxu0 0
        %855 = vmatmul.mubr.bf16.gmra.mrb[0].mxu0 %v740
        %v856 = vpop.f32.mrb[0].mxu0
        %v857 = vadd.f32 %v624, %v856
        %v858 = vpop.f32.mrb[0].mxu0
        %v859 = vpop.f32.mrb[0].mxu0
        %v860 = vadd.f32 %v624, %v859
        %v861 = vpop.f32.mrb[0].mxu0
        %862 = vmatprep.mubr.bf16.mxu0 0
        %863 = vmatmul.mubr.bf16.gmra.mrb[0].mxu0 %v743
        %v864 = vpop.f32.mrb[0].mxu0
        %v865 = vadd.f32 %v624, %v864
        %v866 = vpop.f32.mrb[0].mxu0
        %v867 = vpop.f32.mrb[0].mxu0
        %v868 = vadd.f32 %v624, %v867
        %v869 = vpop.f32.mrb[0].mxu0
        %870 = vmatprep.mubr.bf16.mxu0 0
        %871 = vmatmul.mubr.bf16.gmra.mrb[0].mxu0 %v746
        %v872 = vpop.f32.mrb[0].mxu0
        %v873 = vadd.f32 %v624, %v872
        %v874 = vpop.f32.mrb[0].mxu0
        %v875 = vpop.f32.mrb[0].mxu0
        %v876 = vadd.f32 %v624, %v875
        %v877 = vpop.f32.mrb[0].mxu0
        %878 = vmatprep.mubr.bf16.mxu0 0
        %879 = vmatmul.mubr.bf16.gmra.mrb[0].mxu0 %v749
        %v880 = vpop.f32.mrb[0].mxu0
        %v881 = vadd.f32 %v624, %v880
        %v882 = vpop.f32.mrb[0].mxu0
        %v883 = vpop.f32.mrb[0].mxu0
        %v884 = vadd.f32 %v624, %v883
        %v885 = vpop.f32.mrb[0].mxu0
        %886 = vmatprep.mubr.bf16.mxu0 0
        %887 = vmatmul.mubr.bf16.gmra.mrb[0].mxu0 %v752
        %v888 = vpop.f32.mrb[0].mxu0
        %v889 = vadd.f32 %v624, %v888
        %v890 = vpop.f32.mrb[0].mxu0
        %v891 = vpop.f32.mrb[0].mxu0
        %v892 = vadd.f32 %v624, %v891
        %v893 = vpop.f32.mrb[0].mxu0
        %894 = vmatprep.mubr.bf16.mxu0 0
        %895 = vmatmul.mubr.bf16.gmra.mrb[0].mxu0 %v755
        %v896 = vpop.f32.mrb[0].mxu0
        %v897 = vadd.f32 %v624, %v896
        %v898 = vpop.f32.mrb[0].mxu0
        %v899 = vpop.f32.mrb[0].mxu0
        %v900 = vadd.f32 %v624, %v899
        %v901 = vpop.f32.mrb[0].mxu0
        %902 = vmatprep.mubr.bf16.mxu0 0
        %903 = vmatmul.mubr.bf16.gmra.mrb[0].mxu0 %v758
        %v904 = vpop.f32.mrb[0].mxu0
        %v905 = vadd.f32 %v624, %v904
        %v906 = vpop.f32.mrb[0].mxu0
        %v907 = vpop.f32.mrb[0].mxu0
        %v908 = vadd.f32 %v624, %v907
        %v909 = vpop.f32.mrb[0].mxu0
        %910 = vmatprep.mubr.bf16.mxu0 0
        %911 = vmatmul.mubr.bf16.gmra.mrb[0].mxu0 %v761
        %v912 = vpop.f32.mrb[0].mxu0
        %v913 = vadd.f32 %v624, %v912
        %v914 = vpop.f32.mrb[0].mxu0
        %v915 = vpop.f32.mrb[0].mxu0
        %v916 = vadd.f32 %v624, %v915
        %v917 = vpop.f32.mrb[0].mxu0
        %918 = vmatprep.mubr.bf16.mxu0 0
        %919 = vmatmul.mubr.bf16.gmra.mrb[0].mxu0 %v764
        %v920 = vpop.f32.mrb[0].mxu0
        %v921 = vadd.f32 %v624, %v920
        %v922 = vpop.f32.mrb[0].mxu0
        %v923 = vpop.f32.mrb[0].mxu0
        %v924 = vadd.f32 %v624, %v923
        %v925 = vpop.f32.mrb[0].mxu0
        %926 = vdwg.mxu0
        %v927 = vmul.f32 %v801, %v801
        %v928 = vmul.f32 %v804, %v804
        %v929 = vmul.f32 %v809, %v809
        %v930 = vmul.f32 %v812, %v812
        %v931 = vmul.f32 %v817, %v817
        %v932 = vmul.f32 %v820, %v820
        %v933 = vmul.f32 %v825, %v825
        %v934 = vmul.f32 %v828, %v828
        %v935 = vmul.f32 %v833, %v833
        %v936 = vmul.f32 %v836, %v836
        %v937 = vmul.f32 %v841, %v841
        %v938 = vmul.f32 %v844, %v844
        %v939 = vmul.f32 %v849, %v849
        %v940 = vmul.f32 %v852, %v852
        %v941 = vmul.f32 %v857, %v857
        %v942 = vmul.f32 %v860, %v860
        %v943 = vmul.f32 %v865, %v865
        %v944 = vmul.f32 %v868, %v868
        %v945 = vmul.f32 %v873, %v873
        %v946 = vmul.f32 %v876, %v876
        %v947 = vmul.f32 %v881, %v881
        %v948 = vmul.f32 %v884, %v884
        %v949 = vmul.f32 %v889, %v889
        %v950 = vmul.f32 %v892, %v892
        %v951 = vmul.f32 %v897, %v897
        %v952 = vmul.f32 %v900, %v900
        %v953 = vmul.f32 %v905, %v905
        %v954 = vmul.f32 %v908, %v908
        %v955 = vmul.f32 %v913, %v913
        %v956 = vmul.f32 %v916, %v916
        %v957 = vmul.f32 %v921, %v921
        %v958 = vmul.f32 %v924, %v924
        %991 = vrot.lane.b32.xlu0 %v927, 32
        %v992 = vpop.permute.xlu0 %991
        %993 = vrot.lane.b32.xlu0 %v928, 32
        %v994 = vpop.permute.xlu0 %993
        %995 = vrot.lane.b32.xlu0 %v929, 32
        %v996 = vpop.permute.xlu0 %995
        %997 = vrot.lane.b32.xlu0 %v930, 32
        %v998 = vpop.permute.xlu0 %997
        %999 = vrot.lane.b32.xlu0 %v931, 32
        %v1000 = vpop.permute.xlu0 %999
        %1001 = vrot.lane.b32.xlu0 %v932, 32
        %v1002 = vpop.permute.xlu0 %1001
        %1003 = vrot.lane.b32.xlu0 %v933, 32
        %v1004 = vpop.permute.xlu0 %1003
        %1005 = vrot.lane.b32.xlu0 %v934, 32
        %v1006 = vpop.permute.xlu0 %1005
        %1007 = vrot.lane.b32.xlu0 %v935, 32
        %v1008 = vpop.permute.xlu0 %1007
        %1009 = vrot.lane.b32.xlu0 %v936, 32
        %v1010 = vpop.permute.xlu0 %1009
        %1011 = vrot.lane.b32.xlu0 %v937, 32
        %v1012 = vpop.permute.xlu0 %1011
        %1013 = vrot.lane.b32.xlu0 %v938, 32
        %v1014 = vpop.permute.xlu0 %1013
        %1015 = vrot.lane.b32.xlu0 %v939, 32
        %v1016 = vpop.permute.xlu0 %1015
        %1017 = vrot.lane.b32.xlu0 %v940, 32
        %v1018 = vpop.permute.xlu0 %1017
        %1019 = vrot.lane.b32.xlu0 %v941, 32
        %v1020 = vpop.permute.xlu0 %1019
        %1021 = vrot.lane.b32.xlu0 %v942, 32
        %v1022 = vpop.permute.xlu0 %1021
        %1023 = vrot.lane.b32.xlu0 %v943, 32
        %v1024 = vpop.permute.xlu0 %1023
        %1025 = vrot.lane.b32.xlu0 %v944, 32
        %v1026 = vpop.permute.xlu0 %1025
        %1027 = vrot.lane.b32.xlu0 %v945, 32
        %v1028 = vpop.permute.xlu0 %1027
        %1029 = vrot.lane.b32.xlu0 %v946, 32
        %v1030 = vpop.permute.xlu0 %1029
        %1031 = vrot.lane.b32.xlu0 %v947, 32
        %v1032 = vpop.permute.xlu0 %1031
        %1033 = vrot.lane.b32.xlu0 %v948, 32
        %v1034 = vpop.permute.xlu0 %1033
        %1035 = vrot.lane.b32.xlu0 %v949, 32
        %v1036 = vpop.permute.xlu0 %1035
        %1037 = vrot.lane.b32.xlu0 %v950, 32
        %v1038 = vpop.permute.xlu0 %1037
        %1039 = vrot.lane.b32.xlu0 %v951, 32
        %v1040 = vpop.permute.xlu0 %1039
        %1041 = vrot.lane.b32.xlu0 %v952, 32
        %v1042 = vpop.permute.xlu0 %1041
        %1043 = vrot.lane.b32.xlu0 %v953, 32
        %v1044 = vpop.permute.xlu0 %1043
        %1045 = vrot.lane.b32.xlu0 %v954, 32
        %v1046 = vpop.permute.xlu0 %1045
        %1047 = vrot.lane.b32.xlu0 %v955, 32
        %v1048 = vpop.permute.xlu0 %1047
        %1049 = vrot.lane.b32.xlu0 %v956, 32
        %v1050 = vpop.permute.xlu0 %1049
        %1051 = vrot.lane.b32.xlu0 %v957, 32
        %v1052 = vpop.permute.xlu0 %1051
        %1053 = vrot.lane.b32.xlu0 %v958, 32
        %v1054 = vpop.permute.xlu0 %1053
        %v1087 = vsel %vm495, %v801, %v992
        %v1088 = vsel %vm495, %v804, %v994
        %v1089 = vsel %vm495, %v809, %v996
        %v1090 = vsel %vm495, %v812, %v998
        %v1091 = vsel %vm495, %v817, %v1000
        %v1092 = vsel %vm495, %v820, %v1002
        %v1093 = vsel %vm495, %v825, %v1004
        %v1094 = vsel %vm495, %v828, %v1006
        %v1095 = vsel %vm495, %v833, %v1008
        %v1096 = vsel %vm495, %v836, %v1010
        %v1097 = vsel %vm495, %v841, %v1012
        %v1098 = vsel %vm495, %v844, %v1014
        %v1099 = vsel %vm495, %v849, %v1016
        %v1100 = vsel %vm495, %v852, %v1018
        %v1101 = vsel %vm495, %v857, %v1020
        %v1102 = vsel %vm495, %v860, %v1022
        %v1103 = vsel %vm495, %v865, %v1024
        %v1104 = vsel %vm495, %v868, %v1026
        %v1105 = vsel %vm495, %v873, %v1028
        %v1106 = vsel %vm495, %v876, %v1030
        %v1107 = vsel %vm495, %v881, %v1032
        %v1108 = vsel %vm495, %v884, %v1034
        %v1109 = vsel %vm495, %v889, %v1036
        %v1110 = vsel %vm495, %v892, %v1038
        %v1111 = vsel %vm495, %v897, %v1040
        %v1112 = vsel %vm495, %v900, %v1042
        %v1113 = vsel %vm495, %v905, %v1044
        %v1114 = vsel %vm495, %v908, %v1046
        %v1115 = vsel %vm495, %v913, %v1048
        %v1116 = vsel %vm495, %v916, %v1050
        %v1117 = vsel %vm495, %v921, %v1052
        %v1118 = vsel %vm495, %v924, %v1054
        %v1119 = vpack.c.bf16 %v1088, %v1087
        %v1120 = vpack.c.bf16 %v1090, %v1089
        %v1121 = vpack.c.bf16 %v1092, %v1091
        %v1122 = vpack.c.bf16 %v1094, %v1093
        %v1123 = vpack.c.bf16 %v1096, %v1095
        %v1124 = vpack.c.bf16 %v1098, %v1097
        %v1125 = vpack.c.bf16 %v1100, %v1099
        %v1126 = vpack.c.bf16 %v1102, %v1101
        %v1127 = vpack.c.bf16 %v1104, %v1103
        %v1128 = vpack.c.bf16 %v1106, %v1105
        %v1129 = vpack.c.bf16 %v1108, %v1107
        %v1130 = vpack.c.bf16 %v1110, %v1109
        %v1131 = vpack.c.bf16 %v1112, %v1111
        %v1132 = vpack.c.bf16 %v1114, %v1113
        %v1133 = vpack.c.bf16 %v1116, %v1115
        %v1134 = vpack.c.bf16 %v1118, %v1117
        %v1151 = vunpack.c.l.b16 %v1119
        %v1152 = vunpack.c.h.b16 %v1119
        %v1153 = vunpack.c.l.b16 %v1120
        %v1154 = vunpack.c.h.b16 %v1120
        %v1155 = vunpack.c.l.b16 %v1121
        %v1156 = vunpack.c.h.b16 %v1121
        %v1157 = vunpack.c.l.b16 %v1122
        %v1158 = vunpack.c.h.b16 %v1122
        %v1159 = vunpack.c.l.b16 %v1123
        %v1160 = vunpack.c.h.b16 %v1123
        %v1161 = vunpack.c.l.b16 %v1124
        %v1162 = vunpack.c.h.b16 %v1124
        %v1163 = vunpack.c.l.b16 %v1125
        %v1164 = vunpack.c.h.b16 %v1125
        %v1165 = vunpack.c.l.b16 %v1126
        %v1166 = vunpack.c.h.b16 %v1126
        %v1167 = vunpack.c.l.b16 %v1127
        %v1168 = vunpack.c.h.b16 %v1127
        %v1169 = vunpack.c.l.b16 %v1128
        %v1170 = vunpack.c.h.b16 %v1128
        %v1171 = vunpack.c.l.b16 %v1129
        %v1172 = vunpack.c.h.b16 %v1129
        %v1173 = vunpack.c.l.b16 %v1130
        %v1174 = vunpack.c.h.b16 %v1130
        %v1175 = vunpack.c.l.b16 %v1131
        %v1176 = vunpack.c.h.b16 %v1131
        %v1177 = vunpack.c.l.b16 %v1132
        %v1178 = vunpack.c.h.b16 %v1132
        %v1179 = vunpack.c.l.b16 %v1133
        %v1180 = vunpack.c.h.b16 %v1133
        %v1181 = vunpack.c.l.b16 %v1134
        %v1182 = vunpack.c.h.b16 %v1134
        %v1183 = vpack.c.b16 %v1151, %v1151
        %v1184 = vpack.c.b16 %v1152, %v1152
        %v1185 = vpack.c.b16 %v1153, %v1153
        %v1186 = vpack.c.b16 %v1154, %v1154
        %v1187 = vpack.c.b16 %v1155, %v1155
        %v1188 = vpack.c.b16 %v1156, %v1156
        %v1189 = vpack.c.b16 %v1157, %v1157
        %v1190 = vpack.c.b16 %v1158, %v1158
        %v1191 = vpack.c.b16 %v1159, %v1159
        %v1192 = vpack.c.b16 %v1160, %v1160
        %v1193 = vpack.c.b16 %v1161, %v1161
        %v1194 = vpack.c.b16 %v1162, %v1162
        %v1195 = vpack.c.b16 %v1163, %v1163
        %v1196 = vpack.c.b16 %v1164, %v1164
        %v1197 = vpack.c.b16 %v1165, %v1165
        %v1198 = vpack.c.b16 %v1166, %v1166
        %v1199 = vpack.c.b16 %v1167, %v1167
        %v1200 = vpack.c.b16 %v1168, %v1168
        %v1201 = vpack.c.b16 %v1169, %v1169
        %v1202 = vpack.c.b16 %v1170, %v1170
        %v1203 = vpack.c.b16 %v1171, %v1171
        %v1204 = vpack.c.b16 %v1172, %v1172
        %v1205 = vpack.c.b16 %v1173, %v1173
        %v1206 = vpack.c.b16 %v1174, %v1174
        %v1207 = vpack.c.b16 %v1175, %v1175
        %v1208 = vpack.c.b16 %v1176, %v1176
        %v1209 = vpack.c.b16 %v1177, %v1177
        %v1210 = vpack.c.b16 %v1178, %v1178
        %v1211 = vpack.c.b16 %v1179, %v1179
        %v1212 = vpack.c.b16 %v1180, %v1180
        %v1213 = vpack.c.b16 %v1181, %v1181
        %v1214 = vpack.c.b16 %v1182, %v1182
        %vm1247 = vcmask 519168
        %1248 = vst.msk [vmem:[%s427] sm:$0xf] %vm1247, %v1183
        %1249 = vst.msk [vmem:[%s427 + $0x4] sm:$0xf] %vm1247, %v1184
        %1250 = vst.msk [vmem:[%s427 + $0x8] sm:$0xf] %vm1247, %v1185
        %1251 = vst.msk [vmem:[%s427 + $0xc] sm:$0xf] %vm1247, %v1186
        %1252 = vst.msk [vmem:[%s427 + $0x10] sm:$0xf] %vm1247, %v1187
        %1253 = vst.msk [vmem:[%s427 + $0x14] sm:$0xf] %vm1247, %v1188
        %1254 = vst.msk [vmem:[%s427 + $0x18] sm:$0xf] %vm1247, %v1189
        %1255 = vst.msk [vmem:[%s427 + $0x1c] sm:$0xf] %vm1247, %v1190
        %1256 = vst.msk [vmem:[%s427 + $0x20] sm:$0xf] %vm1247, %v1191
        %1257 = vst.msk [vmem:[%s427 + $0x24] sm:$0xf] %vm1247, %v1192
        %1258 = vst.msk [vmem:[%s427 + $0x28] sm:$0xf] %vm1247, %v1193
        %1259 = vst.msk [vmem:[%s427 + $0x2c] sm:$0xf] %vm1247, %v1194
        %1260 = vst.msk [vmem:[%s427 + $0x30] sm:$0xf] %vm1247, %v1195
        %1261 = vst.msk [vmem:[%s427 + $0x34] sm:$0xf] %vm1247, %v1196
        %1262 = vst.msk [vmem:[%s427 + $0x38] sm:$0xf] %vm1247, %v1197
        %1263 = vst.msk [vmem:[%s427 + $0x3c] sm:$0xf] %vm1247, %v1198
        %1264 = vst.msk [vmem:[%s427 + $0x40] sm:$0xf] %vm1247, %v1199
        %1265 = vst.msk [vmem:[%s427 + $0x44] sm:$0xf] %vm1247, %v1200
        %1266 = vst.msk [vmem:[%s427 + $0x48] sm:$0xf] %vm1247, %v1201
        %1267 = vst.msk [vmem:[%s427 + $0x4c] sm:$0xf] %vm1247, %v1202
        %1268 = vst.msk [vmem:[%s427 + $0x50] sm:$0xf] %vm1247, %v1203
        %1269 = vst.msk [vmem:[%s427 + $0x54] sm:$0xf] %vm1247, %v1204
        %1270 = vst.msk [vmem:[%s427 + $0x58] sm:$0xf] %vm1247, %v1205
        %1271 = vst.msk [vmem:[%s427 + $0x5c] sm:$0xf] %vm1247, %v1206
        %1272 = vst.msk [vmem:[%s427 + $0x60] sm:$0xf] %vm1247, %v1207
        %1273 = vst.msk [vmem:[%s427 + $0x64] sm:$0xf] %vm1247, %v1208
        %1274 = vst.msk [vmem:[%s427 + $0x68] sm:$0xf] %vm1247, %v1209
        %1275 = vst.msk [vmem:[%s427 + $0x6c] sm:$0xf] %vm1247, %v1210
        %1276 = vst.msk [vmem:[%s427 + $0x70] sm:$0xf] %vm1247, %v1211
        %1277 = vst.msk [vmem:[%s427 + $0x74] sm:$0xf] %vm1247, %v1212
        %1278 = vst.msk [vmem:[%s427 + $0x78] sm:$0xf] %vm1247, %v1213
        %1279 = vst.msk [vmem:[%s427 + $0x7c] sm:$0xf] %vm1247, %v1214
        %s1280 = sand.u32 %s195, 1
        %s1281 = scalar_lea.sflag [#allocation4], %s1280
        %s1282 = sand.u32 %s195, 1
        %s1283 = smul.addr %s1282, 32
        %s1284 = scalar_lea.vmem [#allocation13], %s1283
        %s1285 = sand.u32 %s223, 1
        %s1286 = scalar_lea.sflag [#allocation15], %s1285
        %s1287 = sand.u32 %s223, 1
        %s1288 = smul.addr %s1287, 128
        %s1289 = scalar_lea.vmem [#allocation14], %s1288
        // Predicated region
        $region69: #{transformer_forward.4} parent=43 // pred_check
          %p1290 = pneg %p205
        $region70: #{transformer_forward.4} parent=43 // pred_check_branch
          %1292 = sbr.rel (%p1290) target = $region72
        $region71: #{transformer_forward.4} parent=43 // pred_region
          %s1293 = smul.u32 2, %s38
          %s1295 = ssub.s32 512, 512
          %1296 = vsyncadd %s1281, %s1295
          %s1297 = smul.addr %s37, 8
          %s1298 = sadd.s32 %s1293, %s1297
          %s1299 = smul.addr %s1298, 64
          %s1300 = scalar_lea.hbm %s6, %s1299
          %s1301 = sshll.u32 %s1284, 4
          %s1302 = int_to_ptr.vmem [resolvable:$true] %s1301
          %1307 = dma.vmem_to_hbm [thread:$0]  %s1302, 512, %s1300, %s1281, 128, 128, 8
        $region72: #{transformer_forward.4} parent=43 // pred_fallthru
          _
        // Predicated region
        $region73: #{transformer_forward.4} parent=43 // pred_check
          %p1308 = pneg %p233
        $region74: #{transformer_forward.4} parent=43 // pred_check_branch
          %1310 = sbr.rel (%p1308) target = $region76
        $region75: #{transformer_forward.4} parent=43 // pred_region
          %s1311 = smul.u32 32, %s38
          %s1313 = ssub.s32 2048, 2048
          %1314 = vsyncadd %s1286, %s1313
          %s1315 = smul.addr %s37, 32
          %s1316 = sadd.s32 %s1311, %s1315
          %s1317 = smul.addr %s1316, 64
          %s1318 = scalar_lea.hbm %s7, %s1317
          %s1319 = sshll.u32 %s1289, 4
          %s1320 = int_to_ptr.vmem [resolvable:$true] %s1319
          %1325 = dma.vmem_to_hbm [thread:$0]  %s1320, 2048, %s1318, %s1286, 64, 64, 4
        $region76: #{transformer_forward.4} parent=43 // pred_fallthru
          _
      $region44: #{transformer_forward.4} parent=5 // pred_fallthru
        _
      %p1326 = scmp.le.s32.totalorder 2, %s28
      // Predicated region
      $region77: #{transformer_forward.4} parent=5 // pred_check
        %p1327 = pneg %p1326
      $region78: #{transformer_forward.4} parent=5 // pred_check_branch
        %1329 = sbr.rel (%p1327) target = $region80
      $region79: #{transformer_forward.4} parent=5 // pred_region
        %s1330 = ssub.s32 %s28, 2
        // Predicated region
        $region81: #{transformer_forward.4} parent=79 // pred_check
          %p1331 = pneg %p211
        $region82: #{transformer_forward.4} parent=79 // pred_check_branch
          %1333 = sbr.rel (%p1331) target = $region84
        $region83: #{transformer_forward.4} parent=79 // pred_region
          %s1334 = sand.u32 %s196, 1
          %s1335 = scalar_lea.sflag [#allocation4], %s1334
          %s1336 = sand.u32 %s196, 1
          %s1337 = smul.addr %s1336, 32
          %s1338 = scalar_lea.vmem [#allocation13], %s1337
          %1339 = dma.done %s1335, 512
        $region84: #{transformer_forward.4} parent=79 // pred_fallthru
          _
        // Predicated region
        $region85: #{transformer_forward.4} parent=79 // pred_check
          %p1340 = pneg %p239
        $region86: #{transformer_forward.4} parent=79 // pred_check_branch
          %1342 = sbr.rel (%p1340) target = $region88
        $region87: #{transformer_forward.4} parent=79 // pred_region
          %s1343 = sand.u32 %s224, 1
          %s1344 = scalar_lea.sflag [#allocation15], %s1343
          %s1345 = sand.u32 %s224, 1
          %s1346 = smul.addr %s1345, 128
          %s1347 = scalar_lea.vmem [#allocation14], %s1346
          %1348 = dma.done %s1344, 2048
        $region88: #{transformer_forward.4} parent=79 // pred_fallthru
          _
      $region80: #{transformer_forward.4} parent=5 // pred_fallthru
        _
    $region6: #{transformer_forward.4} parent=1 // loop_footer
      %s32 = sadd.s32 1, %s28
    $region7: #{transformer_forward.4} parent=1 // loop_footer_branch
      %27 = sbr.rel target = $region3
    $region8: #{transformer_forward.4} parent=1 // loop_exit
      _
    %1349 = vsyncpa [#allocation3], 1
    %s1350 = scalar_lea.sflag [#allocation3], 1
    %1351 = vsyncpa %s1350, 1
    %1352 = vsyncpa [#allocation6], 1
    %s1353 = scalar_lea.sflag [#allocation6], 1
    %1354 = vsyncpa %s1353, 1
    %1355 = vsyncpa [#allocation9], 1
    %1356 = vsyncpa [#allocation12], 1
    %1357 = vsyncpa [#allocation4], 1
    %s1358 = scalar_lea.sflag [#allocation4], 1
    %1359 = vsyncpa %s1358, 1
    %1360 = vsyncpa [#allocation15], 1
    %s1361 = scalar_lea.sflag [#allocation15], 1
    %1362 = vsyncpa %s1361, 1

// kernel: transformer_forward.6
$region0: #{transformer_forward.6}
  #allocation0 [shape = 'u32[]', space=smem, size = 0x4, offset = 0x4, fixed_abs, tag = 'smem constant byte address 0x4 - core index']
  #allocation1 [shape = 'u32[144,128]{1,0:T(1,128)}', space=vmem, size = 0x12000, scoped, tag = 'internal scratch']
  %s0 = inlined_call_operand.hbm [shape: bf16[2,64,32], index: 0, kind: input, shape index: {}]
  %s1 = inlined_call_operand.hbm [shape: bf16[2,32,64], index: 1, kind: input, shape index: {}]
  %s2 = inlined_call_operand.hbm [shape: bf16[2,64,32], index: 2, kind: input, shape index: {}]
  %s3 = inlined_call_operand.hbm [shape: bf16[2,64,32], index: 3, kind: input, shape index: {}]
  %s4 = inlined_call_operand.hbm [shape: f32[2,1,32], index: 4, kind: input, shape index: {}]
  %s5 = inlined_call_operand.hbm [shape: f32[2,1,32], index: 5, kind: input, shape index: {}]
  %s6 = inlined_call_operand.hbm [shape: bf16[32,32], index: 6, kind: input, shape index: {}]
  %s7 = inlined_call_operand.hbm [shape: f32[1,32], index: 7, kind: input, shape index: {}]
  %s8 = inlined_call_operand.hbm [shape: bf16[32,32], index: 8, kind: input, shape index: {}]
  %s9 = inlined_call_operand.hbm [shape: f32[32,1], index: 9, kind: input, shape index: {}]
  %s10 = inlined_call_operand.hbm [shape: bf16[32,32], index: 10, kind: input, shape index: {}]
  %s11 = inlined_call_operand.hbm [shape: f32[1,32], index: 11, kind: input, shape index: {}]
  %s12 = inlined_call_operand.hbm [shape: bf16[2,64,32], index: 12, kind: output, shape index: {}]
  %s13 = sld [smem:[#allocation0]]
  $region129: #{transformer_forward.6} parent=0
    _
  %s15 = ssub.s32 1, %s13
  %s16 = scalar_select 0, %s15, %s13
  $region1: #{transformer_forward.6} parent=0
    #allocation2 [shape = 'u8[32768]{0}', space=vmem, size = 0x8000, scoped, tag = 'input window, operand 0']
    #allocation3 [shape = 's32[2]{0}', space=sflag, size = 0x8, scoped, tag = 'scoped memory for transformer_forward.6']
    #allocation4 [shape = 's32[2]{0}', space=sflag, size = 0x8, scoped, tag = 'scoped memory for transformer_forward.6']
    #allocation5 [shape = 'u8[16384]{0}', space=vmem, size = 0x4000, scoped, tag = 'input window, operand 1']
    #allocation6 [shape = 's32[2]{0}', space=sflag, size = 0x8, scoped, tag = 'scoped memory for transformer_forward.6']
    #allocation7 [shape = 'u8[32768]{0}', space=vmem, size = 0x8000, scoped, tag = 'input window, operand 2']
    #allocation8 [shape = 'u8[32768]{0}', space=vmem, size = 0x8000, scoped, tag = 'input window, operand 3']
    #allocation9 [shape = 's32[2]{0}', space=sflag, size = 0x8, scoped, tag = 'scoped memory for transformer_forward.6']
    #allocation10 [shape = 'u8[1024]{0}', space=vmem, size = 0x400, scoped, tag = 'input window, operand 4']
    #allocation11 [shape = 'u8[1024]{0}', space=vmem, size = 0x400, scoped, tag = 'input window, operand 5']
    #allocation12 [shape = 's32[2]{0}', space=sflag, size = 0x8, scoped, tag = 'scoped memory for transformer_forward.6']
    #allocation13 [shape = 'u8[8192]{0}', space=vmem, size = 0x2000, scoped, tag = 'input window, operand 6, single buffered']
    #allocation14 [shape = 'u8[512]{0}', space=vmem, size = 0x400, scoped, tag = 'input window, operand 7, single buffered']
    #allocation15 [shape = 's32[1]{0}', space=sflag, size = 0x4, scoped, tag = 'scoped memory for transformer_forward.6']
    #allocation16 [shape = 'u8[8192]{0}', space=vmem, size = 0x2000, scoped, tag = 'input window, operand 8, single buffered']
    #allocation17 [shape = 'u8[16384]{0}', space=vmem, size = 0x4000, scoped, tag = 'input window, operand 9, single buffered']
    #allocation18 [shape = 's32[1]{0}', space=sflag, size = 0x4, scoped, tag = 'scoped memory for transformer_forward.6']
    #allocation19 [shape = 'u8[8192]{0}', space=vmem, size = 0x2000, scoped, tag = 'input window, operand 10, single buffered']
    #allocation20 [shape = 'u8[512]{0}', space=vmem, size = 0x400, scoped, tag = 'input window, operand 11, single buffered']
    #allocation21 [shape = 's32[1]{0}', space=sflag, size = 0x4, scoped, tag = 'scoped memory for transformer_forward.6']
    #allocation22 [shape = 'u8[32768]{0}', space=vmem, size = 0x8000, scoped, tag = 'output window, operand 0']
    %17 = vsyncpa [#allocation3], 0
    %s18 = scalar_lea.sflag [#allocation3], 1
    %19 = vsyncpa %s18, 0
    %20 = vsyncpa [#allocation6], 0
    %s21 = scalar_lea.sflag [#allocation6], 1
    %22 = vsyncpa %s21, 0
    %23 = vsyncpa [#allocation9], 0
    %s24 = scalar_lea.sflag [#allocation9], 1
    %25 = vsyncpa %s24, 0
    %26 = vsyncpa [#allocation12], 0
    %s27 = scalar_lea.sflag [#allocation12], 1
    %28 = vsyncpa %s27, 0
    %29 = vsyncpa [#allocation15], 0
    %30 = vsyncpa [#allocation18], 0
    %31 = vsyncpa [#allocation21], 0
    %32 = vsyncpa [#allocation4], 0
    %s33 = scalar_lea.sflag [#allocation4], 1
    %34 = vsyncpa %s33, 0
    loop: start=0, step=1, limit=4
    $region2: #{transformer_forward.6} parent=1 // loop_pre_header
      _
    $region3: #{transformer_forward.6} parent=1 // loop_header
      %s36 = sphi 0, %s40
      %p37 = scmp.ge.s32.totalorder %s36, 4
      %s46 = sphi 0, %s48
      %s49 = sphi 0, %s46
      %s50 = sphi 0, %s49
      %s66 = sphi 0, %s50
      %s72 = sphi 0, %s74
      %s75 = sphi 0, %s72
      %s76 = sphi 0, %s75
      %s92 = sphi 0, %s76
      %s98 = sphi 0, %s100
      %s101 = sphi 0, %s98
      %s102 = sphi 0, %s101
      %s118 = sphi 0, %s102
      %s124 = sphi 0, %s126
      %s127 = sphi 0, %s124
      %s128 = sphi 0, %s127
      %s144 = sphi 0, %s128
      %s150 = sphi 0, %s152
      %s153 = sphi 0, %s150
      %s154 = sphi 0, %s153
      %s170 = sphi 0, %s154
      %s176 = sphi 0, %s178
      %s179 = sphi 0, %s176
      %s180 = sphi 0, %s179
      %s196 = sphi 0, %s180
      %s200 = sphi 0, %s200
      %s202 = sphi 0, %s200
      %s203 = sphi 0, %s202
      %s217 = sphi 0, %s203
      %s221 = sphi 0, %s221
      %s223 = sphi 0, %s221
      %s224 = sphi 0, %s223
      %s238 = sphi 0, %s224
      %s242 = sphi 0, %s242
      %s244 = sphi 0, %s242
      %s245 = sphi 0, %s244
      %s259 = sphi 0, %s245
      %s263 = sphi 0, %s263
      %s265 = sphi 0, %s263
      %s266 = sphi 0, %s265
      %s280 = sphi 0, %s266
      %s284 = sphi 0, %s284
      %s286 = sphi 0, %s284
      %s287 = sphi 0, %s286
      %s301 = sphi 0, %s287
      %s305 = sphi 0, %s305
      %s307 = sphi 0, %s305
      %s308 = sphi 0, %s307
      %s322 = sphi 0, %s308
      %s328 = sphi 0, %s330
      %s331 = sphi 0, %s328
      %s332 = sphi 0, %s331
      %s348 = sphi 0, %s332
    $region4: #{transformer_forward.6} parent=1 // loop_header_branch
      %39 = sbr.rel (%p37) target = $region8
    $region5: #{transformer_forward.6} parent=1 // loop_body
      %s41 = ssub.s32 %s36, 1
      %s42 = ssub.s32 %s36, 2
      %s43 = sadd.s32 %s36, 1
      %s44 = ssub.s32 %s36, %s43
      %p45 = scmp.eq.s32.totalorder %s44, 0
      %s47 = sadd.s32 %s46, 1
      %s48 = scalar_select %p45, %s46, %s47
      %p51 = pneg %p45
      %p52 = scmp.eq.s32.totalorder %s36, 1
      %p53 = por %p51, %p52
      %p54 = scmp.ne.s32.totalorder %s46, %s49
      %p55 = scmp.eq.s32.totalorder %s36, 0
      %p56 = por %p54, %p55
      %p57 = scmp.ne.s32.totalorder %s46, %s49
      %p58 = scmp.eq.s32.totalorder %s41, 1
      %p59 = por %p57, %p58
      %p60 = scmp.ne.s32.totalorder %s49, %s50
      %p61 = scmp.eq.s32.totalorder %s41, 0
      %p62 = por %p60, %p61
      %p63 = scmp.ne.s32.totalorder %s49, %s50
      %p64 = scmp.eq.s32.totalorder %s42, 1
      %p65 = por %p63, %p64
      %p67 = scmp.ne.s32.totalorder %s50, %s66
      %p68 = scmp.eq.s32.totalorder %s42, 0
      %p69 = por %p67, %p68
      %s70 = ssub.s32 %s36, %s43
      %p71 = scmp.eq.s32.totalorder %s70, 0
      %s73 = sadd.s32 %s72, 1
      %s74 = scalar_select %p71, %s72, %s73
      %p77 = pneg %p71
      %p78 = scmp.eq.s32.totalorder %s36, 1
      %p79 = por %p77, %p78
      %p80 = scmp.ne.s32.totalorder %s72, %s75
      %p81 = scmp.eq.s32.totalorder %s36, 0
      %p82 = por %p80, %p81
      %p83 = scmp.ne.s32.totalorder %s72, %s75
      %p84 = scmp.eq.s32.totalorder %s41, 1
      %p85 = por %p83, %p84
      %p86 = scmp.ne.s32.totalorder %s75, %s76
      %p87 = scmp.eq.s32.totalorder %s41, 0
      %p88 = por %p86, %p87
      %p89 = scmp.ne.s32.totalorder %s75, %s76
      %p90 = scmp.eq.s32.totalorder %s42, 1
      %p91 = por %p89, %p90
      %p93 = scmp.ne.s32.totalorder %s76, %s92
      %p94 = scmp.eq.s32.totalorder %s42, 0
      %p95 = por %p93, %p94
      %s96 = ssub.s32 %s36, %s43
      %p97 = scmp.eq.s32.totalorder %s96, 0
      %s99 = sadd.s32 %s98, 1
      %s100 = scalar_select %p97, %s98, %s99
      %p103 = pneg %p97
      %p104 = scmp.eq.s32.totalorder %s36, 1
      %p105 = por %p103, %p104
      %p106 = scmp.ne.s32.totalorder %s98, %s101
      %p107 = scmp.eq.s32.totalorder %s36, 0
      %p108 = por %p106, %p107
      %p109 = scmp.ne.s32.totalorder %s98, %s101
      %p110 = scmp.eq.s32.totalorder %s41, 1
      %p111 = por %p109, %p110
      %p112 = scmp.ne.s32.totalorder %s101, %s102
      %p113 = scmp.eq.s32.totalorder %s41, 0
      %p114 = por %p112, %p113
      %p115 = scmp.ne.s32.totalorder %s101, %s102
      %p116 = scmp.eq.s32.totalorder %s42, 1
      %p117 = por %p115, %p116
      %p119 = scmp.ne.s32.totalorder %s102, %s118
      %p120 = scmp.eq.s32.totalorder %s42, 0
      %p121 = por %p119, %p120
      %s122 = ssub.s32 %s36, %s43
      %p123 = scmp.eq.s32.totalorder %s122, 0
      %s125 = sadd.s32 %s124, 1
      %s126 = scalar_select %p123, %s124, %s125
      %p129 = pneg %p123
      %p130 = scmp.eq.s32.totalorder %s36, 1
      %p131 = por %p129, %p130
      %p132 = scmp.ne.s32.totalorder %s124, %s127
      %p133 = scmp.eq.s32.totalorder %s36, 0
      %p134 = por %p132, %p133
      %p135 = scmp.ne.s32.totalorder %s124, %s127
      %p136 = scmp.eq.s32.totalorder %s41, 1
      %p137 = por %p135, %p136
      %p138 = scmp.ne.s32.totalorder %s127, %s128
      %p139 = scmp.eq.s32.totalorder %s41, 0
      %p140 = por %p138, %p139
      %p141 = scmp.ne.s32.totalorder %s127, %s128
      %p142 = scmp.eq.s32.totalorder %s42, 1
      %p143 = por %p141, %p142
      %p145 = scmp.ne.s32.totalorder %s128, %s144
      %p146 = scmp.eq.s32.totalorder %s42, 0
      %p147 = por %p145, %p146
      %s148 = ssub.s32 %s36, %s43
      %p149 = scmp.eq.s32.totalorder %s148, 0
      %s151 = sadd.s32 %s150, 1
      %s152 = scalar_select %p149, %s150, %s151
      %p155 = pneg %p149
      %p156 = scmp.eq.s32.totalorder %s36, 1
      %p157 = por %p155, %p156
      %p158 = scmp.ne.s32.totalorder %s150, %s153
      %p159 = scmp.eq.s32.totalorder %s36, 0
      %p160 = por %p158, %p159
      %p161 = scmp.ne.s32.totalorder %s150, %s153
      %p162 = scmp.eq.s32.totalorder %s41, 1
      %p163 = por %p161, %p162
      %p164 = scmp.ne.s32.totalorder %s153, %s154
      %p165 = scmp.eq.s32.totalorder %s41, 0
      %p166 = por %p164, %p165
      %p167 = scmp.ne.s32.totalorder %s153, %s154
      %p168 = scmp.eq.s32.totalorder %s42, 1
      %p169 = por %p167, %p168
      %p171 = scmp.ne.s32.totalorder %s154, %s170
      %p172 = scmp.eq.s32.totalorder %s42, 0
      %p173 = por %p171, %p172
      %s174 = ssub.s32 %s36, %s43
      %p175 = scmp.eq.s32.totalorder %s174, 0
      %s177 = sadd.s32 %s176, 1
      %s178 = scalar_select %p175, %s176, %s177
      %p181 = pneg %p175
      %p182 = scmp.eq.s32.totalorder %s36, 1
      %p183 = por %p181, %p182
      %p184 = scmp.ne.s32.totalorder %s176, %s179
      %p185 = scmp.eq.s32.totalorder %s36, 0
      %p186 = por %p184, %p185
      %p187 = scmp.ne.s32.totalorder %s176, %s179
      %p188 = scmp.eq.s32.totalorder %s41, 1
      %p189 = por %p187, %p188
      %p190 = scmp.ne.s32.totalorder %s179, %s180
      %p191 = scmp.eq.s32.totalorder %s41, 0
      %p192 = por %p190, %p191
      %p193 = scmp.ne.s32.totalorder %s179, %s180
      %p194 = scmp.eq.s32.totalorder %s42, 1
      %p195 = por %p193, %p194
      %p197 = scmp.ne.s32.totalorder %s180, %s196
      %p198 = scmp.eq.s32.totalorder %s42, 0
      %p199 = por %p197, %p198
      %s201 = sadd.s32 %s200, 1
      %p204 = scmp.eq.s32.totalorder %s36, 1
      %p205 = scmp.ne.s32.totalorder %s200, %s202
      %p206 = scmp.eq.s32.totalorder %s36, 0
      %p207 = por %p205, %p206
      %p208 = scmp.ne.s32.totalorder %s200, %s202
      %p209 = scmp.eq.s32.totalorder %s41, 1
      %p210 = por %p208, %p209
      %p211 = scmp.ne.s32.totalorder %s202, %s203
      %p212 = scmp.eq.s32.totalorder %s41, 0
      %p213 = por %p211, %p212
      %p214 = scmp.ne.s32.totalorder %s202, %s203
      %p215 = scmp.eq.s32.totalorder %s42, 1
      %p216 = por %p214, %p215
      %p218 = scmp.ne.s32.totalorder %s203, %s217
      %p219 = scmp.eq.s32.totalorder %s42, 0
      %p220 = por %p218, %p219
      %s222 = sadd.s32 %s221, 1
      %p225 = scmp.eq.s32.totalorder %s36, 1
      %p226 = scmp.ne.s32.totalorder %s221, %s223
      %p227 = scmp.eq.s32.totalorder %s36, 0
      %p228 = por %p226, %p227
      %p229 = scmp.ne.s32.totalorder %s221, %s223
      %p230 = scmp.eq.s32.totalorder %s41, 1
      %p231 = por %p229, %p230
      %p232 = scmp.ne.s32.totalorder %s223, %s224
      %p233 = scmp.eq.s32.totalorder %s41, 0
      %p234 = por %p232, %p233
      %p235 = scmp.ne.s32.totalorder %s223, %s224
      %p236 = scmp.eq.s32.totalorder %s42, 1
      %p237 = por %p235, %p236
      %p239 = scmp.ne.s32.totalorder %s224, %s238
      %p240 = scmp.eq.s32.totalorder %s42, 0
      %p241 = por %p239, %p240
      %s243 = sadd.s32 %s242, 1
      %p246 = scmp.eq.s32.totalorder %s36, 1
      %p247 = scmp.ne.s32.totalorder %s242, %s244
      %p248 = scmp.eq.s32.totalorder %s36, 0
      %p249 = por %p247, %p248
      %p250 = scmp.ne.s32.totalorder %s242, %s244
      %p251 = scmp.eq.s32.totalorder %s41, 1
      %p252 = por %p250, %p251
      %p253 = scmp.ne.s32.totalorder %s244, %s245
      %p254 = scmp.eq.s32.totalorder %s41, 0
      %p255 = por %p253, %p254
      %p256 = scmp.ne.s32.totalorder %s244, %s245
      %p257 = scmp.eq.s32.totalorder %s42, 1
      %p258 = por %p256, %p257
      %p260 = scmp.ne.s32.totalorder %s245, %s259
      %p261 = scmp.eq.s32.totalorder %s42, 0
      %p262 = por %p260, %p261
      %s264 = sadd.s32 %s263, 1
      %p267 = scmp.eq.s32.totalorder %s36, 1
      %p268 = scmp.ne.s32.totalorder %s263, %s265
      %p269 = scmp.eq.s32.totalorder %s36, 0
      %p270 = por %p268, %p269
      %p271 = scmp.ne.s32.totalorder %s263, %s265
      %p272 = scmp.eq.s32.totalorder %s41, 1
      %p273 = por %p271, %p272
      %p274 = scmp.ne.s32.totalorder %s265, %s266
      %p275 = scmp.eq.s32.totalorder %s41, 0
      %p276 = por %p274, %p275
      %p277 = scmp.ne.s32.totalorder %s265, %s266
      %p278 = scmp.eq.s32.totalorder %s42, 1
      %p279 = por %p277, %p278
      %p281 = scmp.ne.s32.totalorder %s266, %s280
      %p282 = scmp.eq.s32.totalorder %s42, 0
      %p283 = por %p281, %p282
      %s285 = sadd.s32 %s284, 1
      %p288 = scmp.eq.s32.totalorder %s36, 1
      %p289 = scmp.ne.s32.totalorder %s284, %s286
      %p290 = scmp.eq.s32.totalorder %s36, 0
      %p291 = por %p289, %p290
      %p292 = scmp.ne.s32.totalorder %s284, %s286
      %p293 = scmp.eq.s32.totalorder %s41, 1
      %p294 = por %p292, %p293
      %p295 = scmp.ne.s32.totalorder %s286, %s287
      %p296 = scmp.eq.s32.totalorder %s41, 0
      %p297 = por %p295, %p296
      %p298 = scmp.ne.s32.totalorder %s286, %s287
      %p299 = scmp.eq.s32.totalorder %s42, 1
      %p300 = por %p298, %p299
      %p302 = scmp.ne.s32.totalorder %s287, %s301
      %p303 = scmp.eq.s32.totalorder %s42, 0
      %p304 = por %p302, %p303
      %s306 = sadd.s32 %s305, 1
      %p309 = scmp.eq.s32.totalorder %s36, 1
      %p310 = scmp.ne.s32.totalorder %s305, %s307
      %p311 = scmp.eq.s32.totalorder %s36, 0
      %p312 = por %p310, %p311
      %p313 = scmp.ne.s32.totalorder %s305, %s307
      %p314 = scmp.eq.s32.totalorder %s41, 1
      %p315 = por %p313, %p314
      %p316 = scmp.ne.s32.totalorder %s307, %s308
      %p317 = scmp.eq.s32.totalorder %s41, 0
      %p318 = por %p316, %p317
      %p319 = scmp.ne.s32.totalorder %s307, %s308
      %p320 = scmp.eq.s32.totalorder %s42, 1
      %p321 = por %p319, %p320
      %p323 = scmp.ne.s32.totalorder %s308, %s322
      %p324 = scmp.eq.s32.totalorder %s42, 0
      %p325 = por %p323, %p324
      %s326 = ssub.s32 %s36, %s43
      %p327 = scmp.eq.s32.totalorder %s326, 0
      %s329 = sadd.s32 %s328, 1
      %s330 = scalar_select %p327, %s328, %s329
      %p333 = pneg %p327
      %p334 = scmp.eq.s32.totalorder %s36, 1
      %p335 = por %p333, %p334
      %p336 = scmp.ne.s32.totalorder %s328, %s331
      %p337 = scmp.eq.s32.totalorder %s36, 0
      %p338 = por %p336, %p337
      %p339 = scmp.ne.s32.totalorder %s328, %s331
      %p340 = scmp.eq.s32.totalorder %s41, 1
      %p341 = por %p339, %p340
      %p342 = scmp.ne.s32.totalorder %s331, %s332
      %p343 = scmp.eq.s32.totalorder %s41, 0
      %p344 = por %p342, %p343
      %p345 = scmp.ne.s32.totalorder %s331, %s332
      %p346 = scmp.eq.s32.totalorder %s42, 1
      %p347 = por %p345, %p346
      %p349 = scmp.ne.s32.totalorder %s332, %s348
      %p350 = scmp.eq.s32.totalorder %s42, 0
      %p351 = por %p349, %p350
      %p352 = scmp.le.s32.totalorder 1, %s36
      %p353 = scmp.lt.s32.totalorder %s36, 3
      %p354 = pnand %p352, %p353
      %p355 = pneg %p354
      // Predicated region
      $region9: #{transformer_forward.6} parent=5 // pred_check
        _
      $region10: #{transformer_forward.6} parent=5 // pred_check_branch
        %357 = sbr.rel (%p354) target = $region12
      $region11: #{transformer_forward.6} parent=5 // pred_region
        %s358 = ssub.s32 %s36, 1
        // Predicated region
        $region13: #{transformer_forward.6} parent=11 // pred_check
          %p359 = pneg %p213
        $region14: #{transformer_forward.6} parent=11 // pred_check_branch
          %361 = sbr.rel (%p359) target = $region16
        $region15: #{transformer_forward.6} parent=11 // pred_region
          %s363 = ssub.s32 256, 256
          %364 = vsyncadd [#allocation12], %s363
          %s365 = sshll.u32 [#allocation13], 4
          %s366 = int_to_ptr.vmem [resolvable:$true] %s365
          %371 = dma.hbm_to_vmem [thread:$0]  %s6, 256, %s366, [#allocation12], 64, 64, 4
        $region16: #{transformer_forward.6} parent=11 // pred_fallthru
          _
        // Predicated region
        $region17: #{transformer_forward.6} parent=11 // pred_check
          %p372 = pneg %p234
        $region18: #{transformer_forward.6} parent=11 // pred_check_branch
          %374 = sbr.rel (%p372) target = $region20
        $region19: #{transformer_forward.6} parent=11 // pred_region
          %s376 = ssub.s32 16, 16
          %377 = vsyncadd [#allocation15], %s376
          %s379 = sshll.u32 [#allocation14], 4
          %s380 = int_to_ptr.vmem [resolvable:$true] %s379
          %382 = dma.hbm_to_vmem [thread:$0]  %s7, 16, %s380, [#allocation15]
        $region20: #{transformer_forward.6} parent=11 // pred_fallthru
          _
        // Predicated region
        $region21: #{transformer_forward.6} parent=11 // pred_check
          %p383 = pneg %p255
        $region22: #{transformer_forward.6} parent=11 // pred_check_branch
          %385 = sbr.rel (%p383) target = $region24
        $region23: #{transformer_forward.6} parent=11 // pred_region
          %s387 = ssub.s32 256, 256
          %388 = vsyncadd [#allocation15], %s387
          %s389 = sshll.u32 [#allocation16], 4
          %s390 = int_to_ptr.vmem [resolvable:$true] %s389
          %395 = dma.hbm_to_vmem [thread:$0]  %s8, 256, %s390, [#allocation15], 64, 64, 4
        $region24: #{transformer_forward.6} parent=11 // pred_fallthru
          _
        // Predicated region
        $region25: #{transformer_forward.6} parent=11 // pred_check
          %p396 = pneg %p276
        $region26: #{transformer_forward.6} parent=11 // pred_check_branch
          %398 = sbr.rel (%p396) target = $region28
        $region27: #{transformer_forward.6} parent=11 // pred_region
          %s400 = ssub.s32 512, 512
          %401 = vsyncadd [#allocation18], %s400
          %s402 = sshll.u32 [#allocation17], 4
          %s403 = int_to_ptr.vmem [resolvable:$true] %s402
          %408 = dma.hbm_to_vmem [thread:$0]  %s9, 512, %s403, [#allocation18], 128, 128, 8
        $region28: #{transformer_forward.6} parent=11 // pred_fallthru
          _
        // Predicated region
        $region29: #{transformer_forward.6} parent=11 // pred_check
          %p409 = pneg %p297
        $region30: #{transformer_forward.6} parent=11 // pred_check_branch
          %411 = sbr.rel (%p409) target = $region32
        $region31: #{transformer_forward.6} parent=11 // pred_region
          %s413 = ssub.s32 256, 256
          %414 = vsyncadd [#allocation18], %s413
          %s415 = sshll.u32 [#allocation19], 4
          %s416 = int_to_ptr.vmem [resolvable:$true] %s415
          %421 = dma.hbm_to_vmem [thread:$0]  %s10, 256, %s416, [#allocation18], 64, 64, 4
        $region32: #{transformer_forward.6} parent=11 // pred_fallthru
          _
        // Predicated region
        $region33: #{transformer_forward.6} parent=11 // pred_check
          %p422 = pneg %p318
        $region34: #{transformer_forward.6} parent=11 // pred_check_branch
          %424 = sbr.rel (%p422) target = $region36
        $region35: #{transformer_forward.6} parent=11 // pred_region
          %s426 = ssub.s32 16, 16
          %427 = vsyncadd [#allocation21], %s426
          %s429 = sshll.u32 [#allocation20], 4
          %s430 = int_to_ptr.vmem [resolvable:$true] %s429
          %432 = dma.hbm_to_vmem [thread:$0]  %s11, 16, %s430, [#allocation21]
        $region36: #{transformer_forward.6} parent=11 // pred_fallthru
          _
      $region12: #{transformer_forward.6} parent=5 // pred_fallthru
        _
      %p433 = scmp.lt.s32.totalorder %s36, 2
      // Predicated region
      $region37: #{transformer_forward.6} parent=5 // pred_check
        %p434 = pneg %p433
      $region38: #{transformer_forward.6} parent=5 // pred_check_branch
        %436 = sbr.rel (%p434) target = $region40
      $region39: #{transformer_forward.6} parent=5 // pred_region
        // Predicated region
        $region41: #{transformer_forward.6} parent=39 // pred_check
          %p437 = pneg %p56
        $region42: #{transformer_forward.6} parent=39 // pred_check_branch
          %439 = sbr.rel (%p437) target = $region44
        $region43: #{transformer_forward.6} parent=39 // pred_region
          %s440 = sand.u32 %s46, 1
          %s441 = scalar_lea.sflag [#allocation3], %s440
          %s442 = sand.u32 %s46, 1
          %s443 = smul.addr %s442, 32
          %s444 = scalar_lea.vmem [#allocation2], %s443
          %s446 = ssub.s32 512, 512
          %447 = vsyncadd %s441, %s446
          %s448 = smul.addr %s36, 8
          %s449 = smul.addr %s448, 64
          %s450 = scalar_lea.hbm %s0, %s449
          %s451 = sshll.u32 %s444, 4
          %s452 = int_to_ptr.vmem [resolvable:$true] %s451
          %457 = dma.hbm_to_vmem [thread:$0]  %s450, 512, %s452, %s441, 64, 64, 4
        $region44: #{transformer_forward.6} parent=39 // pred_fallthru
          _
        // Predicated region
        $region45: #{transformer_forward.6} parent=39 // pred_check
          %p458 = pneg %p82
        $region46: #{transformer_forward.6} parent=39 // pred_check_branch
          %460 = sbr.rel (%p458) target = $region48
        $region47: #{transformer_forward.6} parent=39 // pred_region
          %s461 = sand.u32 %s36, 1
          %s462 = scalar_lea.sflag [#allocation6], %s461
          %s463 = sand.u32 %s72, 1
          %s464 = smul.addr %s463, 16
          %s465 = scalar_lea.vmem [#allocation5], %s464
          %s467 = ssub.s32 256, 256
          %468 = vsyncadd %s462, %s467
          %s469 = smul.addr %s36, 4
          %s470 = smul.addr %s469, 64
          %s471 = scalar_lea.hbm %s1, %s470
          %s472 = sshll.u32 %s465, 4
          %s473 = int_to_ptr.vmem [resolvable:$true] %s472
          %478 = dma.hbm_to_vmem [thread:$0]  %s471, 256, %s473, %s462, 64, 64, 4
        $region48: #{transformer_forward.6} parent=39 // pred_fallthru
          _
        // Predicated region
        $region49: #{transformer_forward.6} parent=39 // pred_check
          %p479 = pneg %p108
        $region50: #{transformer_forward.6} parent=39 // pred_check_branch
          %481 = sbr.rel (%p479) target = $region52
        $region51: #{transformer_forward.6} parent=39 // pred_region
          %s482 = sand.u32 %s36, 1
          %s483 = scalar_lea.sflag [#allocation6], %s482
          %s484 = sand.u32 %s98, 1
          %s485 = smul.addr %s484, 32
          %s486 = scalar_lea.vmem [#allocation7], %s485
          %s488 = ssub.s32 512, 512
          %489 = vsyncadd %s483, %s488
          %s490 = smul.addr %s36, 8
          %s491 = smul.addr %s490, 64
          %s492 = scalar_lea.hbm %s2, %s491
          %s493 = sshll.u32 %s486, 4
          %s494 = int_to_ptr.vmem [resolvable:$true] %s493
          %499 = dma.hbm_to_vmem [thread:$0]  %s492, 512, %s494, %s483, 64, 64, 4
        $region52: #{transformer_forward.6} parent=39 // pred_fallthru
          _
        // Predicated region
        $region53: #{transformer_forward.6} parent=39 // pred_check
          %p500 = pneg %p134
        $region54: #{transformer_forward.6} parent=39 // pred_check_branch
          %502 = sbr.rel (%p500) target = $region56
        $region55: #{transformer_forward.6} parent=39 // pred_region
          %s503 = sand.u32 %s36, 1
          %s504 = scalar_lea.sflag [#allocation9], %s503
          %s505 = sand.u32 %s124, 1
          %s506 = smul.addr %s505, 32
          %s507 = scalar_lea.vmem [#allocation8], %s506
          %s509 = ssub.s32 512, 512
          %510 = vsyncadd %s504, %s509
          %s511 = smul.addr %s36, 8
          %s512 = smul.addr %s511, 64
          %s513 = scalar_lea.hbm %s3, %s512
          %s514 = sshll.u32 %s507, 4
          %s515 = int_to_ptr.vmem [resolvable:$true] %s514
          %520 = dma.hbm_to_vmem [thread:$0]  %s513, 512, %s515, %s504, 64, 64, 4
        $region56: #{transformer_forward.6} parent=39 // pred_fallthru
          _
        // Predicated region
        $region57: #{transformer_forward.6} parent=39 // pred_check
          %p521 = pneg %p160
        $region58: #{transformer_forward.6} parent=39 // pred_check_branch
          %523 = sbr.rel (%p521) target = $region60
        $region59: #{transformer_forward.6} parent=39 // pred_region
          %s524 = sand.u32 %s36, 1
          %s525 = scalar_lea.sflag [#allocation9], %s524
          %s526 = sand.u32 %s150, 1
          %s527 = scalar_lea.vmem [#allocation10], %s526
          %s529 = ssub.s32 16, 16
          %530 = vsyncadd %s525, %s529
          %s531 = smul.addr %s36, 16
          %s532 = scalar_lea.hbm %s4, %s531
          %s534 = sshll.u32 %s527, 4
          %s535 = int_to_ptr.vmem [resolvable:$true] %s534
          %537 = dma.hbm_to_vmem [thread:$0]  %s532, 16, %s535, %s525
        $region60: #{transformer_forward.6} parent=39 // pred_fallthru
          _
        // Predicated region
        $region61: #{transformer_forward.6} parent=39 // pred_check
          %p538 = pneg %p186
        $region62: #{transformer_forward.6} parent=39 // pred_check_branch
          %540 = sbr.rel (%p538) target = $region64
        $region63: #{transformer_forward.6} parent=39 // pred_region
          %s541 = sand.u32 %s36, 1
          %s542 = scalar_lea.sflag [#allocation12], %s541
          %s543 = sand.u32 %s176, 1
          %s544 = scalar_lea.vmem [#allocation11], %s543
          %s546 = ssub.s32 16, 16
          %547 = vsyncadd %s542, %s546
          %s548 = smul.addr %s36, 16
          %s549 = scalar_lea.hbm %s5, %s548
          %s551 = sshll.u32 %s544, 4
          %s552 = int_to_ptr.vmem [resolvable:$true] %s551
          %554 = dma.hbm_to_vmem [thread:$0]  %s549, 16, %s552, %s542
        $region64: #{transformer_forward.6} parent=39 // pred_fallthru
          _
      $region40: #{transformer_forward.6} parent=5 // pred_fallthru
        _
      %p555 = scmp.le.s32.totalorder 1, %s36
      %p556 = scmp.lt.s32.totalorder %s36, 3
      %p557 = pnand %p555, %p556
      %p558 = pneg %p557
      // Predicated region
      $region65: #{transformer_forward.6} parent=5 // pred_check
        _
      $region66: #{transformer_forward.6} parent=5 // pred_check_branch
        %560 = sbr.rel (%p557) target = $region68
      $region67: #{transformer_forward.6} parent=5 // pred_region
        %s561 = ssub.s32 %s36, 1
        %s562 = sand.u32 %s49, 1
        %s563 = scalar_lea.sflag [#allocation3], %s562
        %s564 = sand.u32 %s49, 1
        %s565 = smul.addr %s564, 32
        %s566 = scalar_lea.vmem [#allocation2], %s565
        // Predicated region
        $region69: #{transformer_forward.6} parent=67 // pred_check
          %p567 = pneg %p62
        $region70: #{transformer_forward.6} parent=67 // pred_check_branch
          %569 = sbr.rel (%p567) target = $region72
        $region71: #{transformer_forward.6} parent=67 // pred_region
          %570 = dma.done %s563, 512
        $region72: #{transformer_forward.6} parent=67 // pred_fallthru
          _
        %s571 = sand.u32 %s41, 1
        %s572 = scalar_lea.sflag [#allocation6], %s571
        %s573 = sand.u32 %s75, 1
        %s574 = smul.addr %s573, 16
        %s575 = scalar_lea.vmem [#allocation5], %s574
        // Predicated region
        $region73: #{transformer_forward.6} parent=67 // pred_check
          %p576 = pneg %p88
        $region74: #{transformer_forward.6} parent=67 // pred_check_branch
          %578 = sbr.rel (%p576) target = $region76
        $region75: #{transformer_forward.6} parent=67 // pred_region
          %579 = dma.done %s572, 256
        $region76: #{transformer_forward.6} parent=67 // pred_fallthru
          _
        %s580 = sand.u32 %s41, 1
        %s581 = scalar_lea.sflag [#allocation6], %s580
        %s582 = sand.u32 %s101, 1
        %s583 = smul.addr %s582, 32
        %s584 = scalar_lea.vmem [#allocation7], %s583
        // Predicated region
        $region77: #{transformer_forward.6} parent=67 // pred_check
          %p585 = pneg %p114
        $region78: #{transformer_forward.6} parent=67 // pred_check_branch
          %587 = sbr.rel (%p585) target = $region80
        $region79: #{transformer_forward.6} parent=67 // pred_region
          %588 = dma.done %s581, 512
        $region80: #{transformer_forward.6} parent=67 // pred_fallthru
          _
        %s589 = sand.u32 %s41, 1
        %s590 = scalar_lea.sflag [#allocation9], %s589
        %s591 = sand.u32 %s127, 1
        %s592 = smul.addr %s591, 32
        %s593 = scalar_lea.vmem [#allocation8], %s592
        // Predicated region
        $region81: #{transformer_forward.6} parent=67 // pred_check
          %p594 = pneg %p140
        $region82: #{transformer_forward.6} parent=67 // pred_check_branch
          %596 = sbr.rel (%p594) target = $region84
        $region83: #{transformer_forward.6} parent=67 // pred_region
          %597 = dma.done %s590, 512
        $region84: #{transformer_forward.6} parent=67 // pred_fallthru
          _
        %s598 = sand.u32 %s41, 1
        %s599 = scalar_lea.sflag [#allocation9], %s598
        %s600 = sand.u32 %s153, 1
        %s601 = scalar_lea.vmem [#allocation10], %s600
        // Predicated region
        $region85: #{transformer_forward.6} parent=67 // pred_check
          %p602 = pneg %p166
        $region86: #{transformer_forward.6} parent=67 // pred_check_branch
          %604 = sbr.rel (%p602) target = $region88
        $region87: #{transformer_forward.6} parent=67 // pred_region
          %605 = dma.done %s599, 16
        $region88: #{transformer_forward.6} parent=67 // pred_fallthru
          _
        %s606 = sand.u32 %s41, 1
        %s607 = scalar_lea.sflag [#allocation12], %s606
        %s608 = sand.u32 %s179, 1
        %s609 = scalar_lea.vmem [#allocation11], %s608
        // Predicated region
        $region89: #{transformer_forward.6} parent=67 // pred_check
          %p610 = pneg %p192
        $region90: #{transformer_forward.6} parent=67 // pred_check_branch
          %612 = sbr.rel (%p610) target = $region92
        $region91: #{transformer_forward.6} parent=67 // pred_region
          %613 = dma.done %s607, 16
        $region92: #{transformer_forward.6} parent=67 // pred_fallthru
          _
        // Predicated region
        $region93: #{transformer_forward.6} parent=67 // pred_check
          %p614 = pneg %p213
        $region94: #{transformer_forward.6} parent=67 // pred_check_branch
          %616 = sbr.rel (%p614) target = $region96
        $region95: #{transformer_forward.6} parent=67 // pred_region
          %617 = dma.done [#allocation12], 256
        $region96: #{transformer_forward.6} parent=67 // pred_fallthru
          _
        // Predicated region
        $region97: #{transformer_forward.6} parent=67 // pred_check
          %p618 = pneg %p234
        $region98: #{transformer_forward.6} parent=67 // pred_check_branch
          %620 = sbr.rel (%p618) target = $region100
        $region99: #{transformer_forward.6} parent=67 // pred_region
          %621 = dma.done [#allocation15], 16
        $region100: #{transformer_forward.6} parent=67 // pred_fallthru
          _
        // Predicated region
        $region101: #{transformer_forward.6} parent=67 // pred_check
          %p622 = pneg %p255
        $region102: #{transformer_forward.6} parent=67 // pred_check_branch
          %624 = sbr.rel (%p622) target = $region104
        $region103: #{transformer_forward.6} parent=67 // pred_region
          %625 = dma.done [#allocation15], 256
        $region104: #{transformer_forward.6} parent=67 // pred_fallthru
          _
        // Predicated region
        $region105: #{transformer_forward.6} parent=67 // pred_check
          %p626 = pneg %p276
        $region106: #{transformer_forward.6} parent=67 // pred_check_branch
          %628 = sbr.rel (%p626) target = $region108
        $region107: #{transformer_forward.6} parent=67 // pred_region
          %629 = dma.done [#allocation18], 512
        $region108: #{transformer_forward.6} parent=67 // pred_fallthru
          _
        // Predicated region
        $region109: #{transformer_forward.6} parent=67 // pred_check
          %p630 = pneg %p297
        $region110: #{transformer_forward.6} parent=67 // pred_check_branch
          %632 = sbr.rel (%p630) target = $region112
        $region111: #{transformer_forward.6} parent=67 // pred_region
          %633 = dma.done [#allocation18], 256
        $region112: #{transformer_forward.6} parent=67 // pred_fallthru
          _
        // Predicated region
        $region113: #{transformer_forward.6} parent=67 // pred_check
          %p634 = pneg %p318
        $region114: #{transformer_forward.6} parent=67 // pred_check_branch
          %636 = sbr.rel (%p634) target = $region116
        $region115: #{transformer_forward.6} parent=67 // pred_region
          %637 = dma.done [#allocation21], 16
        $region116: #{transformer_forward.6} parent=67 // pred_fallthru
          _
        %s638 = sand.u32 %s49, 1
        %s639 = scalar_lea.sflag [#allocation3], %s638
        %s640 = sand.u32 %s49, 1
        %s641 = smul.addr %s640, 32
        %s642 = scalar_lea.vmem [#allocation2], %s641
        %p643 = pneg %p62
        %p644 = pneg %p59
        %s645 = sand.u32 %s41, 1
        %s646 = scalar_lea.sflag [#allocation6], %s645
        %s647 = sand.u32 %s75, 1
        %s648 = smul.addr %s647, 16
        %s649 = scalar_lea.vmem [#allocation5], %s648
        %p650 = pneg %p88
        %p651 = pneg %p85
        %s652 = sand.u32 %s41, 1
        %s653 = scalar_lea.sflag [#allocation6], %s652
        %s654 = sand.u32 %s101, 1
        %s655 = smul.addr %s654, 32
        %s656 = scalar_lea.vmem [#allocation7], %s655
        %p657 = pneg %p114
        %p658 = pneg %p111
        %s659 = sand.u32 %s41, 1
        %s660 = scalar_lea.sflag [#allocation9], %s659
        %s661 = sand.u32 %s127, 1
        %s662 = smul.addr %s661, 32
        %s663 = scalar_lea.vmem [#allocation8], %s662
        %p664 = pneg %p140
        %p665 = pneg %p137
        %s666 = sand.u32 %s41, 1
        %s667 = scalar_lea.sflag [#allocation9], %s666
        %s668 = sand.u32 %s153, 1
        %s669 = scalar_lea.vmem [#allocation10], %s668
        %p670 = pneg %p166
        %p671 = pneg %p163
        %s672 = sand.u32 %s41, 1
        %s673 = scalar_lea.sflag [#allocation12], %s672
        %s674 = sand.u32 %s179, 1
        %s675 = scalar_lea.vmem [#allocation11], %s674
        %p676 = pneg %p192
        %p677 = pneg %p189
        %p678 = pneg %p213
        %p679 = pneg %p210
        %p680 = pneg %p234
        %p681 = pneg %p231
        %p682 = pneg %p255
        %p683 = pneg %p252
        %p684 = pneg %p276
        %p685 = pneg %p273
        %p686 = pneg %p297
        %p687 = pneg %p294
        %p688 = pneg %p318
        %p689 = pneg %p315
        %p690 = pneg %p344
        %p691 = pneg %p341
        %s692 = sand.u32 %s331, 1
        %s693 = scalar_lea.sflag [#allocation4], %s692
        %s694 = sand.u32 %s331, 1
        %s695 = smul.addr %s694, 32
        %s696 = scalar_lea.vmem [#allocation22], %s695
        %v698 = vld [vmem:[%s566] sm:$0xf]
        %v699 = vld [vmem:[%s566 + $0x4] sm:$0xf]
        %v700 = vld [vmem:[%s566 + $0x8] sm:$0xf]
        %v701 = vld [vmem:[%s566 + $0xc] sm:$0xf]
        %v702 = vld [vmem:[%s566 + $0x10] sm:$0xf]
        %v703 = vld [vmem:[%s566 + $0x14] sm:$0xf]
        %v704 = vld [vmem:[%s566 + $0x18] sm:$0xf]
        %v705 = vld [vmem:[%s566 + $0x1c] sm:$0xf]
        %v706 = vld [vmem:[#allocation13] sm:$0xf]
        %v707 = vld [vmem:[#allocation13 + $0x4] sm:$0xf]
        %v708 = vld [vmem:[#allocation13 + $0x8] sm:$0xf]
        %v709 = vld [vmem:[#allocation13 + $0xc] sm:$0xf]
        %v710 = vld [vmem:[#allocation14] sm:$0x1]
        %v712 = vlaneseq
        %v713 = vshrl.u32 %v712, 7
        %v714 = vsub.s32 0, %v713
        %v715 = vrot.slane %v710, %v714
        %v725 = vunpack.c.l.b16 %v698
        %v726 = vunpack.c.l.b16 %v699
        %v727 = vunpack.c.l.b16 %v700
        %v728 = vunpack.c.l.b16 %v701
        %v729 = vunpack.c.l.b16 %v702
        %v730 = vunpack.c.l.b16 %v703
        %v731 = vunpack.c.l.b16 %v704
        %v732 = vunpack.c.l.b16 %v705
        %v733 = vpack.c.b16 %v726, %v725
        %v734 = vpack.c.b16 %v728, %v727
        %v735 = vpack.c.b16 %v730, %v729
        %v736 = vpack.c.b16 %v732, %v731
        %v741 = vunpack.c.l.b16 %v706
        %v742 = vunpack.c.l.b16 %v707
        %v743 = vunpack.c.l.b16 %v708
        %v744 = vunpack.c.l.b16 %v709
        %v745 = vpack.c.b16 %v742, %v741
        %v746 = vpack.c.b16 %v744, %v743
        %vm749 = vcmask 261120
        %v751 = vsel %vm749, %v733, 0
        %v754 = vsel %vm749, %v734, 0
        %v757 = vsel %vm749, %v735, 0
        %v760 = vsel %vm749, %v736, 0
        %762 = vmatprep.subr.bf16.mxu0 0
        %763 = vmatpush1.bf16.msra.mxu0 %v745
        %764 = vmatprep.subr.bf16.mxu0 0
        %765 = vmatpush1.bf16.msra.mxu0 %v746
        %766 = vmatprep.subr.bf16.mxu0 0
        %767 = vmatpush1.bf16.msra.mxu0 0
        %768 = vmatprep.subr.bf16.mxu0 0
        %769 = vmatpush1.bf16.msra.mxu0 0
        %770 = vmatprep.subr.bf16.mxu0 0
        %771 = vmatpush1.bf16.msra.mxu0 0
        %772 = vmatprep.subr.bf16.mxu0 0
        %773 = vmatpush1.bf16.msra.mxu0 0
        %774 = vmatprep.subr.bf16.mxu0 0
        %775 = vmatpush1.bf16.msra.mxu0 0
        %776 = vmatprep.subr.bf16.mxu0 0
        %777 = vmatpush1.bf16.msra.mxu0 0
        %778 = vmatprep.subr.bf16.mxu0 0
        %779 = vmatpush1.bf16.msra.mxu0 0
        %780 = vmatprep.subr.bf16.mxu0 0
        %781 = vmatpush1.bf16.msra.mxu0 0
        %782 = vmatprep.subr.bf16.mxu0 0
        %783 = vmatpush1.bf16.msra.mxu0 0
        %784 = vmatprep.subr.bf16.mxu0 0
        %785 = vmatpush1.bf16.msra.mxu0 0
        %786 = vmatprep.subr.bf16.mxu0 0
        %787 = vmatpush1.bf16.msra.mxu0 0
        %788 = vmatprep.subr.bf16.mxu0 0
        %789 = vmatpush1.bf16.msra.mxu0 0
        %790 = vmatprep.subr.bf16.mxu0 0
        %791 = vmatpush1.bf16.msra.mxu0 0
        %792 = vmatprep.subr.bf16.mxu0 0
        %793 = vmatpush1.bf16.msra.mxu0 0
        %794 = vmatprep.mubr.bf16.mxu0 0
        %795 = vmatmul.mubr.bf16.gmra.mrb[0].mxu0 %v751
        %v796 = vpop.f32.mrb[0].mxu0
        %v797 = vadd.f32 %v715, %v796
        %v798 = vpop.f32.mrb[0].mxu0
        %v799 = vpop.f32.mrb[0].mxu0
        %v800 = vadd.f32 %v715, %v799
        %v801 = vpop.f32.mrb[0].mxu0
        %802 = vmatprep.mubr.bf16.mxu0 0
        %803 = vmatmul.mubr.bf16.gmra.mrb[0].mxu0 %v754
        %v804 = vpop.f32.mrb[0].mxu0
        %v805 = vadd.f32 %v715, %v804
        %v806 = vpop.f32.mrb[0].mxu0
        %v807 = vpop.f32.mrb[0].mxu0
        %v808 = vadd.f32 %v715, %v807
        %v809 = vpop.f32.mrb[0].mxu0
        %810 = vmatprep.mubr.bf16.mxu0 0
        %811 = vmatmul.mubr.bf16.gmra.mrb[0].mxu0 %v757
        %v812 = vpop.f32.mrb[0].mxu0
        %v813 = vadd.f32 %v715, %v812
        %v814 = vpop.f32.mrb[0].mxu0
        %v815 = vpop.f32.mrb[0].mxu0
        %v816 = vadd.f32 %v715, %v815
        %v817 = vpop.f32.mrb[0].mxu0
        %818 = vmatprep.mubr.bf16.mxu0 0
        %819 = vmatmul.mubr.bf16.gmra.mrb[0].mxu0 %v760
        %v820 = vpop.f32.mrb[0].mxu0
        %v821 = vadd.f32 %v715, %v820
        %v822 = vpop.f32.mrb[0].mxu0
        %v823 = vpop.f32.mrb[0].mxu0
        %v824 = vadd.f32 %v715, %v823
        %v825 = vpop.f32.mrb[0].mxu0
        %826 = vdwg.mxu0
        %v827 = vpack.c.bf16 %v800, %v797
        %v828 = vpack.c.bf16 %v808, %v805
        %v829 = vpack.c.bf16 %v816, %v813
        %v830 = vpack.c.bf16 %v824, %v821
        %v831 = vld [vmem:[#allocation16] sm:$0xf]
        %v832 = vld [vmem:[#allocation16 + $0x4] sm:$0xf]
        %v833 = vld [vmem:[#allocation16 + $0x8] sm:$0xf]
        %v834 = vld [vmem:[#allocation16 + $0xc] sm:$0xf]
        %v835 = vld [vmem:[%s575] sm:$0xf]
        %v836 = vld [vmem:[%s575 + $0x4] sm:$0xf]
        %v837 = vld [vmem:[%s575 + $0x8] sm:$0xf]
        %v838 = vld [vmem:[%s575 + $0xc] sm:$0xf]
        %v839 = vld [vmem:[#allocation17] sm:$0xff]
        %v840 = vld [vmem:[#allocation17 + $0x8] sm:$0xff]
        %v841 = vld [vmem:[#allocation17 + $0x10] sm:$0xff]
        %v842 = vld [vmem:[#allocation17 + $0x18] sm:$0xff]
        %844 = vset.pattern.permute.xlu0 0
        %845 = vperm.xlu0 %844, %v839
        %v846 = vpop.permute.xlu0 %845
        %849 = vset.pattern.permute.xlu0 0
        %850 = vperm.xlu0 %849, %v840
        %v851 = vpop.permute.xlu0 %850
        %854 = vset.pattern.permute.xlu0 0
        %855 = vperm.xlu0 %854, %v841
        %v856 = vpop.permute.xlu0 %855
        %859 = vset.pattern.permute.xlu0 0
        %860 = vperm.xlu0 %859, %v842
        %v861 = vpop.permute.xlu0 %860
        %v867 = vunpack.c.l.b16 %v831
        %v868 = vunpack.c.l.b16 %v832
        %v869 = vunpack.c.l.b16 %v833
        %v870 = vunpack.c.l.b16 %v834
        %v871 = vpack.c.b16 %v868, %v867
        %v872 = vpack.c.b16 %v870, %v869
        %v877 = vunpack.c.l.b16 %v835
        %v878 = vunpack.c.l.b16 %v836
        %v879 = vunpack.c.l.b16 %v837
        %v880 = vunpack.c.l.b16 %v838
        %v881 = vpack.c.b16 %v878, %v877
        %v882 = vpack.c.b16 %v880, %v879
        %v886 = vsel %vm749, %v871, 0
        %v889 = vsel %vm749, %v872, 0
        %891 = vmatprep.subr.bf16.mxu0 0
        %892 = vmatpush1.bf16.msra.mxu0 %v881
        %893 = vmatprep.subr.bf16.mxu0 0
        %894 = vmatpush1.bf16.msra.mxu0 %v882
        %895 = vmatprep.subr.bf16.mxu0 0
        %896 = vmatpush1.bf16.msra.mxu0 0
        %897 = vmatprep.subr.bf16.mxu0 0
        %898 = vmatpush1.bf16.msra.mxu0 0
        %899 = vmatprep.subr.bf16.mxu0 0
        %900 = vmatpush1.bf16.msra.mxu0 0
        %901 = vmatprep.subr.bf16.mxu0 0
        %902 = vmatpush1.bf16.msra.mxu0 0
        %903 = vmatprep.subr.bf16.mxu0 0
        %904 = vmatpush1.bf16.msra.mxu0 0
        %905 = vmatprep.subr.bf16.mxu0 0
        %906 = vmatpush1.bf16.msra.mxu0 0
        %907 = vmatprep.subr.bf16.mxu0 0
        %908 = vmatpush1.bf16.msra.mxu0 0
        %909 = vmatprep.subr.bf16.mxu0 0
        %910 = vmatpush1.bf16.msra.mxu0 0
        %911 = vmatprep.subr.bf16.mxu0 0
        %912 = vmatpush1.bf16.msra.mxu0 0
        %913 = vmatprep.subr.bf16.mxu0 0
        %914 = vmatpush1.bf16.msra.mxu0 0
        %915 = vmatprep.subr.bf16.mxu0 0
        %916 = vmatpush1.bf16.msra.mxu0 0
        %917 = vmatprep.subr.bf16.mxu0 0
        %918 = vmatpush1.bf16.msra.mxu0 0
        %919 = vmatprep.subr.bf16.mxu0 0
        %920 = vmatpush1.bf16.msra.mxu0 0
        %921 = vmatprep.subr.bf16.mxu0 0
        %922 = vmatpush1.bf16.msra.mxu0 0
        %923 = vmatprep.mubr.bf16.mxu0 0
        %924 = vmatmul.mubr.bf16.gmra.mrb[0].mxu0 %v886
        %v925 = vpop.f32.mrb[0].mxu0
        %v926 = vadd.f32 %v846, %v925
        %v927 = vpop.f32.mrb[0].mxu0
        %v928 = vpop.f32.mrb[0].mxu0
        %v929 = vadd.f32 %v851, %v928
        %v930 = vpop.f32.mrb[0].mxu0
        %931 = vmatprep.mubr.bf16.mxu0 0
        %932 = vmatmul.mubr.bf16.gmra.mrb[0].mxu0 %v889
        %v933 = vpop.f32.mrb[0].mxu0
        %v934 = vadd.f32 %v856, %v933
        %v935 = vpop.f32.mrb[0].mxu0
        %v936 = vpop.f32.mrb[0].mxu0
        %v937 = vadd.f32 %v861, %v936
        %v938 = vpop.f32.mrb[0].mxu0
        %939 = vdwg.mxu0
        %v940 = vpack.c.bf16 %v929, %v926
        %v941 = vpack.c.bf16 %v937, %v934
        %v942 = vld [vmem:[%s584] sm:$0xf]
        %v943 = vld [vmem:[%s584 + $0x4] sm:$0xf]
        %v944 = vld [vmem:[%s584 + $0x8] sm:$0xf]
        %v945 = vld [vmem:[%s584 + $0xc] sm:$0xf]
        %v946 = vld [vmem:[%s584 + $0x10] sm:$0xf]
        %v947 = vld [vmem:[%s584 + $0x14] sm:$0xf]
        %v948 = vld [vmem:[%s584 + $0x18] sm:$0xf]
        %v949 = vld [vmem:[%s584 + $0x1c] sm:$0xf]
        %v950 = vld [vmem:[#allocation19] sm:$0xf]
        %v951 = vld [vmem:[#allocation19 + $0x4] sm:$0xf]
        %v952 = vld [vmem:[#allocation19 + $0x8] sm:$0xf]
        %v953 = vld [vmem:[#allocation19 + $0xc] sm:$0xf]
        %v954 = vld [vmem:[#allocation20] sm:$0x1]
        %v956 = vlaneseq
        %v957 = vshrl.u32 %v956, 7
        %v958 = vsub.s32 0, %v957
        %v959 = vrot.slane %v954, %v958
        %v969 = vunpack.c.l.b16 %v942
        %v970 = vunpack.c.l.b16 %v943
        %v971 = vunpack.c.l.b16 %v944
        %v972 = vunpack.c.l.b16 %v945
        %v973 = vunpack.c.l.b16 %v946
        %v974 = vunpack.c.l.b16 %v947
        %v975 = vunpack.c.l.b16 %v948
        %v976 = vunpack.c.l.b16 %v949
        %v977 = vpack.c.b16 %v970, %v969
        %v978 = vpack.c.b16 %v972, %v971
        %v979 = vpack.c.b16 %v974, %v973
        %v980 = vpack.c.b16 %v976, %v975
        %v985 = vunpack.c.l.b16 %v950
        %v986 = vunpack.c.l.b16 %v951
        %v987 = vunpack.c.l.b16 %v952
        %v988 = vunpack.c.l.b16 %v953
        %v989 = vpack.c.b16 %v986, %v985
        %v990 = vpack.c.b16 %v988, %v987
        %v994 = vsel %vm749, %v977, 0
        %v997 = vsel %vm749, %v978, 0
        %v1000 = vsel %vm749, %v979, 0
        %v1003 = vsel %vm749, %v980, 0
        %1005 = vmatprep.subr.bf16.mxu0 0
        %1006 = vmatpush1.bf16.msra.mxu0 %v989
        %1007 = vmatprep.subr.bf16.mxu0 0
        %1008 = vmatpush1.bf16.msra.mxu0 %v990
        %1009 = vmatprep.subr.bf16.mxu0 0
        %1010 = vmatpush1.bf16.msra.mxu0 0
        %1011 = vmatprep.subr.bf16.mxu0 0
        %1012 = vmatpush1.bf16.msra.mxu0 0
        %1013 = vmatprep.subr.bf16.mxu0 0
        %1014 = vmatpush1.bf16.msra.mxu0 0
        %1015 = vmatprep.subr.bf16.mxu0 0
        %1016 = vmatpush1.bf16.msra.mxu0 0
        %1017 = vmatprep.subr.bf16.mxu0 0
        %1018 = vmatpush1.bf16.msra.mxu0 0
        %1019 = vmatprep.subr.bf16.mxu0 0
        %1020 = vmatpush1.bf16.msra.mxu0 0
        %1021 = vmatprep.subr.bf16.mxu0 0
        %1022 = vmatpush1.bf16.msra.mxu0 0
        %1023 = vmatprep.subr.bf16.mxu0 0
        %1024 = vmatpush1.bf16.msra.mxu0 0
        %1025 = vmatprep.subr.bf16.mxu0 0
        %1026 = vmatpush1.bf16.msra.mxu0 0
        %1027 = vmatprep.subr.bf16.mxu0 0
        %1028 = vmatpush1.bf16.msra.mxu0 0
        %1029 = vmatprep.subr.bf16.mxu0 0
        %1030 = vmatpush1.bf16.msra.mxu0 0
        %1031 = vmatprep.subr.bf16.mxu0 0
        %1032 = vmatpush1.bf16.msra.mxu0 0
        %1033 = vmatprep.subr.bf16.mxu0 0
        %1034 = vmatpush1.bf16.msra.mxu0 0
        %1035 = vmatprep.subr.bf16.mxu0 0
        %1036 = vmatpush1.bf16.msra.mxu0 0
        %1037 = vmatprep.mubr.bf16.mxu0 0
        %1038 = vmatmul.mubr.bf16.gmra.mrb[0].mxu0 %v994
        %v1039 = vpop.f32.mrb[0].mxu0
        %v1040 = vadd.f32 %v959, %v1039
        %v1041 = vpop.f32.mrb[0].mxu0
        %v1042 = vpop.f32.mrb[0].mxu0
        %v1043 = vadd.f32 %v959, %v1042
        %v1044 = vpop.f32.mrb[0].mxu0
        %1045 = vmatprep.mubr.bf16.mxu0 0
        %1046 = vmatmul.mubr.bf16.gmra.mrb[0].mxu0 %v997
        %v1047 = vpop.f32.mrb[0].mxu0
        %v1048 = vadd.f32 %v959, %v1047
        %v1049 = vpop.f32.mrb[0].mxu0
        %v1050 = vpop.f32.mrb[0].mxu0
        %v1051 = vadd.f32 %v959, %v1050
        %v1052 = vpop.f32.mrb[0].mxu0
        %1053 = vmatprep.mubr.bf16.mxu0 0
        %1054 = vmatmul.mubr.bf16.gmra.mrb[0].mxu0 %v1000
        %v1055 = vpop.f32.mrb[0].mxu0
        %v1056 = vadd.f32 %v959, %v1055
        %v1057 = vpop.f32.mrb[0].mxu0
        %v1058 = vpop.f32.mrb[0].mxu0
        %v1059 = vadd.f32 %v959, %v1058
        %v1060 = vpop.f32.mrb[0].mxu0
        %1061 = vmatprep.mubr.bf16.mxu0 0
        %1062 = vmatmul.mubr.bf16.gmra.mrb[0].mxu0 %v1003
        %v1063 = vpop.f32.mrb[0].mxu0
        %v1064 = vadd.f32 %v959, %v1063
        %v1065 = vpop.f32.mrb[0].mxu0
        %v1066 = vpop.f32.mrb[0].mxu0
        %v1067 = vadd.f32 %v959, %v1066
        %v1068 = vpop.f32.mrb[0].mxu0
        %1069 = vdwg.mxu0
        %v1070 = vmul.f32 %v1040, %v1040
        %v1071 = vmul.f32 %v1043, %v1043
        %v1072 = vmul.f32 %v1048, %v1048
        %v1073 = vmul.f32 %v1051, %v1051
        %v1074 = vmul.f32 %v1056, %v1056
        %v1075 = vmul.f32 %v1059, %v1059
        %v1076 = vmul.f32 %v1064, %v1064
        %v1077 = vmul.f32 %v1067, %v1067
        %1086 = vrot.lane.b32.xlu0 %v1070, 32
        %v1087 = vpop.permute.xlu0 %1086
        %1088 = vrot.lane.b32.xlu0 %v1071, 32
        %v1089 = vpop.permute.xlu0 %1088
        %1090 = vrot.lane.b32.xlu0 %v1072, 32
        %v1091 = vpop.permute.xlu0 %1090
        %1092 = vrot.lane.b32.xlu0 %v1073, 32
        %v1093 = vpop.permute.xlu0 %1092
        %1094 = vrot.lane.b32.xlu0 %v1074, 32
        %v1095 = vpop.permute.xlu0 %1094
        %1096 = vrot.lane.b32.xlu0 %v1075, 32
        %v1097 = vpop.permute.xlu0 %1096
        %1098 = vrot.lane.b32.xlu0 %v1076, 32
        %v1099 = vpop.permute.xlu0 %1098
        %1100 = vrot.lane.b32.xlu0 %v1077, 32
        %v1101 = vpop.permute.xlu0 %1100
        %v1110 = vsel %vm749, %v1040, %v1087
        %v1111 = vsel %vm749, %v1043, %v1089
        %v1112 = vsel %vm749, %v1048, %v1091
        %v1113 = vsel %vm749, %v1051, %v1093
        %v1114 = vsel %vm749, %v1056, %v1095
        %v1115 = vsel %vm749, %v1059, %v1097
        %v1116 = vsel %vm749, %v1064, %v1099
        %v1117 = vsel %vm749, %v1067, %v1101
        %v1118 = vpack.c.bf16 %v1111, %v1110
        %v1119 = vpack.c.bf16 %v1113, %v1112
        %v1120 = vpack.c.bf16 %v1115, %v1114
        %v1121 = vpack.c.bf16 %v1117, %v1116
        %v1123 = vsel %vm749, %v827, 0
        %v1126 = vsel %vm749, %v828, 0
        %v1129 = vsel %vm749, %v829, 0
        %v1132 = vsel %vm749, %v830, 0
        %1134 = vmatprep.subr.bf16.mxu0 0
        %1135 = vmatpush1.bf16.msra.mxu0 %v940
        %1136 = vmatprep.subr.bf16.mxu0 0
        %1137 = vmatpush1.bf16.msra.mxu0 %v941
        %1138 = vmatprep.subr.bf16.mxu0 0
        %1139 = vmatpush1.bf16.msra.mxu0 0
        %1140 = vmatprep.subr.bf16.mxu0 0
        %1141 = vmatpush1.bf16.msra.mxu0 0
        %1142 = vmatprep.subr.bf16.mxu0 0
        %1143 = vmatpush1.bf16.msra.mxu0 0
        %1144 = vmatprep.subr.bf16.mxu0 0
        %1145 = vmatpush1.bf16.msra.mxu0 0
        %1146 = vmatprep.subr.bf16.mxu0 0
        %1147 = vmatpush1.bf16.msra.mxu0 0
        %1148 = vmatprep.subr.bf16.mxu0 0
        %1149 = vmatpush1.bf16.msra.mxu0 0
        %1150 = vmatprep.subr.bf16.mxu0 0
        %1151 = vmatpush1.bf16.msra.mxu0 0
        %1152 = vmatprep.subr.bf16.mxu0 0
        %1153 = vmatpush1.bf16.msra.mxu0 0
        %1154 = vmatprep.subr.bf16.mxu0 0
        %1155 = vmatpush1.bf16.msra.mxu0 0
        %1156 = vmatprep.subr.bf16.mxu0 0
        %1157 = vmatpush1.bf16.msra.mxu0 0
        %1158 = vmatprep.subr.bf16.mxu0 0
        %1159 = vmatpush1.bf16.msra.mxu0 0
        %1160 = vmatprep.subr.bf16.mxu0 0
        %1161 = vmatpush1.bf16.msra.mxu0 0
        %1162 = vmatprep.subr.bf16.mxu0 0
        %1163 = vmatpush1.bf16.msra.mxu0 0
        %1164 = vmatprep.subr.bf16.mxu0 0
        %1165 = vmatpush1.bf16.msra.mxu0 0
        %1166 = vmatprep.mubr.bf16.mxu0 0
        %1167 = vmatmul.mubr.bf16.gmra.mrb[0].mxu0 %v1123
        %v1168 = vpop.f32.mrb[0].mxu0
        %v1169 = vadd.f32 0.0, %v1168
        %v1170 = vpop.f32.mrb[0].mxu0
        %v1171 = vpop.f32.mrb[0].mxu0
        %v1172 = vadd.f32 0.0, %v1171
        %v1173 = vpop.f32.mrb[0].mxu0
        %1174 = vmatprep.mubr.bf16.mxu0 0
        %1175 = vmatmul.mubr.bf16.gmra.mrb[0].mxu0 %v1126
        %v1176 = vpop.f32.mrb[0].mxu0
        %v1177 = vadd.f32 0.0, %v1176
        %v1178 = vpop.f32.mrb[0].mxu0
        %v1179 = vpop.f32.mrb[0].mxu0
        %v1180 = vadd.f32 0.0, %v1179
        %v1181 = vpop.f32.mrb[0].mxu0
        %1182 = vmatprep.mubr.bf16.mxu0 0
        %1183 = vmatmul.mubr.bf16.gmra.mrb[0].mxu0 %v1129
        %v1184 = vpop.f32.mrb[0].mxu0
        %v1185 = vadd.f32 0.0, %v1184
        %v1186 = vpop.f32.mrb[0].mxu0
        %v1187 = vpop.f32.mrb[0].mxu0
        %v1188 = vadd.f32 0.0, %v1187
        %v1189 = vpop.f32.mrb[0].mxu0
        %1190 = vmatprep.mubr.bf16.mxu0 0
        %1191 = vmatmul.mubr.bf16.gmra.mrb[0].mxu0 %v1132
        %v1192 = vpop.f32.mrb[0].mxu0
        %v1193 = vadd.f32 0.0, %v1192
        %v1194 = vpop.f32.mrb[0].mxu0
        %v1195 = vpop.f32.mrb[0].mxu0
        %v1196 = vadd.f32 0.0, %v1195
        %v1197 = vpop.f32.mrb[0].mxu0
        %1198 = vdwg.mxu0
        %vm1199 = vcmask 523264
        %v1200 = vsel %vm1199, %v1169, -inf
        %1201 = vmax.xlane.f32.xlu0 %v1200
        %v1202 = vpop.xlane.xlu0 %1201
        %v1203 = vsel %vm1199, %v1172, -inf
        %1204 = vmax.xlane.f32.xlu0 %v1203
        %v1205 = vpop.xlane.xlu0 %1204
        %v1206 = vsel %vm1199, %v1177, -inf
        %1207 = vmax.xlane.f32.xlu0 %v1206
        %v1208 = vpop.xlane.xlu0 %1207
        %v1209 = vsel %vm1199, %v1180, -inf
        %1210 = vmax.xlane.f32.xlu0 %v1209
        %v1211 = vpop.xlane.xlu0 %1210
        %v1212 = vsel %vm1199, %v1185, -inf
        %1213 = vmax.xlane.f32.xlu0 %v1212
        %v1214 = vpop.xlane.xlu0 %1213
        %v1215 = vsel %vm1199, %v1188, -inf
        %1216 = vmax.xlane.f32.xlu0 %v1215
        %v1217 = vpop.xlane.xlu0 %1216
        %v1218 = vsel %vm1199, %v1193, -inf
        %1219 = vmax.xlane.f32.xlu0 %v1218
        %v1220 = vpop.xlane.xlu0 %1219
        %v1221 = vsel %vm1199, %v1196, -inf
        %1222 = vmax.xlane.f32.xlu0 %v1221
        %v1223 = vpop.xlane.xlu0 %1222
        %v1224 = vsub.f32 %v1169, %v1202
        %v1225 = vsub.f32 %v1172, %v1205
        %v1226 = vsub.f32 %v1177, %v1208
        %v1227 = vsub.f32 %v1180, %v1211
        %v1228 = vsub.f32 %v1185, %v1214
        %v1229 = vsub.f32 %v1188, %v1217
        %v1230 = vsub.f32 %v1193, %v1220
        %v1231 = vsub.f32 %v1196, %v1223
        %v1232 = vpack.c.bf16 %v1225, %v1224
        %v1233 = vpack.c.bf16 %v1227, %v1226
        %v1234 = vpack.c.bf16 %v1229, %v1228
        %v1235 = vpack.c.bf16 %v1231, %v1230
        %v1237 = vmul.bf16 %v1232, 1069105081
        %v1238 = vpow.bf16.pop %v1237
        %v1240 = vmul.bf16 %v1233, 1069105081
        %v1241 = vpow.bf16.pop %v1240
        %v1243 = vmul.bf16 %v1234, 1069105081
        %v1244 = vpow.bf16.pop %v1243
        %v1246 = vmul.bf16 %v1235, 1069105081
        %v1247 = vpow.bf16.pop %v1246
        %v1248 = vunpack.c.l.bf16 %v1238
        %v1249 = vunpack.c.h.bf16 %v1238
        %v1250 = vunpack.c.l.bf16 %v1241
        %v1251 = vunpack.c.h.bf16 %v1241
        %v1252 = vunpack.c.l.bf16 %v1244
        %v1253 = vunpack.c.h.bf16 %v1244
        %v1254 = vunpack.c.l.bf16 %v1247
        %v1255 = vunpack.c.h.bf16 %v1247
        %v1256 = vsel %vm1199, %v1248, 0.0
        %1257 = vadd.xlane.f32.xlu0 %v1256
        %v1258 = vpop.xlane.xlu0 %1257
        %v1259 = vsel %vm1199, %v1249, 0.0
        %1260 = vadd.xlane.f32.xlu0 %v1259
        %v1261 = vpop.xlane.xlu0 %1260
        %v1262 = vsel %vm1199, %v1250, 0.0
        %1263 = vadd.xlane.f32.xlu0 %v1262
        %v1264 = vpop.xlane.xlu0 %1263
        %v1265 = vsel %vm1199, %v1251, 0.0
        %1266 = vadd.xlane.f32.xlu0 %v1265
        %v1267 = vpop.xlane.xlu0 %1266
        %v1268 = vsel %vm1199, %v1252, 0.0
        %1269 = vadd.xlane.f32.xlu0 %v1268
        %v1270 = vpop.xlane.xlu0 %1269
        %v1271 = vsel %vm1199, %v1253, 0.0
        %1272 = vadd.xlane.f32.xlu0 %v1271
        %v1273 = vpop.xlane.xlu0 %1272
        %v1274 = vsel %vm1199, %v1254, 0.0
        %1275 = vadd.xlane.f32.xlu0 %v1274
        %v1276 = vpop.xlane.xlu0 %1275
        %v1277 = vsel %vm1199, %v1255, 0.0
        %1278 = vadd.xlane.f32.xlu0 %v1277
        %v1279 = vpop.xlane.xlu0 %1278
        %v1281 = vsel %vm1199, %v1238, 0
        %v1284 = vsel %vm1199, %v1241, 0
        %v1287 = vsel %vm1199, %v1244, 0
        %v1290 = vsel %vm1199, %v1247, 0
        %1292 = vmatprep.subr.bf16.mxu0 0
        %1293 = vmatpush1.bf16.msra.mxu0 %v1118
        %1294 = vmatprep.subr.bf16.mxu0 0
        %1295 = vmatpush1.bf16.msra.mxu0 %v1119
        %1296 = vmatprep.subr.bf16.mxu0 0
        %1297 = vmatpush1.bf16.msra.mxu0 %v1120
        %1298 = vmatprep.subr.bf16.mxu0 0
        %1299 = vmatpush1.bf16.msra.mxu0 %v1121
        %1300 = vmatprep.subr.bf16.mxu0 0
        %1301 = vmatpush1.bf16.msra.mxu0 0
        %1302 = vmatprep.subr.bf16.mxu0 0
        %1303 = vmatpush1.bf16.msra.mxu0 0
        %1304 = vmatprep.subr.bf16.mxu0 0
        %1305 = vmatpush1.bf16.msra.mxu0 0
        %1306 = vmatprep.subr.bf16.mxu0 0
        %1307 = vmatpush1.bf16.msra.mxu0 0
        %1308 = vmatprep.subr.bf16.mxu0 0
        %1309 = vmatpush1.bf16.msra.mxu0 0
        %1310 = vmatprep.subr.bf16.mxu0 0
        %1311 = vmatpush1.bf16.msra.mxu0 0
        %1312 = vmatprep.subr.bf16.mxu0 0
        %1313 = vmatpush1.bf16.msra.mxu0 0
        %1314 = vmatprep.subr.bf16.mxu0 0
        %1315 = vmatpush1.bf16.msra.mxu0 0
        %1316 = vmatprep.subr.bf16.mxu0 0
        %1317 = vmatpush1.bf16.msra.mxu0 0
        %1318 = vmatprep.subr.bf16.mxu0 0
        %1319 = vmatpush1.bf16.msra.mxu0 0
        %1320 = vmatprep.subr.bf16.mxu0 0
        %1321 = vmatpush1.bf16.msra.mxu0 0
        %1322 = vmatprep.subr.bf16.mxu0 0
        %1323 = vmatpush1.bf16.msra.mxu0 0
        %1324 = vmatprep.mubr.bf16.mxu0 0
        %1325 = vmatmul.mubr.bf16.gmra.mrb[0].mxu0 %v1281
        %v1326 = vpop.f32.mrb[0].mxu0
        %v1327 = vadd.f32 0.0, %v1326
        %v1328 = vpop.f32.mrb[0].mxu0
        %v1329 = vpop.f32.mrb[0].mxu0
        %v1330 = vadd.f32 0.0, %v1329
        %v1331 = vpop.f32.mrb[0].mxu0
        %1332 = vmatprep.mubr.bf16.mxu0 0
        %1333 = vmatmul.mubr.bf16.gmra.mrb[0].mxu0 %v1284
        %v1334 = vpop.f32.mrb[0].mxu0
        %v1335 = vadd.f32 0.0, %v1334
        %v1336 = vpop.f32.mrb[0].mxu0
        %v1337 = vpop.f32.mrb[0].mxu0
        %v1338 = vadd.f32 0.0, %v1337
        %v1339 = vpop.f32.mrb[0].mxu0
        %1340 = vmatprep.mubr.bf16.mxu0 0
        %1341 = vmatmul.mubr.bf16.gmra.mrb[0].mxu0 %v1287
        %v1342 = vpop.f32.mrb[0].mxu0
        %v1343 = vadd.f32 0.0, %v1342
        %v1344 = vpop.f32.mrb[0].mxu0
        %v1345 = vpop.f32.mrb[0].mxu0
        %v1346 = vadd.f32 0.0, %v1345
        %v1347 = vpop.f32.mrb[0].mxu0
        %1348 = vmatprep.mubr.bf16.mxu0 0
        %1349 = vmatmul.mubr.bf16.gmra.mrb[0].mxu0 %v1290
        %v1350 = vpop.f32.mrb[0].mxu0
        %v1351 = vadd.f32 0.0, %v1350
        %v1352 = vpop.f32.mrb[0].mxu0
        %v1353 = vpop.f32.mrb[0].mxu0
        %v1354 = vadd.f32 0.0, %v1353
        %v1355 = vpop.f32.mrb[0].mxu0
        %1356 = vdwg.mxu0
        %v1357 = vrcp.pop %v1258
        %v1358 = vmul.f32 %v1327, %v1357
        %v1359 = vrcp.pop %v1261
        %v1360 = vmul.f32 %v1330, %v1359
        %v1361 = vrcp.pop %v1264
        %v1362 = vmul.f32 %v1335, %v1361
        %v1363 = vrcp.pop %v1267
        %v1364 = vmul.f32 %v1338, %v1363
        %v1365 = vrcp.pop %v1270
        %v1366 = vmul.f32 %v1343, %v1365
        %v1367 = vrcp.pop %v1273
        %v1368 = vmul.f32 %v1346, %v1367
        %v1369 = vrcp.pop %v1276
        %v1370 = vmul.f32 %v1351, %v1369
        %v1371 = vrcp.pop %v1279
        %v1372 = vmul.f32 %v1354, %v1371
        %v1373 = vmul.f32 %v1358, %v1358
        %v1374 = vmul.f32 %v1360, %v1360
        %v1375 = vmul.f32 %v1362, %v1362
        %v1376 = vmul.f32 %v1364, %v1364
        %v1377 = vmul.f32 %v1366, %v1366
        %v1378 = vmul.f32 %v1368, %v1368
        %v1379 = vmul.f32 %v1370, %v1370
        %v1380 = vmul.f32 %v1372, %v1372
        %1389 = vrot.lane.b32.xlu0 %v1373, 32
        %v1390 = vpop.permute.xlu0 %1389
        %1391 = vrot.lane.b32.xlu0 %v1374, 32
        %v1392 = vpop.permute.xlu0 %1391
        %1393 = vrot.lane.b32.xlu0 %v1375, 32
        %v1394 = vpop.permute.xlu0 %1393
        %1395 = vrot.lane.b32.xlu0 %v1376, 32
        %v1396 = vpop.permute.xlu0 %1395
        %1397 = vrot.lane.b32.xlu0 %v1377, 32
        %v1398 = vpop.permute.xlu0 %1397
        %1399 = vrot.lane.b32.xlu0 %v1378, 32
        %v1400 = vpop.permute.xlu0 %1399
        %1401 = vrot.lane.b32.xlu0 %v1379, 32
        %v1402 = vpop.permute.xlu0 %1401
        %1403 = vrot.lane.b32.xlu0 %v1380, 32
        %v1404 = vpop.permute.xlu0 %1403
        %v1413 = vsub.f32 %v1358, %v1390
        %v1414 = vsub.f32 %v1360, %v1392
        %v1415 = vsub.f32 %v1362, %v1394
        %v1416 = vsub.f32 %v1364, %v1396
        %v1417 = vsub.f32 %v1366, %v1398
        %v1418 = vsub.f32 %v1368, %v1400
        %v1419 = vsub.f32 %v1370, %v1402
        %v1420 = vsub.f32 %v1372, %v1404
        %v1421 = vmax.f32 %v1413, 0.0
        %v1422 = vmax.f32 %v1414, 0.0
        %v1423 = vmax.f32 %v1415, 0.0
        %v1424 = vmax.f32 %v1416, 0.0
        %v1425 = vmax.f32 %v1417, 0.0
        %v1426 = vmax.f32 %v1418, 0.0
        %v1427 = vmax.f32 %v1419, 0.0
        %v1428 = vmax.f32 %v1420, 0.0
        %v1429 = vrsqrt.pop %v1421
        %v1430 = vmul.f32 %v1421, %v1429
        %vm1431 = vcmp.eq.f32.partialorder %v1421, inf
        %v1432 = vsel %vm1431, %v1421, %v1430
        %vm1433 = vcmp.eq.f32.partialorder %v1421, 0.0
        %v1434 = vand.u32 %v1421, 2147483648
        %v1435 = vsel %vm1433, %v1434, %v1432
        %v1436 = vrsqrt.pop %v1422
        %v1437 = vmul.f32 %v1422, %v1436
        %vm1438 = vcmp.eq.f32.partialorder %v1422, inf
        %v1439 = vsel %vm1438, %v1422, %v1437
        %vm1440 = vcmp.eq.f32.partialorder %v1422, 0.0
        %v1441 = vand.u32 %v1422, 2147483648
        %v1442 = vsel %vm1440, %v1441, %v1439
        %v1443 = vrsqrt.pop %v1423
        %v1444 = vmul.f32 %v1423, %v1443
        %vm1445 = vcmp.eq.f32.partialorder %v1423, inf
        %v1446 = vsel %vm1445, %v1423, %v1444
        %vm1447 = vcmp.eq.f32.partialorder %v1423, 0.0
        %v1448 = vand.u32 %v1423, 2147483648
        %v1449 = vsel %vm1447, %v1448, %v1446
        %v1450 = vrsqrt.pop %v1424
        %v1451 = vmul.f32 %v1424, %v1450
        %vm1452 = vcmp.eq.f32.partialorder %v1424, inf
        %v1453 = vsel %vm1452, %v1424, %v1451
        %vm1454 = vcmp.eq.f32.partialorder %v1424, 0.0
        %v1455 = vand.u32 %v1424, 2147483648
        %v1456 = vsel %vm1454, %v1455, %v1453
        %v1457 = vrsqrt.pop %v1425
        %v1458 = vmul.f32 %v1425, %v1457
        %vm1459 = vcmp.eq.f32.partialorder %v1425, inf
        %v1460 = vsel %vm1459, %v1425, %v1458
        %vm1461 = vcmp.eq.f32.partialorder %v1425, 0.0
        %v1462 = vand.u32 %v1425, 2147483648
        %v1463 = vsel %vm1461, %v1462, %v1460
        %v1464 = vrsqrt.pop %v1426
        %v1465 = vmul.f32 %v1426, %v1464
        %vm1466 = vcmp.eq.f32.partialorder %v1426, inf
        %v1467 = vsel %vm1466, %v1426, %v1465
        %vm1468 = vcmp.eq.f32.partialorder %v1426, 0.0
        %v1469 = vand.u32 %v1426, 2147483648
        %v1470 = vsel %vm1468, %v1469, %v1467
        %v1471 = vrsqrt.pop %v1427
        %v1472 = vmul.f32 %v1427, %v1471
        %vm1473 = vcmp.eq.f32.partialorder %v1427, inf
        %v1474 = vsel %vm1473, %v1427, %v1472
        %vm1475 = vcmp.eq.f32.partialorder %v1427, 0.0
        %v1476 = vand.u32 %v1427, 2147483648
        %v1477 = vsel %vm1475, %v1476, %v1474
        %v1478 = vrsqrt.pop %v1428
        %v1479 = vmul.f32 %v1428, %v1478
        %vm1480 = vcmp.eq.f32.partialorder %v1428, inf
        %v1481 = vsel %vm1480, %v1428, %v1479
        %vm1482 = vcmp.eq.f32.partialorder %v1428, 0.0
        %v1483 = vand.u32 %v1428, 2147483648
        %v1484 = vsel %vm1482, %v1483, %v1481
        %v1485 = vld [vmem:[%s593] sm:$0xf]
        %v1486 = vld [vmem:[%s593 + $0x4] sm:$0xf]
        %v1487 = vld [vmem:[%s593 + $0x8] sm:$0xf]
        %v1488 = vld [vmem:[%s593 + $0xc] sm:$0xf]
        %v1489 = vld [vmem:[%s593 + $0x10] sm:$0xf]
        %v1490 = vld [vmem:[%s593 + $0x14] sm:$0xf]
        %v1491 = vld [vmem:[%s593 + $0x18] sm:$0xf]
        %v1492 = vld [vmem:[%s593 + $0x1c] sm:$0xf]
        %v1493 = vunpack.c.l.bf16 %v1485
        %v1494 = vunpack.c.l.bf16 %v1486
        %v1495 = vunpack.c.l.bf16 %v1487
        %v1496 = vunpack.c.l.bf16 %v1488
        %v1497 = vunpack.c.l.bf16 %v1489
        %v1498 = vunpack.c.l.bf16 %v1490
        %v1499 = vunpack.c.l.bf16 %v1491
        %v1500 = vunpack.c.l.bf16 %v1492
        %v1501 = vld [vmem:[%s601] sm:$0x1]
        %v1503 = vlaneseq
        %v1504 = vshrl.u32 %v1503, 7
        %v1505 = vsub.s32 0, %v1504
        %v1506 = vrot.slane %v1501, %v1505
        %v1508 = vsub.f32 %v1493, %v1506
        %v1509 = vsub.f32 %v1494, %v1506
        %v1510 = vsub.f32 %v1495, %v1506
        %v1511 = vsub.f32 %v1496, %v1506
        %v1512 = vsub.f32 %v1497, %v1506
        %v1513 = vsub.f32 %v1498, %v1506
        %v1514 = vsub.f32 %v1499, %v1506
        %v1515 = vsub.f32 %v1500, %v1506
        %v1516 = vld [vmem:[%s609] sm:$0x1]
        %v1518 = vlaneseq
        %v1519 = vshrl.u32 %v1518, 7
        %v1520 = vsub.s32 0, %v1519
        %v1521 = vrot.slane %v1516, %v1520
        %v1523 = vmul.f32 %v1508, %v1521
        %v1524 = vmul.f32 %v1509, %v1521
        %v1525 = vmul.f32 %v1510, %v1521
        %v1526 = vmul.f32 %v1511, %v1521
        %v1527 = vmul.f32 %v1512, %v1521
        %v1528 = vmul.f32 %v1513, %v1521
        %v1529 = vmul.f32 %v1514, %v1521
        %v1530 = vmul.f32 %v1515, %v1521
        %1539 = vrot.lane.b32.xlu0 %v1523, 32
        %v1540 = vpop.permute.xlu0 %1539
        %1541 = vrot.lane.b32.xlu0 %v1524, 32
        %v1542 = vpop.permute.xlu0 %1541
        %1543 = vrot.lane.b32.xlu0 %v1525, 32
        %v1544 = vpop.permute.xlu0 %1543
        %1545 = vrot.lane.b32.xlu0 %v1526, 32
        %v1546 = vpop.permute.xlu0 %1545
        %1547 = vrot.lane.b32.xlu0 %v1527, 32
        %v1548 = vpop.permute.xlu0 %1547
        %1549 = vrot.lane.b32.xlu0 %v1528, 32
        %v1550 = vpop.permute.xlu0 %1549
        %1551 = vrot.lane.b32.xlu0 %v1529, 32
        %v1552 = vpop.permute.xlu0 %1551
        %1553 = vrot.lane.b32.xlu0 %v1530, 32
        %v1554 = vpop.permute.xlu0 %1553
        %v1563 = vmul.f32 %v1435, %v1540
        %v1564 = vmul.f32 %v1442, %v1542
        %v1565 = vmul.f32 %v1449, %v1544
        %v1566 = vmul.f32 %v1456, %v1546
        %v1567 = vmul.f32 %v1463, %v1548
        %v1568 = vmul.f32 %v1470, %v1550
        %v1569 = vmul.f32 %v1477, %v1552
        %v1570 = vmul.f32 %v1484, %v1554
        %1579 = vrot.lane.b32.xlu0 %v1358, 32
        %v1580 = vpop.permute.xlu0 %1579
        %1581 = vrot.lane.b32.xlu0 %v1360, 32
        %v1582 = vpop.permute.xlu0 %1581
        %1583 = vrot.lane.b32.xlu0 %v1362, 32
        %v1584 = vpop.permute.xlu0 %1583
        %1585 = vrot.lane.b32.xlu0 %v1364, 32
        %v1586 = vpop.permute.xlu0 %1585
        %1587 = vrot.lane.b32.xlu0 %v1366, 32
        %v1588 = vpop.permute.xlu0 %1587
        %1589 = vrot.lane.b32.xlu0 %v1368, 32
        %v1590 = vpop.permute.xlu0 %1589
        %1591 = vrot.lane.b32.xlu0 %v1370, 32
        %v1592 = vpop.permute.xlu0 %1591
        %1593 = vrot.lane.b32.xlu0 %v1372, 32
        %v1594 = vpop.permute.xlu0 %1593
        %v1603 = vadd.f32 %v1563, %v1580
        %v1604 = vadd.f32 %v1564, %v1582
        %v1605 = vadd.f32 %v1565, %v1584
        %v1606 = vadd.f32 %v1566, %v1586
        %v1607 = vadd.f32 %v1567, %v1588
        %v1608 = vadd.f32 %v1568, %v1590
        %v1609 = vadd.f32 %v1569, %v1592
        %v1610 = vadd.f32 %v1570, %v1594
        %v1611 = vpack.c.bf16 %v1604, %v1603
        %v1612 = vpack.c.bf16 %v1606, %v1605
        %v1613 = vpack.c.bf16 %v1608, %v1607
        %v1614 = vpack.c.bf16 %v1610, %v1609
        %v1619 = vunpack.c.l.b16 %v1611
        %v1620 = vunpack.c.h.b16 %v1611
        %v1621 = vunpack.c.l.b16 %v1612
        %v1622 = vunpack.c.h.b16 %v1612
        %v1623 = vunpack.c.l.b16 %v1613
        %v1624 = vunpack.c.h.b16 %v1613
        %v1625 = vunpack.c.l.b16 %v1614
        %v1626 = vunpack.c.h.b16 %v1614
        %v1627 = vpack.c.b16 %v1619, %v1619
        %v1628 = vpack.c.b16 %v1620, %v1620
        %v1629 = vpack.c.b16 %v1621, %v1621
        %v1630 = vpack.c.b16 %v1622, %v1622
        %v1631 = vpack.c.b16 %v1623, %v1623
        %v1632 = vpack.c.b16 %v1624, %v1624
        %v1633 = vpack.c.b16 %v1625, %v1625
        %v1634 = vpack.c.b16 %v1626, %v1626
        %1635 = vrot.lane.b32.xlu0 %v1627, 96
        %v1636 = vpop.permute.xlu0 %1635
        %1637 = vrot.lane.b32.xlu0 %v1628, 96
        %v1638 = vpop.permute.xlu0 %1637
        %1639 = vrot.lane.b32.xlu0 %v1629, 96
        %v1640 = vpop.permute.xlu0 %1639
        %1641 = vrot.lane.b32.xlu0 %v1630, 96
        %v1642 = vpop.permute.xlu0 %1641
        %1643 = vrot.lane.b32.xlu0 %v1631, 96
        %v1644 = vpop.permute.xlu0 %1643
        %1645 = vrot.lane.b32.xlu0 %v1632, 96
        %v1646 = vpop.permute.xlu0 %1645
        %1647 = vrot.lane.b32.xlu0 %v1633, 96
        %v1648 = vpop.permute.xlu0 %1647
        %1649 = vrot.lane.b32.xlu0 %v1634, 96
        %v1650 = vpop.permute.xlu0 %1649
        %vm1659 = vcmask 257024
        %1660 = vst.msk [vmem:[%s696] sm:$0xf] %vm1659, %v1636
        %1661 = vst.msk [vmem:[%s696 + $0x4] sm:$0xf] %vm1659, %v1638
        %1662 = vst.msk [vmem:[%s696 + $0x8] sm:$0xf] %vm1659, %v1640
        %1663 = vst.msk [vmem:[%s696 + $0xc] sm:$0xf] %vm1659, %v1642
        %1664 = vst.msk [vmem:[%s696 + $0x10] sm:$0xf] %vm1659, %v1644
        %1665 = vst.msk [vmem:[%s696 + $0x14] sm:$0xf] %vm1659, %v1646
        %1666 = vst.msk [vmem:[%s696 + $0x18] sm:$0xf] %vm1659, %v1648
        %1667 = vst.msk [vmem:[%s696 + $0x1c] sm:$0xf] %vm1659, %v1650
        %s1668 = sand.u32 %s331, 1
        %s1669 = scalar_lea.sflag [#allocation4], %s1668
        %s1670 = sand.u32 %s331, 1
        %s1671 = smul.addr %s1670, 32
        %s1672 = scalar_lea.vmem [#allocation22], %s1671
        // Predicated region
        $region117: #{transformer_forward.6} parent=67 // pred_check
          %p1673 = pneg %p341
        $region118: #{transformer_forward.6} parent=67 // pred_check_branch
          %1675 = sbr.rel (%p1673) target = $region120
        $region119: #{transformer_forward.6} parent=67 // pred_region
          %s1677 = ssub.s32 512, 512
          %1678 = vsyncadd %s1669, %s1677
          %s1679 = smul.addr %s41, 8
          %s1680 = smul.addr %s1679, 64
          %s1681 = scalar_lea.hbm %s12, %s1680
          %s1682 = sshll.u32 %s1672, 4
          %s1683 = int_to_ptr.vmem [resolvable:$true] %s1682
          %1688 = dma.vmem_to_hbm [thread:$0]  %s1683, 512, %s1681, %s1669, 64, 64, 4
        $region120: #{transformer_forward.6} parent=67 // pred_fallthru
          _
      $region68: #{transformer_forward.6} parent=5 // pred_fallthru
        _
      %p1689 = scmp.le.s32.totalorder 2, %s36
      // Predicated region
      $region121: #{transformer_forward.6} parent=5 // pred_check
        %p1690 = pneg %p1689
      $region122: #{transformer_forward.6} parent=5 // pred_check_branch
        %1692 = sbr.rel (%p1690) target = $region124
      $region123: #{transformer_forward.6} parent=5 // pred_region
        %s1693 = ssub.s32 %s36, 2
        // Predicated region
        $region125: #{transformer_forward.6} parent=123 // pred_check
          %p1694 = pneg %p347
        $region126: #{transformer_forward.6} parent=123 // pred_check_branch
          %1696 = sbr.rel (%p1694) target = $region128
        $region127: #{transformer_forward.6} parent=123 // pred_region
          %s1697 = sand.u32 %s332, 1
          %s1698 = scalar_lea.sflag [#allocation4], %s1697
          %s1699 = sand.u32 %s332, 1
          %s1700 = smul.addr %s1699, 32
          %s1701 = scalar_lea.vmem [#allocation22], %s1700
          %1702 = dma.done %s1698, 512
        $region128: #{transformer_forward.6} parent=123 // pred_fallthru
          _
      $region124: #{transformer_forward.6} parent=5 // pred_fallthru
        _
    $region6: #{transformer_forward.6} parent=1 // loop_footer
      %s40 = sadd.s32 1, %s36
    $region7: #{transformer_forward.6} parent=1 // loop_footer_branch
      %35 = sbr.rel target = $region3
    $region8: #{transformer_forward.6} parent=1 // loop_exit
      _
    %1703 = vsyncpa [#allocation3], 1
    %s1704 = scalar_lea.sflag [#allocation3], 1
    %1705 = vsyncpa %s1704, 1
    %1706 = vsyncpa [#allocation6], 1
    %s1707 = scalar_lea.sflag [#allocation6], 1
    %1708 = vsyncpa %s1707, 1
    %1709 = vsyncpa [#allocation9], 1
    %s1710 = scalar_lea.sflag [#allocation9], 1
    %1711 = vsyncpa %s1710, 1
    %1712 = vsyncpa [#allocation12], 1
    %s1713 = scalar_lea.sflag [#allocation12], 1
    %1714 = vsyncpa %s1713, 1
    %1715 = vsyncpa [#allocation15], 1
    %1716 = vsyncpa [#allocation18], 1
    %1717 = vsyncpa [#allocation21], 1
    %1718 = vsyncpa [#allocation4], 1
    %s1719 = scalar_lea.sflag [#allocation4], 1
    %1720 = vsyncpa %s1719, 1

// kernel: transformer_forward.5
$region0: #{transformer_forward.5}
  #allocation0 [shape = 'u32[]', space=smem, size = 0x4, offset = 0x4, fixed_abs, tag = 'smem constant byte address 0x4 - core index']
  #allocation1 [shape = 'u32[144,128]{1,0:T(1,128)}', space=vmem, size = 0x12000, scoped, tag = 'internal scratch']
  #allocation2 [shape = 'bf16[256,32]{1,0:T(16,128)(2,1)}', space=vmem, size = 0x10000, scoped, tag = 'scratch operand']
  #allocation3 [shape = 'f32[256,1]{1,0:T(8,128)}', space=vmem, size = 0x20000, scoped, tag = 'scratch operand']
  #allocation4 [shape = 'f32[256,1]{1,0:T(8,128)}', space=vmem, size = 0x20000, scoped, tag = 'scratch operand']
  #allocation5 [shape = 'f32[256,64]{1,0:T(8,128)}', space=vmem, size = 0x20000, scoped, tag = 'scratch operand']
  %s0 = inlined_call_operand.hbm [shape: bf16[2,256,32], index: 0, kind: input, shape index: {}]
  %s1 = inlined_call_operand.hbm [shape: bf16[2,32,256], index: 1, kind: input, shape index: {}]
  %s2 = inlined_call_operand.hbm [shape: bf16[2,256,64], index: 2, kind: input, shape index: {}]
  %s3 = inlined_call_operand.hbm [shape: bf16[2,256,32], index: 3, kind: input, shape index: {}]
  %s4 = inlined_call_operand.hbm [shape: f32[2,1,32], index: 4, kind: input, shape index: {}]
  %s5 = inlined_call_operand.hbm [shape: f32[2,1,32], index: 5, kind: input, shape index: {}]
  %s6 = inlined_call_operand.hbm [shape: bf16[32,32], index: 6, kind: input, shape index: {}]
  %s7 = inlined_call_operand.hbm [shape: f32[1,32], index: 7, kind: input, shape index: {}]
  %s8 = inlined_call_operand.hbm [shape: bf16[2,256,32], index: 8, kind: output, shape index: {}]
  %s9 = sld [smem:[#allocation0]]
  $region105: #{transformer_forward.5} parent=0
    _
  %s11 = ssub.s32 1, %s9
  %s12 = scalar_select 0, %s11, %s9
  $region1: #{transformer_forward.5} parent=0
    #allocation6 [shape = 'u8[131072]{0}', space=vmem, size = 0x20000, scoped, tag = 'input window, operand 0']
    #allocation7 [shape = 's32[2]{0}', space=sflag, size = 0x8, scoped, tag = 'scoped memory for transformer_forward.5']
    #allocation8 [shape = 's32[2]{0}', space=sflag, size = 0x8, scoped, tag = 'scoped memory for transformer_forward.5']
    #allocation9 [shape = 'u8[32768]{0}', space=vmem, size = 0x8000, scoped, tag = 'input window, operand 1']
    #allocation10 [shape = 's32[2]{0}', space=sflag, size = 0x8, scoped, tag = 'scoped memory for transformer_forward.5']
    #allocation11 [shape = 'u8[131072]{0}', space=vmem, size = 0x20000, scoped, tag = 'input window, operand 2']
    #allocation12 [shape = 'u8[131072]{0}', space=vmem, size = 0x20000, scoped, tag = 'input window, operand 3']
    #allocation13 [shape = 's32[2]{0}', space=sflag, size = 0x8, scoped, tag = 'scoped memory for transformer_forward.5']
    #allocation14 [shape = 'u8[1024]{0}', space=vmem, size = 0x400, scoped, tag = 'input window, operand 4']
    #allocation15 [shape = 'u8[1024]{0}', space=vmem, size = 0x400, scoped, tag = 'input window, operand 5']
    #allocation16 [shape = 's32[2]{0}', space=sflag, size = 0x8, scoped, tag = 'scoped memory for transformer_forward.5']
    #allocation17 [shape = 'u8[8192]{0}', space=vmem, size = 0x2000, scoped, tag = 'input window, operand 6, single buffered']
    #allocation18 [shape = 'u8[512]{0}', space=vmem, size = 0x400, scoped, tag = 'input window, operand 7, single buffered']
    #allocation19 [shape = 's32[1]{0}', space=sflag, size = 0x4, scoped, tag = 'scoped memory for transformer_forward.5']
    #allocation20 [shape = 'u8[131072]{0}', space=vmem, size = 0x20000, scoped, tag = 'output window, operand 0']
    %13 = vsyncpa [#allocation7], 0
    %s14 = scalar_lea.sflag [#allocation7], 1
    %15 = vsyncpa %s14, 0
    %16 = vsyncpa [#allocation10], 0
    %s17 = scalar_lea.sflag [#allocation10], 1
    %18 = vsyncpa %s17, 0
    %19 = vsyncpa [#allocation13], 0
    %s20 = scalar_lea.sflag [#allocation13], 1
    %21 = vsyncpa %s20, 0
    %22 = vsyncpa [#allocation16], 0
    %s23 = scalar_lea.sflag [#allocation16], 1
    %24 = vsyncpa %s23, 0
    %25 = vsyncpa [#allocation19], 0
    %26 = vsyncpa [#allocation8], 0
    %s27 = scalar_lea.sflag [#allocation8], 1
    %28 = vsyncpa %s27, 0
    loop: start=0, step=1, limit=4
    $region2: #{transformer_forward.5} parent=1 // loop_pre_header
      _
    $region3: #{transformer_forward.5} parent=1 // loop_header
      %s30 = sphi 0, %s34
      %p31 = scmp.ge.s32.totalorder %s30, 4
      %s37 = sphi 0, %s56
      %s38 = sphi 0, %s52
      %s39 = sphi 0, %s48
      %s40 = sphi 0, %s37
      %s41 = sphi 0, %s38
      %s42 = sphi 0, %s39
      %s43 = sphi 0, %s40
      %s44 = sphi 0, %s41
      %s45 = sphi 0, %s42
      %s61 = sphi 0, %s63
      %s64 = sphi 0, %s61
      %s65 = sphi 0, %s64
      %s81 = sphi 0, %s65
      %s89 = sphi 0, %s91
      %s92 = sphi 0, %s89
      %s93 = sphi 0, %s92
      %s109 = sphi 0, %s93
      %s117 = sphi 0, %s119
      %s120 = sphi 0, %s117
      %s121 = sphi 0, %s120
      %s137 = sphi 0, %s121
      %s145 = sphi 0, %s147
      %s148 = sphi 0, %s145
      %s149 = sphi 0, %s148
      %s165 = sphi 0, %s149
      %s171 = sphi 0, %s173
      %s174 = sphi 0, %s171
      %s175 = sphi 0, %s174
      %s191 = sphi 0, %s175
      %s197 = sphi 0, %s199
      %s200 = sphi 0, %s197
      %s201 = sphi 0, %s200
      %s217 = sphi 0, %s201
      %s221 = sphi 0, %s221
      %s223 = sphi 0, %s221
      %s224 = sphi 0, %s223
      %s238 = sphi 0, %s224
      %s242 = sphi 0, %s242
      %s244 = sphi 0, %s242
      %s245 = sphi 0, %s244
      %s259 = sphi 0, %s245
      %s267 = sphi 0, %s269
      %s270 = sphi 0, %s267
      %s271 = sphi 0, %s270
      %s287 = sphi 0, %s271
    $region4: #{transformer_forward.5} parent=1 // loop_header_branch
      %33 = sbr.rel (%p31) target = $region8
    $region5: #{transformer_forward.5} parent=1 // loop_body
      %s35 = ssub.s32 %s30, 1
      %s36 = ssub.s32 %s30, 2
      %s46 = sadd.s32 1, %s39
      %p47 = scmp.ge.s32.totalorder %s46, 1
      %s48 = scalar_select %p47, 0, %s46
      %s49 = sadd.s32 1, %s38
      %s50 = scalar_select %p47, %s49, %s38
      %p51 = scmp.ge.s32.totalorder %s50, 1
      %s52 = scalar_select %p51, 0, %s50
      %s53 = sadd.s32 1, %s37
      %s54 = scalar_select %p51, %s53, %s37
      %p55 = scmp.ge.s32.totalorder %s54, 2
      %s56 = scalar_select %p55, 0, %s54
      %s57 = ssub.s32 %s37, %s56
      %s58 = ssub.s32 %s38, %s52
      %s59 = sor.u32 %s57, %s58
      %p60 = scmp.eq.s32.totalorder %s59, 0
      %s62 = sadd.s32 %s61, 1
      %s63 = scalar_select %p60, %s61, %s62
      %p66 = pneg %p60
      %p67 = scmp.eq.s32.totalorder %s30, 1
      %p68 = por %p66, %p67
      %p69 = scmp.ne.s32.totalorder %s61, %s64
      %p70 = scmp.eq.s32.totalorder %s30, 0
      %p71 = por %p69, %p70
      %p72 = scmp.ne.s32.totalorder %s61, %s64
      %p73 = scmp.eq.s32.totalorder %s35, 1
      %p74 = por %p72, %p73
      %p75 = scmp.ne.s32.totalorder %s64, %s65
      %p76 = scmp.eq.s32.totalorder %s35, 0
      %p77 = por %p75, %p76
      %p78 = scmp.ne.s32.totalorder %s64, %s65
      %p79 = scmp.eq.s32.totalorder %s36, 1
      %p80 = por %p78, %p79
      %p82 = scmp.ne.s32.totalorder %s65, %s81
      %p83 = scmp.eq.s32.totalorder %s36, 0
      %p84 = por %p82, %p83
      %s85 = ssub.s32 %s37, %s56
      %s86 = ssub.s32 %s39, %s48
      %s87 = sor.u32 %s85, %s86
      %p88 = scmp.eq.s32.totalorder %s87, 0
      %s90 = sadd.s32 %s89, 1
      %s91 = scalar_select %p88, %s89, %s90
      %p94 = pneg %p88
      %p95 = scmp.eq.s32.totalorder %s30, 1
      %p96 = por %p94, %p95
      %p97 = scmp.ne.s32.totalorder %s89, %s92
      %p98 = scmp.eq.s32.totalorder %s30, 0
      %p99 = por %p97, %p98
      %p100 = scmp.ne.s32.totalorder %s89, %s92
      %p101 = scmp.eq.s32.totalorder %s35, 1
      %p102 = por %p100, %p101
      %p103 = scmp.ne.s32.totalorder %s92, %s93
      %p104 = scmp.eq.s32.totalorder %s35, 0
      %p105 = por %p103, %p104
      %p106 = scmp.ne.s32.totalorder %s92, %s93
      %p107 = scmp.eq.s32.totalorder %s36, 1
      %p108 = por %p106, %p107
      %p110 = scmp.ne.s32.totalorder %s93, %s109
      %p111 = scmp.eq.s32.totalorder %s36, 0
      %p112 = por %p110, %p111
      %s113 = ssub.s32 %s37, %s56
      %s114 = ssub.s32 %s39, %s48
      %s115 = sor.u32 %s113, %s114
      %p116 = scmp.eq.s32.totalorder %s115, 0
      %s118 = sadd.s32 %s117, 1
      %s119 = scalar_select %p116, %s117, %s118
      %p122 = pneg %p116
      %p123 = scmp.eq.s32.totalorder %s30, 1
      %p124 = por %p122, %p123
      %p125 = scmp.ne.s32.totalorder %s117, %s120
      %p126 = scmp.eq.s32.totalorder %s30, 0
      %p127 = por %p125, %p126
      %p128 = scmp.ne.s32.totalorder %s117, %s120
      %p129 = scmp.eq.s32.totalorder %s35, 1
      %p130 = por %p128, %p129
      %p131 = scmp.ne.s32.totalorder %s120, %s121
      %p132 = scmp.eq.s32.totalorder %s35, 0
      %p133 = por %p131, %p132
      %p134 = scmp.ne.s32.totalorder %s120, %s121
      %p135 = scmp.eq.s32.totalorder %s36, 1
      %p136 = por %p134, %p135
      %p138 = scmp.ne.s32.totalorder %s121, %s137
      %p139 = scmp.eq.s32.totalorder %s36, 0
      %p140 = por %p138, %p139
      %s141 = ssub.s32 %s37, %s56
      %s142 = ssub.s32 %s38, %s52
      %s143 = sor.u32 %s141, %s142
      %p144 = scmp.eq.s32.totalorder %s143, 0
      %s146 = sadd.s32 %s145, 1
      %s147 = scalar_select %p144, %s145, %s146
      %p150 = pneg %p144
      %p151 = scmp.eq.s32.totalorder %s30, 1
      %p152 = por %p150, %p151
      %p153 = scmp.ne.s32.totalorder %s145, %s148
      %p154 = scmp.eq.s32.totalorder %s30, 0
      %p155 = por %p153, %p154
      %p156 = scmp.ne.s32.totalorder %s145, %s148
      %p157 = scmp.eq.s32.totalorder %s35, 1
      %p158 = por %p156, %p157
      %p159 = scmp.ne.s32.totalorder %s148, %s149
      %p160 = scmp.eq.s32.totalorder %s35, 0
      %p161 = por %p159, %p160
      %p162 = scmp.ne.s32.totalorder %s148, %s149
      %p163 = scmp.eq.s32.totalorder %s36, 1
      %p164 = por %p162, %p163
      %p166 = scmp.ne.s32.totalorder %s149, %s165
      %p167 = scmp.eq.s32.totalorder %s36, 0
      %p168 = por %p166, %p167
      %s169 = ssub.s32 %s37, %s56
      %p170 = scmp.eq.s32.totalorder %s169, 0
      %s172 = sadd.s32 %s171, 1
      %s173 = scalar_select %p170, %s171, %s172
      %p176 = pneg %p170
      %p177 = scmp.eq.s32.totalorder %s30, 1
      %p178 = por %p176, %p177
      %p179 = scmp.ne.s32.totalorder %s171, %s174
      %p180 = scmp.eq.s32.totalorder %s30, 0
      %p181 = por %p179, %p180
      %p182 = scmp.ne.s32.totalorder %s171, %s174
      %p183 = scmp.eq.s32.totalorder %s35, 1
      %p184 = por %p182, %p183
      %p185 = scmp.ne.s32.totalorder %s174, %s175
      %p186 = scmp.eq.s32.totalorder %s35, 0
      %p187 = por %p185, %p186
      %p188 = scmp.ne.s32.totalorder %s174, %s175
      %p189 = scmp.eq.s32.totalorder %s36, 1
      %p190 = por %p188, %p189
      %p192 = scmp.ne.s32.totalorder %s175, %s191
      %p193 = scmp.eq.s32.totalorder %s36, 0
      %p194 = por %p192, %p193
      %s195 = ssub.s32 %s37, %s56
      %p196 = scmp.eq.s32.totalorder %s195, 0
      %s198 = sadd.s32 %s197, 1
      %s199 = scalar_select %p196, %s197, %s198
      %p202 = pneg %p196
      %p203 = scmp.eq.s32.totalorder %s30, 1
      %p204 = por %p202, %p203
      %p205 = scmp.ne.s32.totalorder %s197, %s200
      %p206 = scmp.eq.s32.totalorder %s30, 0
      %p207 = por %p205, %p206
      %p208 = scmp.ne.s32.totalorder %s197, %s200
      %p209 = scmp.eq.s32.totalorder %s35, 1
      %p210 = por %p208, %p209
      %p211 = scmp.ne.s32.totalorder %s200, %s201
      %p212 = scmp.eq.s32.totalorder %s35, 0
      %p213 = por %p211, %p212
      %p214 = scmp.ne.s32.totalorder %s200, %s201
      %p215 = scmp.eq.s32.totalorder %s36, 1
      %p216 = por %p214, %p215
      %p218 = scmp.ne.s32.totalorder %s201, %s217
      %p219 = scmp.eq.s32.totalorder %s36, 0
      %p220 = por %p218, %p219
      %s222 = sadd.s32 %s221, 1
      %p225 = scmp.eq.s32.totalorder %s30, 1
      %p226 = scmp.ne.s32.totalorder %s221, %s223
      %p227 = scmp.eq.s32.totalorder %s30, 0
      %p228 = por %p226, %p227
      %p229 = scmp.ne.s32.totalorder %s221, %s223
      %p230 = scmp.eq.s32.totalorder %s35, 1
      %p231 = por %p229, %p230
      %p232 = scmp.ne.s32.totalorder %s223, %s224
      %p233 = scmp.eq.s32.totalorder %s35, 0
      %p234 = por %p232, %p233
      %p235 = scmp.ne.s32.totalorder %s223, %s224
      %p236 = scmp.eq.s32.totalorder %s36, 1
      %p237 = por %p235, %p236
      %p239 = scmp.ne.s32.totalorder %s224, %s238
      %p240 = scmp.eq.s32.totalorder %s36, 0
      %p241 = por %p239, %p240
      %s243 = sadd.s32 %s242, 1
      %p246 = scmp.eq.s32.totalorder %s30, 1
      %p247 = scmp.ne.s32.totalorder %s242, %s244
      %p248 = scmp.eq.s32.totalorder %s30, 0
      %p249 = por %p247, %p248
      %p250 = scmp.ne.s32.totalorder %s242, %s244
      %p251 = scmp.eq.s32.totalorder %s35, 1
      %p252 = por %p250, %p251
      %p253 = scmp.ne.s32.totalorder %s244, %s245
      %p254 = scmp.eq.s32.totalorder %s35, 0
      %p255 = por %p253, %p254
      %p256 = scmp.ne.s32.totalorder %s244, %s245
      %p257 = scmp.eq.s32.totalorder %s36, 1
      %p258 = por %p256, %p257
      %p260 = scmp.ne.s32.totalorder %s245, %s259
      %p261 = scmp.eq.s32.totalorder %s36, 0
      %p262 = por %p260, %p261
      %s263 = ssub.s32 %s37, %s56
      %s264 = ssub.s32 %s38, %s52
      %s265 = sor.u32 %s263, %s264
      %p266 = scmp.eq.s32.totalorder %s265, 0
      %s268 = sadd.s32 %s267, 1
      %s269 = scalar_select %p266, %s267, %s268
      %p272 = pneg %p266
      %p273 = scmp.eq.s32.totalorder %s30, 1
      %p274 = por %p272, %p273
      %p275 = scmp.ne.s32.totalorder %s267, %s270
      %p276 = scmp.eq.s32.totalorder %s30, 0
      %p277 = por %p275, %p276
      %p278 = scmp.ne.s32.totalorder %s267, %s270
      %p279 = scmp.eq.s32.totalorder %s35, 1
      %p280 = por %p278, %p279
      %p281 = scmp.ne.s32.totalorder %s270, %s271
      %p282 = scmp.eq.s32.totalorder %s35, 0
      %p283 = por %p281, %p282
      %p284 = scmp.ne.s32.totalorder %s270, %s271
      %p285 = scmp.eq.s32.totalorder %s36, 1
      %p286 = por %p284, %p285
      %p288 = scmp.ne.s32.totalorder %s271, %s287
      %p289 = scmp.eq.s32.totalorder %s36, 0
      %p290 = por %p288, %p289
      %p291 = scmp.le.s32.totalorder 1, %s30
      %p292 = scmp.lt.s32.totalorder %s30, 3
      %p293 = pnand %p291, %p292
      %p294 = pneg %p293
      // Predicated region
      $region9: #{transformer_forward.5} parent=5 // pred_check
        _
      $region10: #{transformer_forward.5} parent=5 // pred_check_branch
        %296 = sbr.rel (%p293) target = $region12
      $region11: #{transformer_forward.5} parent=5 // pred_region
        %s297 = ssub.s32 %s30, 1
        // Predicated region
        $region13: #{transformer_forward.5} parent=11 // pred_check
          %p298 = pneg %p234
        $region14: #{transformer_forward.5} parent=11 // pred_check_branch
          %300 = sbr.rel (%p298) target = $region16
        $region15: #{transformer_forward.5} parent=11 // pred_region
          %s302 = ssub.s32 256, 256
          %303 = vsyncadd [#allocation16], %s302
          %s304 = sshll.u32 [#allocation17], 4
          %s305 = int_to_ptr.vmem [resolvable:$true] %s304
          %310 = dma.hbm_to_vmem [thread:$0]  %s6, 256, %s305, [#allocation16], 64, 64, 4
        $region16: #{transformer_forward.5} parent=11 // pred_fallthru
          _
        // Predicated region
        $region17: #{transformer_forward.5} parent=11 // pred_check
          %p311 = pneg %p255
        $region18: #{transformer_forward.5} parent=11 // pred_check_branch
          %313 = sbr.rel (%p311) target = $region20
        $region19: #{transformer_forward.5} parent=11 // pred_region
          %s315 = ssub.s32 16, 16
          %316 = vsyncadd [#allocation19], %s315
          %s318 = sshll.u32 [#allocation18], 4
          %s319 = int_to_ptr.vmem [resolvable:$true] %s318
          %321 = dma.hbm_to_vmem [thread:$0]  %s7, 16, %s319, [#allocation19]
        $region20: #{transformer_forward.5} parent=11 // pred_fallthru
          _
      $region12: #{transformer_forward.5} parent=5 // pred_fallthru
        _
      %p322 = scmp.lt.s32.totalorder %s30, 2
      // Predicated region
      $region21: #{transformer_forward.5} parent=5 // pred_check
        %p323 = pneg %p322
      $region22: #{transformer_forward.5} parent=5 // pred_check_branch
        %325 = sbr.rel (%p323) target = $region24
      $region23: #{transformer_forward.5} parent=5 // pred_region
        // Predicated region
        $region25: #{transformer_forward.5} parent=23 // pred_check
          %p326 = pneg %p71
        $region26: #{transformer_forward.5} parent=23 // pred_check_branch
          %328 = sbr.rel (%p326) target = $region28
        $region27: #{transformer_forward.5} parent=23 // pred_region
          %s329 = sand.u32 %s61, 1
          %s330 = scalar_lea.sflag [#allocation7], %s329
          %s331 = sand.u32 %s61, 1
          %s332 = smul.addr %s331, 128
          %s333 = scalar_lea.vmem [#allocation6], %s332
          %s334 = smul.u32 32, %s38
          %s336 = ssub.s32 2048, 2048
          %337 = vsyncadd %s330, %s336
          %s338 = smul.addr %s37, 32
          %s339 = sadd.s32 %s334, %s338
          %s340 = smul.addr %s339, 64
          %s341 = scalar_lea.hbm %s0, %s340
          %s342 = sshll.u32 %s333, 4
          %s343 = int_to_ptr.vmem [resolvable:$true] %s342
          %348 = dma.hbm_to_vmem [thread:$0]  %s341, 2048, %s343, %s330, 64, 64, 4
        $region28: #{transformer_forward.5} parent=23 // pred_fallthru
          _
        // Predicated region
        $region29: #{transformer_forward.5} parent=23 // pred_check
          %p349 = pneg %p99
        $region30: #{transformer_forward.5} parent=23 // pred_check_branch
          %351 = sbr.rel (%p349) target = $region32
        $region31: #{transformer_forward.5} parent=23 // pred_region
          %s352 = sand.u32 %s30, 1
          %s353 = scalar_lea.sflag [#allocation10], %s352
          %s354 = sand.u32 %s89, 1
          %s355 = smul.addr %s354, 32
          %s356 = scalar_lea.vmem [#allocation9], %s355
          %s357 = smul.u32 2, %s39
          %s359 = ssub.s32 512, 512
          %360 = vsyncadd %s353, %s359
          %s361 = smul.addr %s37, 8
          %s362 = sadd.s32 %s357, %s361
          %s363 = smul.addr %s362, 64
          %s364 = scalar_lea.hbm %s1, %s363
          %s365 = sshll.u32 %s356, 4
          %s366 = int_to_ptr.vmem [resolvable:$true] %s365
          %371 = dma.hbm_to_vmem [thread:$0]  %s364, 512, %s366, %s353, 128, 128, 8
        $region32: #{transformer_forward.5} parent=23 // pred_fallthru
          _
        // Predicated region
        $region33: #{transformer_forward.5} parent=23 // pred_check
          %p372 = pneg %p127
        $region34: #{transformer_forward.5} parent=23 // pred_check_branch
          %374 = sbr.rel (%p372) target = $region36
        $region35: #{transformer_forward.5} parent=23 // pred_region
          %s375 = sand.u32 %s30, 1
          %s376 = scalar_lea.sflag [#allocation10], %s375
          %s377 = sand.u32 %s117, 1
          %s378 = smul.addr %s377, 128
          %s379 = scalar_lea.vmem [#allocation11], %s378
          %s380 = smul.u32 32, %s39
          %s382 = ssub.s32 2048, 2048
          %383 = vsyncadd %s376, %s382
          %s384 = smul.addr %s37, 32
          %s385 = sadd.s32 %s380, %s384
          %s386 = smul.addr %s385, 64
          %s387 = scalar_lea.hbm %s2, %s386
          %s388 = sshll.u32 %s379, 4
          %s389 = int_to_ptr.vmem [resolvable:$true] %s388
          %394 = dma.hbm_to_vmem [thread:$0]  %s387, 2048, %s389, %s376, 64, 64, 4
        $region36: #{transformer_forward.5} parent=23 // pred_fallthru
          _
        // Predicated region
        $region37: #{transformer_forward.5} parent=23 // pred_check
          %p395 = pneg %p155
        $region38: #{transformer_forward.5} parent=23 // pred_check_branch
          %397 = sbr.rel (%p395) target = $region40
        $region39: #{transformer_forward.5} parent=23 // pred_region
          %s398 = sand.u32 %s30, 1
          %s399 = scalar_lea.sflag [#allocation13], %s398
          %s400 = sand.u32 %s145, 1
          %s401 = smul.addr %s400, 128
          %s402 = scalar_lea.vmem [#allocation12], %s401
          %s403 = smul.u32 32, %s38
          %s405 = ssub.s32 2048, 2048
          %406 = vsyncadd %s399, %s405
          %s407 = smul.addr %s37, 32
          %s408 = sadd.s32 %s403, %s407
          %s409 = smul.addr %s408, 64
          %s410 = scalar_lea.hbm %s3, %s409
          %s411 = sshll.u32 %s402, 4
          %s412 = int_to_ptr.vmem [resolvable:$true] %s411
          %417 = dma.hbm_to_vmem [thread:$0]  %s410, 2048, %s412, %s399, 64, 64, 4
        $region40: #{transformer_forward.5} parent=23 // pred_fallthru
          _
        // Predicated region
        $region41: #{transformer_forward.5} parent=23 // pred_check
          %p418 = pneg %p181
        $region42: #{transformer_forward.5} parent=23 // pred_check_branch
          %420 = sbr.rel (%p418) target = $region44
        $region43: #{transformer_forward.5} parent=23 // pred_region
          %s421 = sand.u32 %s30, 1
          %s422 = scalar_lea.sflag [#allocation13], %s421
          %s423 = sand.u32 %s171, 1
          %s424 = scalar_lea.vmem [#allocation14], %s423
          %s426 = ssub.s32 16, 16
          %427 = vsyncadd %s422, %s426
          %s428 = smul.addr %s37, 16
          %s429 = scalar_lea.hbm %s4, %s428
          %s431 = sshll.u32 %s424, 4
          %s432 = int_to_ptr.vmem [resolvable:$true] %s431
          %434 = dma.hbm_to_vmem [thread:$0]  %s429, 16, %s432, %s422
        $region44: #{transformer_forward.5} parent=23 // pred_fallthru
          _
        // Predicated region
        $region45: #{transformer_forward.5} parent=23 // pred_check
          %p435 = pneg %p207
        $region46: #{transformer_forward.5} parent=23 // pred_check_branch
          %437 = sbr.rel (%p435) target = $region48
        $region47: #{transformer_forward.5} parent=23 // pred_region
          %s438 = sand.u32 %s30, 1
          %s439 = scalar_lea.sflag [#allocation16], %s438
          %s440 = sand.u32 %s197, 1
          %s441 = scalar_lea.vmem [#allocation15], %s440
          %s443 = ssub.s32 16, 16
          %444 = vsyncadd %s439, %s443
          %s445 = smul.addr %s37, 16
          %s446 = scalar_lea.hbm %s5, %s445
          %s448 = sshll.u32 %s441, 4
          %s449 = int_to_ptr.vmem [resolvable:$true] %s448
          %451 = dma.hbm_to_vmem [thread:$0]  %s446, 16, %s449, %s439
        $region48: #{transformer_forward.5} parent=23 // pred_fallthru
          _
      $region24: #{transformer_forward.5} parent=5 // pred_fallthru
        _
      %p452 = scmp.le.s32.totalorder 1, %s30
      %p453 = scmp.lt.s32.totalorder %s30, 3
      %p454 = pnand %p452, %p453
      %p455 = pneg %p454
      // Predicated region
      $region49: #{transformer_forward.5} parent=5 // pred_check
        _
      $region50: #{transformer_forward.5} parent=5 // pred_check_branch
        %457 = sbr.rel (%p454) target = $region52
      $region51: #{transformer_forward.5} parent=5 // pred_region
        %s458 = ssub.s32 %s30, 1
        %s459 = sand.u32 %s64, 1
        %s460 = scalar_lea.sflag [#allocation7], %s459
        %s461 = sand.u32 %s64, 1
        %s462 = smul.addr %s461, 128
        %s463 = scalar_lea.vmem [#allocation6], %s462
        // Predicated region
        $region53: #{transformer_forward.5} parent=51 // pred_check
          %p464 = pneg %p77
        $region54: #{transformer_forward.5} parent=51 // pred_check_branch
          %466 = sbr.rel (%p464) target = $region56
        $region55: #{transformer_forward.5} parent=51 // pred_region
          %467 = dma.done %s460, 2048
        $region56: #{transformer_forward.5} parent=51 // pred_fallthru
          _
        %s468 = sand.u32 %s35, 1
        %s469 = scalar_lea.sflag [#allocation10], %s468
        %s470 = sand.u32 %s92, 1
        %s471 = smul.addr %s470, 32
        %s472 = scalar_lea.vmem [#allocation9], %s471
        // Predicated region
        $region57: #{transformer_forward.5} parent=51 // pred_check
          %p473 = pneg %p105
        $region58: #{transformer_forward.5} parent=51 // pred_check_branch
          %475 = sbr.rel (%p473) target = $region60
        $region59: #{transformer_forward.5} parent=51 // pred_region
          %476 = dma.done %s469, 512
        $region60: #{transformer_forward.5} parent=51 // pred_fallthru
          _
        %s477 = sand.u32 %s35, 1
        %s478 = scalar_lea.sflag [#allocation10], %s477
        %s479 = sand.u32 %s120, 1
        %s480 = smul.addr %s479, 128
        %s481 = scalar_lea.vmem [#allocation11], %s480
        // Predicated region
        $region61: #{transformer_forward.5} parent=51 // pred_check
          %p482 = pneg %p133
        $region62: #{transformer_forward.5} parent=51 // pred_check_branch
          %484 = sbr.rel (%p482) target = $region64
        $region63: #{transformer_forward.5} parent=51 // pred_region
          %485 = dma.done %s478, 2048
        $region64: #{transformer_forward.5} parent=51 // pred_fallthru
          _
        %s486 = sand.u32 %s35, 1
        %s487 = scalar_lea.sflag [#allocation13], %s486
        %s488 = sand.u32 %s148, 1
        %s489 = smul.addr %s488, 128
        %s490 = scalar_lea.vmem [#allocation12], %s489
        // Predicated region
        $region65: #{transformer_forward.5} parent=51 // pred_check
          %p491 = pneg %p161
        $region66: #{transformer_forward.5} parent=51 // pred_check_branch
          %493 = sbr.rel (%p491) target = $region68
        $region67: #{transformer_forward.5} parent=51 // pred_region
          %494 = dma.done %s487, 2048
        $region68: #{transformer_forward.5} parent=51 // pred_fallthru
          _
        %s495 = sand.u32 %s35, 1
        %s496 = scalar_lea.sflag [#allocation13], %s495
        %s497 = sand.u32 %s174, 1
        %s498 = scalar_lea.vmem [#allocation14], %s497
        // Predicated region
        $region69: #{transformer_forward.5} parent=51 // pred_check
          %p499 = pneg %p187
        $region70: #{transformer_forward.5} parent=51 // pred_check_branch
          %501 = sbr.rel (%p499) target = $region72
        $region71: #{transformer_forward.5} parent=51 // pred_region
          %502 = dma.done %s496, 16
        $region72: #{transformer_forward.5} parent=51 // pred_fallthru
          _
        %s503 = sand.u32 %s35, 1
        %s504 = scalar_lea.sflag [#allocation16], %s503
        %s505 = sand.u32 %s200, 1
        %s506 = scalar_lea.vmem [#allocation15], %s505
        // Predicated region
        $region73: #{transformer_forward.5} parent=51 // pred_check
          %p507 = pneg %p213
        $region74: #{transformer_forward.5} parent=51 // pred_check_branch
          %509 = sbr.rel (%p507) target = $region76
        $region75: #{transformer_forward.5} parent=51 // pred_region
          %510 = dma.done %s504, 16
        $region76: #{transformer_forward.5} parent=51 // pred_fallthru
          _
        // Predicated region
        $region77: #{transformer_forward.5} parent=51 // pred_check
          %p511 = pneg %p234
        $region78: #{transformer_forward.5} parent=51 // pred_check_branch
          %513 = sbr.rel (%p511) target = $region80
        $region79: #{transformer_forward.5} parent=51 // pred_region
          %514 = dma.done [#allocation16], 256
        $region80: #{transformer_forward.5} parent=51 // pred_fallthru
          _
        // Predicated region
        $region81: #{transformer_forward.5} parent=51 // pred_check
          %p515 = pneg %p255
        $region82: #{transformer_forward.5} parent=51 // pred_check_branch
          %517 = sbr.rel (%p515) target = $region84
        $region83: #{transformer_forward.5} parent=51 // pred_region
          %518 = dma.done [#allocation19], 16
        $region84: #{transformer_forward.5} parent=51 // pred_fallthru
          _
        %s519 = sand.u32 %s64, 1
        %s520 = scalar_lea.sflag [#allocation7], %s519
        %s521 = sand.u32 %s64, 1
        %s522 = smul.addr %s521, 128
        %s523 = scalar_lea.vmem [#allocation6], %s522
        %p524 = pneg %p77
        %p525 = pneg %p74
        %s526 = sand.u32 %s35, 1
        %s527 = scalar_lea.sflag [#allocation10], %s526
        %s528 = sand.u32 %s92, 1
        %s529 = smul.addr %s528, 32
        %s530 = scalar_lea.vmem [#allocation9], %s529
        %p531 = pneg %p105
        %p532 = pneg %p102
        %s533 = sand.u32 %s35, 1
        %s534 = scalar_lea.sflag [#allocation10], %s533
        %s535 = sand.u32 %s120, 1
        %s536 = smul.addr %s535, 128
        %s537 = scalar_lea.vmem [#allocation11], %s536
        %p538 = pneg %p133
        %p539 = pneg %p130
        %s540 = sand.u32 %s35, 1
        %s541 = scalar_lea.sflag [#allocation13], %s540
        %s542 = sand.u32 %s148, 1
        %s543 = smul.addr %s542, 128
        %s544 = scalar_lea.vmem [#allocation12], %s543
        %p545 = pneg %p161
        %p546 = pneg %p158
        %s547 = sand.u32 %s35, 1
        %s548 = scalar_lea.sflag [#allocation13], %s547
        %s549 = sand.u32 %s174, 1
        %s550 = scalar_lea.vmem [#allocation14], %s549
        %p551 = pneg %p187
        %p552 = pneg %p184
        %s553 = sand.u32 %s35, 1
        %s554 = scalar_lea.sflag [#allocation16], %s553
        %s555 = sand.u32 %s200, 1
        %s556 = scalar_lea.vmem [#allocation15], %s555
        %p557 = pneg %p213
        %p558 = pneg %p210
        %p559 = pneg %p234
        %p560 = pneg %p231
        %p561 = pneg %p255
        %p562 = pneg %p252
        %p563 = pneg %p283
        %p564 = pneg %p280
        %s565 = sand.u32 %s270, 1
        %s566 = scalar_lea.sflag [#allocation8], %s565
        %s567 = sand.u32 %s270, 1
        %s568 = smul.addr %s567, 128
        %s569 = scalar_lea.vmem [#allocation20], %s568
        %s570 = smul.u32 32, %s41
        %s571 = smul.u32 2, %s42
        %s572 = smul.u32 32, %s42
        %s573 = smul.u32 32, %s41
        %s574 = smul.u32 32, %s41
        %p576 = scmp.eq.s32.totalorder %s42, 0
        // Predicated region
        $region85: #{transformer_forward.5} parent=51 // pred_check
          %p577 = pneg %p576
        $region86: #{transformer_forward.5} parent=51 // pred_check_branch
          %579 = sbr.rel (%p577) target = $region88
        $region87: #{transformer_forward.5} parent=51 // pred_region
          %v580 = vld [vmem:[%s463] sm:$0xf]
          %v581 = vld [vmem:[%s463 + $0x4] sm:$0xf]
          %v582 = vld [vmem:[%s463 + $0x8] sm:$0xf]
          %v583 = vld [vmem:[%s463 + $0xc] sm:$0xf]
          %v584 = vld [vmem:[%s463 + $0x10] sm:$0xf]
          %v585 = vld [vmem:[%s463 + $0x14] sm:$0xf]
          %v586 = vld [vmem:[%s463 + $0x18] sm:$0xf]
          %v587 = vld [vmem:[%s463 + $0x1c] sm:$0xf]
          %v588 = vld [vmem:[%s463 + $0x20] sm:$0xf]
          %v589 = vld [vmem:[%s463 + $0x24] sm:$0xf]
          %v590 = vld [vmem:[%s463 + $0x28] sm:$0xf]
          %v591 = vld [vmem:[%s463 + $0x2c] sm:$0xf]
          %v592 = vld [vmem:[%s463 + $0x30] sm:$0xf]
          %v593 = vld [vmem:[%s463 + $0x34] sm:$0xf]
          %v594 = vld [vmem:[%s463 + $0x38] sm:$0xf]
          %v595 = vld [vmem:[%s463 + $0x3c] sm:$0xf]
          %v596 = vld [vmem:[%s463 + $0x40] sm:$0xf]
          %v597 = vld [vmem:[%s463 + $0x44] sm:$0xf]
          %v598 = vld [vmem:[%s463 + $0x48] sm:$0xf]
          %v599 = vld [vmem:[%s463 + $0x4c] sm:$0xf]
          %v600 = vld [vmem:[%s463 + $0x50] sm:$0xf]
          %v601 = vld [vmem:[%s463 + $0x54] sm:$0xf]
          %v602 = vld [vmem:[%s463 + $0x58] sm:$0xf]
          %v603 = vld [vmem:[%s463 + $0x5c] sm:$0xf]
          %v604 = vld [vmem:[%s463 + $0x60] sm:$0xf]
          %v605 = vld [vmem:[%s463 + $0x64] sm:$0xf]
          %v606 = vld [vmem:[%s463 + $0x68] sm:$0xf]
          %v607 = vld [vmem:[%s463 + $0x6c] sm:$0xf]
          %v608 = vld [vmem:[%s463 + $0x70] sm:$0xf]
          %v609 = vld [vmem:[%s463 + $0x74] sm:$0xf]
          %v610 = vld [vmem:[%s463 + $0x78] sm:$0xf]
          %v611 = vld [vmem:[%s463 + $0x7c] sm:$0xf]
          %v612 = vld [vmem:[#allocation17] sm:$0xf]
          %v613 = vld [vmem:[#allocation17 + $0x4] sm:$0xf]
          %v614 = vld [vmem:[#allocation17 + $0x8] sm:$0xf]
          %v615 = vld [vmem:[#allocation17 + $0xc] sm:$0xf]
          %v616 = vld [vmem:[#allocation18] sm:$0x1]
          %v618 = vlaneseq
          %v619 = vshrl.u32 %v618, 7
          %v620 = vsub.s32 0, %v619
          %v621 = vrot.slane %v616, %v620
          %v655 = vunpack.c.l.b16 %v580
          %v656 = vunpack.c.l.b16 %v581
          %v657 = vunpack.c.l.b16 %v582
          %v658 = vunpack.c.l.b16 %v583
          %v659 = vunpack.c.l.b16 %v584
          %v660 = vunpack.c.l.b16 %v585
          %v661 = vunpack.c.l.b16 %v586
          %v662 = vunpack.c.l.b16 %v587
          %v663 = vunpack.c.l.b16 %v588
          %v664 = vunpack.c.l.b16 %v589
          %v665 = vunpack.c.l.b16 %v590
          %v666 = vunpack.c.l.b16 %v591
          %v667 = vunpack.c.l.b16 %v592
          %v668 = vunpack.c.l.b16 %v593
          %v669 = vunpack.c.l.b16 %v594
          %v670 = vunpack.c.l.b16 %v595
          %v671 = vunpack.c.l.b16 %v596
          %v672 = vunpack.c.l.b16 %v597
          %v673 = vunpack.c.l.b16 %v598
          %v674 = vunpack.c.l.b16 %v599
          %v675 = vunpack.c.l.b16 %v600
          %v676 = vunpack.c.l.b16 %v601
          %v677 = vunpack.c.l.b16 %v602
          %v678 = vunpack.c.l.b16 %v603
          %v679 = vunpack.c.l.b16 %v604
          %v680 = vunpack.c.l.b16 %v605
          %v681 = vunpack.c.l.b16 %v606
          %v682 = vunpack.c.l.b16 %v607
          %v683 = vunpack.c.l.b16 %v608
          %v684 = vunpack.c.l.b16 %v609
          %v685 = vunpack.c.l.b16 %v610
          %v686 = vunpack.c.l.b16 %v611
          %v687 = vpack.c.b16 %v656, %v655
          %v688 = vpack.c.b16 %v658, %v657
          %v689 = vpack.c.b16 %v660, %v659
          %v690 = vpack.c.b16 %v662, %v661
          %v691 = vpack.c.b16 %v664, %v663
          %v692 = vpack.c.b16 %v666, %v665
          %v693 = vpack.c.b16 %v668, %v667
          %v694 = vpack.c.b16 %v670, %v669
          %v695 = vpack.c.b16 %v672, %v671
          %v696 = vpack.c.b16 %v674, %v673
          %v697 = vpack.c.b16 %v676, %v675
          %v698 = vpack.c.b16 %v678, %v677
          %v699 = vpack.c.b16 %v680, %v679
          %v700 = vpack.c.b16 %v682, %v681
          %v701 = vpack.c.b16 %v684, %v683
          %v702 = vpack.c.b16 %v686, %v685
          %v707 = vunpack.c.l.b16 %v612
          %v708 = vunpack.c.l.b16 %v613
          %v709 = vunpack.c.l.b16 %v614
          %v710 = vunpack.c.l.b16 %v615
          %v711 = vpack.c.b16 %v708, %v707
          %v712 = vpack.c.b16 %v710, %v709
          %vm715 = vcmask 261120
          %v717 = vsel %vm715, %v687, 0
          %v720 = vsel %vm715, %v688, 0
          %v723 = vsel %vm715, %v689, 0
          %v726 = vsel %vm715, %v690, 0
          %v729 = vsel %vm715, %v691, 0
          %v732 = vsel %vm715, %v692, 0
          %v735 = vsel %vm715, %v693, 0
          %v738 = vsel %vm715, %v694, 0
          %v741 = vsel %vm715, %v695, 0
          %v744 = vsel %vm715, %v696, 0
          %v747 = vsel %vm715, %v697, 0
          %v750 = vsel %vm715, %v698, 0
          %v753 = vsel %vm715, %v699, 0
          %v756 = vsel %vm715, %v700, 0
          %v759 = vsel %vm715, %v701, 0
          %v762 = vsel %vm715, %v702, 0
          %764 = vmatprep.subr.bf16.mxu0 0
          %765 = vmatpush1.bf16.msra.mxu0 %v711
          %766 = vmatprep.subr.bf16.mxu0 0
          %767 = vmatpush1.bf16.msra.mxu0 %v712
          %768 = vmatprep.subr.bf16.mxu0 0
          %769 = vmatpush1.bf16.msra.mxu0 0
          %770 = vmatprep.subr.bf16.mxu0 0
          %771 = vmatpush1.bf16.msra.mxu0 0
          %772 = vmatprep.subr.bf16.mxu0 0
          %773 = vmatpush1.bf16.msra.mxu0 0
          %774 = vmatprep.subr.bf16.mxu0 0
          %775 = vmatpush1.bf16.msra.mxu0 0
          %776 = vmatprep.subr.bf16.mxu0 0
          %777 = vmatpush1.bf16.msra.mxu0 0
          %778 = vmatprep.subr.bf16.mxu0 0
          %779 = vmatpush1.bf16.msra.mxu0 0
          %780 = vmatprep.subr.bf16.mxu0 0
          %781 = vmatpush1.bf16.msra.mxu0 0
          %782 = vmatprep.subr.bf16.mxu0 0
          %783 = vmatpush1.bf16.msra.mxu0 0
          %784 = vmatprep.subr.bf16.mxu0 0
          %785 = vmatpush1.bf16.msra.mxu0 0
          %786 = vmatprep.subr.bf16.mxu0 0
          %787 = vmatpush1.bf16.msra.mxu0 0
          %788 = vmatprep.subr.bf16.mxu0 0
          %789 = vmatpush1.bf16.msra.mxu0 0
          %790 = vmatprep.subr.bf16.mxu0 0
          %791 = vmatpush1.bf16.msra.mxu0 0
          %792 = vmatprep.subr.bf16.mxu0 0
          %793 = vmatpush1.bf16.msra.mxu0 0
          %794 = vmatprep.subr.bf16.mxu0 0
          %795 = vmatpush1.bf16.msra.mxu0 0
          %796 = vmatprep.mubr.bf16.mxu0 0
          %797 = vmatmul.mubr.bf16.gmra.mrb[0].mxu0 %v717
          %v798 = vpop.f32.mrb[0].mxu0
          %v799 = vadd.f32 %v621, %v798
          %v800 = vpop.f32.mrb[0].mxu0
          %v801 = vpop.f32.mrb[0].mxu0
          %v802 = vadd.f32 %v621, %v801
          %v803 = vpop.f32.mrb[0].mxu0
          %804 = vmatprep.mubr.bf16.mxu0 0
          %805 = vmatmul.mubr.bf16.gmra.mrb[0].mxu0 %v720
          %v806 = vpop.f32.mrb[0].mxu0
          %v807 = vadd.f32 %v621, %v806
          %v808 = vpop.f32.mrb[0].mxu0
          %v809 = vpop.f32.mrb[0].mxu0
          %v810 = vadd.f32 %v621, %v809
          %v811 = vpop.f32.mrb[0].mxu0
          %812 = vmatprep.mubr.bf16.mxu0 0
          %813 = vmatmul.mubr.bf16.gmra.mrb[0].mxu0 %v723
          %v814 = vpop.f32.mrb[0].mxu0
          %v815 = vadd.f32 %v621, %v814
          %v816 = vpop.f32.mrb[0].mxu0
          %v817 = vpop.f32.mrb[0].mxu0
          %v818 = vadd.f32 %v621, %v817
          %v819 = vpop.f32.mrb[0].mxu0
          %820 = vmatprep.mubr.bf16.mxu0 0
          %821 = vmatmul.mubr.bf16.gmra.mrb[0].mxu0 %v726
          %v822 = vpop.f32.mrb[0].mxu0
          %v823 = vadd.f32 %v621, %v822
          %v824 = vpop.f32.mrb[0].mxu0
          %v825 = vpop.f32.mrb[0].mxu0
          %v826 = vadd.f32 %v621, %v825
          %v827 = vpop.f32.mrb[0].mxu0
          %828 = vmatprep.mubr.bf16.mxu0 0
          %829 = vmatmul.mubr.bf16.gmra.mrb[0].mxu0 %v729
          %v830 = vpop.f32.mrb[0].mxu0
          %v831 = vadd.f32 %v621, %v830
          %v832 = vpop.f32.mrb[0].mxu0
          %v833 = vpop.f32.mrb[0].mxu0
          %v834 = vadd.f32 %v621, %v833
          %v835 = vpop.f32.mrb[0].mxu0
          %836 = vmatprep.mubr.bf16.mxu0 0
          %837 = vmatmul.mubr.bf16.gmra.mrb[0].mxu0 %v732
          %v838 = vpop.f32.mrb[0].mxu0
          %v839 = vadd.f32 %v621, %v838
          %v840 = vpop.f32.mrb[0].mxu0
          %v841 = vpop.f32.mrb[0].mxu0
          %v842 = vadd.f32 %v621, %v841
          %v843 = vpop.f32.mrb[0].mxu0
          %844 = vmatprep.mubr.bf16.mxu0 0
          %845 = vmatmul.mubr.bf16.gmra.mrb[0].mxu0 %v735
          %v846 = vpop.f32.mrb[0].mxu0
          %v847 = vadd.f32 %v621, %v846
          %v848 = vpop.f32.mrb[0].mxu0
          %v849 = vpop.f32.mrb[0].mxu0
          %v850 = vadd.f32 %v621, %v849
          %v851 = vpop.f32.mrb[0].mxu0
          %852 = vmatprep.mubr.bf16.mxu0 0
          %853 = vmatmul.mubr.bf16.gmra.mrb[0].mxu0 %v738
          %v854 = vpop.f32.mrb[0].mxu0
          %v855 = vadd.f32 %v621, %v854
          %v856 = vpop.f32.mrb[0].mxu0
          %v857 = vpop.f32.mrb[0].mxu0
          %v858 = vadd.f32 %v621, %v857
          %v859 = vpop.f32.mrb[0].mxu0
          %860 = vmatprep.mubr.bf16.mxu0 0
          %861 = vmatmul.mubr.bf16.gmra.mrb[0].mxu0 %v741
          %v862 = vpop.f32.mrb[0].mxu0
          %v863 = vadd.f32 %v621, %v862
          %v864 = vpop.f32.mrb[0].mxu0
          %v865 = vpop.f32.mrb[0].mxu0
          %v866 = vadd.f32 %v621, %v865
          %v867 = vpop.f32.mrb[0].mxu0
          %868 = vmatprep.mubr.bf16.mxu0 0
          %869 = vmatmul.mubr.bf16.gmra.mrb[0].mxu0 %v744
          %v870 = vpop.f32.mrb[0].mxu0
          %v871 = vadd.f32 %v621, %v870
          %v872 = vpop.f32.mrb[0].mxu0
          %v873 = vpop.f32.mrb[0].mxu0
          %v874 = vadd.f32 %v621, %v873
          %v875 = vpop.f32.mrb[0].mxu0
          %876 = vmatprep.mubr.bf16.mxu0 0
          %877 = vmatmul.mubr.bf16.gmra.mrb[0].mxu0 %v747
          %v878 = vpop.f32.mrb[0].mxu0
          %v879 = vadd.f32 %v621, %v878
          %v880 = vpop.f32.mrb[0].mxu0
          %v881 = vpop.f32.mrb[0].mxu0
          %v882 = vadd.f32 %v621, %v881
          %v883 = vpop.f32.mrb[0].mxu0
          %884 = vmatprep.mubr.bf16.mxu0 0
          %885 = vmatmul.mubr.bf16.gmra.mrb[0].mxu0 %v750
          %v886 = vpop.f32.mrb[0].mxu0
          %v887 = vadd.f32 %v621, %v886
          %v888 = vpop.f32.mrb[0].mxu0
          %v889 = vpop.f32.mrb[0].mxu0
          %v890 = vadd.f32 %v621, %v889
          %v891 = vpop.f32.mrb[0].mxu0
          %892 = vmatprep.mubr.bf16.mxu0 0
          %893 = vmatmul.mubr.bf16.gmra.mrb[0].mxu0 %v753
          %v894 = vpop.f32.mrb[0].mxu0
          %v895 = vadd.f32 %v621, %v894
          %v896 = vpop.f32.mrb[0].mxu0
          %v897 = vpop.f32.mrb[0].mxu0
          %v898 = vadd.f32 %v621, %v897
          %v899 = vpop.f32.mrb[0].mxu0
          %900 = vmatprep.mubr.bf16.mxu0 0
          %901 = vmatmul.mubr.bf16.gmra.mrb[0].mxu0 %v756
          %v902 = vpop.f32.mrb[0].mxu0
          %v903 = vadd.f32 %v621, %v902
          %v904 = vpop.f32.mrb[0].mxu0
          %v905 = vpop.f32.mrb[0].mxu0
          %v906 = vadd.f32 %v621, %v905
          %v907 = vpop.f32.mrb[0].mxu0
          %908 = vmatprep.mubr.bf16.mxu0 0
          %909 = vmatmul.mubr.bf16.gmra.mrb[0].mxu0 %v759
          %v910 = vpop.f32.mrb[0].mxu0
          %v911 = vadd.f32 %v621, %v910
          %v912 = vpop.f32.mrb[0].mxu0
          %v913 = vpop.f32.mrb[0].mxu0
          %v914 = vadd.f32 %v621, %v913
          %v915 = vpop.f32.mrb[0].mxu0
          %916 = vmatprep.mubr.bf16.mxu0 0
          %917 = vmatmul.mubr.bf16.gmra.mrb[0].mxu0 %v762
          %v918 = vpop.f32.mrb[0].mxu0
          %v919 = vadd.f32 %v621, %v918
          %v920 = vpop.f32.mrb[0].mxu0
          %v921 = vpop.f32.mrb[0].mxu0
          %v922 = vadd.f32 %v621, %v921
          %v923 = vpop.f32.mrb[0].mxu0
          %924 = vdwg.mxu0
          %v925 = vpack.c.bf16 %v802, %v799
          %v926 = vpack.c.bf16 %v810, %v807
          %v927 = vpack.c.bf16 %v818, %v815
          %v928 = vpack.c.bf16 %v826, %v823
          %v929 = vpack.c.bf16 %v834, %v831
          %v930 = vpack.c.bf16 %v842, %v839
          %v931 = vpack.c.bf16 %v850, %v847
          %v932 = vpack.c.bf16 %v858, %v855
          %v933 = vpack.c.bf16 %v866, %v863
          %v934 = vpack.c.bf16 %v874, %v871
          %v935 = vpack.c.bf16 %v882, %v879
          %v936 = vpack.c.bf16 %v890, %v887
          %v937 = vpack.c.bf16 %v898, %v895
          %v938 = vpack.c.bf16 %v906, %v903
          %v939 = vpack.c.bf16 %v914, %v911
          %v940 = vpack.c.bf16 %v922, %v919
          %941 = vst.msk [vmem:[#allocation2] sm:$0xff] %vm715, %v925
          %942 = vst.msk [vmem:[#allocation2 + $0x8] sm:$0xff] %vm715, %v926
          %943 = vst.msk [vmem:[#allocation2 + $0x10] sm:$0xff] %vm715, %v927
          %944 = vst.msk [vmem:[#allocation2 + $0x18] sm:$0xff] %vm715, %v928
          %945 = vst.msk [vmem:[#allocation2 + $0x20] sm:$0xff] %vm715, %v929
          %946 = vst.msk [vmem:[#allocation2 + $0x28] sm:$0xff] %vm715, %v930
          %947 = vst.msk [vmem:[#allocation2 + $0x30] sm:$0xff] %vm715, %v931
          %948 = vst.msk [vmem:[#allocation2 + $0x38] sm:$0xff] %vm715, %v932
          %949 = vst.msk [vmem:[#allocation2 + $0x40] sm:$0xff] %vm715, %v933
          %950 = vst.msk [vmem:[#allocation2 + $0x48] sm:$0xff] %vm715, %v934
          %951 = vst.msk [vmem:[#allocation2 + $0x50] sm:$0xff] %vm715, %v935
          %952 = vst.msk [vmem:[#allocation2 + $0x58] sm:$0xff] %vm715, %v936
          %953 = vst.msk [vmem:[#allocation2 + $0x60] sm:$0xff] %vm715, %v937
          %954 = vst.msk [vmem:[#allocation2 + $0x68] sm:$0xff] %vm715, %v938
          %955 = vst.msk [vmem:[#allocation2 + $0x70] sm:$0xff] %vm715, %v939
          %956 = vst.msk [vmem:[#allocation2 + $0x78] sm:$0xff] %vm715, %v940
          %vm957 = vcmask 7168
          %958 = vst.msk [vmem:[#allocation3] sm:$0xff] %vm957, -inf
          %959 = vst.msk [vmem:[#allocation3 + $0x8] sm:$0xff] %vm957, -inf
          %960 = vst.msk [vmem:[#allocation3 + $0x10] sm:$0xff] %vm957, -inf
          %961 = vst.msk [vmem:[#allocation3 + $0x18] sm:$0xff] %vm957, -inf
          %962 = vst.msk [vmem:[#allocation3 + $0x20] sm:$0xff] %vm957, -inf
          %963 = vst.msk [vmem:[#allocation3 + $0x28] sm:$0xff] %vm957, -inf
          %964 = vst.msk [vmem:[#allocation3 + $0x30] sm:$0xff] %vm957, -inf
          %965 = vst.msk [vmem:[#allocation3 + $0x38] sm:$0xff] %vm957, -inf
          %966 = vst.msk [vmem:[#allocation3 + $0x40] sm:$0xff] %vm957, -inf
          %967 = vst.msk [vmem:[#allocation3 + $0x48] sm:$0xff] %vm957, -inf
          %968 = vst.msk [vmem:[#allocation3 + $0x50] sm:$0xff] %vm957, -inf
          %969 = vst.msk [vmem:[#allocation3 + $0x58] sm:$0xff] %vm957, -inf
          %970 = vst.msk [vmem:[#allocation3 + $0x60] sm:$0xff] %vm957, -inf
          %971 = vst.msk [vmem:[#allocation3 + $0x68] sm:$0xff] %vm957, -inf
          %972 = vst.msk [vmem:[#allocation3 + $0x70] sm:$0xff] %vm957, -inf
          %973 = vst.msk [vmem:[#allocation3 + $0x78] sm:$0xff] %vm957, -inf
          %974 = vst.msk [vmem:[#allocation3 + $0x80] sm:$0xff] %vm957, -inf
          %975 = vst.msk [vmem:[#allocation3 + $0x88] sm:$0xff] %vm957, -inf
          %976 = vst.msk [vmem:[#allocation3 + $0x90] sm:$0xff] %vm957, -inf
          %977 = vst.msk [vmem:[#allocation3 + $0x98] sm:$0xff] %vm957, -inf
          %978 = vst.msk [vmem:[#allocation3 + $0xa0] sm:$0xff] %vm957, -inf
          %979 = vst.msk [vmem:[#allocation3 + $0xa8] sm:$0xff] %vm957, -inf
          %980 = vst.msk [vmem:[#allocation3 + $0xb0] sm:$0xff] %vm957, -inf
          %981 = vst.msk [vmem:[#allocation3 + $0xb8] sm:$0xff] %vm957, -inf
          %982 = vst.msk [vmem:[#allocation3 + $0xc0] sm:$0xff] %vm957, -inf
          %983 = vst.msk [vmem:[#allocation3 + $0xc8] sm:$0xff] %vm957, -inf
          %984 = vst.msk [vmem:[#allocation3 + $0xd0] sm:$0xff] %vm957, -inf
          %985 = vst.msk [vmem:[#allocation3 + $0xd8] sm:$0xff] %vm957, -inf
          %986 = vst.msk [vmem:[#allocation3 + $0xe0] sm:$0xff] %vm957, -inf
          %987 = vst.msk [vmem:[#allocation3 + $0xe8] sm:$0xff] %vm957, -inf
          %988 = vst.msk [vmem:[#allocation3 + $0xf0] sm:$0xff] %vm957, -inf
          %989 = vst.msk [vmem:[#allocation3 + $0xf8] sm:$0xff] %vm957, -inf
          %990 = vst.msk [vmem:[#allocation4] sm:$0xff] %vm957, 0.0
          %991 = vst.msk [vmem:[#allocation4 + $0x8] sm:$0xff] %vm957, 0.0
          %992 = vst.msk [vmem:[#allocation4 + $0x10] sm:$0xff] %vm957, 0.0
          %993 = vst.msk [vmem:[#allocation4 + $0x18] sm:$0xff] %vm957, 0.0
          %994 = vst.msk [vmem:[#allocation4 + $0x20] sm:$0xff] %vm957, 0.0
          %995 = vst.msk [vmem:[#allocation4 + $0x28] sm:$0xff] %vm957, 0.0
          %996 = vst.msk [vmem:[#allocation4 + $0x30] sm:$0xff] %vm957, 0.0
          %997 = vst.msk [vmem:[#allocation4 + $0x38] sm:$0xff] %vm957, 0.0
          %998 = vst.msk [vmem:[#allocation4 + $0x40] sm:$0xff] %vm957, 0.0
          %999 = vst.msk [vmem:[#allocation4 + $0x48] sm:$0xff] %vm957, 0.0
          %1000 = vst.msk [vmem:[#allocation4 + $0x50] sm:$0xff] %vm957, 0.0
          %1001 = vst.msk [vmem:[#allocation4 + $0x58] sm:$0xff] %vm957, 0.0
          %1002 = vst.msk [vmem:[#allocation4 + $0x60] sm:$0xff] %vm957, 0.0
          %1003 = vst.msk [vmem:[#allocation4 + $0x68] sm:$0xff] %vm957, 0.0
          %1004 = vst.msk [vmem:[#allocation4 + $0x70] sm:$0xff] %vm957, 0.0
          %1005 = vst.msk [vmem:[#allocation4 + $0x78] sm:$0xff] %vm957, 0.0
          %1006 = vst.msk [vmem:[#allocation4 + $0x80] sm:$0xff] %vm957, 0.0
          %1007 = vst.msk [vmem:[#allocation4 + $0x88] sm:$0xff] %vm957, 0.0
          %1008 = vst.msk [vmem:[#allocation4 + $0x90] sm:$0xff] %vm957, 0.0
          %1009 = vst.msk [vmem:[#allocation4 + $0x98] sm:$0xff] %vm957, 0.0
          %1010 = vst.msk [vmem:[#allocation4 + $0xa0] sm:$0xff] %vm957, 0.0
          %1011 = vst.msk [vmem:[#allocation4 + $0xa8] sm:$0xff] %vm957, 0.0
          %1012 = vst.msk [vmem:[#allocation4 + $0xb0] sm:$0xff] %vm957, 0.0
          %1013 = vst.msk [vmem:[#allocation4 + $0xb8] sm:$0xff] %vm957, 0.0
          %1014 = vst.msk [vmem:[#allocation4 + $0xc0] sm:$0xff] %vm957, 0.0
          %1015 = vst.msk [vmem:[#allocation4 + $0xc8] sm:$0xff] %vm957, 0.0
          %1016 = vst.msk [vmem:[#allocation4 + $0xd0] sm:$0xff] %vm957, 0.0
          %1017 = vst.msk [vmem:[#allocation4 + $0xd8] sm:$0xff] %vm957, 0.0
          %1018 = vst.msk [vmem:[#allocation4 + $0xe0] sm:$0xff] %vm957, 0.0
          %1019 = vst.msk [vmem:[#allocation4 + $0xe8] sm:$0xff] %vm957, 0.0
          %1020 = vst.msk [vmem:[#allocation4 + $0xf0] sm:$0xff] %vm957, 0.0
          %1021 = vst.msk [vmem:[#allocation4 + $0xf8] sm:$0xff] %vm957, 0.0
          %vm1022 = vcmask 523264
          %1023 = vst.msk [vmem:[#allocation5] sm:$0xff] %vm1022, 0.0
          %1024 = vst.msk [vmem:[#allocation5 + $0x8] sm:$0xff] %vm1022, 0.0
          %1025 = vst.msk [vmem:[#allocation5 + $0x10] sm:$0xff] %vm1022, 0.0
          %1026 = vst.msk [vmem:[#allocation5 + $0x18] sm:$0xff] %vm1022, 0.0
          %1027 = vst.msk [vmem:[#allocation5 + $0x20] sm:$0xff] %vm1022, 0.0
          %1028 = vst.msk [vmem:[#allocation5 + $0x28] sm:$0xff] %vm1022, 0.0
          %1029 = vst.msk [vmem:[#allocation5 + $0x30] sm:$0xff] %vm1022, 0.0
          %1030 = vst.msk [vmem:[#allocation5 + $0x38] sm:$0xff] %vm1022, 0.0
          %1031 = vst.msk [vmem:[#allocation5 + $0x40] sm:$0xff] %vm1022, 0.0
          %1032 = vst.msk [vmem:[#allocation5 + $0x48] sm:$0xff] %vm1022, 0.0
          %1033 = vst.msk [vmem:[#allocation5 + $0x50] sm:$0xff] %vm1022, 0.0
          %1034 = vst.msk [vmem:[#allocation5 + $0x58] sm:$0xff] %vm1022, 0.0
          %1035 = vst.msk [vmem:[#allocation5 + $0x60] sm:$0xff] %vm1022, 0.0
          %1036 = vst.msk [vmem:[#allocation5 + $0x68] sm:$0xff] %vm1022, 0.0
          %1037 = vst.msk [vmem:[#allocation5 + $0x70] sm:$0xff] %vm1022, 0.0
          %1038 = vst.msk [vmem:[#allocation5 + $0x78] sm:$0xff] %vm1022, 0.0
          %1039 = vst.msk [vmem:[#allocation5 + $0x80] sm:$0xff] %vm1022, 0.0
          %1040 = vst.msk [vmem:[#allocation5 + $0x88] sm:$0xff] %vm1022, 0.0
          %1041 = vst.msk [vmem:[#allocation5 + $0x90] sm:$0xff] %vm1022, 0.0
          %1042 = vst.msk [vmem:[#allocation5 + $0x98] sm:$0xff] %vm1022, 0.0
          %1043 = vst.msk [vmem:[#allocation5 + $0xa0] sm:$0xff] %vm1022, 0.0
          %1044 = vst.msk [vmem:[#allocation5 + $0xa8] sm:$0xff] %vm1022, 0.0
          %1045 = vst.msk [vmem:[#allocation5 + $0xb0] sm:$0xff] %vm1022, 0.0
          %1046 = vst.msk [vmem:[#allocation5 + $0xb8] sm:$0xff] %vm1022, 0.0
          %1047 = vst.msk [vmem:[#allocation5 + $0xc0] sm:$0xff] %vm1022, 0.0
          %1048 = vst.msk [vmem:[#allocation5 + $0xc8] sm:$0xff] %vm1022, 0.0
          %1049 = vst.msk [vmem:[#allocation5 + $0xd0] sm:$0xff] %vm1022, 0.0
          %1050 = vst.msk [vmem:[#allocation5 + $0xd8] sm:$0xff] %vm1022, 0.0
          %1051 = vst.msk [vmem:[#allocation5 + $0xe0] sm:$0xff] %vm1022, 0.0
          %1052 = vst.msk [vmem:[#allocation5 + $0xe8] sm:$0xff] %vm1022, 0.0
          %1053 = vst.msk [vmem:[#allocation5 + $0xf0] sm:$0xff] %vm1022, 0.0
          %1054 = vst.msk [vmem:[#allocation5 + $0xf8] sm:$0xff] %vm1022, 0.0
        $region88: #{transformer_forward.5} parent=51 // pred_fallthru
          _
        %v1055 = vld [vmem:[#allocation2] sm:$0xff]
        %v1056 = vld [vmem:[#allocation2 + $0x8] sm:$0xff]
        %v1057 = vld [vmem:[#allocation2 + $0x10] sm:$0xff]
        %v1058 = vld [vmem:[#allocation2 + $0x18] sm:$0xff]
        %v1059 = vld [vmem:[#allocation2 + $0x20] sm:$0xff]
        %v1060 = vld [vmem:[#allocation2 + $0x28] sm:$0xff]
        %v1061 = vld [vmem:[#allocation2 + $0x30] sm:$0xff]
        %v1062 = vld [vmem:[#allocation2 + $0x38] sm:$0xff]
        %v1063 = vld [vmem:[#allocation2 + $0x40] sm:$0xff]
        %v1064 = vld [vmem:[#allocation2 + $0x48] sm:$0xff]
        %v1065 = vld [vmem:[#allocation2 + $0x50] sm:$0xff]
        %v1066 = vld [vmem:[#allocation2 + $0x58] sm:$0xff]
        %v1067 = vld [vmem:[#allocation2 + $0x60] sm:$0xff]
        %v1068 = vld [vmem:[#allocation2 + $0x68] sm:$0xff]
        %v1069 = vld [vmem:[#allocation2 + $0x70] sm:$0xff]
        %v1070 = vld [vmem:[#allocation2 + $0x78] sm:$0xff]
        %v1071 = vld [vmem:[%s472] sm:$0xff]
        %v1072 = vld [vmem:[%s472 + $0x8] sm:$0xff]
        %v1073 = vld [vmem:[%s472 + $0x10] sm:$0xff]
        %v1074 = vld [vmem:[%s472 + $0x18] sm:$0xff]
        %v1079 = vunpack.c.l.b16 %v1071
        %v1080 = vunpack.c.h.b16 %v1071
        %v1081 = vunpack.c.l.b16 %v1072
        %v1082 = vunpack.c.h.b16 %v1072
        %v1083 = vunpack.c.l.b16 %v1073
        %v1084 = vunpack.c.h.b16 %v1073
        %v1085 = vunpack.c.l.b16 %v1074
        %v1086 = vunpack.c.h.b16 %v1074
        %v1087 = vpack.c.b16 %v1081, %v1079
        %v1088 = vpack.c.b16 %v1082, %v1080
        %v1089 = vpack.c.b16 %v1085, %v1083
        %v1090 = vpack.c.b16 %v1086, %v1084
        %vm1095 = vcmask 261120
        %v1097 = vsel %vm1095, %v1055, 0
        %v1100 = vsel %vm1095, %v1056, 0
        %v1103 = vsel %vm1095, %v1057, 0
        %v1106 = vsel %vm1095, %v1058, 0
        %v1109 = vsel %vm1095, %v1059, 0
        %v1112 = vsel %vm1095, %v1060, 0
        %v1115 = vsel %vm1095, %v1061, 0
        %v1118 = vsel %vm1095, %v1062, 0
        %v1121 = vsel %vm1095, %v1063, 0
        %v1124 = vsel %vm1095, %v1064, 0
        %v1127 = vsel %vm1095, %v1065, 0
        %v1130 = vsel %vm1095, %v1066, 0
        %v1133 = vsel %vm1095, %v1067, 0
        %v1136 = vsel %vm1095, %v1068, 0
        %v1139 = vsel %vm1095, %v1069, 0
        %v1142 = vsel %vm1095, %v1070, 0
        %1144 = vmatprep.subr.bf16.mxu0 %v1088
        %1145 = vmatpush1.bf16.msra.mxu0 %v1087
        %1146 = vmatprep.subr.bf16.mxu0 %v1090
        %1147 = vmatpush1.bf16.msra.mxu0 %v1089
        %1148 = vmatprep.subr.bf16.mxu0 0
        %1149 = vmatpush1.bf16.msra.mxu0 0
        %1150 = vmatprep.subr.bf16.mxu0 0
        %1151 = vmatpush1.bf16.msra.mxu0 0
        %1152 = vmatprep.subr.bf16.mxu0 0
        %1153 = vmatpush1.bf16.msra.mxu0 0
        %1154 = vmatprep.subr.bf16.mxu0 0
        %1155 = vmatpush1.bf16.msra.mxu0 0
        %1156 = vmatprep.subr.bf16.mxu0 0
        %1157 = vmatpush1.bf16.msra.mxu0 0
        %1158 = vmatprep.subr.bf16.mxu0 0
        %1159 = vmatpush1.bf16.msra.mxu0 0
        %1160 = vmatprep.subr.bf16.mxu0 0
        %1161 = vmatpush1.bf16.msra.mxu0 0
        %1162 = vmatprep.subr.bf16.mxu0 0
        %1163 = vmatpush1.bf16.msra.mxu0 0
        %1164 = vmatprep.subr.bf16.mxu0 0
        %1165 = vmatpush1.bf16.msra.mxu0 0
        %1166 = vmatprep.subr.bf16.mxu0 0
        %1167 = vmatpush1.bf16.msra.mxu0 0
        %1168 = vmatprep.subr.bf16.mxu0 0
        %1169 = vmatpush1.bf16.msra.mxu0 0
        %1170 = vmatprep.subr.bf16.mxu0 0
        %1171 = vmatpush1.bf16.msra.mxu0 0
        %1172 = vmatprep.subr.bf16.mxu0 0
        %1173 = vmatpush1.bf16.msra.mxu0 0
        %1174 = vmatprep.subr.bf16.mxu0 0
        %1175 = vmatpush1.bf16.msra.mxu0 0
        %1176 = vmatprep.mubr.bf16.mxu0 0
        %1177 = vmatmul.mubr.bf16.gmra.mrb[0].mxu0 %v1097
        %v1178 = vpop.f32.mrb[0].mxu0
        %v1179 = vadd.f32 0.0, %v1178
        %v1180 = vpop.f32.mrb[0].mxu0
        %v1181 = vadd.f32 0.0, %v1180
        %v1182 = vpop.f32.mrb[0].mxu0
        %v1183 = vadd.f32 0.0, %v1182
        %v1184 = vpop.f32.mrb[0].mxu0
        %v1185 = vadd.f32 0.0, %v1184
        %1186 = vmatprep.mubr.bf16.mxu0 0
        %1187 = vmatmul.mubr.bf16.gmra.mrb[0].mxu0 %v1100
        %v1188 = vpop.f32.mrb[0].mxu0
        %v1189 = vadd.f32 0.0, %v1188
        %v1190 = vpop.f32.mrb[0].mxu0
        %v1191 = vadd.f32 0.0, %v1190
        %v1192 = vpop.f32.mrb[0].mxu0
        %v1193 = vadd.f32 0.0, %v1192
        %v1194 = vpop.f32.mrb[0].mxu0
        %v1195 = vadd.f32 0.0, %v1194
        %1196 = vmatprep.mubr.bf16.mxu0 0
        %1197 = vmatmul.mubr.bf16.gmra.mrb[0].mxu0 %v1103
        %v1198 = vpop.f32.mrb[0].mxu0
        %v1199 = vadd.f32 0.0, %v1198
        %v1200 = vpop.f32.mrb[0].mxu0
        %v1201 = vadd.f32 0.0, %v1200
        %v1202 = vpop.f32.mrb[0].mxu0
        %v1203 = vadd.f32 0.0, %v1202
        %v1204 = vpop.f32.mrb[0].mxu0
        %v1205 = vadd.f32 0.0, %v1204
        %1206 = vmatprep.mubr.bf16.mxu0 0
        %1207 = vmatmul.mubr.bf16.gmra.mrb[0].mxu0 %v1106
        %v1208 = vpop.f32.mrb[0].mxu0
        %v1209 = vadd.f32 0.0, %v1208
        %v1210 = vpop.f32.mrb[0].mxu0
        %v1211 = vadd.f32 0.0, %v1210
        %v1212 = vpop.f32.mrb[0].mxu0
        %v1213 = vadd.f32 0.0, %v1212
        %v1214 = vpop.f32.mrb[0].mxu0
        %v1215 = vadd.f32 0.0, %v1214
        %1216 = vmatprep.mubr.bf16.mxu0 0
        %1217 = vmatmul.mubr.bf16.gmra.mrb[0].mxu0 %v1109
        %v1218 = vpop.f32.mrb[0].mxu0
        %v1219 = vadd.f32 0.0, %v1218
        %v1220 = vpop.f32.mrb[0].mxu0
        %v1221 = vadd.f32 0.0, %v1220
        %v1222 = vpop.f32.mrb[0].mxu0
        %v1223 = vadd.f32 0.0, %v1222
        %v1224 = vpop.f32.mrb[0].mxu0
        %v1225 = vadd.f32 0.0, %v1224
        %1226 = vmatprep.mubr.bf16.mxu0 0
        %1227 = vmatmul.mubr.bf16.gmra.mrb[0].mxu0 %v1112
        %v1228 = vpop.f32.mrb[0].mxu0
        %v1229 = vadd.f32 0.0, %v1228
        %v1230 = vpop.f32.mrb[0].mxu0
        %v1231 = vadd.f32 0.0, %v1230
        %v1232 = vpop.f32.mrb[0].mxu0
        %v1233 = vadd.f32 0.0, %v1232
        %v1234 = vpop.f32.mrb[0].mxu0
        %v1235 = vadd.f32 0.0, %v1234
        %1236 = vmatprep.mubr.bf16.mxu0 0
        %1237 = vmatmul.mubr.bf16.gmra.mrb[0].mxu0 %v1115
        %v1238 = vpop.f32.mrb[0].mxu0
        %v1239 = vadd.f32 0.0, %v1238
        %v1240 = vpop.f32.mrb[0].mxu0
        %v1241 = vadd.f32 0.0, %v1240
        %v1242 = vpop.f32.mrb[0].mxu0
        %v1243 = vadd.f32 0.0, %v1242
        %v1244 = vpop.f32.mrb[0].mxu0
        %v1245 = vadd.f32 0.0, %v1244
        %1246 = vmatprep.mubr.bf16.mxu0 0
        %1247 = vmatmul.mubr.bf16.gmra.mrb[0].mxu0 %v1118
        %v1248 = vpop.f32.mrb[0].mxu0
        %v1249 = vadd.f32 0.0, %v1248
        %v1250 = vpop.f32.mrb[0].mxu0
        %v1251 = vadd.f32 0.0, %v1250
        %v1252 = vpop.f32.mrb[0].mxu0
        %v1253 = vadd.f32 0.0, %v1252
        %v1254 = vpop.f32.mrb[0].mxu0
        %v1255 = vadd.f32 0.0, %v1254
        %1256 = vmatprep.mubr.bf16.mxu0 0
        %1257 = vmatmul.mubr.bf16.gmra.mrb[0].mxu0 %v1121
        %v1258 = vpop.f32.mrb[0].mxu0
        %v1259 = vadd.f32 0.0, %v1258
        %v1260 = vpop.f32.mrb[0].mxu0
        %v1261 = vadd.f32 0.0, %v1260
        %v1262 = vpop.f32.mrb[0].mxu0
        %v1263 = vadd.f32 0.0, %v1262
        %v1264 = vpop.f32.mrb[0].mxu0
        %v1265 = vadd.f32 0.0, %v1264
        %1266 = vmatprep.mubr.bf16.mxu0 0
        %1267 = vmatmul.mubr.bf16.gmra.mrb[0].mxu0 %v1124
        %v1268 = vpop.f32.mrb[0].mxu0
        %v1269 = vadd.f32 0.0, %v1268
        %v1270 = vpop.f32.mrb[0].mxu0
        %v1271 = vadd.f32 0.0, %v1270
        %v1272 = vpop.f32.mrb[0].mxu0
        %v1273 = vadd.f32 0.0, %v1272
        %v1274 = vpop.f32.mrb[0].mxu0
        %v1275 = vadd.f32 0.0, %v1274
        %1276 = vmatprep.mubr.bf16.mxu0 0
        %1277 = vmatmul.mubr.bf16.gmra.mrb[0].mxu0 %v1127
        %v1278 = vpop.f32.mrb[0].mxu0
        %v1279 = vadd.f32 0.0, %v1278
        %v1280 = vpop.f32.mrb[0].mxu0
        %v1281 = vadd.f32 0.0, %v1280
        %v1282 = vpop.f32.mrb[0].mxu0
        %v1283 = vadd.f32 0.0, %v1282
        %v1284 = vpop.f32.mrb[0].mxu0
        %v1285 = vadd.f32 0.0, %v1284
        %1286 = vmatprep.mubr.bf16.mxu0 0
        %1287 = vmatmul.mubr.bf16.gmra.mrb[0].mxu0 %v1130
        %v1288 = vpop.f32.mrb[0].mxu0
        %v1289 = vadd.f32 0.0, %v1288
        %v1290 = vpop.f32.mrb[0].mxu0
        %v1291 = vadd.f32 0.0, %v1290
        %v1292 = vpop.f32.mrb[0].mxu0
        %v1293 = vadd.f32 0.0, %v1292
        %v1294 = vpop.f32.mrb[0].mxu0
        %v1295 = vadd.f32 0.0, %v1294
        %1296 = vmatprep.mubr.bf16.mxu0 0
        %1297 = vmatmul.mubr.bf16.gmra.mrb[0].mxu0 %v1133
        %v1298 = vpop.f32.mrb[0].mxu0
        %v1299 = vadd.f32 0.0, %v1298
        %v1300 = vpop.f32.mrb[0].mxu0
        %v1301 = vadd.f32 0.0, %v1300
        %v1302 = vpop.f32.mrb[0].mxu0
        %v1303 = vadd.f32 0.0, %v1302
        %v1304 = vpop.f32.mrb[0].mxu0
        %v1305 = vadd.f32 0.0, %v1304
        %1306 = vmatprep.mubr.bf16.mxu0 0
        %1307 = vmatmul.mubr.bf16.gmra.mrb[0].mxu0 %v1136
        %v1308 = vpop.f32.mrb[0].mxu0
        %v1309 = vadd.f32 0.0, %v1308
        %v1310 = vpop.f32.mrb[0].mxu0
        %v1311 = vadd.f32 0.0, %v1310
        %v1312 = vpop.f32.mrb[0].mxu0
        %v1313 = vadd.f32 0.0, %v1312
        %v1314 = vpop.f32.mrb[0].mxu0
        %v1315 = vadd.f32 0.0, %v1314
        %1316 = vmatprep.mubr.bf16.mxu0 0
        %1317 = vmatmul.mubr.bf16.gmra.mrb[0].mxu0 %v1139
        %v1318 = vpop.f32.mrb[0].mxu0
        %v1319 = vadd.f32 0.0, %v1318
        %v1320 = vpop.f32.mrb[0].mxu0
        %v1321 = vadd.f32 0.0, %v1320
        %v1322 = vpop.f32.mrb[0].mxu0
        %v1323 = vadd.f32 0.0, %v1322
        %v1324 = vpop.f32.mrb[0].mxu0
        %v1325 = vadd.f32 0.0, %v1324
        %1326 = vmatprep.mubr.bf16.mxu0 0
        %1327 = vmatmul.mubr.bf16.gmra.mrb[0].mxu0 %v1142
        %v1328 = vpop.f32.mrb[0].mxu0
        %v1329 = vadd.f32 0.0, %v1328
        %v1330 = vpop.f32.mrb[0].mxu0
        %v1331 = vadd.f32 0.0, %v1330
        %v1332 = vpop.f32.mrb[0].mxu0
        %v1333 = vadd.f32 0.0, %v1332
        %v1334 = vpop.f32.mrb[0].mxu0
        %v1335 = vadd.f32 0.0, %v1334
        %1336 = vdwg.mxu0
        %v1337 = vld [vmem:[#allocation3] sm:$0xff]
        %v1338 = vld [vmem:[#allocation3 + $0x8] sm:$0xff]
        %v1339 = vld [vmem:[#allocation3 + $0x10] sm:$0xff]
        %v1340 = vld [vmem:[#allocation3 + $0x18] sm:$0xff]
        %v1341 = vld [vmem:[#allocation3 + $0x20] sm:$0xff]
        %v1342 = vld [vmem:[#allocation3 + $0x28] sm:$0xff]
        %v1343 = vld [vmem:[#allocation3 + $0x30] sm:$0xff]
        %v1344 = vld [vmem:[#allocation3 + $0x38] sm:$0xff]
        %v1345 = vld [vmem:[#allocation3 + $0x40] sm:$0xff]
        %v1346 = vld [vmem:[#allocation3 + $0x48] sm:$0xff]
        %v1347 = vld [vmem:[#allocation3 + $0x50] sm:$0xff]
        %v1348 = vld [vmem:[#allocation3 + $0x58] sm:$0xff]
        %v1349 = vld [vmem:[#allocation3 + $0x60] sm:$0xff]
        %v1350 = vld [vmem:[#allocation3 + $0x68] sm:$0xff]
        %v1351 = vld [vmem:[#allocation3 + $0x70] sm:$0xff]
        %v1352 = vld [vmem:[#allocation3 + $0x78] sm:$0xff]
        %v1353 = vld [vmem:[#allocation3 + $0x80] sm:$0xff]
        %v1354 = vld [vmem:[#allocation3 + $0x88] sm:$0xff]
        %v1355 = vld [vmem:[#allocation3 + $0x90] sm:$0xff]
        %v1356 = vld [vmem:[#allocation3 + $0x98] sm:$0xff]
        %v1357 = vld [vmem:[#allocation3 + $0xa0] sm:$0xff]
        %v1358 = vld [vmem:[#allocation3 + $0xa8] sm:$0xff]
        %v1359 = vld [vmem:[#allocation3 + $0xb0] sm:$0xff]
        %v1360 = vld [vmem:[#allocation3 + $0xb8] sm:$0xff]
        %v1361 = vld [vmem:[#allocation3 + $0xc0] sm:$0xff]
        %v1362 = vld [vmem:[#allocation3 + $0xc8] sm:$0xff]
        %v1363 = vld [vmem:[#allocation3 + $0xd0] sm:$0xff]
        %v1364 = vld [vmem:[#allocation3 + $0xd8] sm:$0xff]
        %v1365 = vld [vmem:[#allocation3 + $0xe0] sm:$0xff]
        %v1366 = vld [vmem:[#allocation3 + $0xe8] sm:$0xff]
        %v1367 = vld [vmem:[#allocation3 + $0xf0] sm:$0xff]
        %v1368 = vld [vmem:[#allocation3 + $0xf8] sm:$0xff]
        %v1369 = vmax.f32 %v1179, %v1181
        %1370 = vmax.xlane.f32.xlu0 %v1369
        %v1371 = vpop.xlane.xlu0 %1370
        %v1372 = vmax.f32 %v1183, %v1185
        %1373 = vmax.xlane.f32.xlu0 %v1372
        %v1374 = vpop.xlane.xlu0 %1373
        %v1375 = vmax.f32 %v1189, %v1191
        %1376 = vmax.xlane.f32.xlu0 %v1375
        %v1377 = vpop.xlane.xlu0 %1376
        %v1378 = vmax.f32 %v1193, %v1195
        %1379 = vmax.xlane.f32.xlu0 %v1378
        %v1380 = vpop.xlane.xlu0 %1379
        %v1381 = vmax.f32 %v1199, %v1201
        %1382 = vmax.xlane.f32.xlu0 %v1381
        %v1383 = vpop.xlane.xlu0 %1382
        %v1384 = vmax.f32 %v1203, %v1205
        %1385 = vmax.xlane.f32.xlu0 %v1384
        %v1386 = vpop.xlane.xlu0 %1385
        %v1387 = vmax.f32 %v1209, %v1211
        %1388 = vmax.xlane.f32.xlu0 %v1387
        %v1389 = vpop.xlane.xlu0 %1388
        %v1390 = vmax.f32 %v1213, %v1215
        %1391 = vmax.xlane.f32.xlu0 %v1390
        %v1392 = vpop.xlane.xlu0 %1391
        %v1393 = vmax.f32 %v1219, %v1221
        %1394 = vmax.xlane.f32.xlu0 %v1393
        %v1395 = vpop.xlane.xlu0 %1394
        %v1396 = vmax.f32 %v1223, %v1225
        %1397 = vmax.xlane.f32.xlu0 %v1396
        %v1398 = vpop.xlane.xlu0 %1397
        %v1399 = vmax.f32 %v1229, %v1231
        %1400 = vmax.xlane.f32.xlu0 %v1399
        %v1401 = vpop.xlane.xlu0 %1400
        %v1402 = vmax.f32 %v1233, %v1235
        %1403 = vmax.xlane.f32.xlu0 %v1402
        %v1404 = vpop.xlane.xlu0 %1403
        %v1405 = vmax.f32 %v1239, %v1241
        %1406 = vmax.xlane.f32.xlu0 %v1405
        %v1407 = vpop.xlane.xlu0 %1406
        %v1408 = vmax.f32 %v1243, %v1245
        %1409 = vmax.xlane.f32.xlu0 %v1408
        %v1410 = vpop.xlane.xlu0 %1409
        %v1411 = vmax.f32 %v1249, %v1251
        %1412 = vmax.xlane.f32.xlu0 %v1411
        %v1413 = vpop.xlane.xlu0 %1412
        %v1414 = vmax.f32 %v1253, %v1255
        %1415 = vmax.xlane.f32.xlu0 %v1414
        %v1416 = vpop.xlane.xlu0 %1415
        %v1417 = vmax.f32 %v1259, %v1261
        %1418 = vmax.xlane.f32.xlu0 %v1417
        %v1419 = vpop.xlane.xlu0 %1418
        %v1420 = vmax.f32 %v1263, %v1265
        %1421 = vmax.xlane.f32.xlu0 %v1420
        %v1422 = vpop.xlane.xlu0 %1421
        %v1423 = vmax.f32 %v1269, %v1271
        %1424 = vmax.xlane.f32.xlu0 %v1423
        %v1425 = vpop.xlane.xlu0 %1424
        %v1426 = vmax.f32 %v1273, %v1275
        %1427 = vmax.xlane.f32.xlu0 %v1426
        %v1428 = vpop.xlane.xlu0 %1427
        %v1429 = vmax.f32 %v1279, %v1281
        %1430 = vmax.xlane.f32.xlu0 %v1429
        %v1431 = vpop.xlane.xlu0 %1430
        %v1432 = vmax.f32 %v1283, %v1285
        %1433 = vmax.xlane.f32.xlu0 %v1432
        %v1434 = vpop.xlane.xlu0 %1433
        %v1435 = vmax.f32 %v1289, %v1291
        %1436 = vmax.xlane.f32.xlu0 %v1435
        %v1437 = vpop.xlane.xlu0 %1436
        %v1438 = vmax.f32 %v1293, %v1295
        %1439 = vmax.xlane.f32.xlu0 %v1438
        %v1440 = vpop.xlane.xlu0 %1439
        %v1441 = vmax.f32 %v1299, %v1301
        %1442 = vmax.xlane.f32.xlu0 %v1441
        %v1443 = vpop.xlane.xlu0 %1442
        %v1444 = vmax.f32 %v1303, %v1305
        %1445 = vmax.xlane.f32.xlu0 %v1444
        %v1446 = vpop.xlane.xlu0 %1445
        %v1447 = vmax.f32 %v1309, %v1311
        %1448 = vmax.xlane.f32.xlu0 %v1447
        %v1449 = vpop.xlane.xlu0 %1448
        %v1450 = vmax.f32 %v1313, %v1315
        %1451 = vmax.xlane.f32.xlu0 %v1450
        %v1452 = vpop.xlane.xlu0 %1451
        %v1453 = vmax.f32 %v1319, %v1321
        %1454 = vmax.xlane.f32.xlu0 %v1453
        %v1455 = vpop.xlane.xlu0 %1454
        %v1456 = vmax.f32 %v1323, %v1325
        %1457 = vmax.xlane.f32.xlu0 %v1456
        %v1458 = vpop.xlane.xlu0 %1457
        %v1459 = vmax.f32 %v1329, %v1331
        %1460 = vmax.xlane.f32.xlu0 %v1459
        %v1461 = vpop.xlane.xlu0 %1460
        %v1462 = vmax.f32 %v1333, %v1335
        %1463 = vmax.xlane.f32.xlu0 %v1462
        %v1464 = vpop.xlane.xlu0 %1463
        %v1465 = vmax.f32 %v1337, %v1371
        %v1466 = vmax.f32 %v1338, %v1374
        %v1467 = vmax.f32 %v1339, %v1377
        %v1468 = vmax.f32 %v1340, %v1380
        %v1469 = vmax.f32 %v1341, %v1383
        %v1470 = vmax.f32 %v1342, %v1386
        %v1471 = vmax.f32 %v1343, %v1389
        %v1472 = vmax.f32 %v1344, %v1392
        %v1473 = vmax.f32 %v1345, %v1395
        %v1474 = vmax.f32 %v1346, %v1398
        %v1475 = vmax.f32 %v1347, %v1401
        %v1476 = vmax.f32 %v1348, %v1404
        %v1477 = vmax.f32 %v1349, %v1407
        %v1478 = vmax.f32 %v1350, %v1410
        %v1479 = vmax.f32 %v1351, %v1413
        %v1480 = vmax.f32 %v1352, %v1416
        %v1481 = vmax.f32 %v1353, %v1419
        %v1482 = vmax.f32 %v1354, %v1422
        %v1483 = vmax.f32 %v1355, %v1425
        %v1484 = vmax.f32 %v1356, %v1428
        %v1485 = vmax.f32 %v1357, %v1431
        %v1486 = vmax.f32 %v1358, %v1434
        %v1487 = vmax.f32 %v1359, %v1437
        %v1488 = vmax.f32 %v1360, %v1440
        %v1489 = vmax.f32 %v1361, %v1443
        %v1490 = vmax.f32 %v1362, %v1446
        %v1491 = vmax.f32 %v1363, %v1449
        %v1492 = vmax.f32 %v1364, %v1452
        %v1493 = vmax.f32 %v1365, %v1455
        %v1494 = vmax.f32 %v1366, %v1458
        %v1495 = vmax.f32 %v1367, %v1461
        %v1496 = vmax.f32 %v1368, %v1464
        %v1497 = vsub.f32 %v1337, %v1465
        %v1498 = vsub.f32 %v1338, %v1466
        %v1499 = vsub.f32 %v1339, %v1467
        %v1500 = vsub.f32 %v1340, %v1468
        %v1501 = vsub.f32 %v1341, %v1469
        %v1502 = vsub.f32 %v1342, %v1470
        %v1503 = vsub.f32 %v1343, %v1471
        %v1504 = vsub.f32 %v1344, %v1472
        %v1505 = vsub.f32 %v1345, %v1473
        %v1506 = vsub.f32 %v1346, %v1474
        %v1507 = vsub.f32 %v1347, %v1475
        %v1508 = vsub.f32 %v1348, %v1476
        %v1509 = vsub.f32 %v1349, %v1477
        %v1510 = vsub.f32 %v1350, %v1478
        %v1511 = vsub.f32 %v1351, %v1479
        %v1512 = vsub.f32 %v1352, %v1480
        %v1513 = vsub.f32 %v1353, %v1481
        %v1514 = vsub.f32 %v1354, %v1482
        %v1515 = vsub.f32 %v1355, %v1483
        %v1516 = vsub.f32 %v1356, %v1484
        %v1517 = vsub.f32 %v1357, %v1485
        %v1518 = vsub.f32 %v1358, %v1486
        %v1519 = vsub.f32 %v1359, %v1487
        %v1520 = vsub.f32 %v1360, %v1488
        %v1521 = vsub.f32 %v1361, %v1489
        %v1522 = vsub.f32 %v1362, %v1490
        %v1523 = vsub.f32 %v1363, %v1491
        %v1524 = vsub.f32 %v1364, %v1492
        %v1525 = vsub.f32 %v1365, %v1493
        %v1526 = vsub.f32 %v1366, %v1494
        %v1527 = vsub.f32 %v1367, %v1495
        %v1528 = vsub.f32 %v1368, %v1496
        %v1529 = vmul.f32 %v1497, 1.442695
        %v1530 = vpow.pop %v1529
        %v1531 = vmul.f32 %v1498, 1.442695
        %v1532 = vpow.pop %v1531
        %v1533 = vmul.f32 %v1499, 1.442695
        %v1534 = vpow.pop %v1533
        %v1535 = vmul.f32 %v1500, 1.442695
        %v1536 = vpow.pop %v1535
        %v1537 = vmul.f32 %v1501, 1.442695
        %v1538 = vpow.pop %v1537
        %v1539 = vmul.f32 %v1502, 1.442695
        %v1540 = vpow.pop %v1539
        %v1541 = vmul.f32 %v1503, 1.442695
        %v1542 = vpow.pop %v1541
        %v1543 = vmul.f32 %v1504, 1.442695
        %v1544 = vpow.pop %v1543
        %v1545 = vmul.f32 %v1505, 1.442695
        %v1546 = vpow.pop %v1545
        %v1547 = vmul.f32 %v1506, 1.442695
        %v1548 = vpow.pop %v1547
        %v1549 = vmul.f32 %v1507, 1.442695
        %v1550 = vpow.pop %v1549
        %v1551 = vmul.f32 %v1508, 1.442695
        %v1552 = vpow.pop %v1551
        %v1553 = vmul.f32 %v1509, 1.442695
        %v1554 = vpow.pop %v1553
        %v1555 = vmul.f32 %v1510, 1.442695
        %v1556 = vpow.pop %v1555
        %v1557 = vmul.f32 %v1511, 1.442695
        %v1558 = vpow.pop %v1557
        %v1559 = vmul.f32 %v1512, 1.442695
        %v1560 = vpow.pop %v1559
        %v1561 = vmul.f32 %v1513, 1.442695
        %v1562 = vpow.pop %v1561
        %v1563 = vmul.f32 %v1514, 1.442695
        %v1564 = vpow.pop %v1563
        %v1565 = vmul.f32 %v1515, 1.442695
        %v1566 = vpow.pop %v1565
        %v1567 = vmul.f32 %v1516, 1.442695
        %v1568 = vpow.pop %v1567
        %v1569 = vmul.f32 %v1517, 1.442695
        %v1570 = vpow.pop %v1569
        %v1571 = vmul.f32 %v1518, 1.442695
        %v1572 = vpow.pop %v1571
        %v1573 = vmul.f32 %v1519, 1.442695
        %v1574 = vpow.pop %v1573
        %v1575 = vmul.f32 %v1520, 1.442695
        %v1576 = vpow.pop %v1575
        %v1577 = vmul.f32 %v1521, 1.442695
        %v1578 = vpow.pop %v1577
        %v1579 = vmul.f32 %v1522, 1.442695
        %v1580 = vpow.pop %v1579
        %v1581 = vmul.f32 %v1523, 1.442695
        %v1582 = vpow.pop %v1581
        %v1583 = vmul.f32 %v1524, 1.442695
        %v1584 = vpow.pop %v1583
        %v1585 = vmul.f32 %v1525, 1.442695
        %v1586 = vpow.pop %v1585
        %v1587 = vmul.f32 %v1526, 1.442695
        %v1588 = vpow.pop %v1587
        %v1589 = vmul.f32 %v1527, 1.442695
        %v1590 = vpow.pop %v1589
        %v1591 = vmul.f32 %v1528, 1.442695
        %v1592 = vpow.pop %v1591
        %1594 = vset.pattern.permute.xlu0 0
        %1595 = vperm.xlu0 %1594, %v1465
        %v1596 = vpop.permute.xlu0 %1595
        %1599 = vset.pattern.permute.xlu0 0
        %1600 = vperm.xlu0 %1599, %v1466
        %v1601 = vpop.permute.xlu0 %1600
        %1604 = vset.pattern.permute.xlu0 0
        %1605 = vperm.xlu0 %1604, %v1467
        %v1606 = vpop.permute.xlu0 %1605
        %1609 = vset.pattern.permute.xlu0 0
        %1610 = vperm.xlu0 %1609, %v1468
        %v1611 = vpop.permute.xlu0 %1610
        %1614 = vset.pattern.permute.xlu0 0
        %1615 = vperm.xlu0 %1614, %v1469
        %v1616 = vpop.permute.xlu0 %1615
        %1619 = vset.pattern.permute.xlu0 0
        %1620 = vperm.xlu0 %1619, %v1470
        %v1621 = vpop.permute.xlu0 %1620
        %1624 = vset.pattern.permute.xlu0 0
        %1625 = vperm.xlu0 %1624, %v1471
        %v1626 = vpop.permute.xlu0 %1625
        %1629 = vset.pattern.permute.xlu0 0
        %1630 = vperm.xlu0 %1629, %v1472
        %v1631 = vpop.permute.xlu0 %1630
        %1634 = vset.pattern.permute.xlu0 0
        %1635 = vperm.xlu0 %1634, %v1473
        %v1636 = vpop.permute.xlu0 %1635
        %1639 = vset.pattern.permute.xlu0 0
        %1640 = vperm.xlu0 %1639, %v1474
        %v1641 = vpop.permute.xlu0 %1640
        %1644 = vset.pattern.permute.xlu0 0
        %1645 = vperm.xlu0 %1644, %v1475
        %v1646 = vpop.permute.xlu0 %1645
        %1649 = vset.pattern.permute.xlu0 0
        %1650 = vperm.xlu0 %1649, %v1476
        %v1651 = vpop.permute.xlu0 %1650
        %1654 = vset.pattern.permute.xlu0 0
        %1655 = vperm.xlu0 %1654, %v1477
        %v1656 = vpop.permute.xlu0 %1655
        %1659 = vset.pattern.permute.xlu0 0
        %1660 = vperm.xlu0 %1659, %v1478
        %v1661 = vpop.permute.xlu0 %1660
        %1664 = vset.pattern.permute.xlu0 0
        %1665 = vperm.xlu0 %1664, %v1479
        %v1666 = vpop.permute.xlu0 %1665
        %1669 = vset.pattern.permute.xlu0 0
        %1670 = vperm.xlu0 %1669, %v1480
        %v1671 = vpop.permute.xlu0 %1670
        %1674 = vset.pattern.permute.xlu0 0
        %1675 = vperm.xlu0 %1674, %v1481
        %v1676 = vpop.permute.xlu0 %1675
        %1679 = vset.pattern.permute.xlu0 0
        %1680 = vperm.xlu0 %1679, %v1482
        %v1681 = vpop.permute.xlu0 %1680
        %1684 = vset.pattern.permute.xlu0 0
        %1685 = vperm.xlu0 %1684, %v1483
        %v1686 = vpop.permute.xlu0 %1685
        %1689 = vset.pattern.permute.xlu0 0
        %1690 = vperm.xlu0 %1689, %v1484
        %v1691 = vpop.permute.xlu0 %1690
        %1694 = vset.pattern.permute.xlu0 0
        %1695 = vperm.xlu0 %1694, %v1485
        %v1696 = vpop.permute.xlu0 %1695
        %1699 = vset.pattern.permute.xlu0 0
        %1700 = vperm.xlu0 %1699, %v1486
        %v1701 = vpop.permute.xlu0 %1700
        %1704 = vset.pattern.permute.xlu0 0
        %1705 = vperm.xlu0 %1704, %v1487
        %v1706 = vpop.permute.xlu0 %1705
        %1709 = vset.pattern.permute.xlu0 0
        %1710 = vperm.xlu0 %1709, %v1488
        %v1711 = vpop.permute.xlu0 %1710
        %1714 = vset.pattern.permute.xlu0 0
        %1715 = vperm.xlu0 %1714, %v1489
        %v1716 = vpop.permute.xlu0 %1715
        %1719 = vset.pattern.permute.xlu0 0
        %1720 = vperm.xlu0 %1719, %v1490
        %v1721 = vpop.permute.xlu0 %1720
        %1724 = vset.pattern.permute.xlu0 0
        %1725 = vperm.xlu0 %1724, %v1491
        %v1726 = vpop.permute.xlu0 %1725
        %1729 = vset.pattern.permute.xlu0 0
        %1730 = vperm.xlu0 %1729, %v1492
        %v1731 = vpop.permute.xlu0 %1730
        %1734 = vset.pattern.permute.xlu0 0
        %1735 = vperm.xlu0 %1734, %v1493
        %v1736 = vpop.permute.xlu0 %1735
        %1739 = vset.pattern.permute.xlu0 0
        %1740 = vperm.xlu0 %1739, %v1494
        %v1741 = vpop.permute.xlu0 %1740
        %1744 = vset.pattern.permute.xlu0 0
        %1745 = vperm.xlu0 %1744, %v1495
        %v1746 = vpop.permute.xlu0 %1745
        %1749 = vset.pattern.permute.xlu0 0
        %1750 = vperm.xlu0 %1749, %v1496
        %v1751 = vpop.permute.xlu0 %1750
        %v1753 = vsub.f32 %v1179, %v1596
        %v1754 = vsub.f32 %v1181, %v1596
        %v1755 = vsub.f32 %v1183, %v1601
        %v1756 = vsub.f32 %v1185, %v1601
        %v1757 = vsub.f32 %v1189, %v1606
        %v1758 = vsub.f32 %v1191, %v1606
        %v1759 = vsub.f32 %v1193, %v1611
        %v1760 = vsub.f32 %v1195, %v1611
        %v1761 = vsub.f32 %v1199, %v1616
        %v1762 = vsub.f32 %v1201, %v1616
        %v1763 = vsub.f32 %v1203, %v1621
        %v1764 = vsub.f32 %v1205, %v1621
        %v1765 = vsub.f32 %v1209, %v1626
        %v1766 = vsub.f32 %v1211, %v1626
        %v1767 = vsub.f32 %v1213, %v1631
        %v1768 = vsub.f32 %v1215, %v1631
        %v1769 = vsub.f32 %v1219, %v1636
        %v1770 = vsub.f32 %v1221, %v1636
        %v1771 = vsub.f32 %v1223, %v1641
        %v1772 = vsub.f32 %v1225, %v1641
        %v1773 = vsub.f32 %v1229, %v1646
        %v1774 = vsub.f32 %v1231, %v1646
        %v1775 = vsub.f32 %v1233, %v1651
        %v1776 = vsub.f32 %v1235, %v1651
        %v1777 = vsub.f32 %v1239, %v1656
        %v1778 = vsub.f32 %v1241, %v1656
        %v1779 = vsub.f32 %v1243, %v1661
        %v1780 = vsub.f32 %v1245, %v1661
        %v1781 = vsub.f32 %v1249, %v1666
        %v1782 = vsub.f32 %v1251, %v1666
        %v1783 = vsub.f32 %v1253, %v1671
        %v1784 = vsub.f32 %v1255, %v1671
        %v1785 = vsub.f32 %v1259, %v1676
        %v1786 = vsub.f32 %v1261, %v1676
        %v1787 = vsub.f32 %v1263, %v1681
        %v1788 = vsub.f32 %v1265, %v1681
        %v1789 = vsub.f32 %v1269, %v1686
        %v1790 = vsub.f32 %v1271, %v1686
        %v1791 = vsub.f32 %v1273, %v1691
        %v1792 = vsub.f32 %v1275, %v1691
        %v1793 = vsub.f32 %v1279, %v1696
        %v1794 = vsub.f32 %v1281, %v1696
        %v1795 = vsub.f32 %v1283, %v1701
        %v1796 = vsub.f32 %v1285, %v1701
        %v1797 = vsub.f32 %v1289, %v1706
        %v1798 = vsub.f32 %v1291, %v1706
        %v1799 = vsub.f32 %v1293, %v1711
        %v1800 = vsub.f32 %v1295, %v1711
        %v1801 = vsub.f32 %v1299, %v1716
        %v1802 = vsub.f32 %v1301, %v1716
        %v1803 = vsub.f32 %v1303, %v1721
        %v1804 = vsub.f32 %v1305, %v1721
        %v1805 = vsub.f32 %v1309, %v1726
        %v1806 = vsub.f32 %v1311, %v1726
        %v1807 = vsub.f32 %v1313, %v1731
        %v1808 = vsub.f32 %v1315, %v1731
        %v1809 = vsub.f32 %v1319, %v1736
        %v1810 = vsub.f32 %v1321, %v1736
        %v1811 = vsub.f32 %v1323, %v1741
        %v1812 = vsub.f32 %v1325, %v1741
        %v1813 = vsub.f32 %v1329, %v1746
        %v1814 = vsub.f32 %v1331, %v1746
        %v1815 = vsub.f32 %v1333, %v1751
        %v1816 = vsub.f32 %v1335, %v1751
        %v1817 = vpack.c.bf16 %v1755, %v1753
        %v1818 = vpack.c.bf16 %v1756, %v1754
        %v1819 = vpack.c.bf16 %v1759, %v1757
        %v1820 = vpack.c.bf16 %v1760, %v1758
        %v1821 = vpack.c.bf16 %v1763, %v1761
        %v1822 = vpack.c.bf16 %v1764, %v1762
        %v1823 = vpack.c.bf16 %v1767, %v1765
        %v1824 = vpack.c.bf16 %v1768, %v1766
        %v1825 = vpack.c.bf16 %v1771, %v1769
        %v1826 = vpack.c.bf16 %v1772, %v1770
        %v1827 = vpack.c.bf16 %v1775, %v1773
        %v1828 = vpack.c.bf16 %v1776, %v1774
        %v1829 = vpack.c.bf16 %v1779, %v1777
        %v1830 = vpack.c.bf16 %v1780, %v1778
        %v1831 = vpack.c.bf16 %v1783, %v1781
        %v1832 = vpack.c.bf16 %v1784, %v1782
        %v1833 = vpack.c.bf16 %v1787, %v1785
        %v1834 = vpack.c.bf16 %v1788, %v1786
        %v1835 = vpack.c.bf16 %v1791, %v1789
        %v1836 = vpack.c.bf16 %v1792, %v1790
        %v1837 = vpack.c.bf16 %v1795, %v1793
        %v1838 = vpack.c.bf16 %v1796, %v1794
        %v1839 = vpack.c.bf16 %v1799, %v1797
        %v1840 = vpack.c.bf16 %v1800, %v1798
        %v1841 = vpack.c.bf16 %v1803, %v1801
        %v1842 = vpack.c.bf16 %v1804, %v1802
        %v1843 = vpack.c.bf16 %v1807, %v1805
        %v1844 = vpack.c.bf16 %v1808, %v1806
        %v1845 = vpack.c.bf16 %v1811, %v1809
        %v1846 = vpack.c.bf16 %v1812, %v1810
        %v1847 = vpack.c.bf16 %v1815, %v1813
        %v1848 = vpack.c.bf16 %v1816, %v1814
        %v1850 = vmul.bf16 %v1817, 1069105081
        %v1851 = vpow.bf16.pop %v1850
        %v1853 = vmul.bf16 %v1818, 1069105081
        %v1854 = vpow.bf16.pop %v1853
        %v1856 = vmul.bf16 %v1819, 1069105081
        %v1857 = vpow.bf16.pop %v1856
        %v1859 = vmul.bf16 %v1820, 1069105081
        %v1860 = vpow.bf16.pop %v1859
        %v1862 = vmul.bf16 %v1821, 1069105081
        %v1863 = vpow.bf16.pop %v1862
        %v1865 = vmul.bf16 %v1822, 1069105081
        %v1866 = vpow.bf16.pop %v1865
        %v1868 = vmul.bf16 %v1823, 1069105081
        %v1869 = vpow.bf16.pop %v1868
        %v1871 = vmul.bf16 %v1824, 1069105081
        %v1872 = vpow.bf16.pop %v1871
        %v1874 = vmul.bf16 %v1825, 1069105081
        %v1875 = vpow.bf16.pop %v1874
        %v1877 = vmul.bf16 %v1826, 1069105081
        %v1878 = vpow.bf16.pop %v1877
        %v1880 = vmul.bf16 %v1827, 1069105081
        %v1881 = vpow.bf16.pop %v1880
        %v1883 = vmul.bf16 %v1828, 1069105081
        %v1884 = vpow.bf16.pop %v1883
        %v1886 = vmul.bf16 %v1829, 1069105081
        %v1887 = vpow.bf16.pop %v1886
        %v1889 = vmul.bf16 %v1830, 1069105081
        %v1890 = vpow.bf16.pop %v1889
        %v1892 = vmul.bf16 %v1831, 1069105081
        %v1893 = vpow.bf16.pop %v1892
        %v1895 = vmul.bf16 %v1832, 1069105081
        %v1896 = vpow.bf16.pop %v1895
        %v1898 = vmul.bf16 %v1833, 1069105081
        %v1899 = vpow.bf16.pop %v1898
        %v1901 = vmul.bf16 %v1834, 1069105081
        %v1902 = vpow.bf16.pop %v1901
        %v1904 = vmul.bf16 %v1835, 1069105081
        %v1905 = vpow.bf16.pop %v1904
        %v1907 = vmul.bf16 %v1836, 1069105081
        %v1908 = vpow.bf16.pop %v1907
        %v1910 = vmul.bf16 %v1837, 1069105081
        %v1911 = vpow.bf16.pop %v1910
        %v1913 = vmul.bf16 %v1838, 1069105081
        %v1914 = vpow.bf16.pop %v1913
        %v1916 = vmul.bf16 %v1839, 1069105081
        %v1917 = vpow.bf16.pop %v1916
        %v1919 = vmul.bf16 %v1840, 1069105081
        %v1920 = vpow.bf16.pop %v1919
        %v1922 = vmul.bf16 %v1841, 1069105081
        %v1923 = vpow.bf16.pop %v1922
        %v1925 = vmul.bf16 %v1842, 1069105081
        %v1926 = vpow.bf16.pop %v1925
        %v1928 = vmul.bf16 %v1843, 1069105081
        %v1929 = vpow.bf16.pop %v1928
        %v1931 = vmul.bf16 %v1844, 1069105081
        %v1932 = vpow.bf16.pop %v1931
        %v1934 = vmul.bf16 %v1845, 1069105081
        %v1935 = vpow.bf16.pop %v1934
        %v1937 = vmul.bf16 %v1846, 1069105081
        %v1938 = vpow.bf16.pop %v1937
        %v1940 = vmul.bf16 %v1847, 1069105081
        %v1941 = vpow.bf16.pop %v1940
        %v1943 = vmul.bf16 %v1848, 1069105081
        %v1944 = vpow.bf16.pop %v1943
        %v1945 = vld [vmem:[#allocation4] sm:$0xff]
        %v1946 = vld [vmem:[#allocation4 + $0x8] sm:$0xff]
        %v1947 = vld [vmem:[#allocation4 + $0x10] sm:$0xff]
        %v1948 = vld [vmem:[#allocation4 + $0x18] sm:$0xff]
        %v1949 = vld [vmem:[#allocation4 + $0x20] sm:$0xff]
        %v1950 = vld [vmem:[#allocation4 + $0x28] sm:$0xff]
        %v1951 = vld [vmem:[#allocation4 + $0x30] sm:$0xff]
        %v1952 = vld [vmem:[#allocation4 + $0x38] sm:$0xff]
        %v1953 = vld [vmem:[#allocation4 + $0x40] sm:$0xff]
        %v1954 = vld [vmem:[#allocation4 + $0x48] sm:$0xff]
        %v1955 = vld [vmem:[#allocation4 + $0x50] sm:$0xff]
        %v1956 = vld [vmem:[#allocation4 + $0x58] sm:$0xff]
        %v1957 = vld [vmem:[#allocation4 + $0x60] sm:$0xff]
        %v1958 = vld [vmem:[#allocation4 + $0x68] sm:$0xff]
        %v1959 = vld [vmem:[#allocation4 + $0x70] sm:$0xff]
        %v1960 = vld [vmem:[#allocation4 + $0x78] sm:$0xff]
        %v1961 = vld [vmem:[#allocation4 + $0x80] sm:$0xff]
        %v1962 = vld [vmem:[#allocation4 + $0x88] sm:$0xff]
        %v1963 = vld [vmem:[#allocation4 + $0x90] sm:$0xff]
        %v1964 = vld [vmem:[#allocation4 + $0x98] sm:$0xff]
        %v1965 = vld [vmem:[#allocation4 + $0xa0] sm:$0xff]
        %v1966 = vld [vmem:[#allocation4 + $0xa8] sm:$0xff]
        %v1967 = vld [vmem:[#allocation4 + $0xb0] sm:$0xff]
        %v1968 = vld [vmem:[#allocation4 + $0xb8] sm:$0xff]
        %v1969 = vld [vmem:[#allocation4 + $0xc0] sm:$0xff]
        %v1970 = vld [vmem:[#allocation4 + $0xc8] sm:$0xff]
        %v1971 = vld [vmem:[#allocation4 + $0xd0] sm:$0xff]
        %v1972 = vld [vmem:[#allocation4 + $0xd8] sm:$0xff]
        %v1973 = vld [vmem:[#allocation4 + $0xe0] sm:$0xff]
        %v1974 = vld [vmem:[#allocation4 + $0xe8] sm:$0xff]
        %v1975 = vld [vmem:[#allocation4 + $0xf0] sm:$0xff]
        %v1976 = vld [vmem:[#allocation4 + $0xf8] sm:$0xff]
        %v1977 = vmul.f32 %v1530, %v1945
        %v1978 = vmul.f32 %v1532, %v1946
        %v1979 = vmul.f32 %v1534, %v1947
        %v1980 = vmul.f32 %v1536, %v1948
        %v1981 = vmul.f32 %v1538, %v1949
        %v1982 = vmul.f32 %v1540, %v1950
        %v1983 = vmul.f32 %v1542, %v1951
        %v1984 = vmul.f32 %v1544, %v1952
        %v1985 = vmul.f32 %v1546, %v1953
        %v1986 = vmul.f32 %v1548, %v1954
        %v1987 = vmul.f32 %v1550, %v1955
        %v1988 = vmul.f32 %v1552, %v1956
        %v1989 = vmul.f32 %v1554, %v1957
        %v1990 = vmul.f32 %v1556, %v1958
        %v1991 = vmul.f32 %v1558, %v1959
        %v1992 = vmul.f32 %v1560, %v1960
        %v1993 = vmul.f32 %v1562, %v1961
        %v1994 = vmul.f32 %v1564, %v1962
        %v1995 = vmul.f32 %v1566, %v1963
        %v1996 = vmul.f32 %v1568, %v1964
        %v1997 = vmul.f32 %v1570, %v1965
        %v1998 = vmul.f32 %v1572, %v1966
        %v1999 = vmul.f32 %v1574, %v1967
        %v2000 = vmul.f32 %v1576, %v1968
        %v2001 = vmul.f32 %v1578, %v1969
        %v2002 = vmul.f32 %v1580, %v1970
        %v2003 = vmul.f32 %v1582, %v1971
        %v2004 = vmul.f32 %v1584, %v1972
        %v2005 = vmul.f32 %v1586, %v1973
        %v2006 = vmul.f32 %v1588, %v1974
        %v2007 = vmul.f32 %v1590, %v1975
        %v2008 = vmul.f32 %v1592, %v1976
        %v2009 = vunpack.c.l.bf16 %v1851
        %v2010 = vunpack.c.l.bf16 %v1854
        %v2011 = vunpack.c.h.bf16 %v1851
        %v2012 = vunpack.c.h.bf16 %v1854
        %v2013 = vunpack.c.l.bf16 %v1857
        %v2014 = vunpack.c.l.bf16 %v1860
        %v2015 = vunpack.c.h.bf16 %v1857
        %v2016 = vunpack.c.h.bf16 %v1860
        %v2017 = vunpack.c.l.bf16 %v1863
        %v2018 = vunpack.c.l.bf16 %v1866
        %v2019 = vunpack.c.h.bf16 %v1863
        %v2020 = vunpack.c.h.bf16 %v1866
        %v2021 = vunpack.c.l.bf16 %v1869
        %v2022 = vunpack.c.l.bf16 %v1872
        %v2023 = vunpack.c.h.bf16 %v1869
        %v2024 = vunpack.c.h.bf16 %v1872
        %v2025 = vunpack.c.l.bf16 %v1875
        %v2026 = vunpack.c.l.bf16 %v1878
        %v2027 = vunpack.c.h.bf16 %v1875
        %v2028 = vunpack.c.h.bf16 %v1878
        %v2029 = vunpack.c.l.bf16 %v1881
        %v2030 = vunpack.c.l.bf16 %v1884
        %v2031 = vunpack.c.h.bf16 %v1881
        %v2032 = vunpack.c.h.bf16 %v1884
        %v2033 = vunpack.c.l.bf16 %v1887
        %v2034 = vunpack.c.l.bf16 %v1890
        %v2035 = vunpack.c.h.bf16 %v1887
        %v2036 = vunpack.c.h.bf16 %v1890
        %v2037 = vunpack.c.l.bf16 %v1893
        %v2038 = vunpack.c.l.bf16 %v1896
        %v2039 = vunpack.c.h.bf16 %v1893
        %v2040 = vunpack.c.h.bf16 %v1896
        %v2041 = vunpack.c.l.bf16 %v1899
        %v2042 = vunpack.c.l.bf16 %v1902
        %v2043 = vunpack.c.h.bf16 %v1899
        %v2044 = vunpack.c.h.bf16 %v1902
        %v2045 = vunpack.c.l.bf16 %v1905
        %v2046 = vunpack.c.l.bf16 %v1908
        %v2047 = vunpack.c.h.bf16 %v1905
        %v2048 = vunpack.c.h.bf16 %v1908
        %v2049 = vunpack.c.l.bf16 %v1911
        %v2050 = vunpack.c.l.bf16 %v1914
        %v2051 = vunpack.c.h.bf16 %v1911
        %v2052 = vunpack.c.h.bf16 %v1914
        %v2053 = vunpack.c.l.bf16 %v1917
        %v2054 = vunpack.c.l.bf16 %v1920
        %v2055 = vunpack.c.h.bf16 %v1917
        %v2056 = vunpack.c.h.bf16 %v1920
        %v2057 = vunpack.c.l.bf16 %v1923
        %v2058 = vunpack.c.l.bf16 %v1926
        %v2059 = vunpack.c.h.bf16 %v1923
        %v2060 = vunpack.c.h.bf16 %v1926
        %v2061 = vunpack.c.l.bf16 %v1929
        %v2062 = vunpack.c.l.bf16 %v1932
        %v2063 = vunpack.c.h.bf16 %v1929
        %v2064 = vunpack.c.h.bf16 %v1932
        %v2065 = vunpack.c.l.bf16 %v1935
        %v2066 = vunpack.c.l.bf16 %v1938
        %v2067 = vunpack.c.h.bf16 %v1935
        %v2068 = vunpack.c.h.bf16 %v1938
        %v2069 = vunpack.c.l.bf16 %v1941
        %v2070 = vunpack.c.l.bf16 %v1944
        %v2071 = vunpack.c.h.bf16 %v1941
        %v2072 = vunpack.c.h.bf16 %v1944
        %v2073 = vadd.f32 %v2009, %v2010
        %2074 = vadd.xlane.f32.xlu0 %v2073
        %v2075 = vpop.xlane.xlu0 %2074
        %v2076 = vadd.f32 %v2011, %v2012
        %2077 = vadd.xlane.f32.xlu0 %v2076
        %v2078 = vpop.xlane.xlu0 %2077
        %v2079 = vadd.f32 %v2013, %v2014
        %2080 = vadd.xlane.f32.xlu0 %v2079
        %v2081 = vpop.xlane.xlu0 %2080
        %v2082 = vadd.f32 %v2015, %v2016
        %2083 = vadd.xlane.f32.xlu0 %v2082
        %v2084 = vpop.xlane.xlu0 %2083
        %v2085 = vadd.f32 %v2017, %v2018
        %2086 = vadd.xlane.f32.xlu0 %v2085
        %v2087 = vpop.xlane.xlu0 %2086
        %v2088 = vadd.f32 %v2019, %v2020
        %2089 = vadd.xlane.f32.xlu0 %v2088
        %v2090 = vpop.xlane.xlu0 %2089
        %v2091 = vadd.f32 %v2021, %v2022
        %2092 = vadd.xlane.f32.xlu0 %v2091
        %v2093 = vpop.xlane.xlu0 %2092
        %v2094 = vadd.f32 %v2023, %v2024
        %2095 = vadd.xlane.f32.xlu0 %v2094
        %v2096 = vpop.xlane.xlu0 %2095
        %v2097 = vadd.f32 %v2025, %v2026
        %2098 = vadd.xlane.f32.xlu0 %v2097
        %v2099 = vpop.xlane.xlu0 %2098
        %v2100 = vadd.f32 %v2027, %v2028
        %2101 = vadd.xlane.f32.xlu0 %v2100
        %v2102 = vpop.xlane.xlu0 %2101
        %v2103 = vadd.f32 %v2029, %v2030
        %2104 = vadd.xlane.f32.xlu0 %v2103
        %v2105 = vpop.xlane.xlu0 %2104
        %v2106 = vadd.f32 %v2031, %v2032
        %2107 = vadd.xlane.f32.xlu0 %v2106
        %v2108 = vpop.xlane.xlu0 %2107
        %v2109 = vadd.f32 %v2033, %v2034
        %2110 = vadd.xlane.f32.xlu0 %v2109
        %v2111 = vpop.xlane.xlu0 %2110
        %v2112 = vadd.f32 %v2035, %v2036
        %2113 = vadd.xlane.f32.xlu0 %v2112
        %v2114 = vpop.xlane.xlu0 %2113
        %v2115 = vadd.f32 %v2037, %v2038
        %2116 = vadd.xlane.f32.xlu0 %v2115
        %v2117 = vpop.xlane.xlu0 %2116
        %v2118 = vadd.f32 %v2039, %v2040
        %2119 = vadd.xlane.f32.xlu0 %v2118
        %v2120 = vpop.xlane.xlu0 %2119
        %v2121 = vadd.f32 %v2041, %v2042
        %2122 = vadd.xlane.f32.xlu0 %v2121
        %v2123 = vpop.xlane.xlu0 %2122
        %v2124 = vadd.f32 %v2043, %v2044
        %2125 = vadd.xlane.f32.xlu0 %v2124
        %v2126 = vpop.xlane.xlu0 %2125
        %v2127 = vadd.f32 %v2045, %v2046
        %2128 = vadd.xlane.f32.xlu0 %v2127
        %v2129 = vpop.xlane.xlu0 %2128
        %v2130 = vadd.f32 %v2047, %v2048
        %2131 = vadd.xlane.f32.xlu0 %v2130
        %v2132 = vpop.xlane.xlu0 %2131
        %v2133 = vadd.f32 %v2049, %v2050
        %2134 = vadd.xlane.f32.xlu0 %v2133
        %v2135 = vpop.xlane.xlu0 %2134
        %v2136 = vadd.f32 %v2051, %v2052
        %2137 = vadd.xlane.f32.xlu0 %v2136
        %v2138 = vpop.xlane.xlu0 %2137
        %v2139 = vadd.f32 %v2053, %v2054
        %2140 = vadd.xlane.f32.xlu0 %v2139
        %v2141 = vpop.xlane.xlu0 %2140
        %v2142 = vadd.f32 %v2055, %v2056
        %2143 = vadd.xlane.f32.xlu0 %v2142
        %v2144 = vpop.xlane.xlu0 %2143
        %v2145 = vadd.f32 %v2057, %v2058
        %2146 = vadd.xlane.f32.xlu0 %v2145
        %v2147 = vpop.xlane.xlu0 %2146
        %v2148 = vadd.f32 %v2059, %v2060
        %2149 = vadd.xlane.f32.xlu0 %v2148
        %v2150 = vpop.xlane.xlu0 %2149
        %v2151 = vadd.f32 %v2061, %v2062
        %2152 = vadd.xlane.f32.xlu0 %v2151
        %v2153 = vpop.xlane.xlu0 %2152
        %v2154 = vadd.f32 %v2063, %v2064
        %2155 = vadd.xlane.f32.xlu0 %v2154
        %v2156 = vpop.xlane.xlu0 %2155
        %v2157 = vadd.f32 %v2065, %v2066
        %2158 = vadd.xlane.f32.xlu0 %v2157
        %v2159 = vpop.xlane.xlu0 %2158
        %v2160 = vadd.f32 %v2067, %v2068
        %2161 = vadd.xlane.f32.xlu0 %v2160
        %v2162 = vpop.xlane.xlu0 %2161
        %v2163 = vadd.f32 %v2069, %v2070
        %2164 = vadd.xlane.f32.xlu0 %v2163
        %v2165 = vpop.xlane.xlu0 %2164
        %v2166 = vadd.f32 %v2071, %v2072
        %2167 = vadd.xlane.f32.xlu0 %v2166
        %v2168 = vpop.xlane.xlu0 %2167
        %v2169 = vadd.f32 %v1977, %v2075
        %v2170 = vadd.f32 %v1978, %v2078
        %v2171 = vadd.f32 %v1979, %v2081
        %v2172 = vadd.f32 %v1980, %v2084
        %v2173 = vadd.f32 %v1981, %v2087
        %v2174 = vadd.f32 %v1982, %v2090
        %v2175 = vadd.f32 %v1983, %v2093
        %v2176 = vadd.f32 %v1984, %v2096
        %v2177 = vadd.f32 %v1985, %v2099
        %v2178 = vadd.f32 %v1986, %v2102
        %v2179 = vadd.f32 %v1987, %v2105
        %v2180 = vadd.f32 %v1988, %v2108
        %v2181 = vadd.f32 %v1989, %v2111
        %v2182 = vadd.f32 %v1990, %v2114
        %v2183 = vadd.f32 %v1991, %v2117
        %v2184 = vadd.f32 %v1992, %v2120
        %v2185 = vadd.f32 %v1993, %v2123
        %v2186 = vadd.f32 %v1994, %v2126
        %v2187 = vadd.f32 %v1995, %v2129
        %v2188 = vadd.f32 %v1996, %v2132
        %v2189 = vadd.f32 %v1997, %v2135
        %v2190 = vadd.f32 %v1998, %v2138
        %v2191 = vadd.f32 %v1999, %v2141
        %v2192 = vadd.f32 %v2000, %v2144
        %v2193 = vadd.f32 %v2001, %v2147
        %v2194 = vadd.f32 %v2002, %v2150
        %v2195 = vadd.f32 %v2003, %v2153
        %v2196 = vadd.f32 %v2004, %v2156
        %v2197 = vadd.f32 %v2005, %v2159
        %v2198 = vadd.f32 %v2006, %v2162
        %v2199 = vadd.f32 %v2007, %v2165
        %v2200 = vadd.f32 %v2008, %v2168
        %vm2201 = vcmask 7168
        %2202 = vst.msk [vmem:[#allocation4] sm:$0xff] %vm2201, %v2169
        %2203 = vst.msk [vmem:[#allocation4 + $0x8] sm:$0xff] %vm2201, %v2170
        %2204 = vst.msk [vmem:[#allocation4 + $0x10] sm:$0xff] %vm2201, %v2171
        %2205 = vst.msk [vmem:[#allocation4 + $0x18] sm:$0xff] %vm2201, %v2172
        %2206 = vst.msk [vmem:[#allocation4 + $0x20] sm:$0xff] %vm2201, %v2173
        %2207 = vst.msk [vmem:[#allocation4 + $0x28] sm:$0xff] %vm2201, %v2174
        %2208 = vst.msk [vmem:[#allocation4 + $0x30] sm:$0xff] %vm2201, %v2175
        %2209 = vst.msk [vmem:[#allocation4 + $0x38] sm:$0xff] %vm2201, %v2176
        %2210 = vst.msk [vmem:[#allocation4 + $0x40] sm:$0xff] %vm2201, %v2177
        %2211 = vst.msk [vmem:[#allocation4 + $0x48] sm:$0xff] %vm2201, %v2178
        %2212 = vst.msk [vmem:[#allocation4 + $0x50] sm:$0xff] %vm2201, %v2179
        %2213 = vst.msk [vmem:[#allocation4 + $0x58] sm:$0xff] %vm2201, %v2180
        %2214 = vst.msk [vmem:[#allocation4 + $0x60] sm:$0xff] %vm2201, %v2181
        %2215 = vst.msk [vmem:[#allocation4 + $0x68] sm:$0xff] %vm2201, %v2182
        %2216 = vst.msk [vmem:[#allocation4 + $0x70] sm:$0xff] %vm2201, %v2183
        %2217 = vst.msk [vmem:[#allocation4 + $0x78] sm:$0xff] %vm2201, %v2184
        %2218 = vst.msk [vmem:[#allocation4 + $0x80] sm:$0xff] %vm2201, %v2185
        %2219 = vst.msk [vmem:[#allocation4 + $0x88] sm:$0xff] %vm2201, %v2186
        %2220 = vst.msk [vmem:[#allocation4 + $0x90] sm:$0xff] %vm2201, %v2187
        %2221 = vst.msk [vmem:[#allocation4 + $0x98] sm:$0xff] %vm2201, %v2188
        %2222 = vst.msk [vmem:[#allocation4 + $0xa0] sm:$0xff] %vm2201, %v2189
        %2223 = vst.msk [vmem:[#allocation4 + $0xa8] sm:$0xff] %vm2201, %v2190
        %2224 = vst.msk [vmem:[#allocation4 + $0xb0] sm:$0xff] %vm2201, %v2191
        %2225 = vst.msk [vmem:[#allocation4 + $0xb8] sm:$0xff] %vm2201, %v2192
        %2226 = vst.msk [vmem:[#allocation4 + $0xc0] sm:$0xff] %vm2201, %v2193
        %2227 = vst.msk [vmem:[#allocation4 + $0xc8] sm:$0xff] %vm2201, %v2194
        %2228 = vst.msk [vmem:[#allocation4 + $0xd0] sm:$0xff] %vm2201, %v2195
        %2229 = vst.msk [vmem:[#allocation4 + $0xd8] sm:$0xff] %vm2201, %v2196
        %2230 = vst.msk [vmem:[#allocation4 + $0xe0] sm:$0xff] %vm2201, %v2197
        %2231 = vst.msk [vmem:[#allocation4 + $0xe8] sm:$0xff] %vm2201, %v2198
        %2232 = vst.msk [vmem:[#allocation4 + $0xf0] sm:$0xff] %vm2201, %v2199
        %2233 = vst.msk [vmem:[#allocation4 + $0xf8] sm:$0xff] %vm2201, %v2200
        %v2234 = vld [vmem:[#allocation5] sm:$0xff]
        %v2235 = vld [vmem:[#allocation5 + $0x8] sm:$0xff]
        %v2236 = vld [vmem:[#allocation5 + $0x10] sm:$0xff]
        %v2237 = vld [vmem:[#allocation5 + $0x18] sm:$0xff]
        %v2238 = vld [vmem:[#allocation5 + $0x20] sm:$0xff]
        %v2239 = vld [vmem:[#allocation5 + $0x28] sm:$0xff]
        %v2240 = vld [vmem:[#allocation5 + $0x30] sm:$0xff]
        %v2241 = vld [vmem:[#allocation5 + $0x38] sm:$0xff]
        %v2242 = vld [vmem:[#allocation5 + $0x40] sm:$0xff]
        %v2243 = vld [vmem:[#allocation5 + $0x48] sm:$0xff]
        %v2244 = vld [vmem:[#allocation5 + $0x50] sm:$0xff]
        %v2245 = vld [vmem:[#allocation5 + $0x58] sm:$0xff]
        %v2246 = vld [vmem:[#allocation5 + $0x60] sm:$0xff]
        %v2247 = vld [vmem:[#allocation5 + $0x68] sm:$0xff]
        %v2248 = vld [vmem:[#allocation5 + $0x70] sm:$0xff]
        %v2249 = vld [vmem:[#allocation5 + $0x78] sm:$0xff]
        %v2250 = vld [vmem:[#allocation5 + $0x80] sm:$0xff]
        %v2251 = vld [vmem:[#allocation5 + $0x88] sm:$0xff]
        %v2252 = vld [vmem:[#allocation5 + $0x90] sm:$0xff]
        %v2253 = vld [vmem:[#allocation5 + $0x98] sm:$0xff]
        %v2254 = vld [vmem:[#allocation5 + $0xa0] sm:$0xff]
        %v2255 = vld [vmem:[#allocation5 + $0xa8] sm:$0xff]
        %v2256 = vld [vmem:[#allocation5 + $0xb0] sm:$0xff]
        %v2257 = vld [vmem:[#allocation5 + $0xb8] sm:$0xff]
        %v2258 = vld [vmem:[#allocation5 + $0xc0] sm:$0xff]
        %v2259 = vld [vmem:[#allocation5 + $0xc8] sm:$0xff]
        %v2260 = vld [vmem:[#allocation5 + $0xd0] sm:$0xff]
        %v2261 = vld [vmem:[#allocation5 + $0xd8] sm:$0xff]
        %v2262 = vld [vmem:[#allocation5 + $0xe0] sm:$0xff]
        %v2263 = vld [vmem:[#allocation5 + $0xe8] sm:$0xff]
        %v2264 = vld [vmem:[#allocation5 + $0xf0] sm:$0xff]
        %v2265 = vld [vmem:[#allocation5 + $0xf8] sm:$0xff]
        %2267 = vset.pattern.permute.xlu0 0
        %2268 = vperm.xlu0 %2267, %v1530
        %v2269 = vpop.permute.xlu0 %2268
        %2272 = vset.pattern.permute.xlu0 0
        %2273 = vperm.xlu0 %2272, %v1532
        %v2274 = vpop.permute.xlu0 %2273
        %2277 = vset.pattern.permute.xlu0 0
        %2278 = vperm.xlu0 %2277, %v1534
        %v2279 = vpop.permute.xlu0 %2278
        %2282 = vset.pattern.permute.xlu0 0
        %2283 = vperm.xlu0 %2282, %v1536
        %v2284 = vpop.permute.xlu0 %2283
        %2287 = vset.pattern.permute.xlu0 0
        %2288 = vperm.xlu0 %2287, %v1538
        %v2289 = vpop.permute.xlu0 %2288
        %2292 = vset.pattern.permute.xlu0 0
        %2293 = vperm.xlu0 %2292, %v1540
        %v2294 = vpop.permute.xlu0 %2293
        %2297 = vset.pattern.permute.xlu0 0
        %2298 = vperm.xlu0 %2297, %v1542
        %v2299 = vpop.permute.xlu0 %2298
        %2302 = vset.pattern.permute.xlu0 0
        %2303 = vperm.xlu0 %2302, %v1544
        %v2304 = vpop.permute.xlu0 %2303
        %2307 = vset.pattern.permute.xlu0 0
        %2308 = vperm.xlu0 %2307, %v1546
        %v2309 = vpop.permute.xlu0 %2308
        %2312 = vset.pattern.permute.xlu0 0
        %2313 = vperm.xlu0 %2312, %v1548
        %v2314 = vpop.permute.xlu0 %2313
        %2317 = vset.pattern.permute.xlu0 0
        %2318 = vperm.xlu0 %2317, %v1550
        %v2319 = vpop.permute.xlu0 %2318
        %2322 = vset.pattern.permute.xlu0 0
        %2323 = vperm.xlu0 %2322, %v1552
        %v2324 = vpop.permute.xlu0 %2323
        %2327 = vset.pattern.permute.xlu0 0
        %2328 = vperm.xlu0 %2327, %v1554
        %v2329 = vpop.permute.xlu0 %2328
        %2332 = vset.pattern.permute.xlu0 0
        %2333 = vperm.xlu0 %2332, %v1556
        %v2334 = vpop.permute.xlu0 %2333
        %2337 = vset.pattern.permute.xlu0 0
        %2338 = vperm.xlu0 %2337, %v1558
        %v2339 = vpop.permute.xlu0 %2338
        %2342 = vset.pattern.permute.xlu0 0
        %2343 = vperm.xlu0 %2342, %v1560
        %v2344 = vpop.permute.xlu0 %2343
        %2347 = vset.pattern.permute.xlu0 0
        %2348 = vperm.xlu0 %2347, %v1562
        %v2349 = vpop.permute.xlu0 %2348
        %2352 = vset.pattern.permute.xlu0 0
        %2353 = vperm.xlu0 %2352, %v1564
        %v2354 = vpop.permute.xlu0 %2353
        %2357 = vset.pattern.permute.xlu0 0
        %2358 = vperm.xlu0 %2357, %v1566
        %v2359 = vpop.permute.xlu0 %2358
        %2362 = vset.pattern.permute.xlu0 0
        %2363 = vperm.xlu0 %2362, %v1568
        %v2364 = vpop.permute.xlu0 %2363
        %2367 = vset.pattern.permute.xlu0 0
        %2368 = vperm.xlu0 %2367, %v1570
        %v2369 = vpop.permute.xlu0 %2368
        %2372 = vset.pattern.permute.xlu0 0
        %2373 = vperm.xlu0 %2372, %v1572
        %v2374 = vpop.permute.xlu0 %2373
        %2377 = vset.pattern.permute.xlu0 0
        %2378 = vperm.xlu0 %2377, %v1574
        %v2379 = vpop.permute.xlu0 %2378
        %2382 = vset.pattern.permute.xlu0 0
        %2383 = vperm.xlu0 %2382, %v1576
        %v2384 = vpop.permute.xlu0 %2383
        %2387 = vset.pattern.permute.xlu0 0
        %2388 = vperm.xlu0 %2387, %v1578
        %v2389 = vpop.permute.xlu0 %2388
        %2392 = vset.pattern.permute.xlu0 0
        %2393 = vperm.xlu0 %2392, %v1580
        %v2394 = vpop.permute.xlu0 %2393
        %2397 = vset.pattern.permute.xlu0 0
        %2398 = vperm.xlu0 %2397, %v1582
        %v2399 = vpop.permute.xlu0 %2398
        %2402 = vset.pattern.permute.xlu0 0
        %2403 = vperm.xlu0 %2402, %v1584
        %v2404 = vpop.permute.xlu0 %2403
        %2407 = vset.pattern.permute.xlu0 0
        %2408 = vperm.xlu0 %2407, %v1586
        %v2409 = vpop.permute.xlu0 %2408
        %2412 = vset.pattern.permute.xlu0 0
        %2413 = vperm.xlu0 %2412, %v1588
        %v2414 = vpop.permute.xlu0 %2413
        %2417 = vset.pattern.permute.xlu0 0
        %2418 = vperm.xlu0 %2417, %v1590
        %v2419 = vpop.permute.xlu0 %2418
        %2422 = vset.pattern.permute.xlu0 0
        %2423 = vperm.xlu0 %2422, %v1592
        %v2424 = vpop.permute.xlu0 %2423
        %v2426 = vmul.f32 %v2269, %v2234
        %v2427 = vmul.f32 %v2274, %v2235
        %v2428 = vmul.f32 %v2279, %v2236
        %v2429 = vmul.f32 %v2284, %v2237
        %v2430 = vmul.f32 %v2289, %v2238
        %v2431 = vmul.f32 %v2294, %v2239
        %v2432 = vmul.f32 %v2299, %v2240
        %v2433 = vmul.f32 %v2304, %v2241
        %v2434 = vmul.f32 %v2309, %v2242
        %v2435 = vmul.f32 %v2314, %v2243
        %v2436 = vmul.f32 %v2319, %v2244
        %v2437 = vmul.f32 %v2324, %v2245
        %v2438 = vmul.f32 %v2329, %v2246
        %v2439 = vmul.f32 %v2334, %v2247
        %v2440 = vmul.f32 %v2339, %v2248
        %v2441 = vmul.f32 %v2344, %v2249
        %v2442 = vmul.f32 %v2349, %v2250
        %v2443 = vmul.f32 %v2354, %v2251
        %v2444 = vmul.f32 %v2359, %v2252
        %v2445 = vmul.f32 %v2364, %v2253
        %v2446 = vmul.f32 %v2369, %v2254
        %v2447 = vmul.f32 %v2374, %v2255
        %v2448 = vmul.f32 %v2379, %v2256
        %v2449 = vmul.f32 %v2384, %v2257
        %v2450 = vmul.f32 %v2389, %v2258
        %v2451 = vmul.f32 %v2394, %v2259
        %v2452 = vmul.f32 %v2399, %v2260
        %v2453 = vmul.f32 %v2404, %v2261
        %v2454 = vmul.f32 %v2409, %v2262
        %v2455 = vmul.f32 %v2414, %v2263
        %v2456 = vmul.f32 %v2419, %v2264
        %v2457 = vmul.f32 %v2424, %v2265
        %v2458 = vld [vmem:[%s481] sm:$0xf]
        %v2459 = vld [vmem:[%s481 + $0x4] sm:$0xf]
        %v2460 = vld [vmem:[%s481 + $0x8] sm:$0xf]
        %v2461 = vld [vmem:[%s481 + $0xc] sm:$0xf]
        %v2462 = vld [vmem:[%s481 + $0x10] sm:$0xf]
        %v2463 = vld [vmem:[%s481 + $0x14] sm:$0xf]
        %v2464 = vld [vmem:[%s481 + $0x18] sm:$0xf]
        %v2465 = vld [vmem:[%s481 + $0x1c] sm:$0xf]
        %v2466 = vld [vmem:[%s481 + $0x20] sm:$0xf]
        %v2467 = vld [vmem:[%s481 + $0x24] sm:$0xf]
        %v2468 = vld [vmem:[%s481 + $0x28] sm:$0xf]
        %v2469 = vld [vmem:[%s481 + $0x2c] sm:$0xf]
        %v2470 = vld [vmem:[%s481 + $0x30] sm:$0xf]
        %v2471 = vld [vmem:[%s481 + $0x34] sm:$0xf]
        %v2472 = vld [vmem:[%s481 + $0x38] sm:$0xf]
        %v2473 = vld [vmem:[%s481 + $0x3c] sm:$0xf]
        %v2474 = vld [vmem:[%s481 + $0x40] sm:$0xf]
        %v2475 = vld [vmem:[%s481 + $0x44] sm:$0xf]
        %v2476 = vld [vmem:[%s481 + $0x48] sm:$0xf]
        %v2477 = vld [vmem:[%s481 + $0x4c] sm:$0xf]
        %v2478 = vld [vmem:[%s481 + $0x50] sm:$0xf]
        %v2479 = vld [vmem:[%s481 + $0x54] sm:$0xf]
        %v2480 = vld [vmem:[%s481 + $0x58] sm:$0xf]
        %v2481 = vld [vmem:[%s481 + $0x5c] sm:$0xf]
        %v2482 = vld [vmem:[%s481 + $0x60] sm:$0xf]
        %v2483 = vld [vmem:[%s481 + $0x64] sm:$0xf]
        %v2484 = vld [vmem:[%s481 + $0x68] sm:$0xf]
        %v2485 = vld [vmem:[%s481 + $0x6c] sm:$0xf]
        %v2486 = vld [vmem:[%s481 + $0x70] sm:$0xf]
        %v2487 = vld [vmem:[%s481 + $0x74] sm:$0xf]
        %v2488 = vld [vmem:[%s481 + $0x78] sm:$0xf]
        %v2489 = vld [vmem:[%s481 + $0x7c] sm:$0xf]
        %v2522 = vunpack.c.l.b16 %v2458
        %v2523 = vunpack.c.l.b16 %v2459
        %v2524 = vunpack.c.l.b16 %v2460
        %v2525 = vunpack.c.l.b16 %v2461
        %v2526 = vunpack.c.l.b16 %v2462
        %v2527 = vunpack.c.l.b16 %v2463
        %v2528 = vunpack.c.l.b16 %v2464
        %v2529 = vunpack.c.l.b16 %v2465
        %v2530 = vunpack.c.l.b16 %v2466
        %v2531 = vunpack.c.l.b16 %v2467
        %v2532 = vunpack.c.l.b16 %v2468
        %v2533 = vunpack.c.l.b16 %v2469
        %v2534 = vunpack.c.l.b16 %v2470
        %v2535 = vunpack.c.l.b16 %v2471
        %v2536 = vunpack.c.l.b16 %v2472
        %v2537 = vunpack.c.l.b16 %v2473
        %v2538 = vunpack.c.l.b16 %v2474
        %v2539 = vunpack.c.l.b16 %v2475
        %v2540 = vunpack.c.l.b16 %v2476
        %v2541 = vunpack.c.l.b16 %v2477
        %v2542 = vunpack.c.l.b16 %v2478
        %v2543 = vunpack.c.l.b16 %v2479
        %v2544 = vunpack.c.l.b16 %v2480
        %v2545 = vunpack.c.l.b16 %v2481
        %v2546 = vunpack.c.l.b16 %v2482
        %v2547 = vunpack.c.l.b16 %v2483
        %v2548 = vunpack.c.l.b16 %v2484
        %v2549 = vunpack.c.l.b16 %v2485
        %v2550 = vunpack.c.l.b16 %v2486
        %v2551 = vunpack.c.l.b16 %v2487
        %v2552 = vunpack.c.l.b16 %v2488
        %v2553 = vunpack.c.l.b16 %v2489
        %v2554 = vpack.c.b16 %v2523, %v2522
        %v2555 = vpack.c.b16 %v2525, %v2524
        %v2556 = vpack.c.b16 %v2527, %v2526
        %v2557 = vpack.c.b16 %v2529, %v2528
        %v2558 = vpack.c.b16 %v2531, %v2530
        %v2559 = vpack.c.b16 %v2533, %v2532
        %v2560 = vpack.c.b16 %v2535, %v2534
        %v2561 = vpack.c.b16 %v2537, %v2536
        %v2562 = vpack.c.b16 %v2539, %v2538
        %v2563 = vpack.c.b16 %v2541, %v2540
        %v2564 = vpack.c.b16 %v2543, %v2542
        %v2565 = vpack.c.b16 %v2545, %v2544
        %v2566 = vpack.c.b16 %v2547, %v2546
        %v2567 = vpack.c.b16 %v2549, %v2548
        %v2568 = vpack.c.b16 %v2551, %v2550
        %v2569 = vpack.c.b16 %v2553, %v2552
        %2586 = vmatprep.subr.bf16.mxu0 0
        %2587 = vmatpush1.bf16.msra.mxu0 %v2554
        %2588 = vmatprep.subr.bf16.mxu0 0
        %2589 = vmatpush1.bf16.msra.mxu0 %v2555
        %2590 = vmatprep.subr.bf16.mxu0 0
        %2591 = vmatpush1.bf16.msra.mxu0 %v2556
        %2592 = vmatprep.subr.bf16.mxu0 0
        %2593 = vmatpush1.bf16.msra.mxu0 %v2557
        %2594 = vmatprep.subr.bf16.mxu0 0
        %2595 = vmatpush1.bf16.msra.mxu0 %v2558
        %2596 = vmatprep.subr.bf16.mxu0 0
        %2597 = vmatpush1.bf16.msra.mxu0 %v2559
        %2598 = vmatprep.subr.bf16.mxu0 0
        %2599 = vmatpush1.bf16.msra.mxu0 %v2560
        %2600 = vmatprep.subr.bf16.mxu0 0
        %2601 = vmatpush1.bf16.msra.mxu0 %v2561
        %2602 = vmatprep.subr.bf16.mxu0 0
        %2603 = vmatpush1.bf16.msra.mxu0 %v2562
        %2604 = vmatprep.subr.bf16.mxu0 0
        %2605 = vmatpush1.bf16.msra.mxu0 %v2563
        %2606 = vmatprep.subr.bf16.mxu0 0
        %2607 = vmatpush1.bf16.msra.mxu0 %v2564
        %2608 = vmatprep.subr.bf16.mxu0 0
        %2609 = vmatpush1.bf16.msra.mxu0 %v2565
        %2610 = vmatprep.subr.bf16.mxu0 0
        %2611 = vmatpush1.bf16.msra.mxu0 %v2566
        %2612 = vmatprep.subr.bf16.mxu0 0
        %2613 = vmatpush1.bf16.msra.mxu0 %v2567
        %2614 = vmatprep.subr.bf16.mxu0 0
        %2615 = vmatpush1.bf16.msra.mxu0 %v2568
        %2616 = vmatprep.subr.bf16.mxu0 0
        %2617 = vmatpush1.bf16.msra.mxu0 %v2569
        %2618 = vmatprep.mubr.bf16.mxu0 %v1854
        %2619 = vmatmul.mubr.bf16.gmra.mrb[0].mxu0 %v1851
        %v2620 = vpop.f32.mrb[0].mxu0
        %v2621 = vadd.f32 0.0, %v2620
        %v2622 = vpop.f32.mrb[0].mxu0
        %v2623 = vpop.f32.mrb[0].mxu0
        %v2624 = vadd.f32 0.0, %v2623
        %v2625 = vpop.f32.mrb[0].mxu0
        %2626 = vmatprep.mubr.bf16.mxu0 %v1860
        %2627 = vmatmul.mubr.bf16.gmra.mrb[0].mxu0 %v1857
        %v2628 = vpop.f32.mrb[0].mxu0
        %v2629 = vadd.f32 0.0, %v2628
        %v2630 = vpop.f32.mrb[0].mxu0
        %v2631 = vpop.f32.mrb[0].mxu0
        %v2632 = vadd.f32 0.0, %v2631
        %v2633 = vpop.f32.mrb[0].mxu0
        %2634 = vmatprep.mubr.bf16.mxu0 %v1866
        %2635 = vmatmul.mubr.bf16.gmra.mrb[0].mxu0 %v1863
        %v2636 = vpop.f32.mrb[0].mxu0
        %v2637 = vadd.f32 0.0, %v2636
        %v2638 = vpop.f32.mrb[0].mxu0
        %v2639 = vpop.f32.mrb[0].mxu0
        %v2640 = vadd.f32 0.0, %v2639
        %v2641 = vpop.f32.mrb[0].mxu0
        %2642 = vmatprep.mubr.bf16.mxu0 %v1872
        %2643 = vmatmul.mubr.bf16.gmra.mrb[0].mxu0 %v1869
        %v2644 = vpop.f32.mrb[0].mxu0
        %v2645 = vadd.f32 0.0, %v2644
        %v2646 = vpop.f32.mrb[0].mxu0
        %v2647 = vpop.f32.mrb[0].mxu0
        %v2648 = vadd.f32 0.0, %v2647
        %v2649 = vpop.f32.mrb[0].mxu0
        %2650 = vmatprep.mubr.bf16.mxu0 %v1878
        %2651 = vmatmul.mubr.bf16.gmra.mrb[0].mxu0 %v1875
        %v2652 = vpop.f32.mrb[0].mxu0
        %v2653 = vadd.f32 0.0, %v2652
        %v2654 = vpop.f32.mrb[0].mxu0
        %v2655 = vpop.f32.mrb[0].mxu0
        %v2656 = vadd.f32 0.0, %v2655
        %v2657 = vpop.f32.mrb[0].mxu0
        %2658 = vmatprep.mubr.bf16.mxu0 %v1884
        %2659 = vmatmul.mubr.bf16.gmra.mrb[0].mxu0 %v1881
        %v2660 = vpop.f32.mrb[0].mxu0
        %v2661 = vadd.f32 0.0, %v2660
        %v2662 = vpop.f32.mrb[0].mxu0
        %v2663 = vpop.f32.mrb[0].mxu0
        %v2664 = vadd.f32 0.0, %v2663
        %v2665 = vpop.f32.mrb[0].mxu0
        %2666 = vmatprep.mubr.bf16.mxu0 %v1890
        %2667 = vmatmul.mubr.bf16.gmra.mrb[0].mxu0 %v1887
        %v2668 = vpop.f32.mrb[0].mxu0
        %v2669 = vadd.f32 0.0, %v2668
        %v2670 = vpop.f32.mrb[0].mxu0
        %v2671 = vpop.f32.mrb[0].mxu0
        %v2672 = vadd.f32 0.0, %v2671
        %v2673 = vpop.f32.mrb[0].mxu0
        %2674 = vmatprep.mubr.bf16.mxu0 %v1896
        %2675 = vmatmul.mubr.bf16.gmra.mrb[0].mxu0 %v1893
        %v2676 = vpop.f32.mrb[0].mxu0
        %v2677 = vadd.f32 0.0, %v2676
        %v2678 = vpop.f32.mrb[0].mxu0
        %v2679 = vpop.f32.mrb[0].mxu0
        %v2680 = vadd.f32 0.0, %v2679
        %v2681 = vpop.f32.mrb[0].mxu0
        %2682 = vmatprep.mubr.bf16.mxu0 %v1902
        %2683 = vmatmul.mubr.bf16.gmra.mrb[0].mxu0 %v1899
        %v2684 = vpop.f32.mrb[0].mxu0
        %v2685 = vadd.f32 0.0, %v2684
        %v2686 = vpop.f32.mrb[0].mxu0
        %v2687 = vpop.f32.mrb[0].mxu0
        %v2688 = vadd.f32 0.0, %v2687
        %v2689 = vpop.f32.mrb[0].mxu0
        %2690 = vmatprep.mubr.bf16.mxu0 %v1908
        %2691 = vmatmul.mubr.bf16.gmra.mrb[0].mxu0 %v1905
        %v2692 = vpop.f32.mrb[0].mxu0
        %v2693 = vadd.f32 0.0, %v2692
        %v2694 = vpop.f32.mrb[0].mxu0
        %v2695 = vpop.f32.mrb[0].mxu0
        %v2696 = vadd.f32 0.0, %v2695
        %v2697 = vpop.f32.mrb[0].mxu0
        %2698 = vmatprep.mubr.bf16.mxu0 %v1914
        %2699 = vmatmul.mubr.bf16.gmra.mrb[0].mxu0 %v1911
        %v2700 = vpop.f32.mrb[0].mxu0
        %v2701 = vadd.f32 0.0, %v2700
        %v2702 = vpop.f32.mrb[0].mxu0
        %v2703 = vpop.f32.mrb[0].mxu0
        %v2704 = vadd.f32 0.0, %v2703
        %v2705 = vpop.f32.mrb[0].mxu0
        %2706 = vmatprep.mubr.bf16.mxu0 %v1920
        %2707 = vmatmul.mubr.bf16.gmra.mrb[0].mxu0 %v1917
        %v2708 = vpop.f32.mrb[0].mxu0
        %v2709 = vadd.f32 0.0, %v2708
        %v2710 = vpop.f32.mrb[0].mxu0
        %v2711 = vpop.f32.mrb[0].mxu0
        %v2712 = vadd.f32 0.0, %v2711
        %v2713 = vpop.f32.mrb[0].mxu0
        %2714 = vmatprep.mubr.bf16.mxu0 %v1926
        %2715 = vmatmul.mubr.bf16.gmra.mrb[0].mxu0 %v1923
        %v2716 = vpop.f32.mrb[0].mxu0
        %v2717 = vadd.f32 0.0, %v2716
        %v2718 = vpop.f32.mrb[0].mxu0
        %v2719 = vpop.f32.mrb[0].mxu0
        %v2720 = vadd.f32 0.0, %v2719
        %v2721 = vpop.f32.mrb[0].mxu0
        %2722 = vmatprep.mubr.bf16.mxu0 %v1932
        %2723 = vmatmul.mubr.bf16.gmra.mrb[0].mxu0 %v1929
        %v2724 = vpop.f32.mrb[0].mxu0
        %v2725 = vadd.f32 0.0, %v2724
        %v2726 = vpop.f32.mrb[0].mxu0
        %v2727 = vpop.f32.mrb[0].mxu0
        %v2728 = vadd.f32 0.0, %v2727
        %v2729 = vpop.f32.mrb[0].mxu0
        %2730 = vmatprep.mubr.bf16.mxu0 %v1938
        %2731 = vmatmul.mubr.bf16.gmra.mrb[0].mxu0 %v1935
        %v2732 = vpop.f32.mrb[0].mxu0
        %v2733 = vadd.f32 0.0, %v2732
        %v2734 = vpop.f32.mrb[0].mxu0
        %v2735 = vpop.f32.mrb[0].mxu0
        %v2736 = vadd.f32 0.0, %v2735
        %v2737 = vpop.f32.mrb[0].mxu0
        %2738 = vmatprep.mubr.bf16.mxu0 %v1944
        %2739 = vmatmul.mubr.bf16.gmra.mrb[0].mxu0 %v1941
        %v2740 = vpop.f32.mrb[0].mxu0
        %v2741 = vadd.f32 0.0, %v2740
        %v2742 = vpop.f32.mrb[0].mxu0
        %v2743 = vpop.f32.mrb[0].mxu0
        %v2744 = vadd.f32 0.0, %v2743
        %v2745 = vpop.f32.mrb[0].mxu0
        %2746 = vdwg.mxu0
        %v2747 = vadd.f32 %v2426, %v2621
        %v2748 = vadd.f32 %v2427, %v2624
        %v2749 = vadd.f32 %v2428, %v2629
        %v2750 = vadd.f32 %v2429, %v2632
        %v2751 = vadd.f32 %v2430, %v2637
        %v2752 = vadd.f32 %v2431, %v2640
        %v2753 = vadd.f32 %v2432, %v2645
        %v2754 = vadd.f32 %v2433, %v2648
        %v2755 = vadd.f32 %v2434, %v2653
        %v2756 = vadd.f32 %v2435, %v2656
        %v2757 = vadd.f32 %v2436, %v2661
        %v2758 = vadd.f32 %v2437, %v2664
        %v2759 = vadd.f32 %v2438, %v2669
        %v2760 = vadd.f32 %v2439, %v2672
        %v2761 = vadd.f32 %v2440, %v2677
        %v2762 = vadd.f32 %v2441, %v2680
        %v2763 = vadd.f32 %v2442, %v2685
        %v2764 = vadd.f32 %v2443, %v2688
        %v2765 = vadd.f32 %v2444, %v2693
        %v2766 = vadd.f32 %v2445, %v2696
        %v2767 = vadd.f32 %v2446, %v2701
        %v2768 = vadd.f32 %v2447, %v2704
        %v2769 = vadd.f32 %v2448, %v2709
        %v2770 = vadd.f32 %v2449, %v2712
        %v2771 = vadd.f32 %v2450, %v2717
        %v2772 = vadd.f32 %v2451, %v2720
        %v2773 = vadd.f32 %v2452, %v2725
        %v2774 = vadd.f32 %v2453, %v2728
        %v2775 = vadd.f32 %v2454, %v2733
        %v2776 = vadd.f32 %v2455, %v2736
        %v2777 = vadd.f32 %v2456, %v2741
        %v2778 = vadd.f32 %v2457, %v2744
        %vm2779 = vcmask 523264
        %2780 = vst.msk [vmem:[#allocation5] sm:$0xff] %vm2779, %v2747
        %2781 = vst.msk [vmem:[#allocation5 + $0x8] sm:$0xff] %vm2779, %v2748
        %2782 = vst.msk [vmem:[#allocation5 + $0x10] sm:$0xff] %vm2779, %v2749
        %2783 = vst.msk [vmem:[#allocation5 + $0x18] sm:$0xff] %vm2779, %v2750
        %2784 = vst.msk [vmem:[#allocation5 + $0x20] sm:$0xff] %vm2779, %v2751
        %2785 = vst.msk [vmem:[#allocation5 + $0x28] sm:$0xff] %vm2779, %v2752
        %2786 = vst.msk [vmem:[#allocation5 + $0x30] sm:$0xff] %vm2779, %v2753
        %2787 = vst.msk [vmem:[#allocation5 + $0x38] sm:$0xff] %vm2779, %v2754
        %2788 = vst.msk [vmem:[#allocation5 + $0x40] sm:$0xff] %vm2779, %v2755
        %2789 = vst.msk [vmem:[#allocation5 + $0x48] sm:$0xff] %vm2779, %v2756
        %2790 = vst.msk [vmem:[#allocation5 + $0x50] sm:$0xff] %vm2779, %v2757
        %2791 = vst.msk [vmem:[#allocation5 + $0x58] sm:$0xff] %vm2779, %v2758
        %2792 = vst.msk [vmem:[#allocation5 + $0x60] sm:$0xff] %vm2779, %v2759
        %2793 = vst.msk [vmem:[#allocation5 + $0x68] sm:$0xff] %vm2779, %v2760
        %2794 = vst.msk [vmem:[#allocation5 + $0x70] sm:$0xff] %vm2779, %v2761
        %2795 = vst.msk [vmem:[#allocation5 + $0x78] sm:$0xff] %vm2779, %v2762
        %2796 = vst.msk [vmem:[#allocation5 + $0x80] sm:$0xff] %vm2779, %v2763
        %2797 = vst.msk [vmem:[#allocation5 + $0x88] sm:$0xff] %vm2779, %v2764
        %2798 = vst.msk [vmem:[#allocation5 + $0x90] sm:$0xff] %vm2779, %v2765
        %2799 = vst.msk [vmem:[#allocation5 + $0x98] sm:$0xff] %vm2779, %v2766
        %2800 = vst.msk [vmem:[#allocation5 + $0xa0] sm:$0xff] %vm2779, %v2767
        %2801 = vst.msk [vmem:[#allocation5 + $0xa8] sm:$0xff] %vm2779, %v2768
        %2802 = vst.msk [vmem:[#allocation5 + $0xb0] sm:$0xff] %vm2779, %v2769
        %2803 = vst.msk [vmem:[#allocation5 + $0xb8] sm:$0xff] %vm2779, %v2770
        %2804 = vst.msk [vmem:[#allocation5 + $0xc0] sm:$0xff] %vm2779, %v2771
        %2805 = vst.msk [vmem:[#allocation5 + $0xc8] sm:$0xff] %vm2779, %v2772
        %2806 = vst.msk [vmem:[#allocation5 + $0xd0] sm:$0xff] %vm2779, %v2773
        %2807 = vst.msk [vmem:[#allocation5 + $0xd8] sm:$0xff] %vm2779, %v2774
        %2808 = vst.msk [vmem:[#allocation5 + $0xe0] sm:$0xff] %vm2779, %v2775
        %2809 = vst.msk [vmem:[#allocation5 + $0xe8] sm:$0xff] %vm2779, %v2776
        %2810 = vst.msk [vmem:[#allocation5 + $0xf0] sm:$0xff] %vm2779, %v2777
        %2811 = vst.msk [vmem:[#allocation5 + $0xf8] sm:$0xff] %vm2779, %v2778
        %2812 = vst.msk [vmem:[#allocation3] sm:$0xff] %vm2201, %v1465
        %2813 = vst.msk [vmem:[#allocation3 + $0x8] sm:$0xff] %vm2201, %v1466
        %2814 = vst.msk [vmem:[#allocation3 + $0x10] sm:$0xff] %vm2201, %v1467
        %2815 = vst.msk [vmem:[#allocation3 + $0x18] sm:$0xff] %vm2201, %v1468
        %2816 = vst.msk [vmem:[#allocation3 + $0x20] sm:$0xff] %vm2201, %v1469
        %2817 = vst.msk [vmem:[#allocation3 + $0x28] sm:$0xff] %vm2201, %v1470
        %2818 = vst.msk [vmem:[#allocation3 + $0x30] sm:$0xff] %vm2201, %v1471
        %2819 = vst.msk [vmem:[#allocation3 + $0x38] sm:$0xff] %vm2201, %v1472
        %2820 = vst.msk [vmem:[#allocation3 + $0x40] sm:$0xff] %vm2201, %v1473
        %2821 = vst.msk [vmem:[#allocation3 + $0x48] sm:$0xff] %vm2201, %v1474
        %2822 = vst.msk [vmem:[#allocation3 + $0x50] sm:$0xff] %vm2201, %v1475
        %2823 = vst.msk [vmem:[#allocation3 + $0x58] sm:$0xff] %vm2201, %v1476
        %2824 = vst.msk [vmem:[#allocation3 + $0x60] sm:$0xff] %vm2201, %v1477
        %2825 = vst.msk [vmem:[#allocation3 + $0x68] sm:$0xff] %vm2201, %v1478
        %2826 = vst.msk [vmem:[#allocation3 + $0x70] sm:$0xff] %vm2201, %v1479
        %2827 = vst.msk [vmem:[#allocation3 + $0x78] sm:$0xff] %vm2201, %v1480
        %2828 = vst.msk [vmem:[#allocation3 + $0x80] sm:$0xff] %vm2201, %v1481
        %2829 = vst.msk [vmem:[#allocation3 + $0x88] sm:$0xff] %vm2201, %v1482
        %2830 = vst.msk [vmem:[#allocation3 + $0x90] sm:$0xff] %vm2201, %v1483
        %2831 = vst.msk [vmem:[#allocation3 + $0x98] sm:$0xff] %vm2201, %v1484
        %2832 = vst.msk [vmem:[#allocation3 + $0xa0] sm:$0xff] %vm2201, %v1485
        %2833 = vst.msk [vmem:[#allocation3 + $0xa8] sm:$0xff] %vm2201, %v1486
        %2834 = vst.msk [vmem:[#allocation3 + $0xb0] sm:$0xff] %vm2201, %v1487
        %2835 = vst.msk [vmem:[#allocation3 + $0xb8] sm:$0xff] %vm2201, %v1488
        %2836 = vst.msk [vmem:[#allocation3 + $0xc0] sm:$0xff] %vm2201, %v1489
        %2837 = vst.msk [vmem:[#allocation3 + $0xc8] sm:$0xff] %vm2201, %v1490
        %2838 = vst.msk [vmem:[#allocation3 + $0xd0] sm:$0xff] %vm2201, %v1491
        %2839 = vst.msk [vmem:[#allocation3 + $0xd8] sm:$0xff] %vm2201, %v1492
        %2840 = vst.msk [vmem:[#allocation3 + $0xe0] sm:$0xff] %vm2201, %v1493
        %2841 = vst.msk [vmem:[#allocation3 + $0xe8] sm:$0xff] %vm2201, %v1494
        %2842 = vst.msk [vmem:[#allocation3 + $0xf0] sm:$0xff] %vm2201, %v1495
        %2843 = vst.msk [vmem:[#allocation3 + $0xf8] sm:$0xff] %vm2201, %v1496
        // Predicated region
        $region89: #{transformer_forward.5} parent=51 // pred_check
          %p2844 = pneg %p576
        $region90: #{transformer_forward.5} parent=51 // pred_check_branch
          %2846 = sbr.rel (%p2844) target = $region92
        $region91: #{transformer_forward.5} parent=51 // pred_region
          %v2847 = vld [vmem:[#allocation5] sm:$0xff]
          %v2848 = vld [vmem:[#allocation5 + $0x8] sm:$0xff]
          %v2849 = vld [vmem:[#allocation5 + $0x10] sm:$0xff]
          %v2850 = vld [vmem:[#allocation5 + $0x18] sm:$0xff]
          %v2851 = vld [vmem:[#allocation5 + $0x20] sm:$0xff]
          %v2852 = vld [vmem:[#allocation5 + $0x28] sm:$0xff]
          %v2853 = vld [vmem:[#allocation5 + $0x30] sm:$0xff]
          %v2854 = vld [vmem:[#allocation5 + $0x38] sm:$0xff]
          %v2855 = vld [vmem:[#allocation5 + $0x40] sm:$0xff]
          %v2856 = vld [vmem:[#allocation5 + $0x48] sm:$0xff]
          %v2857 = vld [vmem:[#allocation5 + $0x50] sm:$0xff]
          %v2858 = vld [vmem:[#allocation5 + $0x58] sm:$0xff]
          %v2859 = vld [vmem:[#allocation5 + $0x60] sm:$0xff]
          %v2860 = vld [vmem:[#allocation5 + $0x68] sm:$0xff]
          %v2861 = vld [vmem:[#allocation5 + $0x70] sm:$0xff]
          %v2862 = vld [vmem:[#allocation5 + $0x78] sm:$0xff]
          %v2863 = vld [vmem:[#allocation5 + $0x80] sm:$0xff]
          %v2864 = vld [vmem:[#allocation5 + $0x88] sm:$0xff]
          %v2865 = vld [vmem:[#allocation5 + $0x90] sm:$0xff]
          %v2866 = vld [vmem:[#allocation5 + $0x98] sm:$0xff]
          %v2867 = vld [vmem:[#allocation5 + $0xa0] sm:$0xff]
          %v2868 = vld [vmem:[#allocation5 + $0xa8] sm:$0xff]
          %v2869 = vld [vmem:[#allocation5 + $0xb0] sm:$0xff]
          %v2870 = vld [vmem:[#allocation5 + $0xb8] sm:$0xff]
          %v2871 = vld [vmem:[#allocation5 + $0xc0] sm:$0xff]
          %v2872 = vld [vmem:[#allocation5 + $0xc8] sm:$0xff]
          %v2873 = vld [vmem:[#allocation5 + $0xd0] sm:$0xff]
          %v2874 = vld [vmem:[#allocation5 + $0xd8] sm:$0xff]
          %v2875 = vld [vmem:[#allocation5 + $0xe0] sm:$0xff]
          %v2876 = vld [vmem:[#allocation5 + $0xe8] sm:$0xff]
          %v2877 = vld [vmem:[#allocation5 + $0xf0] sm:$0xff]
          %v2878 = vld [vmem:[#allocation5 + $0xf8] sm:$0xff]
          %v2879 = vld [vmem:[#allocation4] sm:$0xff]
          %v2880 = vld [vmem:[#allocation4 + $0x8] sm:$0xff]
          %v2881 = vld [vmem:[#allocation4 + $0x10] sm:$0xff]
          %v2882 = vld [vmem:[#allocation4 + $0x18] sm:$0xff]
          %v2883 = vld [vmem:[#allocation4 + $0x20] sm:$0xff]
          %v2884 = vld [vmem:[#allocation4 + $0x28] sm:$0xff]
          %v2885 = vld [vmem:[#allocation4 + $0x30] sm:$0xff]
          %v2886 = vld [vmem:[#allocation4 + $0x38] sm:$0xff]
          %v2887 = vld [vmem:[#allocation4 + $0x40] sm:$0xff]
          %v2888 = vld [vmem:[#allocation4 + $0x48] sm:$0xff]
          %v2889 = vld [vmem:[#allocation4 + $0x50] sm:$0xff]
          %v2890 = vld [vmem:[#allocation4 + $0x58] sm:$0xff]
          %v2891 = vld [vmem:[#allocation4 + $0x60] sm:$0xff]
          %v2892 = vld [vmem:[#allocation4 + $0x68] sm:$0xff]
          %v2893 = vld [vmem:[#allocation4 + $0x70] sm:$0xff]
          %v2894 = vld [vmem:[#allocation4 + $0x78] sm:$0xff]
          %v2895 = vld [vmem:[#allocation4 + $0x80] sm:$0xff]
          %v2896 = vld [vmem:[#allocation4 + $0x88] sm:$0xff]
          %v2897 = vld [vmem:[#allocation4 + $0x90] sm:$0xff]
          %v2898 = vld [vmem:[#allocation4 + $0x98] sm:$0xff]
          %v2899 = vld [vmem:[#allocation4 + $0xa0] sm:$0xff]
          %v2900 = vld [vmem:[#allocation4 + $0xa8] sm:$0xff]
          %v2901 = vld [vmem:[#allocation4 + $0xb0] sm:$0xff]
          %v2902 = vld [vmem:[#allocation4 + $0xb8] sm:$0xff]
          %v2903 = vld [vmem:[#allocation4 + $0xc0] sm:$0xff]
          %v2904 = vld [vmem:[#allocation4 + $0xc8] sm:$0xff]
          %v2905 = vld [vmem:[#allocation4 + $0xd0] sm:$0xff]
          %v2906 = vld [vmem:[#allocation4 + $0xd8] sm:$0xff]
          %v2907 = vld [vmem:[#allocation4 + $0xe0] sm:$0xff]
          %v2908 = vld [vmem:[#allocation4 + $0xe8] sm:$0xff]
          %v2909 = vld [vmem:[#allocation4 + $0xf0] sm:$0xff]
          %v2910 = vld [vmem:[#allocation4 + $0xf8] sm:$0xff]
          %2912 = vset.pattern.permute.xlu0 0
          %2913 = vperm.xlu0 %2912, %v2879
          %v2914 = vpop.permute.xlu0 %2913
          %2917 = vset.pattern.permute.xlu0 0
          %2918 = vperm.xlu0 %2917, %v2880
          %v2919 = vpop.permute.xlu0 %2918
          %2922 = vset.pattern.permute.xlu0 0
          %2923 = vperm.xlu0 %2922, %v2881
          %v2924 = vpop.permute.xlu0 %2923
          %2927 = vset.pattern.permute.xlu0 0
          %2928 = vperm.xlu0 %2927, %v2882
          %v2929 = vpop.permute.xlu0 %2928
          %2932 = vset.pattern.permute.xlu0 0
          %2933 = vperm.xlu0 %2932, %v2883
          %v2934 = vpop.permute.xlu0 %2933
          %2937 = vset.pattern.permute.xlu0 0
          %2938 = vperm.xlu0 %2937, %v2884
          %v2939 = vpop.permute.xlu0 %2938
          %2942 = vset.pattern.permute.xlu0 0
          %2943 = vperm.xlu0 %2942, %v2885
          %v2944 = vpop.permute.xlu0 %2943
          %2947 = vset.pattern.permute.xlu0 0
          %2948 = vperm.xlu0 %2947, %v2886
          %v2949 = vpop.permute.xlu0 %2948
          %2952 = vset.pattern.permute.xlu0 0
          %2953 = vperm.xlu0 %2952, %v2887
          %v2954 = vpop.permute.xlu0 %2953
          %2957 = vset.pattern.permute.xlu0 0
          %2958 = vperm.xlu0 %2957, %v2888
          %v2959 = vpop.permute.xlu0 %2958
          %2962 = vset.pattern.permute.xlu0 0
          %2963 = vperm.xlu0 %2962, %v2889
          %v2964 = vpop.permute.xlu0 %2963
          %2967 = vset.pattern.permute.xlu0 0
          %2968 = vperm.xlu0 %2967, %v2890
          %v2969 = vpop.permute.xlu0 %2968
          %2972 = vset.pattern.permute.xlu0 0
          %2973 = vperm.xlu0 %2972, %v2891
          %v2974 = vpop.permute.xlu0 %2973
          %2977 = vset.pattern.permute.xlu0 0
          %2978 = vperm.xlu0 %2977, %v2892
          %v2979 = vpop.permute.xlu0 %2978
          %2982 = vset.pattern.permute.xlu0 0
          %2983 = vperm.xlu0 %2982, %v2893
          %v2984 = vpop.permute.xlu0 %2983
          %2987 = vset.pattern.permute.xlu0 0
          %2988 = vperm.xlu0 %2987, %v2894
          %v2989 = vpop.permute.xlu0 %2988
          %2992 = vset.pattern.permute.xlu0 0
          %2993 = vperm.xlu0 %2992, %v2895
          %v2994 = vpop.permute.xlu0 %2993
          %2997 = vset.pattern.permute.xlu0 0
          %2998 = vperm.xlu0 %2997, %v2896
          %v2999 = vpop.permute.xlu0 %2998
          %3002 = vset.pattern.permute.xlu0 0
          %3003 = vperm.xlu0 %3002, %v2897
          %v3004 = vpop.permute.xlu0 %3003
          %3007 = vset.pattern.permute.xlu0 0
          %3008 = vperm.xlu0 %3007, %v2898
          %v3009 = vpop.permute.xlu0 %3008
          %3012 = vset.pattern.permute.xlu0 0
          %3013 = vperm.xlu0 %3012, %v2899
          %v3014 = vpop.permute.xlu0 %3013
          %3017 = vset.pattern.permute.xlu0 0
          %3018 = vperm.xlu0 %3017, %v2900
          %v3019 = vpop.permute.xlu0 %3018
          %3022 = vset.pattern.permute.xlu0 0
          %3023 = vperm.xlu0 %3022, %v2901
          %v3024 = vpop.permute.xlu0 %3023
          %3027 = vset.pattern.permute.xlu0 0
          %3028 = vperm.xlu0 %3027, %v2902
          %v3029 = vpop.permute.xlu0 %3028
          %3032 = vset.pattern.permute.xlu0 0
          %3033 = vperm.xlu0 %3032, %v2903
          %v3034 = vpop.permute.xlu0 %3033
          %3037 = vset.pattern.permute.xlu0 0
          %3038 = vperm.xlu0 %3037, %v2904
          %v3039 = vpop.permute.xlu0 %3038
          %3042 = vset.pattern.permute.xlu0 0
          %3043 = vperm.xlu0 %3042, %v2905
          %v3044 = vpop.permute.xlu0 %3043
          %3047 = vset.pattern.permute.xlu0 0
          %3048 = vperm.xlu0 %3047, %v2906
          %v3049 = vpop.permute.xlu0 %3048
          %3052 = vset.pattern.permute.xlu0 0
          %3053 = vperm.xlu0 %3052, %v2907
          %v3054 = vpop.permute.xlu0 %3053
          %3057 = vset.pattern.permute.xlu0 0
          %3058 = vperm.xlu0 %3057, %v2908
          %v3059 = vpop.permute.xlu0 %3058
          %3062 = vset.pattern.permute.xlu0 0
          %3063 = vperm.xlu0 %3062, %v2909
          %v3064 = vpop.permute.xlu0 %3063
          %3067 = vset.pattern.permute.xlu0 0
          %3068 = vperm.xlu0 %3067, %v2910
          %v3069 = vpop.permute.xlu0 %3068
          %v3071 = vrcp.pop %v2914
          %v3072 = vmul.f32 %v2847, %v3071
          %v3073 = vrcp.pop %v2919
          %v3074 = vmul.f32 %v2848, %v3073
          %v3075 = vrcp.pop %v2924
          %v3076 = vmul.f32 %v2849, %v3075
          %v3077 = vrcp.pop %v2929
          %v3078 = vmul.f32 %v2850, %v3077
          %v3079 = vrcp.pop %v2934
          %v3080 = vmul.f32 %v2851, %v3079
          %v3081 = vrcp.pop %v2939
          %v3082 = vmul.f32 %v2852, %v3081
          %v3083 = vrcp.pop %v2944
          %v3084 = vmul.f32 %v2853, %v3083
          %v3085 = vrcp.pop %v2949
          %v3086 = vmul.f32 %v2854, %v3085
          %v3087 = vrcp.pop %v2954
          %v3088 = vmul.f32 %v2855, %v3087
          %v3089 = vrcp.pop %v2959
          %v3090 = vmul.f32 %v2856, %v3089
          %v3091 = vrcp.pop %v2964
          %v3092 = vmul.f32 %v2857, %v3091
          %v3093 = vrcp.pop %v2969
          %v3094 = vmul.f32 %v2858, %v3093
          %v3095 = vrcp.pop %v2974
          %v3096 = vmul.f32 %v2859, %v3095
          %v3097 = vrcp.pop %v2979
          %v3098 = vmul.f32 %v2860, %v3097
          %v3099 = vrcp.pop %v2984
          %v3100 = vmul.f32 %v2861, %v3099
          %v3101 = vrcp.pop %v2989
          %v3102 = vmul.f32 %v2862, %v3101
          %v3103 = vrcp.pop %v2994
          %v3104 = vmul.f32 %v2863, %v3103
          %v3105 = vrcp.pop %v2999
          %v3106 = vmul.f32 %v2864, %v3105
          %v3107 = vrcp.pop %v3004
          %v3108 = vmul.f32 %v2865, %v3107
          %v3109 = vrcp.pop %v3009
          %v3110 = vmul.f32 %v2866, %v3109
          %v3111 = vrcp.pop %v3014
          %v3112 = vmul.f32 %v2867, %v3111
          %v3113 = vrcp.pop %v3019
          %v3114 = vmul.f32 %v2868, %v3113
          %v3115 = vrcp.pop %v3024
          %v3116 = vmul.f32 %v2869, %v3115
          %v3117 = vrcp.pop %v3029
          %v3118 = vmul.f32 %v2870, %v3117
          %v3119 = vrcp.pop %v3034
          %v3120 = vmul.f32 %v2871, %v3119
          %v3121 = vrcp.pop %v3039
          %v3122 = vmul.f32 %v2872, %v3121
          %v3123 = vrcp.pop %v3044
          %v3124 = vmul.f32 %v2873, %v3123
          %v3125 = vrcp.pop %v3049
          %v3126 = vmul.f32 %v2874, %v3125
          %v3127 = vrcp.pop %v3054
          %v3128 = vmul.f32 %v2875, %v3127
          %v3129 = vrcp.pop %v3059
          %v3130 = vmul.f32 %v2876, %v3129
          %v3131 = vrcp.pop %v3064
          %v3132 = vmul.f32 %v2877, %v3131
          %v3133 = vrcp.pop %v3069
          %v3134 = vmul.f32 %v2878, %v3133
          %v3135 = vmul.f32 %v3072, %v3072
          %v3136 = vmul.f32 %v3074, %v3074
          %v3137 = vmul.f32 %v3076, %v3076
          %v3138 = vmul.f32 %v3078, %v3078
          %v3139 = vmul.f32 %v3080, %v3080
          %v3140 = vmul.f32 %v3082, %v3082
          %v3141 = vmul.f32 %v3084, %v3084
          %v3142 = vmul.f32 %v3086, %v3086
          %v3143 = vmul.f32 %v3088, %v3088
          %v3144 = vmul.f32 %v3090, %v3090
          %v3145 = vmul.f32 %v3092, %v3092
          %v3146 = vmul.f32 %v3094, %v3094
          %v3147 = vmul.f32 %v3096, %v3096
          %v3148 = vmul.f32 %v3098, %v3098
          %v3149 = vmul.f32 %v3100, %v3100
          %v3150 = vmul.f32 %v3102, %v3102
          %v3151 = vmul.f32 %v3104, %v3104
          %v3152 = vmul.f32 %v3106, %v3106
          %v3153 = vmul.f32 %v3108, %v3108
          %v3154 = vmul.f32 %v3110, %v3110
          %v3155 = vmul.f32 %v3112, %v3112
          %v3156 = vmul.f32 %v3114, %v3114
          %v3157 = vmul.f32 %v3116, %v3116
          %v3158 = vmul.f32 %v3118, %v3118
          %v3159 = vmul.f32 %v3120, %v3120
          %v3160 = vmul.f32 %v3122, %v3122
          %v3161 = vmul.f32 %v3124, %v3124
          %v3162 = vmul.f32 %v3126, %v3126
          %v3163 = vmul.f32 %v3128, %v3128
          %v3164 = vmul.f32 %v3130, %v3130
          %v3165 = vmul.f32 %v3132, %v3132
          %v3166 = vmul.f32 %v3134, %v3134
          %3199 = vrot.lane.b32.xlu0 %v3135, 32
          %v3200 = vpop.permute.xlu0 %3199
          %3201 = vrot.lane.b32.xlu0 %v3136, 32
          %v3202 = vpop.permute.xlu0 %3201
          %3203 = vrot.lane.b32.xlu0 %v3137, 32
          %v3204 = vpop.permute.xlu0 %3203
          %3205 = vrot.lane.b32.xlu0 %v3138, 32
          %v3206 = vpop.permute.xlu0 %3205
          %3207 = vrot.lane.b32.xlu0 %v3139, 32
          %v3208 = vpop.permute.xlu0 %3207
          %3209 = vrot.lane.b32.xlu0 %v3140, 32
          %v3210 = vpop.permute.xlu0 %3209
          %3211 = vrot.lane.b32.xlu0 %v3141, 32
          %v3212 = vpop.permute.xlu0 %3211
          %3213 = vrot.lane.b32.xlu0 %v3142, 32
          %v3214 = vpop.permute.xlu0 %3213
          %3215 = vrot.lane.b32.xlu0 %v3143, 32
          %v3216 = vpop.permute.xlu0 %3215
          %3217 = vrot.lane.b32.xlu0 %v3144, 32
          %v3218 = vpop.permute.xlu0 %3217
          %3219 = vrot.lane.b32.xlu0 %v3145, 32
          %v3220 = vpop.permute.xlu0 %3219
          %3221 = vrot.lane.b32.xlu0 %v3146, 32
          %v3222 = vpop.permute.xlu0 %3221
          %3223 = vrot.lane.b32.xlu0 %v3147, 32
          %v3224 = vpop.permute.xlu0 %3223
          %3225 = vrot.lane.b32.xlu0 %v3148, 32
          %v3226 = vpop.permute.xlu0 %3225
          %3227 = vrot.lane.b32.xlu0 %v3149, 32
          %v3228 = vpop.permute.xlu0 %3227
          %3229 = vrot.lane.b32.xlu0 %v3150, 32
          %v3230 = vpop.permute.xlu0 %3229
          %3231 = vrot.lane.b32.xlu0 %v3151, 32
          %v3232 = vpop.permute.xlu0 %3231
          %3233 = vrot.lane.b32.xlu0 %v3152, 32
          %v3234 = vpop.permute.xlu0 %3233
          %3235 = vrot.lane.b32.xlu0 %v3153, 32
          %v3236 = vpop.permute.xlu0 %3235
          %3237 = vrot.lane.b32.xlu0 %v3154, 32
          %v3238 = vpop.permute.xlu0 %3237
          %3239 = vrot.lane.b32.xlu0 %v3155, 32
          %v3240 = vpop.permute.xlu0 %3239
          %3241 = vrot.lane.b32.xlu0 %v3156, 32
          %v3242 = vpop.permute.xlu0 %3241
          %3243 = vrot.lane.b32.xlu0 %v3157, 32
          %v3244 = vpop.permute.xlu0 %3243
          %3245 = vrot.lane.b32.xlu0 %v3158, 32
          %v3246 = vpop.permute.xlu0 %3245
          %3247 = vrot.lane.b32.xlu0 %v3159, 32
          %v3248 = vpop.permute.xlu0 %3247
          %3249 = vrot.lane.b32.xlu0 %v3160, 32
          %v3250 = vpop.permute.xlu0 %3249
          %3251 = vrot.lane.b32.xlu0 %v3161, 32
          %v3252 = vpop.permute.xlu0 %3251
          %3253 = vrot.lane.b32.xlu0 %v3162, 32
          %v3254 = vpop.permute.xlu0 %3253
          %3255 = vrot.lane.b32.xlu0 %v3163, 32
          %v3256 = vpop.permute.xlu0 %3255
          %3257 = vrot.lane.b32.xlu0 %v3164, 32
          %v3258 = vpop.permute.xlu0 %3257
          %3259 = vrot.lane.b32.xlu0 %v3165, 32
          %v3260 = vpop.permute.xlu0 %3259
          %3261 = vrot.lane.b32.xlu0 %v3166, 32
          %v3262 = vpop.permute.xlu0 %3261
          %v3295 = vsub.f32 %v3072, %v3200
          %v3296 = vsub.f32 %v3074, %v3202
          %v3297 = vsub.f32 %v3076, %v3204
          %v3298 = vsub.f32 %v3078, %v3206
          %v3299 = vsub.f32 %v3080, %v3208
          %v3300 = vsub.f32 %v3082, %v3210
          %v3301 = vsub.f32 %v3084, %v3212
          %v3302 = vsub.f32 %v3086, %v3214
          %v3303 = vsub.f32 %v3088, %v3216
          %v3304 = vsub.f32 %v3090, %v3218
          %v3305 = vsub.f32 %v3092, %v3220
          %v3306 = vsub.f32 %v3094, %v3222
          %v3307 = vsub.f32 %v3096, %v3224
          %v3308 = vsub.f32 %v3098, %v3226
          %v3309 = vsub.f32 %v3100, %v3228
          %v3310 = vsub.f32 %v3102, %v3230
          %v3311 = vsub.f32 %v3104, %v3232
          %v3312 = vsub.f32 %v3106, %v3234
          %v3313 = vsub.f32 %v3108, %v3236
          %v3314 = vsub.f32 %v3110, %v3238
          %v3315 = vsub.f32 %v3112, %v3240
          %v3316 = vsub.f32 %v3114, %v3242
          %v3317 = vsub.f32 %v3116, %v3244
          %v3318 = vsub.f32 %v3118, %v3246
          %v3319 = vsub.f32 %v3120, %v3248
          %v3320 = vsub.f32 %v3122, %v3250
          %v3321 = vsub.f32 %v3124, %v3252
          %v3322 = vsub.f32 %v3126, %v3254
          %v3323 = vsub.f32 %v3128, %v3256
          %v3324 = vsub.f32 %v3130, %v3258
          %v3325 = vsub.f32 %v3132, %v3260
          %v3326 = vsub.f32 %v3134, %v3262
          %v3327 = vmax.f32 %v3295, 0.0
          %v3328 = vmax.f32 %v3296, 0.0
          %v3329 = vmax.f32 %v3297, 0.0
          %v3330 = vmax.f32 %v3298, 0.0
          %v3331 = vmax.f32 %v3299, 0.0
          %v3332 = vmax.f32 %v3300, 0.0
          %v3333 = vmax.f32 %v3301, 0.0
          %v3334 = vmax.f32 %v3302, 0.0
          %v3335 = vmax.f32 %v3303, 0.0
          %v3336 = vmax.f32 %v3304, 0.0
          %v3337 = vmax.f32 %v3305, 0.0
          %v3338 = vmax.f32 %v3306, 0.0
          %v3339 = vmax.f32 %v3307, 0.0
          %v3340 = vmax.f32 %v3308, 0.0
          %v3341 = vmax.f32 %v3309, 0.0
          %v3342 = vmax.f32 %v3310, 0.0
          %v3343 = vmax.f32 %v3311, 0.0
          %v3344 = vmax.f32 %v3312, 0.0
          %v3345 = vmax.f32 %v3313, 0.0
          %v3346 = vmax.f32 %v3314, 0.0
          %v3347 = vmax.f32 %v3315, 0.0
          %v3348 = vmax.f32 %v3316, 0.0
          %v3349 = vmax.f32 %v3317, 0.0
          %v3350 = vmax.f32 %v3318, 0.0
          %v3351 = vmax.f32 %v3319, 0.0
          %v3352 = vmax.f32 %v3320, 0.0
          %v3353 = vmax.f32 %v3321, 0.0
          %v3354 = vmax.f32 %v3322, 0.0
          %v3355 = vmax.f32 %v3323, 0.0
          %v3356 = vmax.f32 %v3324, 0.0
          %v3357 = vmax.f32 %v3325, 0.0
          %v3358 = vmax.f32 %v3326, 0.0
          %v3359 = vrsqrt.pop %v3327
          %v3360 = vmul.f32 %v3327, %v3359
          %vm3361 = vcmp.eq.f32.partialorder %v3327, inf
          %v3362 = vsel %vm3361, %v3327, %v3360
          %vm3363 = vcmp.eq.f32.partialorder %v3327, 0.0
          %v3364 = vand.u32 %v3327, 2147483648
          %v3365 = vsel %vm3363, %v3364, %v3362
          %v3366 = vrsqrt.pop %v3328
          %v3367 = vmul.f32 %v3328, %v3366
          %vm3368 = vcmp.eq.f32.partialorder %v3328, inf
          %v3369 = vsel %vm3368, %v3328, %v3367
          %vm3370 = vcmp.eq.f32.partialorder %v3328, 0.0
          %v3371 = vand.u32 %v3328, 2147483648
          %v3372 = vsel %vm3370, %v3371, %v3369
          %v3373 = vrsqrt.pop %v3329
          %v3374 = vmul.f32 %v3329, %v3373
          %vm3375 = vcmp.eq.f32.partialorder %v3329, inf
          %v3376 = vsel %vm3375, %v3329, %v3374
          %vm3377 = vcmp.eq.f32.partialorder %v3329, 0.0
          %v3378 = vand.u32 %v3329, 2147483648
          %v3379 = vsel %vm3377, %v3378, %v3376
          %v3380 = vrsqrt.pop %v3330
          %v3381 = vmul.f32 %v3330, %v3380
          %vm3382 = vcmp.eq.f32.partialorder %v3330, inf
          %v3383 = vsel %vm3382, %v3330, %v3381
          %vm3384 = vcmp.eq.f32.partialorder %v3330, 0.0
          %v3385 = vand.u32 %v3330, 2147483648
          %v3386 = vsel %vm3384, %v3385, %v3383
          %v3387 = vrsqrt.pop %v3331
          %v3388 = vmul.f32 %v3331, %v3387
          %vm3389 = vcmp.eq.f32.partialorder %v3331, inf
          %v3390 = vsel %vm3389, %v3331, %v3388
          %vm3391 = vcmp.eq.f32.partialorder %v3331, 0.0
          %v3392 = vand.u32 %v3331, 2147483648
          %v3393 = vsel %vm3391, %v3392, %v3390
          %v3394 = vrsqrt.pop %v3332
          %v3395 = vmul.f32 %v3332, %v3394
          %vm3396 = vcmp.eq.f32.partialorder %v3332, inf
          %v3397 = vsel %vm3396, %v3332, %v3395
          %vm3398 = vcmp.eq.f32.partialorder %v3332, 0.0
          %v3399 = vand.u32 %v3332, 2147483648
          %v3400 = vsel %vm3398, %v3399, %v3397
          %v3401 = vrsqrt.pop %v3333
          %v3402 = vmul.f32 %v3333, %v3401
          %vm3403 = vcmp.eq.f32.partialorder %v3333, inf
          %v3404 = vsel %vm3403, %v3333, %v3402
          %vm3405 = vcmp.eq.f32.partialorder %v3333, 0.0
          %v3406 = vand.u32 %v3333, 2147483648
          %v3407 = vsel %vm3405, %v3406, %v3404
          %v3408 = vrsqrt.pop %v3334
          %v3409 = vmul.f32 %v3334, %v3408
          %vm3410 = vcmp.eq.f32.partialorder %v3334, inf
          %v3411 = vsel %vm3410, %v3334, %v3409
          %vm3412 = vcmp.eq.f32.partialorder %v3334, 0.0
          %v3413 = vand.u32 %v3334, 2147483648
          %v3414 = vsel %vm3412, %v3413, %v3411
          %v3415 = vrsqrt.pop %v3335
          %v3416 = vmul.f32 %v3335, %v3415
          %vm3417 = vcmp.eq.f32.partialorder %v3335, inf
          %v3418 = vsel %vm3417, %v3335, %v3416
          %vm3419 = vcmp.eq.f32.partialorder %v3335, 0.0
          %v3420 = vand.u32 %v3335, 2147483648
          %v3421 = vsel %vm3419, %v3420, %v3418
          %v3422 = vrsqrt.pop %v3336
          %v3423 = vmul.f32 %v3336, %v3422
          %vm3424 = vcmp.eq.f32.partialorder %v3336, inf
          %v3425 = vsel %vm3424, %v3336, %v3423
          %vm3426 = vcmp.eq.f32.partialorder %v3336, 0.0
          %v3427 = vand.u32 %v3336, 2147483648
          %v3428 = vsel %vm3426, %v3427, %v3425
          %v3429 = vrsqrt.pop %v3337
          %v3430 = vmul.f32 %v3337, %v3429
          %vm3431 = vcmp.eq.f32.partialorder %v3337, inf
          %v3432 = vsel %vm3431, %v3337, %v3430
          %vm3433 = vcmp.eq.f32.partialorder %v3337, 0.0
          %v3434 = vand.u32 %v3337, 2147483648
          %v3435 = vsel %vm3433, %v3434, %v3432
          %v3436 = vrsqrt.pop %v3338
          %v3437 = vmul.f32 %v3338, %v3436
          %vm3438 = vcmp.eq.f32.partialorder %v3338, inf
          %v3439 = vsel %vm3438, %v3338, %v3437
          %vm3440 = vcmp.eq.f32.partialorder %v3338, 0.0
          %v3441 = vand.u32 %v3338, 2147483648
          %v3442 = vsel %vm3440, %v3441, %v3439
          %v3443 = vrsqrt.pop %v3339
          %v3444 = vmul.f32 %v3339, %v3443
          %vm3445 = vcmp.eq.f32.partialorder %v3339, inf
          %v3446 = vsel %vm3445, %v3339, %v3444
          %vm3447 = vcmp.eq.f32.partialorder %v3339, 0.0
          %v3448 = vand.u32 %v3339, 2147483648
          %v3449 = vsel %vm3447, %v3448, %v3446
          %v3450 = vrsqrt.pop %v3340
          %v3451 = vmul.f32 %v3340, %v3450
          %vm3452 = vcmp.eq.f32.partialorder %v3340, inf
          %v3453 = vsel %vm3452, %v3340, %v3451
          %vm3454 = vcmp.eq.f32.partialorder %v3340, 0.0
          %v3455 = vand.u32 %v3340, 2147483648
          %v3456 = vsel %vm3454, %v3455, %v3453
          %v3457 = vrsqrt.pop %v3341
          %v3458 = vmul.f32 %v3341, %v3457
          %vm3459 = vcmp.eq.f32.partialorder %v3341, inf
          %v3460 = vsel %vm3459, %v3341, %v3458
          %vm3461 = vcmp.eq.f32.partialorder %v3341, 0.0
          %v3462 = vand.u32 %v3341, 2147483648
          %v3463 = vsel %vm3461, %v3462, %v3460
          %v3464 = vrsqrt.pop %v3342
          %v3465 = vmul.f32 %v3342, %v3464
          %vm3466 = vcmp.eq.f32.partialorder %v3342, inf
          %v3467 = vsel %vm3466, %v3342, %v3465
          %vm3468 = vcmp.eq.f32.partialorder %v3342, 0.0
          %v3469 = vand.u32 %v3342, 2147483648
          %v3470 = vsel %vm3468, %v3469, %v3467
          %v3471 = vrsqrt.pop %v3343
          %v3472 = vmul.f32 %v3343, %v3471
          %vm3473 = vcmp.eq.f32.partialorder %v3343, inf
          %v3474 = vsel %vm3473, %v3343, %v3472
          %vm3475 = vcmp.eq.f32.partialorder %v3343, 0.0
          %v3476 = vand.u32 %v3343, 2147483648
          %v3477 = vsel %vm3475, %v3476, %v3474
          %v3478 = vrsqrt.pop %v3344
          %v3479 = vmul.f32 %v3344, %v3478
          %vm3480 = vcmp.eq.f32.partialorder %v3344, inf
          %v3481 = vsel %vm3480, %v3344, %v3479
          %vm3482 = vcmp.eq.f32.partialorder %v3344, 0.0
          %v3483 = vand.u32 %v3344, 2147483648
          %v3484 = vsel %vm3482, %v3483, %v3481
          %v3485 = vrsqrt.pop %v3345
          %v3486 = vmul.f32 %v3345, %v3485
          %vm3487 = vcmp.eq.f32.partialorder %v3345, inf
          %v3488 = vsel %vm3487, %v3345, %v3486
          %vm3489 = vcmp.eq.f32.partialorder %v3345, 0.0
          %v3490 = vand.u32 %v3345, 2147483648
          %v3491 = vsel %vm3489, %v3490, %v3488
          %v3492 = vrsqrt.pop %v3346
          %v3493 = vmul.f32 %v3346, %v3492
          %vm3494 = vcmp.eq.f32.partialorder %v3346, inf
          %v3495 = vsel %vm3494, %v3346, %v3493
          %vm3496 = vcmp.eq.f32.partialorder %v3346, 0.0
          %v3497 = vand.u32 %v3346, 2147483648
          %v3498 = vsel %vm3496, %v3497, %v3495
          %v3499 = vrsqrt.pop %v3347
          %v3500 = vmul.f32 %v3347, %v3499
          %vm3501 = vcmp.eq.f32.partialorder %v3347, inf
          %v3502 = vsel %vm3501, %v3347, %v3500
          %vm3503 = vcmp.eq.f32.partialorder %v3347, 0.0
          %v3504 = vand.u32 %v3347, 2147483648
          %v3505 = vsel %vm3503, %v3504, %v3502
          %v3506 = vrsqrt.pop %v3348
          %v3507 = vmul.f32 %v3348, %v3506
          %vm3508 = vcmp.eq.f32.partialorder %v3348, inf
          %v3509 = vsel %vm3508, %v3348, %v3507
          %vm3510 = vcmp.eq.f32.partialorder %v3348, 0.0
          %v3511 = vand.u32 %v3348, 2147483648
          %v3512 = vsel %vm3510, %v3511, %v3509
          %v3513 = vrsqrt.pop %v3349
          %v3514 = vmul.f32 %v3349, %v3513
          %vm3515 = vcmp.eq.f32.partialorder %v3349, inf
          %v3516 = vsel %vm3515, %v3349, %v3514
          %vm3517 = vcmp.eq.f32.partialorder %v3349, 0.0
          %v3518 = vand.u32 %v3349, 2147483648
          %v3519 = vsel %vm3517, %v3518, %v3516
          %v3520 = vrsqrt.pop %v3350
          %v3521 = vmul.f32 %v3350, %v3520
          %vm3522 = vcmp.eq.f32.partialorder %v3350, inf
          %v3523 = vsel %vm3522, %v3350, %v3521
          %vm3524 = vcmp.eq.f32.partialorder %v3350, 0.0
          %v3525 = vand.u32 %v3350, 2147483648
          %v3526 = vsel %vm3524, %v3525, %v3523
          %v3527 = vrsqrt.pop %v3351
          %v3528 = vmul.f32 %v3351, %v3527
          %vm3529 = vcmp.eq.f32.partialorder %v3351, inf
          %v3530 = vsel %vm3529, %v3351, %v3528
          %vm3531 = vcmp.eq.f32.partialorder %v3351, 0.0
          %v3532 = vand.u32 %v3351, 2147483648
          %v3533 = vsel %vm3531, %v3532, %v3530
          %v3534 = vrsqrt.pop %v3352
          %v3535 = vmul.f32 %v3352, %v3534
          %vm3536 = vcmp.eq.f32.partialorder %v3352, inf
          %v3537 = vsel %vm3536, %v3352, %v3535
          %vm3538 = vcmp.eq.f32.partialorder %v3352, 0.0
          %v3539 = vand.u32 %v3352, 2147483648
          %v3540 = vsel %vm3538, %v3539, %v3537
          %v3541 = vrsqrt.pop %v3353
          %v3542 = vmul.f32 %v3353, %v3541
          %vm3543 = vcmp.eq.f32.partialorder %v3353, inf
          %v3544 = vsel %vm3543, %v3353, %v3542
          %vm3545 = vcmp.eq.f32.partialorder %v3353, 0.0
          %v3546 = vand.u32 %v3353, 2147483648
          %v3547 = vsel %vm3545, %v3546, %v3544
          %v3548 = vrsqrt.pop %v3354
          %v3549 = vmul.f32 %v3354, %v3548
          %vm3550 = vcmp.eq.f32.partialorder %v3354, inf
          %v3551 = vsel %vm3550, %v3354, %v3549
          %vm3552 = vcmp.eq.f32.partialorder %v3354, 0.0
          %v3553 = vand.u32 %v3354, 2147483648
          %v3554 = vsel %vm3552, %v3553, %v3551
          %v3555 = vrsqrt.pop %v3355
          %v3556 = vmul.f32 %v3355, %v3555
          %vm3557 = vcmp.eq.f32.partialorder %v3355, inf
          %v3558 = vsel %vm3557, %v3355, %v3556
          %vm3559 = vcmp.eq.f32.partialorder %v3355, 0.0
          %v3560 = vand.u32 %v3355, 2147483648
          %v3561 = vsel %vm3559, %v3560, %v3558
          %v3562 = vrsqrt.pop %v3356
          %v3563 = vmul.f32 %v3356, %v3562
          %vm3564 = vcmp.eq.f32.partialorder %v3356, inf
          %v3565 = vsel %vm3564, %v3356, %v3563
          %vm3566 = vcmp.eq.f32.partialorder %v3356, 0.0
          %v3567 = vand.u32 %v3356, 2147483648
          %v3568 = vsel %vm3566, %v3567, %v3565
          %v3569 = vrsqrt.pop %v3357
          %v3570 = vmul.f32 %v3357, %v3569
          %vm3571 = vcmp.eq.f32.partialorder %v3357, inf
          %v3572 = vsel %vm3571, %v3357, %v3570
          %vm3573 = vcmp.eq.f32.partialorder %v3357, 0.0
          %v3574 = vand.u32 %v3357, 2147483648
          %v3575 = vsel %vm3573, %v3574, %v3572
          %v3576 = vrsqrt.pop %v3358
          %v3577 = vmul.f32 %v3358, %v3576
          %vm3578 = vcmp.eq.f32.partialorder %v3358, inf
          %v3579 = vsel %vm3578, %v3358, %v3577
          %vm3580 = vcmp.eq.f32.partialorder %v3358, 0.0
          %v3581 = vand.u32 %v3358, 2147483648
          %v3582 = vsel %vm3580, %v3581, %v3579
          %v3583 = vld [vmem:[%s490] sm:$0xf]
          %v3584 = vld [vmem:[%s490 + $0x4] sm:$0xf]
          %v3585 = vld [vmem:[%s490 + $0x8] sm:$0xf]
          %v3586 = vld [vmem:[%s490 + $0xc] sm:$0xf]
          %v3587 = vld [vmem:[%s490 + $0x10] sm:$0xf]
          %v3588 = vld [vmem:[%s490 + $0x14] sm:$0xf]
          %v3589 = vld [vmem:[%s490 + $0x18] sm:$0xf]
          %v3590 = vld [vmem:[%s490 + $0x1c] sm:$0xf]
          %v3591 = vld [vmem:[%s490 + $0x20] sm:$0xf]
          %v3592 = vld [vmem:[%s490 + $0x24] sm:$0xf]
          %v3593 = vld [vmem:[%s490 + $0x28] sm:$0xf]
          %v3594 = vld [vmem:[%s490 + $0x2c] sm:$0xf]
          %v3595 = vld [vmem:[%s490 + $0x30] sm:$0xf]
          %v3596 = vld [vmem:[%s490 + $0x34] sm:$0xf]
          %v3597 = vld [vmem:[%s490 + $0x38] sm:$0xf]
          %v3598 = vld [vmem:[%s490 + $0x3c] sm:$0xf]
          %v3599 = vld [vmem:[%s490 + $0x40] sm:$0xf]
          %v3600 = vld [vmem:[%s490 + $0x44] sm:$0xf]
          %v3601 = vld [vmem:[%s490 + $0x48] sm:$0xf]
          %v3602 = vld [vmem:[%s490 + $0x4c] sm:$0xf]
          %v3603 = vld [vmem:[%s490 + $0x50] sm:$0xf]
          %v3604 = vld [vmem:[%s490 + $0x54] sm:$0xf]
          %v3605 = vld [vmem:[%s490 + $0x58] sm:$0xf]
          %v3606 = vld [vmem:[%s490 + $0x5c] sm:$0xf]
          %v3607 = vld [vmem:[%s490 + $0x60] sm:$0xf]
          %v3608 = vld [vmem:[%s490 + $0x64] sm:$0xf]
          %v3609 = vld [vmem:[%s490 + $0x68] sm:$0xf]
          %v3610 = vld [vmem:[%s490 + $0x6c] sm:$0xf]
          %v3611 = vld [vmem:[%s490 + $0x70] sm:$0xf]
          %v3612 = vld [vmem:[%s490 + $0x74] sm:$0xf]
          %v3613 = vld [vmem:[%s490 + $0x78] sm:$0xf]
          %v3614 = vld [vmem:[%s490 + $0x7c] sm:$0xf]
          %v3615 = vunpack.c.l.bf16 %v3583
          %v3616 = vunpack.c.l.bf16 %v3584
          %v3617 = vunpack.c.l.bf16 %v3585
          %v3618 = vunpack.c.l.bf16 %v3586
          %v3619 = vunpack.c.l.bf16 %v3587
          %v3620 = vunpack.c.l.bf16 %v3588
          %v3621 = vunpack.c.l.bf16 %v3589
          %v3622 = vunpack.c.l.bf16 %v3590
          %v3623 = vunpack.c.l.bf16 %v3591
          %v3624 = vunpack.c.l.bf16 %v3592
          %v3625 = vunpack.c.l.bf16 %v3593
          %v3626 = vunpack.c.l.bf16 %v3594
          %v3627 = vunpack.c.l.bf16 %v3595
          %v3628 = vunpack.c.l.bf16 %v3596
          %v3629 = vunpack.c.l.bf16 %v3597
          %v3630 = vunpack.c.l.bf16 %v3598
          %v3631 = vunpack.c.l.bf16 %v3599
          %v3632 = vunpack.c.l.bf16 %v3600
          %v3633 = vunpack.c.l.bf16 %v3601
          %v3634 = vunpack.c.l.bf16 %v3602
          %v3635 = vunpack.c.l.bf16 %v3603
          %v3636 = vunpack.c.l.bf16 %v3604
          %v3637 = vunpack.c.l.bf16 %v3605
          %v3638 = vunpack.c.l.bf16 %v3606
          %v3639 = vunpack.c.l.bf16 %v3607
          %v3640 = vunpack.c.l.bf16 %v3608
          %v3641 = vunpack.c.l.bf16 %v3609
          %v3642 = vunpack.c.l.bf16 %v3610
          %v3643 = vunpack.c.l.bf16 %v3611
          %v3644 = vunpack.c.l.bf16 %v3612
          %v3645 = vunpack.c.l.bf16 %v3613
          %v3646 = vunpack.c.l.bf16 %v3614
          %v3647 = vld [vmem:[%s498] sm:$0x1]
          %v3649 = vlaneseq
          %v3650 = vshrl.u32 %v3649, 7
          %v3651 = vsub.s32 0, %v3650
          %v3652 = vrot.slane %v3647, %v3651
          %v3654 = vsub.f32 %v3615, %v3652
          %v3655 = vsub.f32 %v3616, %v3652
          %v3656 = vsub.f32 %v3617, %v3652
          %v3657 = vsub.f32 %v3618, %v3652
          %v3658 = vsub.f32 %v3619, %v3652
          %v3659 = vsub.f32 %v3620, %v3652
          %v3660 = vsub.f32 %v3621, %v3652
          %v3661 = vsub.f32 %v3622, %v3652
          %v3662 = vsub.f32 %v3623, %v3652
          %v3663 = vsub.f32 %v3624, %v3652
          %v3664 = vsub.f32 %v3625, %v3652
          %v3665 = vsub.f32 %v3626, %v3652
          %v3666 = vsub.f32 %v3627, %v3652
          %v3667 = vsub.f32 %v3628, %v3652
          %v3668 = vsub.f32 %v3629, %v3652
          %v3669 = vsub.f32 %v3630, %v3652
          %v3670 = vsub.f32 %v3631, %v3652
          %v3671 = vsub.f32 %v3632, %v3652
          %v3672 = vsub.f32 %v3633, %v3652
          %v3673 = vsub.f32 %v3634, %v3652
          %v3674 = vsub.f32 %v3635, %v3652
          %v3675 = vsub.f32 %v3636, %v3652
          %v3676 = vsub.f32 %v3637, %v3652
          %v3677 = vsub.f32 %v3638, %v3652
          %v3678 = vsub.f32 %v3639, %v3652
          %v3679 = vsub.f32 %v3640, %v3652
          %v3680 = vsub.f32 %v3641, %v3652
          %v3681 = vsub.f32 %v3642, %v3652
          %v3682 = vsub.f32 %v3643, %v3652
          %v3683 = vsub.f32 %v3644, %v3652
          %v3684 = vsub.f32 %v3645, %v3652
          %v3685 = vsub.f32 %v3646, %v3652
          %v3686 = vld [vmem:[%s506] sm:$0x1]
          %v3688 = vlaneseq
          %v3689 = vshrl.u32 %v3688, 7
          %v3690 = vsub.s32 0, %v3689
          %v3691 = vrot.slane %v3686, %v3690
          %v3693 = vmul.f32 %v3654, %v3691
          %v3694 = vmul.f32 %v3655, %v3691
          %v3695 = vmul.f32 %v3656, %v3691
          %v3696 = vmul.f32 %v3657, %v3691
          %v3697 = vmul.f32 %v3658, %v3691
          %v3698 = vmul.f32 %v3659, %v3691
          %v3699 = vmul.f32 %v3660, %v3691
          %v3700 = vmul.f32 %v3661, %v3691
          %v3701 = vmul.f32 %v3662, %v3691
          %v3702 = vmul.f32 %v3663, %v3691
          %v3703 = vmul.f32 %v3664, %v3691
          %v3704 = vmul.f32 %v3665, %v3691
          %v3705 = vmul.f32 %v3666, %v3691
          %v3706 = vmul.f32 %v3667, %v3691
          %v3707 = vmul.f32 %v3668, %v3691
          %v3708 = vmul.f32 %v3669, %v3691
          %v3709 = vmul.f32 %v3670, %v3691
          %v3710 = vmul.f32 %v3671, %v3691
          %v3711 = vmul.f32 %v3672, %v3691
          %v3712 = vmul.f32 %v3673, %v3691
          %v3713 = vmul.f32 %v3674, %v3691
          %v3714 = vmul.f32 %v3675, %v3691
          %v3715 = vmul.f32 %v3676, %v3691
          %v3716 = vmul.f32 %v3677, %v3691
          %v3717 = vmul.f32 %v3678, %v3691
          %v3718 = vmul.f32 %v3679, %v3691
          %v3719 = vmul.f32 %v3680, %v3691
          %v3720 = vmul.f32 %v3681, %v3691
          %v3721 = vmul.f32 %v3682, %v3691
          %v3722 = vmul.f32 %v3683, %v3691
          %v3723 = vmul.f32 %v3684, %v3691
          %v3724 = vmul.f32 %v3685, %v3691
          %3757 = vrot.lane.b32.xlu0 %v3693, 32
          %v3758 = vpop.permute.xlu0 %3757
          %3759 = vrot.lane.b32.xlu0 %v3694, 32
          %v3760 = vpop.permute.xlu0 %3759
          %3761 = vrot.lane.b32.xlu0 %v3695, 32
          %v3762 = vpop.permute.xlu0 %3761
          %3763 = vrot.lane.b32.xlu0 %v3696, 32
          %v3764 = vpop.permute.xlu0 %3763
          %3765 = vrot.lane.b32.xlu0 %v3697, 32
          %v3766 = vpop.permute.xlu0 %3765
          %3767 = vrot.lane.b32.xlu0 %v3698, 32
          %v3768 = vpop.permute.xlu0 %3767
          %3769 = vrot.lane.b32.xlu0 %v3699, 32
          %v3770 = vpop.permute.xlu0 %3769
          %3771 = vrot.lane.b32.xlu0 %v3700, 32
          %v3772 = vpop.permute.xlu0 %3771
          %3773 = vrot.lane.b32.xlu0 %v3701, 32
          %v3774 = vpop.permute.xlu0 %3773
          %3775 = vrot.lane.b32.xlu0 %v3702, 32
          %v3776 = vpop.permute.xlu0 %3775
          %3777 = vrot.lane.b32.xlu0 %v3703, 32
          %v3778 = vpop.permute.xlu0 %3777
          %3779 = vrot.lane.b32.xlu0 %v3704, 32
          %v3780 = vpop.permute.xlu0 %3779
          %3781 = vrot.lane.b32.xlu0 %v3705, 32
          %v3782 = vpop.permute.xlu0 %3781
          %3783 = vrot.lane.b32.xlu0 %v3706, 32
          %v3784 = vpop.permute.xlu0 %3783
          %3785 = vrot.lane.b32.xlu0 %v3707, 32
          %v3786 = vpop.permute.xlu0 %3785
          %3787 = vrot.lane.b32.xlu0 %v3708, 32
          %v3788 = vpop.permute.xlu0 %3787
          %3789 = vrot.lane.b32.xlu0 %v3709, 32
          %v3790 = vpop.permute.xlu0 %3789
          %3791 = vrot.lane.b32.xlu0 %v3710, 32
          %v3792 = vpop.permute.xlu0 %3791
          %3793 = vrot.lane.b32.xlu0 %v3711, 32
          %v3794 = vpop.permute.xlu0 %3793
          %3795 = vrot.lane.b32.xlu0 %v3712, 32
          %v3796 = vpop.permute.xlu0 %3795
          %3797 = vrot.lane.b32.xlu0 %v3713, 32
          %v3798 = vpop.permute.xlu0 %3797
          %3799 = vrot.lane.b32.xlu0 %v3714, 32
          %v3800 = vpop.permute.xlu0 %3799
          %3801 = vrot.lane.b32.xlu0 %v3715, 32
          %v3802 = vpop.permute.xlu0 %3801
          %3803 = vrot.lane.b32.xlu0 %v3716, 32
          %v3804 = vpop.permute.xlu0 %3803
          %3805 = vrot.lane.b32.xlu0 %v3717, 32
          %v3806 = vpop.permute.xlu0 %3805
          %3807 = vrot.lane.b32.xlu0 %v3718, 32
          %v3808 = vpop.permute.xlu0 %3807
          %3809 = vrot.lane.b32.xlu0 %v3719, 32
          %v3810 = vpop.permute.xlu0 %3809
          %3811 = vrot.lane.b32.xlu0 %v3720, 32
          %v3812 = vpop.permute.xlu0 %3811
          %3813 = vrot.lane.b32.xlu0 %v3721, 32
          %v3814 = vpop.permute.xlu0 %3813
          %3815 = vrot.lane.b32.xlu0 %v3722, 32
          %v3816 = vpop.permute.xlu0 %3815
          %3817 = vrot.lane.b32.xlu0 %v3723, 32
          %v3818 = vpop.permute.xlu0 %3817
          %3819 = vrot.lane.b32.xlu0 %v3724, 32
          %v3820 = vpop.permute.xlu0 %3819
          %v3853 = vmul.f32 %v3365, %v3758
          %v3854 = vmul.f32 %v3372, %v3760
          %v3855 = vmul.f32 %v3379, %v3762
          %v3856 = vmul.f32 %v3386, %v3764
          %v3857 = vmul.f32 %v3393, %v3766
          %v3858 = vmul.f32 %v3400, %v3768
          %v3859 = vmul.f32 %v3407, %v3770
          %v3860 = vmul.f32 %v3414, %v3772
          %v3861 = vmul.f32 %v3421, %v3774
          %v3862 = vmul.f32 %v3428, %v3776
          %v3863 = vmul.f32 %v3435, %v3778
          %v3864 = vmul.f32 %v3442, %v3780
          %v3865 = vmul.f32 %v3449, %v3782
          %v3866 = vmul.f32 %v3456, %v3784
          %v3867 = vmul.f32 %v3463, %v3786
          %v3868 = vmul.f32 %v3470, %v3788
          %v3869 = vmul.f32 %v3477, %v3790
          %v3870 = vmul.f32 %v3484, %v3792
          %v3871 = vmul.f32 %v3491, %v3794
          %v3872 = vmul.f32 %v3498, %v3796
          %v3873 = vmul.f32 %v3505, %v3798
          %v3874 = vmul.f32 %v3512, %v3800
          %v3875 = vmul.f32 %v3519, %v3802
          %v3876 = vmul.f32 %v3526, %v3804
          %v3877 = vmul.f32 %v3533, %v3806
          %v3878 = vmul.f32 %v3540, %v3808
          %v3879 = vmul.f32 %v3547, %v3810
          %v3880 = vmul.f32 %v3554, %v3812
          %v3881 = vmul.f32 %v3561, %v3814
          %v3882 = vmul.f32 %v3568, %v3816
          %v3883 = vmul.f32 %v3575, %v3818
          %v3884 = vmul.f32 %v3582, %v3820
          %3917 = vrot.lane.b32.xlu0 %v3072, 32
          %v3918 = vpop.permute.xlu0 %3917
          %3919 = vrot.lane.b32.xlu0 %v3074, 32
          %v3920 = vpop.permute.xlu0 %3919
          %3921 = vrot.lane.b32.xlu0 %v3076, 32
          %v3922 = vpop.permute.xlu0 %3921
          %3923 = vrot.lane.b32.xlu0 %v3078, 32
          %v3924 = vpop.permute.xlu0 %3923
          %3925 = vrot.lane.b32.xlu0 %v3080, 32
          %v3926 = vpop.permute.xlu0 %3925
          %3927 = vrot.lane.b32.xlu0 %v3082, 32
          %v3928 = vpop.permute.xlu0 %3927
          %3929 = vrot.lane.b32.xlu0 %v3084, 32
          %v3930 = vpop.permute.xlu0 %3929
          %3931 = vrot.lane.b32.xlu0 %v3086, 32
          %v3932 = vpop.permute.xlu0 %3931
          %3933 = vrot.lane.b32.xlu0 %v3088, 32
          %v3934 = vpop.permute.xlu0 %3933
          %3935 = vrot.lane.b32.xlu0 %v3090, 32
          %v3936 = vpop.permute.xlu0 %3935
          %3937 = vrot.lane.b32.xlu0 %v3092, 32
          %v3938 = vpop.permute.xlu0 %3937
          %3939 = vrot.lane.b32.xlu0 %v3094, 32
          %v3940 = vpop.permute.xlu0 %3939
          %3941 = vrot.lane.b32.xlu0 %v3096, 32
          %v3942 = vpop.permute.xlu0 %3941
          %3943 = vrot.lane.b32.xlu0 %v3098, 32
          %v3944 = vpop.permute.xlu0 %3943
          %3945 = vrot.lane.b32.xlu0 %v3100, 32
          %v3946 = vpop.permute.xlu0 %3945
          %3947 = vrot.lane.b32.xlu0 %v3102, 32
          %v3948 = vpop.permute.xlu0 %3947
          %3949 = vrot.lane.b32.xlu0 %v3104, 32
          %v3950 = vpop.permute.xlu0 %3949
          %3951 = vrot.lane.b32.xlu0 %v3106, 32
          %v3952 = vpop.permute.xlu0 %3951
          %3953 = vrot.lane.b32.xlu0 %v3108, 32
          %v3954 = vpop.permute.xlu0 %3953
          %3955 = vrot.lane.b32.xlu0 %v3110, 32
          %v3956 = vpop.permute.xlu0 %3955
          %3957 = vrot.lane.b32.xlu0 %v3112, 32
          %v3958 = vpop.permute.xlu0 %3957
          %3959 = vrot.lane.b32.xlu0 %v3114, 32
          %v3960 = vpop.permute.xlu0 %3959
          %3961 = vrot.lane.b32.xlu0 %v3116, 32
          %v3962 = vpop.permute.xlu0 %3961
          %3963 = vrot.lane.b32.xlu0 %v3118, 32
          %v3964 = vpop.permute.xlu0 %3963
          %3965 = vrot.lane.b32.xlu0 %v3120, 32
          %v3966 = vpop.permute.xlu0 %3965
          %3967 = vrot.lane.b32.xlu0 %v3122, 32
          %v3968 = vpop.permute.xlu0 %3967
          %3969 = vrot.lane.b32.xlu0 %v3124, 32
          %v3970 = vpop.permute.xlu0 %3969
          %3971 = vrot.lane.b32.xlu0 %v3126, 32
          %v3972 = vpop.permute.xlu0 %3971
          %3973 = vrot.lane.b32.xlu0 %v3128, 32
          %v3974 = vpop.permute.xlu0 %3973
          %3975 = vrot.lane.b32.xlu0 %v3130, 32
          %v3976 = vpop.permute.xlu0 %3975
          %3977 = vrot.lane.b32.xlu0 %v3132, 32
          %v3978 = vpop.permute.xlu0 %3977
          %3979 = vrot.lane.b32.xlu0 %v3134, 32
          %v3980 = vpop.permute.xlu0 %3979
          %v4013 = vadd.f32 %v3853, %v3918
          %v4014 = vadd.f32 %v3854, %v3920
          %v4015 = vadd.f32 %v3855, %v3922
          %v4016 = vadd.f32 %v3856, %v3924
          %v4017 = vadd.f32 %v3857, %v3926
          %v4018 = vadd.f32 %v3858, %v3928
          %v4019 = vadd.f32 %v3859, %v3930
          %v4020 = vadd.f32 %v3860, %v3932
          %v4021 = vadd.f32 %v3861, %v3934
          %v4022 = vadd.f32 %v3862, %v3936
          %v4023 = vadd.f32 %v3863, %v3938
          %v4024 = vadd.f32 %v3864, %v3940
          %v4025 = vadd.f32 %v3865, %v3942
          %v4026 = vadd.f32 %v3866, %v3944
          %v4027 = vadd.f32 %v3867, %v3946
          %v4028 = vadd.f32 %v3868, %v3948
          %v4029 = vadd.f32 %v3869, %v3950
          %v4030 = vadd.f32 %v3870, %v3952
          %v4031 = vadd.f32 %v3871, %v3954
          %v4032 = vadd.f32 %v3872, %v3956
          %v4033 = vadd.f32 %v3873, %v3958
          %v4034 = vadd.f32 %v3874, %v3960
          %v4035 = vadd.f32 %v3875, %v3962
          %v4036 = vadd.f32 %v3876, %v3964
          %v4037 = vadd.f32 %v3877, %v3966
          %v4038 = vadd.f32 %v3878, %v3968
          %v4039 = vadd.f32 %v3879, %v3970
          %v4040 = vadd.f32 %v3880, %v3972
          %v4041 = vadd.f32 %v3881, %v3974
          %v4042 = vadd.f32 %v3882, %v3976
          %v4043 = vadd.f32 %v3883, %v3978
          %v4044 = vadd.f32 %v3884, %v3980
          %v4045 = vpack.c.bf16 %v4014, %v4013
          %v4046 = vpack.c.bf16 %v4016, %v4015
          %v4047 = vpack.c.bf16 %v4018, %v4017
          %v4048 = vpack.c.bf16 %v4020, %v4019
          %v4049 = vpack.c.bf16 %v4022, %v4021
          %v4050 = vpack.c.bf16 %v4024, %v4023
          %v4051 = vpack.c.bf16 %v4026, %v4025
          %v4052 = vpack.c.bf16 %v4028, %v4027
          %v4053 = vpack.c.bf16 %v4030, %v4029
          %v4054 = vpack.c.bf16 %v4032, %v4031
          %v4055 = vpack.c.bf16 %v4034, %v4033
          %v4056 = vpack.c.bf16 %v4036, %v4035
          %v4057 = vpack.c.bf16 %v4038, %v4037
          %v4058 = vpack.c.bf16 %v4040, %v4039
          %v4059 = vpack.c.bf16 %v4042, %v4041
          %v4060 = vpack.c.bf16 %v4044, %v4043
          %v4077 = vunpack.c.l.b16 %v4045
          %v4078 = vunpack.c.h.b16 %v4045
          %v4079 = vunpack.c.l.b16 %v4046
          %v4080 = vunpack.c.h.b16 %v4046
          %v4081 = vunpack.c.l.b16 %v4047
          %v4082 = vunpack.c.h.b16 %v4047
          %v4083 = vunpack.c.l.b16 %v4048
          %v4084 = vunpack.c.h.b16 %v4048
          %v4085 = vunpack.c.l.b16 %v4049
          %v4086 = vunpack.c.h.b16 %v4049
          %v4087 = vunpack.c.l.b16 %v4050
          %v4088 = vunpack.c.h.b16 %v4050
          %v4089 = vunpack.c.l.b16 %v4051
          %v4090 = vunpack.c.h.b16 %v4051
          %v4091 = vunpack.c.l.b16 %v4052
          %v4092 = vunpack.c.h.b16 %v4052
          %v4093 = vunpack.c.l.b16 %v4053
          %v4094 = vunpack.c.h.b16 %v4053
          %v4095 = vunpack.c.l.b16 %v4054
          %v4096 = vunpack.c.h.b16 %v4054
          %v4097 = vunpack.c.l.b16 %v4055
          %v4098 = vunpack.c.h.b16 %v4055
          %v4099 = vunpack.c.l.b16 %v4056
          %v4100 = vunpack.c.h.b16 %v4056
          %v4101 = vunpack.c.l.b16 %v4057
          %v4102 = vunpack.c.h.b16 %v4057
          %v4103 = vunpack.c.l.b16 %v4058
          %v4104 = vunpack.c.h.b16 %v4058
          %v4105 = vunpack.c.l.b16 %v4059
          %v4106 = vunpack.c.h.b16 %v4059
          %v4107 = vunpack.c.l.b16 %v4060
          %v4108 = vunpack.c.h.b16 %v4060
          %v4109 = vpack.c.b16 %v4077, %v4077
          %v4110 = vpack.c.b16 %v4078, %v4078
          %v4111 = vpack.c.b16 %v4079, %v4079
          %v4112 = vpack.c.b16 %v4080, %v4080
          %v4113 = vpack.c.b16 %v4081, %v4081
          %v4114 = vpack.c.b16 %v4082, %v4082
          %v4115 = vpack.c.b16 %v4083, %v4083
          %v4116 = vpack.c.b16 %v4084, %v4084
          %v4117 = vpack.c.b16 %v4085, %v4085
          %v4118 = vpack.c.b16 %v4086, %v4086
          %v4119 = vpack.c.b16 %v4087, %v4087
          %v4120 = vpack.c.b16 %v4088, %v4088
          %v4121 = vpack.c.b16 %v4089, %v4089
          %v4122 = vpack.c.b16 %v4090, %v4090
          %v4123 = vpack.c.b16 %v4091, %v4091
          %v4124 = vpack.c.b16 %v4092, %v4092
          %v4125 = vpack.c.b16 %v4093, %v4093
          %v4126 = vpack.c.b16 %v4094, %v4094
          %v4127 = vpack.c.b16 %v4095, %v4095
          %v4128 = vpack.c.b16 %v4096, %v4096
          %v4129 = vpack.c.b16 %v4097, %v4097
          %v4130 = vpack.c.b16 %v4098, %v4098
          %v4131 = vpack.c.b16 %v4099, %v4099
          %v4132 = vpack.c.b16 %v4100, %v4100
          %v4133 = vpack.c.b16 %v4101, %v4101
          %v4134 = vpack.c.b16 %v4102, %v4102
          %v4135 = vpack.c.b16 %v4103, %v4103
          %v4136 = vpack.c.b16 %v4104, %v4104
          %v4137 = vpack.c.b16 %v4105, %v4105
          %v4138 = vpack.c.b16 %v4106, %v4106
          %v4139 = vpack.c.b16 %v4107, %v4107
          %v4140 = vpack.c.b16 %v4108, %v4108
          %4141 = vrot.lane.b32.xlu0 %v4109, 96
          %v4142 = vpop.permute.xlu0 %4141
          %4143 = vrot.lane.b32.xlu0 %v4110, 96
          %v4144 = vpop.permute.xlu0 %4143
          %4145 = vrot.lane.b32.xlu0 %v4111, 96
          %v4146 = vpop.permute.xlu0 %4145
          %4147 = vrot.lane.b32.xlu0 %v4112, 96
          %v4148 = vpop.permute.xlu0 %4147
          %4149 = vrot.lane.b32.xlu0 %v4113, 96
          %v4150 = vpop.permute.xlu0 %4149
          %4151 = vrot.lane.b32.xlu0 %v4114, 96
          %v4152 = vpop.permute.xlu0 %4151
          %4153 = vrot.lane.b32.xlu0 %v4115, 96
          %v4154 = vpop.permute.xlu0 %4153
          %4155 = vrot.lane.b32.xlu0 %v4116, 96
          %v4156 = vpop.permute.xlu0 %4155
          %4157 = vrot.lane.b32.xlu0 %v4117, 96
          %v4158 = vpop.permute.xlu0 %4157
          %4159 = vrot.lane.b32.xlu0 %v4118, 96
          %v4160 = vpop.permute.xlu0 %4159
          %4161 = vrot.lane.b32.xlu0 %v4119, 96
          %v4162 = vpop.permute.xlu0 %4161
          %4163 = vrot.lane.b32.xlu0 %v4120, 96
          %v4164 = vpop.permute.xlu0 %4163
          %4165 = vrot.lane.b32.xlu0 %v4121, 96
          %v4166 = vpop.permute.xlu0 %4165
          %4167 = vrot.lane.b32.xlu0 %v4122, 96
          %v4168 = vpop.permute.xlu0 %4167
          %4169 = vrot.lane.b32.xlu0 %v4123, 96
          %v4170 = vpop.permute.xlu0 %4169
          %4171 = vrot.lane.b32.xlu0 %v4124, 96
          %v4172 = vpop.permute.xlu0 %4171
          %4173 = vrot.lane.b32.xlu0 %v4125, 96
          %v4174 = vpop.permute.xlu0 %4173
          %4175 = vrot.lane.b32.xlu0 %v4126, 96
          %v4176 = vpop.permute.xlu0 %4175
          %4177 = vrot.lane.b32.xlu0 %v4127, 96
          %v4178 = vpop.permute.xlu0 %4177
          %4179 = vrot.lane.b32.xlu0 %v4128, 96
          %v4180 = vpop.permute.xlu0 %4179
          %4181 = vrot.lane.b32.xlu0 %v4129, 96
          %v4182 = vpop.permute.xlu0 %4181
          %4183 = vrot.lane.b32.xlu0 %v4130, 96
          %v4184 = vpop.permute.xlu0 %4183
          %4185 = vrot.lane.b32.xlu0 %v4131, 96
          %v4186 = vpop.permute.xlu0 %4185
          %4187 = vrot.lane.b32.xlu0 %v4132, 96
          %v4188 = vpop.permute.xlu0 %4187
          %4189 = vrot.lane.b32.xlu0 %v4133, 96
          %v4190 = vpop.permute.xlu0 %4189
          %4191 = vrot.lane.b32.xlu0 %v4134, 96
          %v4192 = vpop.permute.xlu0 %4191
          %4193 = vrot.lane.b32.xlu0 %v4135, 96
          %v4194 = vpop.permute.xlu0 %4193
          %4195 = vrot.lane.b32.xlu0 %v4136, 96
          %v4196 = vpop.permute.xlu0 %4195
          %4197 = vrot.lane.b32.xlu0 %v4137, 96
          %v4198 = vpop.permute.xlu0 %4197
          %4199 = vrot.lane.b32.xlu0 %v4138, 96
          %v4200 = vpop.permute.xlu0 %4199
          %4201 = vrot.lane.b32.xlu0 %v4139, 96
          %v4202 = vpop.permute.xlu0 %4201
          %4203 = vrot.lane.b32.xlu0 %v4140, 96
          %v4204 = vpop.permute.xlu0 %4203
          %vm4237 = vcmask 257024
          %4238 = vst.msk [vmem:[%s569] sm:$0xf] %vm4237, %v4142
          %4239 = vst.msk [vmem:[%s569 + $0x4] sm:$0xf] %vm4237, %v4144
          %4240 = vst.msk [vmem:[%s569 + $0x8] sm:$0xf] %vm4237, %v4146
          %4241 = vst.msk [vmem:[%s569 + $0xc] sm:$0xf] %vm4237, %v4148
          %4242 = vst.msk [vmem:[%s569 + $0x10] sm:$0xf] %vm4237, %v4150
          %4243 = vst.msk [vmem:[%s569 + $0x14] sm:$0xf] %vm4237, %v4152
          %4244 = vst.msk [vmem:[%s569 + $0x18] sm:$0xf] %vm4237, %v4154
          %4245 = vst.msk [vmem:[%s569 + $0x1c] sm:$0xf] %vm4237, %v4156
          %4246 = vst.msk [vmem:[%s569 + $0x20] sm:$0xf] %vm4237, %v4158
          %4247 = vst.msk [vmem:[%s569 + $0x24] sm:$0xf] %vm4237, %v4160
          %4248 = vst.msk [vmem:[%s569 + $0x28] sm:$0xf] %vm4237, %v4162
          %4249 = vst.msk [vmem:[%s569 + $0x2c] sm:$0xf] %vm4237, %v4164
          %4250 = vst.msk [vmem:[%s569 + $0x30] sm:$0xf] %vm4237, %v4166
          %4251 = vst.msk [vmem:[%s569 + $0x34] sm:$0xf] %vm4237, %v4168
          %4252 = vst.msk [vmem:[%s569 + $0x38] sm:$0xf] %vm4237, %v4170
          %4253 = vst.msk [vmem:[%s569 + $0x3c] sm:$0xf] %vm4237, %v4172
          %4254 = vst.msk [vmem:[%s569 + $0x40] sm:$0xf] %vm4237, %v4174
          %4255 = vst.msk [vmem:[%s569 + $0x44] sm:$0xf] %vm4237, %v4176
          %4256 = vst.msk [vmem:[%s569 + $0x48] sm:$0xf] %vm4237, %v4178
          %4257 = vst.msk [vmem:[%s569 + $0x4c] sm:$0xf] %vm4237, %v4180
          %4258 = vst.msk [vmem:[%s569 + $0x50] sm:$0xf] %vm4237, %v4182
          %4259 = vst.msk [vmem:[%s569 + $0x54] sm:$0xf] %vm4237, %v4184
          %4260 = vst.msk [vmem:[%s569 + $0x58] sm:$0xf] %vm4237, %v4186
          %4261 = vst.msk [vmem:[%s569 + $0x5c] sm:$0xf] %vm4237, %v4188
          %4262 = vst.msk [vmem:[%s569 + $0x60] sm:$0xf] %vm4237, %v4190
          %4263 = vst.msk [vmem:[%s569 + $0x64] sm:$0xf] %vm4237, %v4192
          %4264 = vst.msk [vmem:[%s569 + $0x68] sm:$0xf] %vm4237, %v4194
          %4265 = vst.msk [vmem:[%s569 + $0x6c] sm:$0xf] %vm4237, %v4196
          %4266 = vst.msk [vmem:[%s569 + $0x70] sm:$0xf] %vm4237, %v4198
          %4267 = vst.msk [vmem:[%s569 + $0x74] sm:$0xf] %vm4237, %v4200
          %4268 = vst.msk [vmem:[%s569 + $0x78] sm:$0xf] %vm4237, %v4202
          %4269 = vst.msk [vmem:[%s569 + $0x7c] sm:$0xf] %vm4237, %v4204
        $region92: #{transformer_forward.5} parent=51 // pred_fallthru
          _
        %s4270 = sand.u32 %s270, 1
        %s4271 = scalar_lea.sflag [#allocation8], %s4270
        %s4272 = sand.u32 %s270, 1
        %s4273 = smul.addr %s4272, 128
        %s4274 = scalar_lea.vmem [#allocation20], %s4273
        // Predicated region
        $region93: #{transformer_forward.5} parent=51 // pred_check
          %p4275 = pneg %p280
        $region94: #{transformer_forward.5} parent=51 // pred_check_branch
          %4277 = sbr.rel (%p4275) target = $region96
        $region95: #{transformer_forward.5} parent=51 // pred_region
          %s4278 = smul.u32 32, %s41
          %s4280 = ssub.s32 2048, 2048
          %4281 = vsyncadd %s4271, %s4280
          %s4282 = smul.addr %s40, 32
          %s4283 = sadd.s32 %s4278, %s4282
          %s4284 = smul.addr %s4283, 64
          %s4285 = scalar_lea.hbm %s8, %s4284
          %s4286 = sshll.u32 %s4274, 4
          %s4287 = int_to_ptr.vmem [resolvable:$true] %s4286
          %4292 = dma.vmem_to_hbm [thread:$0]  %s4287, 2048, %s4285, %s4271, 64, 64, 4
        $region96: #{transformer_forward.5} parent=51 // pred_fallthru
          _
      $region52: #{transformer_forward.5} parent=5 // pred_fallthru
        _
      %p4293 = scmp.le.s32.totalorder 2, %s30
      // Predicated region
      $region97: #{transformer_forward.5} parent=5 // pred_check
        %p4294 = pneg %p4293
      $region98: #{transformer_forward.5} parent=5 // pred_check_branch
        %4296 = sbr.rel (%p4294) target = $region100
      $region99: #{transformer_forward.5} parent=5 // pred_region
        %s4297 = ssub.s32 %s30, 2
        // Predicated region
        $region101: #{transformer_forward.5} parent=99 // pred_check
          %p4298 = pneg %p286
        $region102: #{transformer_forward.5} parent=99 // pred_check_branch
          %4300 = sbr.rel (%p4298) target = $region104
        $region103: #{transformer_forward.5} parent=99 // pred_region
          %s4301 = sand.u32 %s271, 1
          %s4302 = scalar_lea.sflag [#allocation8], %s4301
          %s4303 = sand.u32 %s271, 1
          %s4304 = smul.addr %s4303, 128
          %s4305 = scalar_lea.vmem [#allocation20], %s4304
          %4306 = dma.done %s4302, 2048
        $region104: #{transformer_forward.5} parent=99 // pred_fallthru
          _
      $region100: #{transformer_forward.5} parent=5 // pred_fallthru
        _
    $region6: #{transformer_forward.5} parent=1 // loop_footer
      %s34 = sadd.s32 1, %s30
    $region7: #{transformer_forward.5} parent=1 // loop_footer_branch
      %29 = sbr.rel target = $region3
    $region8: #{transformer_forward.5} parent=1 // loop_exit
      _
    %4307 = vsyncpa [#allocation7], 1
    %s4308 = scalar_lea.sflag [#allocation7], 1
    %4309 = vsyncpa %s4308, 1
    %4310 = vsyncpa [#allocation10], 1
    %s4311 = scalar_lea.sflag [#allocation10], 1
    %4312 = vsyncpa %s4311, 1
    %4313 = vsyncpa [#allocation13], 1
    %s4314 = scalar_lea.sflag [#allocation13], 1
    %4315 = vsyncpa %s4314, 1
    %4316 = vsyncpa [#allocation16], 1
    %s4317 = scalar_lea.sflag [#allocation16], 1
    %4318 = vsyncpa %s4317, 1
    %4319 = vsyncpa [#allocation19], 1
    %4320 = vsyncpa [#allocation8], 1
    %s4321 = scalar_lea.sflag [#allocation8], 1
    %4322 = vsyncpa %s4321, 1

// kernel: transformer_forward.7
$region0: #{transformer_forward.7}
  #allocation0 [shape = 'u32[]', space=smem, size = 0x4, offset = 0x4, fixed_abs, tag = 'smem constant byte address 0x4 - core index']
  #allocation1 [shape = 'u32[144,128]{1,0:T(1,128)}', space=vmem, size = 0x12000, scoped, tag = 'internal scratch']
  %s0 = inlined_call_operand.hbm [shape: bf16[2,18,18,32], index: 0, kind: input, shape index: {}]
  %s1 = inlined_call_operand.hbm [shape: bf16[288,32], index: 1, kind: input, shape index: {}]
  %s2 = inlined_call_operand.hbm [shape: f32[1,32], index: 2, kind: input, shape index: {}]
  %s3 = inlined_call_operand.hbm [shape: f32[2,256,32], index: 3, kind: output, shape index: {}]
  %s4 = sld [smem:[#allocation0]]
  $region57: #{transformer_forward.7} parent=0
    _
  %s6 = ssub.s32 1, %s4
  %s7 = scalar_select 0, %s6, %s4
  $region1: #{transformer_forward.7} parent=0
    #allocation2 [shape = 'u8[221184]{0}', space=vmem, size = 0x36000, scoped, tag = 'input window, operand 0']
    #allocation3 [shape = 's32[2]{0}', space=sflag, size = 0x8, scoped, tag = 'scoped memory for transformer_forward.7']
    #allocation4 [shape = 's32[2]{0}', space=sflag, size = 0x8, scoped, tag = 'scoped memory for transformer_forward.7']
    #allocation5 [shape = 'u8[73728]{0}', space=vmem, size = 0x12000, scoped, tag = 'input window, operand 1, single buffered']
    #allocation6 [shape = 's32[1]{0}', space=sflag, size = 0x4, scoped, tag = 'scoped memory for transformer_forward.7']
    #allocation7 [shape = 'u8[512]{0}', space=vmem, size = 0x400, scoped, tag = 'input window, operand 2, single buffered']
    #allocation8 [shape = 'u8[262144]{0}', space=vmem, size = 0x40000, scoped, tag = 'output window, operand 0']
    %8 = vsyncpa [#allocation3], 0
    %s9 = scalar_lea.sflag [#allocation3], 1
    %10 = vsyncpa %s9, 0
    %11 = vsyncpa [#allocation6], 0
    %12 = vsyncpa [#allocation4], 0
    %s13 = scalar_lea.sflag [#allocation4], 1
    %14 = vsyncpa %s13, 0
    loop: start=0, step=1, limit=4
    $region2: #{transformer_forward.7} parent=1 // loop_pre_header
      _
    $region3: #{transformer_forward.7} parent=1 // loop_header
      %s16 = sphi 0, %s20
      %p17 = scmp.ge.s32.totalorder %s16, 4
      %s26 = sphi 0, %s28
      %s29 = sphi 0, %s26
      %s30 = sphi 0, %s29
      %s46 = sphi 0, %s30
      %s50 = sphi 0, %s50
      %s52 = sphi 0, %s50
      %s53 = sphi 0, %s52
      %s67 = sphi 0, %s53
      %s71 = sphi 0, %s71
      %s73 = sphi 0, %s71
      %s74 = sphi 0, %s73
      %s88 = sphi 0, %s74
      %s94 = sphi 0, %s96
      %s97 = sphi 0, %s94
      %s98 = sphi 0, %s97
      %s114 = sphi 0, %s98
    $region4: #{transformer_forward.7} parent=1 // loop_header_branch
      %19 = sbr.rel (%p17) target = $region8
    $region5: #{transformer_forward.7} parent=1 // loop_body
      %s21 = ssub.s32 %s16, 1
      %s22 = ssub.s32 %s16, 2
      %s23 = sadd.s32 %s16, 1
      %s24 = ssub.s32 %s16, %s23
      %p25 = scmp.eq.s32.totalorder %s24, 0
      %s27 = sadd.s32 %s26, 1
      %s28 = scalar_select %p25, %s26, %s27
      %p31 = pneg %p25
      %p32 = scmp.eq.s32.totalorder %s16, 1
      %p33 = por %p31, %p32
      %p34 = scmp.ne.s32.totalorder %s26, %s29
      %p35 = scmp.eq.s32.totalorder %s16, 0
      %p36 = por %p34, %p35
      %p37 = scmp.ne.s32.totalorder %s26, %s29
      %p38 = scmp.eq.s32.totalorder %s21, 1
      %p39 = por %p37, %p38
      %p40 = scmp.ne.s32.totalorder %s29, %s30
      %p41 = scmp.eq.s32.totalorder %s21, 0
      %p42 = por %p40, %p41
      %p43 = scmp.ne.s32.totalorder %s29, %s30
      %p44 = scmp.eq.s32.totalorder %s22, 1
      %p45 = por %p43, %p44
      %p47 = scmp.ne.s32.totalorder %s30, %s46
      %p48 = scmp.eq.s32.totalorder %s22, 0
      %p49 = por %p47, %p48
      %s51 = sadd.s32 %s50, 1
      %p54 = scmp.eq.s32.totalorder %s16, 1
      %p55 = scmp.ne.s32.totalorder %s50, %s52
      %p56 = scmp.eq.s32.totalorder %s16, 0
      %p57 = por %p55, %p56
      %p58 = scmp.ne.s32.totalorder %s50, %s52
      %p59 = scmp.eq.s32.totalorder %s21, 1
      %p60 = por %p58, %p59
      %p61 = scmp.ne.s32.totalorder %s52, %s53
      %p62 = scmp.eq.s32.totalorder %s21, 0
      %p63 = por %p61, %p62
      %p64 = scmp.ne.s32.totalorder %s52, %s53
      %p65 = scmp.eq.s32.totalorder %s22, 1
      %p66 = por %p64, %p65
      %p68 = scmp.ne.s32.totalorder %s53, %s67
      %p69 = scmp.eq.s32.totalorder %s22, 0
      %p70 = por %p68, %p69
      %s72 = sadd.s32 %s71, 1
      %p75 = scmp.eq.s32.totalorder %s16, 1
      %p76 = scmp.ne.s32.totalorder %s71, %s73
      %p77 = scmp.eq.s32.totalorder %s16, 0
      %p78 = por %p76, %p77
      %p79 = scmp.ne.s32.totalorder %s71, %s73
      %p80 = scmp.eq.s32.totalorder %s21, 1
      %p81 = por %p79, %p80
      %p82 = scmp.ne.s32.totalorder %s73, %s74
      %p83 = scmp.eq.s32.totalorder %s21, 0
      %p84 = por %p82, %p83
      %p85 = scmp.ne.s32.totalorder %s73, %s74
      %p86 = scmp.eq.s32.totalorder %s22, 1
      %p87 = por %p85, %p86
      %p89 = scmp.ne.s32.totalorder %s74, %s88
      %p90 = scmp.eq.s32.totalorder %s22, 0
      %p91 = por %p89, %p90
      %s92 = ssub.s32 %s16, %s23
      %p93 = scmp.eq.s32.totalorder %s92, 0
      %s95 = sadd.s32 %s94, 1
      %s96 = scalar_select %p93, %s94, %s95
      %p99 = pneg %p93
      %p100 = scmp.eq.s32.totalorder %s16, 1
      %p101 = por %p99, %p100
      %p102 = scmp.ne.s32.totalorder %s94, %s97
      %p103 = scmp.eq.s32.totalorder %s16, 0
      %p104 = por %p102, %p103
      %p105 = scmp.ne.s32.totalorder %s94, %s97
      %p106 = scmp.eq.s32.totalorder %s21, 1
      %p107 = por %p105, %p106
      %p108 = scmp.ne.s32.totalorder %s97, %s98
      %p109 = scmp.eq.s32.totalorder %s21, 0
      %p110 = por %p108, %p109
      %p111 = scmp.ne.s32.totalorder %s97, %s98
      %p112 = scmp.eq.s32.totalorder %s22, 1
      %p113 = por %p111, %p112
      %p115 = scmp.ne.s32.totalorder %s98, %s114
      %p116 = scmp.eq.s32.totalorder %s22, 0
      %p117 = por %p115, %p116
      %p118 = scmp.le.s32.totalorder 1, %s16
      %p119 = scmp.lt.s32.totalorder %s16, 3
      %p120 = pnand %p118, %p119
      %p121 = pneg %p120
      // Predicated region
      $region9: #{transformer_forward.7} parent=5 // pred_check
        _
      $region10: #{transformer_forward.7} parent=5 // pred_check_branch
        %123 = sbr.rel (%p120) target = $region12
      $region11: #{transformer_forward.7} parent=5 // pred_region
        %s124 = ssub.s32 %s16, 1
        // Predicated region
        $region13: #{transformer_forward.7} parent=11 // pred_check
          %p125 = pneg %p63
        $region14: #{transformer_forward.7} parent=11 // pred_check_branch
          %127 = sbr.rel (%p125) target = $region16
        $region15: #{transformer_forward.7} parent=11 // pred_region
          %s129 = ssub.s32 2304, 2304
          %130 = vsyncadd [#allocation6], %s129
          %s131 = sshll.u32 [#allocation5], 4
          %s132 = int_to_ptr.vmem [resolvable:$true] %s131
          %137 = dma.hbm_to_vmem [thread:$0]  %s1, 2304, %s132, [#allocation6], 64, 64, 4
        $region16: #{transformer_forward.7} parent=11 // pred_fallthru
          _
        // Predicated region
        $region17: #{transformer_forward.7} parent=11 // pred_check
          %p138 = pneg %p84
        $region18: #{transformer_forward.7} parent=11 // pred_check_branch
          %140 = sbr.rel (%p138) target = $region20
        $region19: #{transformer_forward.7} parent=11 // pred_region
          %s142 = ssub.s32 16, 16
          %143 = vsyncadd [#allocation6], %s142
          %s145 = sshll.u32 [#allocation7], 4
          %s146 = int_to_ptr.vmem [resolvable:$true] %s145
          %148 = dma.hbm_to_vmem [thread:$0]  %s2, 16, %s146, [#allocation6]
        $region20: #{transformer_forward.7} parent=11 // pred_fallthru
          _
      $region12: #{transformer_forward.7} parent=5 // pred_fallthru
        _
      %p149 = scmp.lt.s32.totalorder %s16, 2
      // Predicated region
      $region21: #{transformer_forward.7} parent=5 // pred_check
        %p150 = pneg %p149
      $region22: #{transformer_forward.7} parent=5 // pred_check_branch
        %152 = sbr.rel (%p150) target = $region24
      $region23: #{transformer_forward.7} parent=5 // pred_region
        // Predicated region
        $region25: #{transformer_forward.7} parent=23 // pred_check
          %p153 = pneg %p36
        $region26: #{transformer_forward.7} parent=23 // pred_check_branch
          %155 = sbr.rel (%p153) target = $region28
        $region27: #{transformer_forward.7} parent=23 // pred_region
          %s156 = sand.u32 %s26, 1
          %s157 = scalar_lea.sflag [#allocation3], %s156
          %s158 = sand.u32 %s26, 1
          %s159 = smul.addr %s158, 216
          %s160 = scalar_lea.vmem [#allocation2], %s159
          %s162 = ssub.s32 3456, 3456
          %163 = vsyncadd %s157, %s162
          %s164 = smul.addr %s16, 54
          %s165 = smul.addr %s164, 64
          %s166 = scalar_lea.hbm %s0, %s165
          %s167 = sshll.u32 %s160, 4
          %s168 = int_to_ptr.vmem [resolvable:$true] %s167
          %173 = dma.hbm_to_vmem [thread:$0]  %s166, 3456, %s168, %s157, 64, 64, 4
        $region28: #{transformer_forward.7} parent=23 // pred_fallthru
          _
      $region24: #{transformer_forward.7} parent=5 // pred_fallthru
        _
      %p174 = scmp.le.s32.totalorder 1, %s16
      %p175 = scmp.lt.s32.totalorder %s16, 3
      %p176 = pnand %p174, %p175
      %p177 = pneg %p176
      // Predicated region
      $region29: #{transformer_forward.7} parent=5 // pred_check
        _
      $region30: #{transformer_forward.7} parent=5 // pred_check_branch
        %179 = sbr.rel (%p176) target = $region32
      $region31: #{transformer_forward.7} parent=5 // pred_region
        %s180 = ssub.s32 %s16, 1
        %s181 = sand.u32 %s29, 1
        %s182 = scalar_lea.sflag [#allocation3], %s181
        %s183 = sand.u32 %s29, 1
        %s184 = smul.addr %s183, 216
        %s185 = scalar_lea.vmem [#allocation2], %s184
        // Predicated region
        $region33: #{transformer_forward.7} parent=31 // pred_check
          %p186 = pneg %p42
        $region34: #{transformer_forward.7} parent=31 // pred_check_branch
          %188 = sbr.rel (%p186) target = $region36
        $region35: #{transformer_forward.7} parent=31 // pred_region
          %189 = dma.done %s182, 3456
        $region36: #{transformer_forward.7} parent=31 // pred_fallthru
          _
        // Predicated region
        $region37: #{transformer_forward.7} parent=31 // pred_check
          %p190 = pneg %p63
        $region38: #{transformer_forward.7} parent=31 // pred_check_branch
          %192 = sbr.rel (%p190) target = $region40
        $region39: #{transformer_forward.7} parent=31 // pred_region
          %193 = dma.done [#allocation6], 2304
        $region40: #{transformer_forward.7} parent=31 // pred_fallthru
          _
        // Predicated region
        $region41: #{transformer_forward.7} parent=31 // pred_check
          %p194 = pneg %p84
        $region42: #{transformer_forward.7} parent=31 // pred_check_branch
          %196 = sbr.rel (%p194) target = $region44
        $region43: #{transformer_forward.7} parent=31 // pred_region
          %197 = dma.done [#allocation6], 16
        $region44: #{transformer_forward.7} parent=31 // pred_fallthru
          _
        %s198 = sand.u32 %s29, 1
        %s199 = scalar_lea.sflag [#allocation3], %s198
        %s200 = sand.u32 %s29, 1
        %s201 = smul.addr %s200, 216
        %s202 = scalar_lea.vmem [#allocation2], %s201
        %p203 = pneg %p42
        %p204 = pneg %p39
        %p205 = pneg %p63
        %p206 = pneg %p60
        %p207 = pneg %p84
        %p208 = pneg %p81
        %p209 = pneg %p110
        %p210 = pneg %p107
        %s211 = sand.u32 %s97, 1
        %s212 = scalar_lea.sflag [#allocation4], %s211
        %s213 = sand.u32 %s97, 1
        %s214 = smul.addr %s213, 256
        %s215 = scalar_lea.vmem [#allocation8], %s214
        %v217 = vld [vmem:[%s185] sm:$0xf]
        %v218 = vld [vmem:[%s185 + $0x4] sm:$0xf]
        %v219 = vld [vmem:[%s185 + $0x8] sm:$0x1]
        %v220 = vld [vmem:[%s185 + $0xc] sm:$0xf]
        %v221 = vld [vmem:[%s185 + $0x10] sm:$0xf]
        %v222 = vld [vmem:[%s185 + $0x14] sm:$0x1]
        %v223 = vld [vmem:[%s185 + $0x18] sm:$0xf]
        %v224 = vld [vmem:[%s185 + $0x1c] sm:$0xf]
        %v225 = vld [vmem:[%s185 + $0x20] sm:$0x1]
        %v226 = vld [vmem:[%s185 + $0x24] sm:$0xf]
        %v227 = vld [vmem:[%s185 + $0x28] sm:$0xf]
        %v228 = vld [vmem:[%s185 + $0x2c] sm:$0x1]
        %v229 = vld [vmem:[%s185 + $0x30] sm:$0xf]
        %v230 = vld [vmem:[%s185 + $0x34] sm:$0xf]
        %v231 = vld [vmem:[%s185 + $0x38] sm:$0x1]
        %v232 = vld [vmem:[%s185 + $0x3c] sm:$0xf]
        %v233 = vld [vmem:[%s185 + $0x40] sm:$0xf]
        %v234 = vld [vmem:[%s185 + $0x44] sm:$0x1]
        %v235 = vld [vmem:[%s185 + $0x48] sm:$0xf]
        %v236 = vld [vmem:[%s185 + $0x4c] sm:$0xf]
        %v237 = vld [vmem:[%s185 + $0x50] sm:$0x1]
        %v238 = vld [vmem:[%s185 + $0x54] sm:$0xf]
        %v239 = vld [vmem:[%s185 + $0x58] sm:$0xf]
        %v240 = vld [vmem:[%s185 + $0x5c] sm:$0x1]
        %v241 = vld [vmem:[%s185 + $0x60] sm:$0xf]
        %v242 = vld [vmem:[%s185 + $0x64] sm:$0xf]
        %v243 = vld [vmem:[%s185 + $0x68] sm:$0x1]
        %v244 = vld [vmem:[%s185 + $0x6c] sm:$0xf]
        %v245 = vld [vmem:[%s185 + $0x70] sm:$0xf]
        %v246 = vld [vmem:[%s185 + $0x74] sm:$0x1]
        %v247 = vld [vmem:[%s185 + $0x78] sm:$0xf]
        %v248 = vld [vmem:[%s185 + $0x7c] sm:$0xf]
        %v249 = vld [vmem:[%s185 + $0x80] sm:$0x1]
        %v250 = vld [vmem:[%s185 + $0x84] sm:$0xf]
        %v251 = vld [vmem:[%s185 + $0x88] sm:$0xf]
        %v252 = vld [vmem:[%s185 + $0x8c] sm:$0x1]
        %v253 = vld [vmem:[%s185 + $0x90] sm:$0xf]
        %v254 = vld [vmem:[%s185 + $0x94] sm:$0xf]
        %v255 = vld [vmem:[%s185 + $0x98] sm:$0x1]
        %v256 = vld [vmem:[%s185 + $0x9c] sm:$0xf]
        %v257 = vld [vmem:[%s185 + $0xa0] sm:$0xf]
        %v258 = vld [vmem:[%s185 + $0xa4] sm:$0x1]
        %v259 = vld [vmem:[%s185 + $0xa8] sm:$0xf]
        %v260 = vld [vmem:[%s185 + $0xac] sm:$0xf]
        %v261 = vld [vmem:[%s185 + $0xb0] sm:$0x1]
        %v262 = vld [vmem:[%s185 + $0xb4] sm:$0xf]
        %v263 = vld [vmem:[%s185 + $0xb8] sm:$0xf]
        %v264 = vld [vmem:[%s185 + $0xbc] sm:$0x1]
        %v265 = vld [vmem:[%s185 + $0xc0] sm:$0xf]
        %v266 = vld [vmem:[%s185 + $0xc4] sm:$0xf]
        %v267 = vld [vmem:[%s185 + $0xc8] sm:$0x1]
        %v268 = vld [vmem:[%s185 + $0xcc] sm:$0xf]
        %v269 = vld [vmem:[%s185 + $0xd0] sm:$0xf]
        %v270 = vld [vmem:[%s185 + $0xd4] sm:$0x1]
        %v303 = vunpack.c.l.b16 %v217
        %v304 = vunpack.c.l.b16 %v218
        %v305 = vunpack.c.l.b16 %v220
        %v306 = vunpack.c.l.b16 %v221
        %v307 = vunpack.c.l.b16 %v223
        %v308 = vunpack.c.l.b16 %v224
        %v309 = vunpack.c.l.b16 %v226
        %v310 = vunpack.c.l.b16 %v227
        %v311 = vunpack.c.l.b16 %v229
        %v312 = vunpack.c.l.b16 %v230
        %v313 = vunpack.c.l.b16 %v232
        %v314 = vunpack.c.l.b16 %v233
        %v315 = vunpack.c.l.b16 %v235
        %v316 = vunpack.c.l.b16 %v236
        %v317 = vunpack.c.l.b16 %v238
        %v318 = vunpack.c.l.b16 %v239
        %v319 = vunpack.c.l.b16 %v241
        %v320 = vunpack.c.l.b16 %v242
        %v321 = vunpack.c.l.b16 %v244
        %v322 = vunpack.c.l.b16 %v245
        %v323 = vunpack.c.l.b16 %v247
        %v324 = vunpack.c.l.b16 %v248
        %v325 = vunpack.c.l.b16 %v250
        %v326 = vunpack.c.l.b16 %v251
        %v327 = vunpack.c.l.b16 %v253
        %v328 = vunpack.c.l.b16 %v254
        %v329 = vunpack.c.l.b16 %v256
        %v330 = vunpack.c.l.b16 %v257
        %v331 = vunpack.c.l.b16 %v259
        %v332 = vunpack.c.l.b16 %v260
        %v333 = vunpack.c.l.b16 %v262
        %v334 = vunpack.c.l.b16 %v263
        %v335 = vpack.c.b16 %v304, %v303
        %v336 = vpack.c.b16 %v306, %v305
        %v337 = vpack.c.b16 %v308, %v307
        %v338 = vpack.c.b16 %v310, %v309
        %v339 = vpack.c.b16 %v312, %v311
        %v340 = vpack.c.b16 %v314, %v313
        %v341 = vpack.c.b16 %v316, %v315
        %v342 = vpack.c.b16 %v318, %v317
        %v343 = vpack.c.b16 %v320, %v319
        %v344 = vpack.c.b16 %v322, %v321
        %v345 = vpack.c.b16 %v324, %v323
        %v346 = vpack.c.b16 %v326, %v325
        %v347 = vpack.c.b16 %v328, %v327
        %v348 = vpack.c.b16 %v330, %v329
        %v349 = vpack.c.b16 %v332, %v331
        %v350 = vpack.c.b16 %v334, %v333
        %v367 = vunpack.c.l.b16 %v219
        %v368 = vunpack.c.l.b16 %v222
        %v369 = vunpack.c.l.b16 %v225
        %v370 = vunpack.c.l.b16 %v228
        %v371 = vunpack.c.l.b16 %v231
        %v372 = vunpack.c.l.b16 %v234
        %v373 = vunpack.c.l.b16 %v237
        %v374 = vunpack.c.l.b16 %v240
        %v375 = vunpack.c.l.b16 %v243
        %v376 = vunpack.c.l.b16 %v246
        %v377 = vunpack.c.l.b16 %v249
        %v378 = vunpack.c.l.b16 %v252
        %v379 = vunpack.c.l.b16 %v255
        %v380 = vunpack.c.l.b16 %v258
        %v381 = vunpack.c.l.b16 %v261
        %v382 = vunpack.c.l.b16 %v264
        %v383 = vpack.c.b16 %v367, %v367
        %v384 = vpack.c.b16 %v368, %v368
        %v385 = vpack.c.b16 %v369, %v369
        %v386 = vpack.c.b16 %v370, %v370
        %v387 = vpack.c.b16 %v371, %v371
        %v388 = vpack.c.b16 %v372, %v372
        %v389 = vpack.c.b16 %v373, %v373
        %v390 = vpack.c.b16 %v374, %v374
        %v391 = vpack.c.b16 %v375, %v375
        %v392 = vpack.c.b16 %v376, %v376
        %v393 = vpack.c.b16 %v377, %v377
        %v394 = vpack.c.b16 %v378, %v378
        %v395 = vpack.c.b16 %v379, %v379
        %v396 = vpack.c.b16 %v380, %v380
        %v397 = vpack.c.b16 %v381, %v381
        %v398 = vpack.c.b16 %v382, %v382
        %vm399 = vsmask.f32 7424
        %v401 = vshrl.u32 %v335, 16
        %v403 = vshll.u32 %v335, 16
        %v405 = vrot.slane %v403, 1
        %v406 = vor.u32 %v401, %v405
        %v408 = vshll.u32 %v383, 16
        %v410 = vrot.slane %v408, 1
        %v411 = vsel %vm399, %v406, %v410
        %v413 = vshrl.u32 %v336, 16
        %v415 = vshll.u32 %v336, 16
        %v417 = vrot.slane %v415, 1
        %v418 = vor.u32 %v413, %v417
        %v420 = vshll.u32 %v384, 16
        %v422 = vrot.slane %v420, 1
        %v423 = vsel %vm399, %v418, %v422
        %v425 = vshrl.u32 %v337, 16
        %v427 = vshll.u32 %v337, 16
        %v429 = vrot.slane %v427, 1
        %v430 = vor.u32 %v425, %v429
        %v432 = vshll.u32 %v385, 16
        %v434 = vrot.slane %v432, 1
        %v435 = vsel %vm399, %v430, %v434
        %v437 = vshrl.u32 %v338, 16
        %v439 = vshll.u32 %v338, 16
        %v441 = vrot.slane %v439, 1
        %v442 = vor.u32 %v437, %v441
        %v444 = vshll.u32 %v386, 16
        %v446 = vrot.slane %v444, 1
        %v447 = vsel %vm399, %v442, %v446
        %v449 = vshrl.u32 %v339, 16
        %v451 = vshll.u32 %v339, 16
        %v453 = vrot.slane %v451, 1
        %v454 = vor.u32 %v449, %v453
        %v456 = vshll.u32 %v387, 16
        %v458 = vrot.slane %v456, 1
        %v459 = vsel %vm399, %v454, %v458
        %v461 = vshrl.u32 %v340, 16
        %v463 = vshll.u32 %v340, 16
        %v465 = vrot.slane %v463, 1
        %v466 = vor.u32 %v461, %v465
        %v468 = vshll.u32 %v388, 16
        %v470 = vrot.slane %v468, 1
        %v471 = vsel %vm399, %v466, %v470
        %v473 = vshrl.u32 %v341, 16
        %v475 = vshll.u32 %v341, 16
        %v477 = vrot.slane %v475, 1
        %v478 = vor.u32 %v473, %v477
        %v480 = vshll.u32 %v389, 16
        %v482 = vrot.slane %v480, 1
        %v483 = vsel %vm399, %v478, %v482
        %v485 = vshrl.u32 %v342, 16
        %v487 = vshll.u32 %v342, 16
        %v489 = vrot.slane %v487, 1
        %v490 = vor.u32 %v485, %v489
        %v492 = vshll.u32 %v390, 16
        %v494 = vrot.slane %v492, 1
        %v495 = vsel %vm399, %v490, %v494
        %v497 = vshrl.u32 %v343, 16
        %v499 = vshll.u32 %v343, 16
        %v501 = vrot.slane %v499, 1
        %v502 = vor.u32 %v497, %v501
        %v504 = vshll.u32 %v391, 16
        %v506 = vrot.slane %v504, 1
        %v507 = vsel %vm399, %v502, %v506
        %v509 = vshrl.u32 %v344, 16
        %v511 = vshll.u32 %v344, 16
        %v513 = vrot.slane %v511, 1
        %v514 = vor.u32 %v509, %v513
        %v516 = vshll.u32 %v392, 16
        %v518 = vrot.slane %v516, 1
        %v519 = vsel %vm399, %v514, %v518
        %v521 = vshrl.u32 %v345, 16
        %v523 = vshll.u32 %v345, 16
        %v525 = vrot.slane %v523, 1
        %v526 = vor.u32 %v521, %v525
        %v528 = vshll.u32 %v393, 16
        %v530 = vrot.slane %v528, 1
        %v531 = vsel %vm399, %v526, %v530
        %v533 = vshrl.u32 %v346, 16
        %v535 = vshll.u32 %v346, 16
        %v537 = vrot.slane %v535, 1
        %v538 = vor.u32 %v533, %v537
        %v540 = vshll.u32 %v394, 16
        %v542 = vrot.slane %v540, 1
        %v543 = vsel %vm399, %v538, %v542
        %v545 = vshrl.u32 %v347, 16
        %v547 = vshll.u32 %v347, 16
        %v549 = vrot.slane %v547, 1
        %v550 = vor.u32 %v545, %v549
        %v552 = vshll.u32 %v395, 16
        %v554 = vrot.slane %v552, 1
        %v555 = vsel %vm399, %v550, %v554
        %v557 = vshrl.u32 %v348, 16
        %v559 = vshll.u32 %v348, 16
        %v561 = vrot.slane %v559, 1
        %v562 = vor.u32 %v557, %v561
        %v564 = vshll.u32 %v396, 16
        %v566 = vrot.slane %v564, 1
        %v567 = vsel %vm399, %v562, %v566
        %v569 = vshrl.u32 %v349, 16
        %v571 = vshll.u32 %v349, 16
        %v573 = vrot.slane %v571, 1
        %v574 = vor.u32 %v569, %v573
        %v576 = vshll.u32 %v397, 16
        %v578 = vrot.slane %v576, 1
        %v579 = vsel %vm399, %v574, %v578
        %v581 = vshrl.u32 %v350, 16
        %v583 = vshll.u32 %v350, 16
        %v585 = vrot.slane %v583, 1
        %v586 = vor.u32 %v581, %v585
        %v588 = vshll.u32 %v398, 16
        %v590 = vrot.slane %v588, 1
        %v591 = vsel %vm399, %v586, %v590
        %592 = vrot.lane.b32.xlu0 %v411, 32
        %v593 = vpop.permute.xlu0 %592
        %594 = vrot.lane.b32.xlu0 %v423, 32
        %v595 = vpop.permute.xlu0 %594
        %596 = vrot.lane.b32.xlu0 %v435, 32
        %v597 = vpop.permute.xlu0 %596
        %598 = vrot.lane.b32.xlu0 %v447, 32
        %v599 = vpop.permute.xlu0 %598
        %600 = vrot.lane.b32.xlu0 %v459, 32
        %v601 = vpop.permute.xlu0 %600
        %602 = vrot.lane.b32.xlu0 %v471, 32
        %v603 = vpop.permute.xlu0 %602
        %604 = vrot.lane.b32.xlu0 %v483, 32
        %v605 = vpop.permute.xlu0 %604
        %606 = vrot.lane.b32.xlu0 %v495, 32
        %v607 = vpop.permute.xlu0 %606
        %608 = vrot.lane.b32.xlu0 %v507, 32
        %v609 = vpop.permute.xlu0 %608
        %610 = vrot.lane.b32.xlu0 %v519, 32
        %v611 = vpop.permute.xlu0 %610
        %612 = vrot.lane.b32.xlu0 %v531, 32
        %v613 = vpop.permute.xlu0 %612
        %614 = vrot.lane.b32.xlu0 %v543, 32
        %v615 = vpop.permute.xlu0 %614
        %616 = vrot.lane.b32.xlu0 %v555, 32
        %v617 = vpop.permute.xlu0 %616
        %618 = vrot.lane.b32.xlu0 %v567, 32
        %v619 = vpop.permute.xlu0 %618
        %620 = vrot.lane.b32.xlu0 %v579, 32
        %v621 = vpop.permute.xlu0 %620
        %622 = vrot.lane.b32.xlu0 %v591, 32
        %v623 = vpop.permute.xlu0 %622
        %vm624 = vcmask 1046528
        %v625 = vrot.slane %v335, 1
        %v626 = vrot.slane %v383, 1
        %v627 = vsel %vm624, %v625, %v626
        %v628 = vrot.slane %v336, 1
        %v629 = vrot.slane %v384, 1
        %v630 = vsel %vm624, %v628, %v629
        %v631 = vrot.slane %v337, 1
        %v632 = vrot.slane %v385, 1
        %v633 = vsel %vm624, %v631, %v632
        %v634 = vrot.slane %v338, 1
        %v635 = vrot.slane %v386, 1
        %v636 = vsel %vm624, %v634, %v635
        %v637 = vrot.slane %v339, 1
        %v638 = vrot.slane %v387, 1
        %v639 = vsel %vm624, %v637, %v638
        %v640 = vrot.slane %v340, 1
        %v641 = vrot.slane %v388, 1
        %v642 = vsel %vm624, %v640, %v641
        %v643 = vrot.slane %v341, 1
        %v644 = vrot.slane %v389, 1
        %v645 = vsel %vm624, %v643, %v644
        %v646 = vrot.slane %v342, 1
        %v647 = vrot.slane %v390, 1
        %v648 = vsel %vm624, %v646, %v647
        %v649 = vrot.slane %v343, 1
        %v650 = vrot.slane %v391, 1
        %v651 = vsel %vm624, %v649, %v650
        %v652 = vrot.slane %v344, 1
        %v653 = vrot.slane %v392, 1
        %v654 = vsel %vm624, %v652, %v653
        %v655 = vrot.slane %v345, 1
        %v656 = vrot.slane %v393, 1
        %v657 = vsel %vm624, %v655, %v656
        %v658 = vrot.slane %v346, 1
        %v659 = vrot.slane %v394, 1
        %v660 = vsel %vm624, %v658, %v659
        %v661 = vrot.slane %v347, 1
        %v662 = vrot.slane %v395, 1
        %v663 = vsel %vm624, %v661, %v662
        %v664 = vrot.slane %v348, 1
        %v665 = vrot.slane %v396, 1
        %v666 = vsel %vm624, %v664, %v665
        %v667 = vrot.slane %v349, 1
        %v668 = vrot.slane %v397, 1
        %v669 = vsel %vm624, %v667, %v668
        %v670 = vrot.slane %v350, 1
        %v671 = vrot.slane %v398, 1
        %v672 = vsel %vm624, %v670, %v671
        %673 = vrot.lane.b32.xlu0 %v627, 64
        %v674 = vpop.permute.xlu0 %673
        %675 = vrot.lane.b32.xlu0 %v630, 64
        %v676 = vpop.permute.xlu0 %675
        %677 = vrot.lane.b32.xlu0 %v633, 64
        %v678 = vpop.permute.xlu0 %677
        %679 = vrot.lane.b32.xlu0 %v636, 64
        %v680 = vpop.permute.xlu0 %679
        %681 = vrot.lane.b32.xlu0 %v639, 64
        %v682 = vpop.permute.xlu0 %681
        %683 = vrot.lane.b32.xlu0 %v642, 64
        %v684 = vpop.permute.xlu0 %683
        %685 = vrot.lane.b32.xlu0 %v645, 64
        %v686 = vpop.permute.xlu0 %685
        %687 = vrot.lane.b32.xlu0 %v648, 64
        %v688 = vpop.permute.xlu0 %687
        %689 = vrot.lane.b32.xlu0 %v651, 64
        %v690 = vpop.permute.xlu0 %689
        %691 = vrot.lane.b32.xlu0 %v654, 64
        %v692 = vpop.permute.xlu0 %691
        %693 = vrot.lane.b32.xlu0 %v657, 64
        %v694 = vpop.permute.xlu0 %693
        %695 = vrot.lane.b32.xlu0 %v660, 64
        %v696 = vpop.permute.xlu0 %695
        %697 = vrot.lane.b32.xlu0 %v663, 64
        %v698 = vpop.permute.xlu0 %697
        %699 = vrot.lane.b32.xlu0 %v666, 64
        %v700 = vpop.permute.xlu0 %699
        %701 = vrot.lane.b32.xlu0 %v669, 64
        %v702 = vpop.permute.xlu0 %701
        %703 = vrot.lane.b32.xlu0 %v672, 64
        %v704 = vpop.permute.xlu0 %703
        %v707 = vunpack.c.l.b16 %v265
        %v708 = vunpack.c.l.b16 %v266
        %v709 = vpack.c.b16 %v708, %v707
        %710 = vrot.lane.b32.xlu0 %v336, 96
        %v711 = vpop.permute.xlu0 %710
        %712 = vrot.lane.b32.xlu0 %v337, 96
        %v713 = vpop.permute.xlu0 %712
        %714 = vrot.lane.b32.xlu0 %v338, 96
        %v715 = vpop.permute.xlu0 %714
        %716 = vrot.lane.b32.xlu0 %v339, 96
        %v717 = vpop.permute.xlu0 %716
        %718 = vrot.lane.b32.xlu0 %v340, 96
        %v719 = vpop.permute.xlu0 %718
        %720 = vrot.lane.b32.xlu0 %v341, 96
        %v721 = vpop.permute.xlu0 %720
        %722 = vrot.lane.b32.xlu0 %v342, 96
        %v723 = vpop.permute.xlu0 %722
        %724 = vrot.lane.b32.xlu0 %v343, 96
        %v725 = vpop.permute.xlu0 %724
        %726 = vrot.lane.b32.xlu0 %v344, 96
        %v727 = vpop.permute.xlu0 %726
        %728 = vrot.lane.b32.xlu0 %v345, 96
        %v729 = vpop.permute.xlu0 %728
        %730 = vrot.lane.b32.xlu0 %v346, 96
        %v731 = vpop.permute.xlu0 %730
        %732 = vrot.lane.b32.xlu0 %v347, 96
        %v733 = vpop.permute.xlu0 %732
        %734 = vrot.lane.b32.xlu0 %v348, 96
        %v735 = vpop.permute.xlu0 %734
        %736 = vrot.lane.b32.xlu0 %v349, 96
        %v737 = vpop.permute.xlu0 %736
        %738 = vrot.lane.b32.xlu0 %v350, 96
        %v739 = vpop.permute.xlu0 %738
        %740 = vrot.lane.b32.xlu0 %v709, 96
        %v741 = vpop.permute.xlu0 %740
        %v743 = vunpack.c.l.b16 %v267
        %v744 = vpack.c.b16 %v743, %v743
        %v746 = vshrl.u32 %v709, 16
        %v748 = vshll.u32 %v709, 16
        %v750 = vrot.slane %v748, 1
        %v751 = vor.u32 %v746, %v750
        %v753 = vshll.u32 %v744, 16
        %v755 = vrot.slane %v753, 1
        %v756 = vsel %vm399, %v751, %v755
        %v757 = vrot.slane %v709, 1
        %v758 = vrot.slane %v744, 1
        %v759 = vsel %vm624, %v757, %v758
        %760 = vrot.lane.b32.xlu0 %v630, 32
        %v761 = vpop.permute.xlu0 %760
        %762 = vrot.lane.b32.xlu0 %v633, 32
        %v763 = vpop.permute.xlu0 %762
        %764 = vrot.lane.b32.xlu0 %v636, 32
        %v765 = vpop.permute.xlu0 %764
        %766 = vrot.lane.b32.xlu0 %v639, 32
        %v767 = vpop.permute.xlu0 %766
        %768 = vrot.lane.b32.xlu0 %v642, 32
        %v769 = vpop.permute.xlu0 %768
        %770 = vrot.lane.b32.xlu0 %v645, 32
        %v771 = vpop.permute.xlu0 %770
        %772 = vrot.lane.b32.xlu0 %v648, 32
        %v773 = vpop.permute.xlu0 %772
        %774 = vrot.lane.b32.xlu0 %v651, 32
        %v775 = vpop.permute.xlu0 %774
        %776 = vrot.lane.b32.xlu0 %v654, 32
        %v777 = vpop.permute.xlu0 %776
        %778 = vrot.lane.b32.xlu0 %v657, 32
        %v779 = vpop.permute.xlu0 %778
        %780 = vrot.lane.b32.xlu0 %v660, 32
        %v781 = vpop.permute.xlu0 %780
        %782 = vrot.lane.b32.xlu0 %v663, 32
        %v783 = vpop.permute.xlu0 %782
        %784 = vrot.lane.b32.xlu0 %v666, 32
        %v785 = vpop.permute.xlu0 %784
        %786 = vrot.lane.b32.xlu0 %v669, 32
        %v787 = vpop.permute.xlu0 %786
        %788 = vrot.lane.b32.xlu0 %v672, 32
        %v789 = vpop.permute.xlu0 %788
        %790 = vrot.lane.b32.xlu0 %v759, 32
        %v791 = vpop.permute.xlu0 %790
        %v794 = vunpack.c.l.b16 %v268
        %v795 = vunpack.c.l.b16 %v269
        %v796 = vpack.c.b16 %v795, %v794
        %797 = vrot.lane.b32.xlu0 %v337, 64
        %v798 = vpop.permute.xlu0 %797
        %799 = vrot.lane.b32.xlu0 %v338, 64
        %v800 = vpop.permute.xlu0 %799
        %801 = vrot.lane.b32.xlu0 %v339, 64
        %v802 = vpop.permute.xlu0 %801
        %803 = vrot.lane.b32.xlu0 %v340, 64
        %v804 = vpop.permute.xlu0 %803
        %805 = vrot.lane.b32.xlu0 %v341, 64
        %v806 = vpop.permute.xlu0 %805
        %807 = vrot.lane.b32.xlu0 %v342, 64
        %v808 = vpop.permute.xlu0 %807
        %809 = vrot.lane.b32.xlu0 %v343, 64
        %v810 = vpop.permute.xlu0 %809
        %811 = vrot.lane.b32.xlu0 %v344, 64
        %v812 = vpop.permute.xlu0 %811
        %813 = vrot.lane.b32.xlu0 %v345, 64
        %v814 = vpop.permute.xlu0 %813
        %815 = vrot.lane.b32.xlu0 %v346, 64
        %v816 = vpop.permute.xlu0 %815
        %817 = vrot.lane.b32.xlu0 %v347, 64
        %v818 = vpop.permute.xlu0 %817
        %819 = vrot.lane.b32.xlu0 %v348, 64
        %v820 = vpop.permute.xlu0 %819
        %821 = vrot.lane.b32.xlu0 %v349, 64
        %v822 = vpop.permute.xlu0 %821
        %823 = vrot.lane.b32.xlu0 %v350, 64
        %v824 = vpop.permute.xlu0 %823
        %825 = vrot.lane.b32.xlu0 %v709, 64
        %v826 = vpop.permute.xlu0 %825
        %827 = vrot.lane.b32.xlu0 %v796, 64
        %v828 = vpop.permute.xlu0 %827
        %v830 = vunpack.c.l.b16 %v270
        %v831 = vpack.c.b16 %v830, %v830
        %v833 = vshrl.u32 %v796, 16
        %v835 = vshll.u32 %v796, 16
        %v837 = vrot.slane %v835, 1
        %v838 = vor.u32 %v833, %v837
        %v840 = vshll.u32 %v831, 16
        %v842 = vrot.slane %v840, 1
        %v843 = vsel %vm399, %v838, %v842
        %844 = vrot.lane.b32.xlu0 %v435, 96
        %v845 = vpop.permute.xlu0 %844
        %846 = vrot.lane.b32.xlu0 %v447, 96
        %v847 = vpop.permute.xlu0 %846
        %848 = vrot.lane.b32.xlu0 %v459, 96
        %v849 = vpop.permute.xlu0 %848
        %850 = vrot.lane.b32.xlu0 %v471, 96
        %v851 = vpop.permute.xlu0 %850
        %852 = vrot.lane.b32.xlu0 %v483, 96
        %v853 = vpop.permute.xlu0 %852
        %854 = vrot.lane.b32.xlu0 %v495, 96
        %v855 = vpop.permute.xlu0 %854
        %856 = vrot.lane.b32.xlu0 %v507, 96
        %v857 = vpop.permute.xlu0 %856
        %858 = vrot.lane.b32.xlu0 %v519, 96
        %v859 = vpop.permute.xlu0 %858
        %860 = vrot.lane.b32.xlu0 %v531, 96
        %v861 = vpop.permute.xlu0 %860
        %862 = vrot.lane.b32.xlu0 %v543, 96
        %v863 = vpop.permute.xlu0 %862
        %864 = vrot.lane.b32.xlu0 %v555, 96
        %v865 = vpop.permute.xlu0 %864
        %866 = vrot.lane.b32.xlu0 %v567, 96
        %v867 = vpop.permute.xlu0 %866
        %868 = vrot.lane.b32.xlu0 %v579, 96
        %v869 = vpop.permute.xlu0 %868
        %870 = vrot.lane.b32.xlu0 %v591, 96
        %v871 = vpop.permute.xlu0 %870
        %872 = vrot.lane.b32.xlu0 %v756, 96
        %v873 = vpop.permute.xlu0 %872
        %874 = vrot.lane.b32.xlu0 %v843, 96
        %v875 = vpop.permute.xlu0 %874
        %v876 = vrot.slane %v796, 1
        %v877 = vrot.slane %v831, 1
        %v878 = vsel %vm624, %v876, %v877
        %vm879 = vcmask 261120
        %v881 = vsel %vm879, %v335, %v593
        %v883 = vsel %vm879, %v336, %v595
        %v885 = vsel %vm879, %v337, %v597
        %v887 = vsel %vm879, %v338, %v599
        %v889 = vsel %vm879, %v339, %v601
        %v891 = vsel %vm879, %v340, %v603
        %v893 = vsel %vm879, %v341, %v605
        %v895 = vsel %vm879, %v342, %v607
        %v897 = vsel %vm879, %v343, %v609
        %v899 = vsel %vm879, %v344, %v611
        %v901 = vsel %vm879, %v345, %v613
        %v903 = vsel %vm879, %v346, %v615
        %v905 = vsel %vm879, %v347, %v617
        %v907 = vsel %vm879, %v348, %v619
        %v909 = vsel %vm879, %v349, %v621
        %v911 = vsel %vm879, %v350, %v623
        %vm912 = vcmask 523264
        %v914 = vsel %vm912, %v881, %v674
        %v916 = vsel %vm912, %v883, %v676
        %v918 = vsel %vm912, %v885, %v678
        %v920 = vsel %vm912, %v887, %v680
        %v922 = vsel %vm912, %v889, %v682
        %v924 = vsel %vm912, %v891, %v684
        %v926 = vsel %vm912, %v893, %v686
        %v928 = vsel %vm912, %v895, %v688
        %v930 = vsel %vm912, %v897, %v690
        %v932 = vsel %vm912, %v899, %v692
        %v934 = vsel %vm912, %v901, %v694
        %v936 = vsel %vm912, %v903, %v696
        %v938 = vsel %vm912, %v905, %v698
        %v940 = vsel %vm912, %v907, %v700
        %v942 = vsel %vm912, %v909, %v702
        %v944 = vsel %vm912, %v911, %v704
        %vm945 = vcmask 785408
        %v947 = vsel %vm945, %v914, %v711
        %v950 = vsel %vm945, %v916, %v713
        %v953 = vsel %vm945, %v918, %v715
        %v956 = vsel %vm945, %v920, %v717
        %v959 = vsel %vm945, %v922, %v719
        %v962 = vsel %vm945, %v924, %v721
        %v965 = vsel %vm945, %v926, %v723
        %v968 = vsel %vm945, %v928, %v725
        %v971 = vsel %vm945, %v930, %v727
        %v974 = vsel %vm945, %v932, %v729
        %v977 = vsel %vm945, %v934, %v731
        %v980 = vsel %vm945, %v936, %v733
        %v983 = vsel %vm945, %v938, %v735
        %v986 = vsel %vm945, %v940, %v737
        %v989 = vsel %vm945, %v942, %v739
        %v992 = vsel %vm945, %v944, %v741
        %v996 = vsel %vm879, %v423, %v761
        %v999 = vsel %vm879, %v435, %v763
        %v1002 = vsel %vm879, %v447, %v765
        %v1005 = vsel %vm879, %v459, %v767
        %v1008 = vsel %vm879, %v471, %v769
        %v1011 = vsel %vm879, %v483, %v771
        %v1014 = vsel %vm879, %v495, %v773
        %v1017 = vsel %vm879, %v507, %v775
        %v1020 = vsel %vm879, %v519, %v777
        %v1023 = vsel %vm879, %v531, %v779
        %v1026 = vsel %vm879, %v543, %v781
        %v1029 = vsel %vm879, %v555, %v783
        %v1032 = vsel %vm879, %v567, %v785
        %v1035 = vsel %vm879, %v579, %v787
        %v1038 = vsel %vm879, %v591, %v789
        %v1041 = vsel %vm879, %v756, %v791
        %v1043 = vsel %vm912, %v996, %v798
        %v1045 = vsel %vm912, %v999, %v800
        %v1047 = vsel %vm912, %v1002, %v802
        %v1049 = vsel %vm912, %v1005, %v804
        %v1051 = vsel %vm912, %v1008, %v806
        %v1053 = vsel %vm912, %v1011, %v808
        %v1055 = vsel %vm912, %v1014, %v810
        %v1057 = vsel %vm912, %v1017, %v812
        %v1059 = vsel %vm912, %v1020, %v814
        %v1061 = vsel %vm912, %v1023, %v816
        %v1063 = vsel %vm912, %v1026, %v818
        %v1065 = vsel %vm912, %v1029, %v820
        %v1067 = vsel %vm912, %v1032, %v822
        %v1069 = vsel %vm912, %v1035, %v824
        %v1071 = vsel %vm912, %v1038, %v826
        %v1073 = vsel %vm912, %v1041, %v828
        %v1075 = vsel %vm945, %v1043, %v845
        %v1078 = vsel %vm945, %v1045, %v847
        %v1081 = vsel %vm945, %v1047, %v849
        %v1084 = vsel %vm945, %v1049, %v851
        %v1087 = vsel %vm945, %v1051, %v853
        %v1090 = vsel %vm945, %v1053, %v855
        %v1093 = vsel %vm945, %v1055, %v857
        %v1096 = vsel %vm945, %v1057, %v859
        %v1099 = vsel %vm945, %v1059, %v861
        %v1102 = vsel %vm945, %v1061, %v863
        %v1105 = vsel %vm945, %v1063, %v865
        %v1108 = vsel %vm945, %v1065, %v867
        %v1111 = vsel %vm945, %v1067, %v869
        %v1114 = vsel %vm945, %v1069, %v871
        %v1117 = vsel %vm945, %v1071, %v873
        %v1120 = vsel %vm945, %v1073, %v875
        %v1122 = vld [vmem:[#allocation5] sm:$0xf]
        %v1123 = vld [vmem:[#allocation5 + $0x4] sm:$0xf]
        %v1124 = vld [vmem:[#allocation5 + $0x8] sm:$0xf]
        %v1125 = vld [vmem:[#allocation5 + $0xc] sm:$0xf]
        %v1126 = vld [vmem:[#allocation5 + $0x10] sm:$0xf]
        %v1127 = vld [vmem:[#allocation5 + $0x14] sm:$0xf]
        %v1128 = vld [vmem:[#allocation5 + $0x18] sm:$0xf]
        %v1129 = vld [vmem:[#allocation5 + $0x1c] sm:$0xf]
        %v1130 = vld [vmem:[#allocation5 + $0x20] sm:$0xf]
        %v1131 = vld [vmem:[#allocation5 + $0x24] sm:$0xf]
        %v1132 = vld [vmem:[#allocation5 + $0x28] sm:$0xf]
        %v1133 = vld [vmem:[#allocation5 + $0x2c] sm:$0xf]
        %v1134 = vld [vmem:[#allocation5 + $0x30] sm:$0xf]
        %v1135 = vld [vmem:[#allocation5 + $0x34] sm:$0xf]
        %v1136 = vld [vmem:[#allocation5 + $0x38] sm:$0xf]
        %v1137 = vld [vmem:[#allocation5 + $0x3c] sm:$0xf]
        %v1138 = vld [vmem:[#allocation5 + $0x40] sm:$0xf]
        %v1139 = vld [vmem:[#allocation5 + $0x44] sm:$0xf]
        %v1140 = vld [vmem:[#allocation5 + $0x48] sm:$0xf]
        %v1141 = vld [vmem:[#allocation5 + $0x4c] sm:$0xf]
        %v1142 = vld [vmem:[#allocation5 + $0x50] sm:$0xf]
        %v1143 = vld [vmem:[#allocation5 + $0x54] sm:$0xf]
        %v1144 = vld [vmem:[#allocation5 + $0x58] sm:$0xf]
        %v1145 = vld [vmem:[#allocation5 + $0x5c] sm:$0xf]
        %v1146 = vld [vmem:[#allocation5 + $0x60] sm:$0xf]
        %v1147 = vld [vmem:[#allocation5 + $0x64] sm:$0xf]
        %v1148 = vld [vmem:[#allocation5 + $0x68] sm:$0xf]
        %v1149 = vld [vmem:[#allocation5 + $0x6c] sm:$0xf]
        %v1150 = vld [vmem:[#allocation5 + $0x70] sm:$0xf]
        %v1151 = vld [vmem:[#allocation5 + $0x74] sm:$0xf]
        %v1152 = vld [vmem:[#allocation5 + $0x78] sm:$0xf]
        %v1153 = vld [vmem:[#allocation5 + $0x7c] sm:$0xf]
        %v1154 = vld [vmem:[#allocation5 + $0x80] sm:$0xf]
        %v1155 = vld [vmem:[#allocation5 + $0x84] sm:$0xf]
        %v1156 = vld [vmem:[#allocation5 + $0x88] sm:$0xf]
        %v1157 = vld [vmem:[#allocation5 + $0x8c] sm:$0xf]
        %v1158 = vld [vmem:[#allocation7] sm:$0x1]
        %v1160 = vlaneseq
        %v1161 = vshrl.u32 %v1160, 7
        %v1162 = vsub.s32 0, %v1161
        %v1163 = vrot.slane %v1158, %v1162
        %v1201 = vunpack.c.l.b16 %v1122
        %v1202 = vunpack.c.l.b16 %v1123
        %v1203 = vunpack.c.l.b16 %v1124
        %v1204 = vunpack.c.l.b16 %v1125
        %v1205 = vunpack.c.l.b16 %v1126
        %v1206 = vunpack.c.l.b16 %v1127
        %v1207 = vunpack.c.l.b16 %v1128
        %v1208 = vunpack.c.l.b16 %v1129
        %v1209 = vunpack.c.l.b16 %v1130
        %v1210 = vunpack.c.l.b16 %v1131
        %v1211 = vunpack.c.l.b16 %v1132
        %v1212 = vunpack.c.l.b16 %v1133
        %v1213 = vunpack.c.l.b16 %v1134
        %v1214 = vunpack.c.l.b16 %v1135
        %v1215 = vunpack.c.l.b16 %v1136
        %v1216 = vunpack.c.l.b16 %v1137
        %v1217 = vunpack.c.l.b16 %v1138
        %v1218 = vunpack.c.l.b16 %v1139
        %v1219 = vunpack.c.l.b16 %v1140
        %v1220 = vunpack.c.l.b16 %v1141
        %v1221 = vunpack.c.l.b16 %v1142
        %v1222 = vunpack.c.l.b16 %v1143
        %v1223 = vunpack.c.l.b16 %v1144
        %v1224 = vunpack.c.l.b16 %v1145
        %v1225 = vunpack.c.l.b16 %v1146
        %v1226 = vunpack.c.l.b16 %v1147
        %v1227 = vunpack.c.l.b16 %v1148
        %v1228 = vunpack.c.l.b16 %v1149
        %v1229 = vunpack.c.l.b16 %v1150
        %v1230 = vunpack.c.l.b16 %v1151
        %v1231 = vunpack.c.l.b16 %v1152
        %v1232 = vunpack.c.l.b16 %v1153
        %v1233 = vunpack.c.l.b16 %v1154
        %v1234 = vunpack.c.l.b16 %v1155
        %v1235 = vunpack.c.l.b16 %v1156
        %v1236 = vunpack.c.l.b16 %v1157
        %v1237 = vpack.c.b16 %v1202, %v1201
        %v1238 = vpack.c.b16 %v1204, %v1203
        %v1239 = vpack.c.b16 %v1206, %v1205
        %v1240 = vpack.c.b16 %v1208, %v1207
        %v1241 = vpack.c.b16 %v1210, %v1209
        %v1242 = vpack.c.b16 %v1212, %v1211
        %v1243 = vpack.c.b16 %v1214, %v1213
        %v1244 = vpack.c.b16 %v1216, %v1215
        %v1245 = vpack.c.b16 %v1218, %v1217
        %v1246 = vpack.c.b16 %v1220, %v1219
        %v1247 = vpack.c.b16 %v1222, %v1221
        %v1248 = vpack.c.b16 %v1224, %v1223
        %v1249 = vpack.c.b16 %v1226, %v1225
        %v1250 = vpack.c.b16 %v1228, %v1227
        %v1251 = vpack.c.b16 %v1230, %v1229
        %v1252 = vpack.c.b16 %v1232, %v1231
        %v1253 = vpack.c.b16 %v1234, %v1233
        %v1254 = vpack.c.b16 %v1236, %v1235
        %v1274 = vsel %vm879, %v633, 0
        %v1277 = vsel %vm879, %v636, 0
        %v1280 = vsel %vm879, %v639, 0
        %v1283 = vsel %vm879, %v642, 0
        %v1286 = vsel %vm879, %v645, 0
        %v1289 = vsel %vm879, %v648, 0
        %v1292 = vsel %vm879, %v651, 0
        %v1295 = vsel %vm879, %v654, 0
        %v1298 = vsel %vm879, %v657, 0
        %v1301 = vsel %vm879, %v660, 0
        %v1304 = vsel %vm879, %v663, 0
        %v1307 = vsel %vm879, %v666, 0
        %v1310 = vsel %vm879, %v669, 0
        %v1313 = vsel %vm879, %v672, 0
        %v1316 = vsel %vm879, %v759, 0
        %v1319 = vsel %vm879, %v878, 0
        %1321 = vmatprep.subr.bf16.mxu0 0
        %1322 = vmatpush1.bf16.msra.mxu0 %v1237
        %1323 = vmatprep.subr.bf16.mxu0 0
        %1324 = vmatpush1.bf16.msra.mxu0 %v1238
        %1325 = vmatprep.subr.bf16.mxu0 0
        %1326 = vmatpush1.bf16.msra.mxu0 %v1239
        %1327 = vmatprep.subr.bf16.mxu0 0
        %1328 = vmatpush1.bf16.msra.mxu0 %v1240
        %1329 = vmatprep.subr.bf16.mxu0 0
        %1330 = vmatpush1.bf16.msra.mxu0 %v1241
        %1331 = vmatprep.subr.bf16.mxu0 0
        %1332 = vmatpush1.bf16.msra.mxu0 %v1242
        %1333 = vmatprep.subr.bf16.mxu0 0
        %1334 = vmatpush1.bf16.msra.mxu0 %v1243
        %1335 = vmatprep.subr.bf16.mxu0 0
        %1336 = vmatpush1.bf16.msra.mxu0 %v1244
        %1337 = vmatprep.subr.bf16.mxu0 0
        %1338 = vmatpush1.bf16.msra.mxu0 %v1245
        %1339 = vmatprep.subr.bf16.mxu0 0
        %1340 = vmatpush1.bf16.msra.mxu0 %v1246
        %1341 = vmatprep.subr.bf16.mxu0 0
        %1342 = vmatpush1.bf16.msra.mxu0 %v1247
        %1343 = vmatprep.subr.bf16.mxu0 0
        %1344 = vmatpush1.bf16.msra.mxu0 %v1248
        %1345 = vmatprep.subr.bf16.mxu0 0
        %1346 = vmatpush1.bf16.msra.mxu0 %v1249
        %1347 = vmatprep.subr.bf16.mxu0 0
        %1348 = vmatpush1.bf16.msra.mxu0 %v1250
        %1349 = vmatprep.subr.bf16.mxu0 0
        %1350 = vmatpush1.bf16.msra.mxu0 %v1251
        %1351 = vmatprep.subr.bf16.mxu0 0
        %1352 = vmatpush1.bf16.msra.mxu0 %v1252
        %1353 = vmatprep.mubr.bf16.mxu0 %v1075
        %1354 = vmatmul.mubr.bf16.gmra.mrb[0].mxu0 %v947
        %v1355 = vpop.f32.mrb[0].mxu0
        %v1356 = vadd.f32 %v1163, %v1355
        %v1357 = vpop.f32.mrb[0].mxu0
        %v1358 = vpop.f32.mrb[0].mxu0
        %v1359 = vadd.f32 %v1163, %v1358
        %v1360 = vpop.f32.mrb[0].mxu0
        %1361 = vmatprep.mubr.bf16.mxu0 %v1078
        %1362 = vmatmul.mubr.bf16.gmra.mrb[0].mxu0 %v950
        %v1363 = vpop.f32.mrb[0].mxu0
        %v1364 = vadd.f32 %v1163, %v1363
        %v1365 = vpop.f32.mrb[0].mxu0
        %v1366 = vpop.f32.mrb[0].mxu0
        %v1367 = vadd.f32 %v1163, %v1366
        %v1368 = vpop.f32.mrb[0].mxu0
        %1369 = vmatprep.mubr.bf16.mxu0 %v1081
        %1370 = vmatmul.mubr.bf16.gmra.mrb[0].mxu0 %v953
        %v1371 = vpop.f32.mrb[0].mxu0
        %v1372 = vadd.f32 %v1163, %v1371
        %v1373 = vpop.f32.mrb[0].mxu0
        %v1374 = vpop.f32.mrb[0].mxu0
        %v1375 = vadd.f32 %v1163, %v1374
        %v1376 = vpop.f32.mrb[0].mxu0
        %1377 = vmatprep.mubr.bf16.mxu0 %v1084
        %1378 = vmatmul.mubr.bf16.gmra.mrb[0].mxu0 %v956
        %v1379 = vpop.f32.mrb[0].mxu0
        %v1380 = vadd.f32 %v1163, %v1379
        %v1381 = vpop.f32.mrb[0].mxu0
        %v1382 = vpop.f32.mrb[0].mxu0
        %v1383 = vadd.f32 %v1163, %v1382
        %v1384 = vpop.f32.mrb[0].mxu0
        %1385 = vmatprep.mubr.bf16.mxu0 %v1087
        %1386 = vmatmul.mubr.bf16.gmra.mrb[0].mxu0 %v959
        %v1387 = vpop.f32.mrb[0].mxu0
        %v1388 = vadd.f32 %v1163, %v1387
        %v1389 = vpop.f32.mrb[0].mxu0
        %v1390 = vpop.f32.mrb[0].mxu0
        %v1391 = vadd.f32 %v1163, %v1390
        %v1392 = vpop.f32.mrb[0].mxu0
        %1393 = vmatprep.mubr.bf16.mxu0 %v1090
        %1394 = vmatmul.mubr.bf16.gmra.mrb[0].mxu0 %v962
        %v1395 = vpop.f32.mrb[0].mxu0
        %v1396 = vadd.f32 %v1163, %v1395
        %v1397 = vpop.f32.mrb[0].mxu0
        %v1398 = vpop.f32.mrb[0].mxu0
        %v1399 = vadd.f32 %v1163, %v1398
        %v1400 = vpop.f32.mrb[0].mxu0
        %1401 = vmatprep.mubr.bf16.mxu0 %v1093
        %1402 = vmatmul.mubr.bf16.gmra.mrb[0].mxu0 %v965
        %v1403 = vpop.f32.mrb[0].mxu0
        %v1404 = vadd.f32 %v1163, %v1403
        %v1405 = vpop.f32.mrb[0].mxu0
        %v1406 = vpop.f32.mrb[0].mxu0
        %v1407 = vadd.f32 %v1163, %v1406
        %v1408 = vpop.f32.mrb[0].mxu0
        %1409 = vmatprep.mubr.bf16.mxu0 %v1096
        %1410 = vmatmul.mubr.bf16.gmra.mrb[0].mxu0 %v968
        %v1411 = vpop.f32.mrb[0].mxu0
        %v1412 = vadd.f32 %v1163, %v1411
        %v1413 = vpop.f32.mrb[0].mxu0
        %v1414 = vpop.f32.mrb[0].mxu0
        %v1415 = vadd.f32 %v1163, %v1414
        %v1416 = vpop.f32.mrb[0].mxu0
        %1417 = vmatprep.mubr.bf16.mxu0 %v1099
        %1418 = vmatmul.mubr.bf16.gmra.mrb[0].mxu0 %v971
        %v1419 = vpop.f32.mrb[0].mxu0
        %v1420 = vadd.f32 %v1163, %v1419
        %v1421 = vpop.f32.mrb[0].mxu0
        %v1422 = vpop.f32.mrb[0].mxu0
        %v1423 = vadd.f32 %v1163, %v1422
        %v1424 = vpop.f32.mrb[0].mxu0
        %1425 = vmatprep.mubr.bf16.mxu0 %v1102
        %1426 = vmatmul.mubr.bf16.gmra.mrb[0].mxu0 %v974
        %v1427 = vpop.f32.mrb[0].mxu0
        %v1428 = vadd.f32 %v1163, %v1427
        %v1429 = vpop.f32.mrb[0].mxu0
        %v1430 = vpop.f32.mrb[0].mxu0
        %v1431 = vadd.f32 %v1163, %v1430
        %v1432 = vpop.f32.mrb[0].mxu0
        %1433 = vmatprep.mubr.bf16.mxu0 %v1105
        %1434 = vmatmul.mubr.bf16.gmra.mrb[0].mxu0 %v977
        %v1435 = vpop.f32.mrb[0].mxu0
        %v1436 = vadd.f32 %v1163, %v1435
        %v1437 = vpop.f32.mrb[0].mxu0
        %v1438 = vpop.f32.mrb[0].mxu0
        %v1439 = vadd.f32 %v1163, %v1438
        %v1440 = vpop.f32.mrb[0].mxu0
        %1441 = vmatprep.mubr.bf16.mxu0 %v1108
        %1442 = vmatmul.mubr.bf16.gmra.mrb[0].mxu0 %v980
        %v1443 = vpop.f32.mrb[0].mxu0
        %v1444 = vadd.f32 %v1163, %v1443
        %v1445 = vpop.f32.mrb[0].mxu0
        %v1446 = vpop.f32.mrb[0].mxu0
        %v1447 = vadd.f32 %v1163, %v1446
        %v1448 = vpop.f32.mrb[0].mxu0
        %1449 = vmatprep.mubr.bf16.mxu0 %v1111
        %1450 = vmatmul.mubr.bf16.gmra.mrb[0].mxu0 %v983
        %v1451 = vpop.f32.mrb[0].mxu0
        %v1452 = vadd.f32 %v1163, %v1451
        %v1453 = vpop.f32.mrb[0].mxu0
        %v1454 = vpop.f32.mrb[0].mxu0
        %v1455 = vadd.f32 %v1163, %v1454
        %v1456 = vpop.f32.mrb[0].mxu0
        %1457 = vmatprep.mubr.bf16.mxu0 %v1114
        %1458 = vmatmul.mubr.bf16.gmra.mrb[0].mxu0 %v986
        %v1459 = vpop.f32.mrb[0].mxu0
        %v1460 = vadd.f32 %v1163, %v1459
        %v1461 = vpop.f32.mrb[0].mxu0
        %v1462 = vpop.f32.mrb[0].mxu0
        %v1463 = vadd.f32 %v1163, %v1462
        %v1464 = vpop.f32.mrb[0].mxu0
        %1465 = vmatprep.mubr.bf16.mxu0 %v1117
        %1466 = vmatmul.mubr.bf16.gmra.mrb[0].mxu0 %v989
        %v1467 = vpop.f32.mrb[0].mxu0
        %v1468 = vadd.f32 %v1163, %v1467
        %v1469 = vpop.f32.mrb[0].mxu0
        %v1470 = vpop.f32.mrb[0].mxu0
        %v1471 = vadd.f32 %v1163, %v1470
        %v1472 = vpop.f32.mrb[0].mxu0
        %1473 = vmatprep.mubr.bf16.mxu0 %v1120
        %1474 = vmatmul.mubr.bf16.gmra.mrb[0].mxu0 %v992
        %v1475 = vpop.f32.mrb[0].mxu0
        %v1476 = vadd.f32 %v1163, %v1475
        %v1477 = vpop.f32.mrb[0].mxu0
        %v1478 = vpop.f32.mrb[0].mxu0
        %v1479 = vadd.f32 %v1163, %v1478
        %v1480 = vpop.f32.mrb[0].mxu0
        %1481 = vdwg.mxu0
        %1482 = vmatprep.subr.bf16.mxu0 0
        %1483 = vmatpush1.bf16.msra.mxu0 %v1253
        %1484 = vmatprep.subr.bf16.mxu0 0
        %1485 = vmatpush1.bf16.msra.mxu0 %v1254
        %1486 = vmatprep.subr.bf16.mxu0 0
        %1487 = vmatpush1.bf16.msra.mxu0 0
        %1488 = vmatprep.subr.bf16.mxu0 0
        %1489 = vmatpush1.bf16.msra.mxu0 0
        %1490 = vmatprep.subr.bf16.mxu0 0
        %1491 = vmatpush1.bf16.msra.mxu0 0
        %1492 = vmatprep.subr.bf16.mxu0 0
        %1493 = vmatpush1.bf16.msra.mxu0 0
        %1494 = vmatprep.subr.bf16.mxu0 0
        %1495 = vmatpush1.bf16.msra.mxu0 0
        %1496 = vmatprep.subr.bf16.mxu0 0
        %1497 = vmatpush1.bf16.msra.mxu0 0
        %1498 = vmatprep.subr.bf16.mxu0 0
        %1499 = vmatpush1.bf16.msra.mxu0 0
        %1500 = vmatprep.subr.bf16.mxu0 0
        %1501 = vmatpush1.bf16.msra.mxu0 0
        %1502 = vmatprep.subr.bf16.mxu0 0
        %1503 = vmatpush1.bf16.msra.mxu0 0
        %1504 = vmatprep.subr.bf16.mxu0 0
        %1505 = vmatpush1.bf16.msra.mxu0 0
        %1506 = vmatprep.subr.bf16.mxu0 0
        %1507 = vmatpush1.bf16.msra.mxu0 0
        %1508 = vmatprep.subr.bf16.mxu0 0
        %1509 = vmatpush1.bf16.msra.mxu0 0
        %1510 = vmatprep.subr.bf16.mxu0 0
        %1511 = vmatpush1.bf16.msra.mxu0 0
        %1512 = vmatprep.subr.bf16.mxu0 0
        %1513 = vmatpush1.bf16.msra.mxu0 0
        %1514 = vmatprep.mubr.bf16.mxu0 0
        %1515 = vmatmul.mubr.bf16.gmra.mrb[0].mxu0 %v1274
        %v1516 = vpop.f32.mrb[0].mxu0
        %v1517 = vadd.f32 %v1356, %v1516
        %v1518 = vpop.f32.mrb[0].mxu0
        %v1519 = vpop.f32.mrb[0].mxu0
        %v1520 = vadd.f32 %v1359, %v1519
        %v1521 = vpop.f32.mrb[0].mxu0
        %1522 = vmatprep.mubr.bf16.mxu0 0
        %1523 = vmatmul.mubr.bf16.gmra.mrb[0].mxu0 %v1277
        %v1524 = vpop.f32.mrb[0].mxu0
        %v1525 = vadd.f32 %v1364, %v1524
        %v1526 = vpop.f32.mrb[0].mxu0
        %v1527 = vpop.f32.mrb[0].mxu0
        %v1528 = vadd.f32 %v1367, %v1527
        %v1529 = vpop.f32.mrb[0].mxu0
        %1530 = vmatprep.mubr.bf16.mxu0 0
        %1531 = vmatmul.mubr.bf16.gmra.mrb[0].mxu0 %v1280
        %v1532 = vpop.f32.mrb[0].mxu0
        %v1533 = vadd.f32 %v1372, %v1532
        %v1534 = vpop.f32.mrb[0].mxu0
        %v1535 = vpop.f32.mrb[0].mxu0
        %v1536 = vadd.f32 %v1375, %v1535
        %v1537 = vpop.f32.mrb[0].mxu0
        %1538 = vmatprep.mubr.bf16.mxu0 0
        %1539 = vmatmul.mubr.bf16.gmra.mrb[0].mxu0 %v1283
        %v1540 = vpop.f32.mrb[0].mxu0
        %v1541 = vadd.f32 %v1380, %v1540
        %v1542 = vpop.f32.mrb[0].mxu0
        %v1543 = vpop.f32.mrb[0].mxu0
        %v1544 = vadd.f32 %v1383, %v1543
        %v1545 = vpop.f32.mrb[0].mxu0
        %1546 = vmatprep.mubr.bf16.mxu0 0
        %1547 = vmatmul.mubr.bf16.gmra.mrb[0].mxu0 %v1286
        %v1548 = vpop.f32.mrb[0].mxu0
        %v1549 = vadd.f32 %v1388, %v1548
        %v1550 = vpop.f32.mrb[0].mxu0
        %v1551 = vpop.f32.mrb[0].mxu0
        %v1552 = vadd.f32 %v1391, %v1551
        %v1553 = vpop.f32.mrb[0].mxu0
        %1554 = vmatprep.mubr.bf16.mxu0 0
        %1555 = vmatmul.mubr.bf16.gmra.mrb[0].mxu0 %v1289
        %v1556 = vpop.f32.mrb[0].mxu0
        %v1557 = vadd.f32 %v1396, %v1556
        %v1558 = vpop.f32.mrb[0].mxu0
        %v1559 = vpop.f32.mrb[0].mxu0
        %v1560 = vadd.f32 %v1399, %v1559
        %v1561 = vpop.f32.mrb[0].mxu0
        %1562 = vmatprep.mubr.bf16.mxu0 0
        %1563 = vmatmul.mubr.bf16.gmra.mrb[0].mxu0 %v1292
        %v1564 = vpop.f32.mrb[0].mxu0
        %v1565 = vadd.f32 %v1404, %v1564
        %v1566 = vpop.f32.mrb[0].mxu0
        %v1567 = vpop.f32.mrb[0].mxu0
        %v1568 = vadd.f32 %v1407, %v1567
        %v1569 = vpop.f32.mrb[0].mxu0
        %1570 = vmatprep.mubr.bf16.mxu0 0
        %1571 = vmatmul.mubr.bf16.gmra.mrb[0].mxu0 %v1295
        %v1572 = vpop.f32.mrb[0].mxu0
        %v1573 = vadd.f32 %v1412, %v1572
        %v1574 = vpop.f32.mrb[0].mxu0
        %v1575 = vpop.f32.mrb[0].mxu0
        %v1576 = vadd.f32 %v1415, %v1575
        %v1577 = vpop.f32.mrb[0].mxu0
        %1578 = vmatprep.mubr.bf16.mxu0 0
        %1579 = vmatmul.mubr.bf16.gmra.mrb[0].mxu0 %v1298
        %v1580 = vpop.f32.mrb[0].mxu0
        %v1581 = vadd.f32 %v1420, %v1580
        %v1582 = vpop.f32.mrb[0].mxu0
        %v1583 = vpop.f32.mrb[0].mxu0
        %v1584 = vadd.f32 %v1423, %v1583
        %v1585 = vpop.f32.mrb[0].mxu0
        %1586 = vmatprep.mubr.bf16.mxu0 0
        %1587 = vmatmul.mubr.bf16.gmra.mrb[0].mxu0 %v1301
        %v1588 = vpop.f32.mrb[0].mxu0
        %v1589 = vadd.f32 %v1428, %v1588
        %v1590 = vpop.f32.mrb[0].mxu0
        %v1591 = vpop.f32.mrb[0].mxu0
        %v1592 = vadd.f32 %v1431, %v1591
        %v1593 = vpop.f32.mrb[0].mxu0
        %1594 = vmatprep.mubr.bf16.mxu0 0
        %1595 = vmatmul.mubr.bf16.gmra.mrb[0].mxu0 %v1304
        %v1596 = vpop.f32.mrb[0].mxu0
        %v1597 = vadd.f32 %v1436, %v1596
        %v1598 = vpop.f32.mrb[0].mxu0
        %v1599 = vpop.f32.mrb[0].mxu0
        %v1600 = vadd.f32 %v1439, %v1599
        %v1601 = vpop.f32.mrb[0].mxu0
        %1602 = vmatprep.mubr.bf16.mxu0 0
        %1603 = vmatmul.mubr.bf16.gmra.mrb[0].mxu0 %v1307
        %v1604 = vpop.f32.mrb[0].mxu0
        %v1605 = vadd.f32 %v1444, %v1604
        %v1606 = vpop.f32.mrb[0].mxu0
        %v1607 = vpop.f32.mrb[0].mxu0
        %v1608 = vadd.f32 %v1447, %v1607
        %v1609 = vpop.f32.mrb[0].mxu0
        %1610 = vmatprep.mubr.bf16.mxu0 0
        %1611 = vmatmul.mubr.bf16.gmra.mrb[0].mxu0 %v1310
        %v1612 = vpop.f32.mrb[0].mxu0
        %v1613 = vadd.f32 %v1452, %v1612
        %v1614 = vpop.f32.mrb[0].mxu0
        %v1615 = vpop.f32.mrb[0].mxu0
        %v1616 = vadd.f32 %v1455, %v1615
        %v1617 = vpop.f32.mrb[0].mxu0
        %1618 = vmatprep.mubr.bf16.mxu0 0
        %1619 = vmatmul.mubr.bf16.gmra.mrb[0].mxu0 %v1313
        %v1620 = vpop.f32.mrb[0].mxu0
        %v1621 = vadd.f32 %v1460, %v1620
        %v1622 = vpop.f32.mrb[0].mxu0
        %v1623 = vpop.f32.mrb[0].mxu0
        %v1624 = vadd.f32 %v1463, %v1623
        %v1625 = vpop.f32.mrb[0].mxu0
        %1626 = vmatprep.mubr.bf16.mxu0 0
        %1627 = vmatmul.mubr.bf16.gmra.mrb[0].mxu0 %v1316
        %v1628 = vpop.f32.mrb[0].mxu0
        %v1629 = vadd.f32 %v1468, %v1628
        %v1630 = vpop.f32.mrb[0].mxu0
        %v1631 = vpop.f32.mrb[0].mxu0
        %v1632 = vadd.f32 %v1471, %v1631
        %v1633 = vpop.f32.mrb[0].mxu0
        %1634 = vmatprep.mubr.bf16.mxu0 0
        %1635 = vmatmul.mubr.bf16.gmra.mrb[0].mxu0 %v1319
        %v1636 = vpop.f32.mrb[0].mxu0
        %v1637 = vadd.f32 %v1476, %v1636
        %v1638 = vpop.f32.mrb[0].mxu0
        %v1639 = vpop.f32.mrb[0].mxu0
        %v1640 = vadd.f32 %v1479, %v1639
        %v1641 = vpop.f32.mrb[0].mxu0
        %1642 = vdwg.mxu0
        %1643 = vst.msk [vmem:[%s215] sm:$0xff] %vm879, %v1517
        %1644 = vst.msk [vmem:[%s215 + $0x8] sm:$0xff] %vm879, %v1520
        %1645 = vst.msk [vmem:[%s215 + $0x10] sm:$0xff] %vm879, %v1525
        %1646 = vst.msk [vmem:[%s215 + $0x18] sm:$0xff] %vm879, %v1528
        %1647 = vst.msk [vmem:[%s215 + $0x20] sm:$0xff] %vm879, %v1533
        %1648 = vst.msk [vmem:[%s215 + $0x28] sm:$0xff] %vm879, %v1536
        %1649 = vst.msk [vmem:[%s215 + $0x30] sm:$0xff] %vm879, %v1541
        %1650 = vst.msk [vmem:[%s215 + $0x38] sm:$0xff] %vm879, %v1544
        %1651 = vst.msk [vmem:[%s215 + $0x40] sm:$0xff] %vm879, %v1549
        %1652 = vst.msk [vmem:[%s215 + $0x48] sm:$0xff] %vm879, %v1552
        %1653 = vst.msk [vmem:[%s215 + $0x50] sm:$0xff] %vm879, %v1557
        %1654 = vst.msk [vmem:[%s215 + $0x58] sm:$0xff] %vm879, %v1560
        %1655 = vst.msk [vmem:[%s215 + $0x60] sm:$0xff] %vm879, %v1565
        %1656 = vst.msk [vmem:[%s215 + $0x68] sm:$0xff] %vm879, %v1568
        %1657 = vst.msk [vmem:[%s215 + $0x70] sm:$0xff] %vm879, %v1573
        %1658 = vst.msk [vmem:[%s215 + $0x78] sm:$0xff] %vm879, %v1576
        %1659 = vst.msk [vmem:[%s215 + $0x80] sm:$0xff] %vm879, %v1581
        %1660 = vst.msk [vmem:[%s215 + $0x88] sm:$0xff] %vm879, %v1584
        %1661 = vst.msk [vmem:[%s215 + $0x90] sm:$0xff] %vm879, %v1589
        %1662 = vst.msk [vmem:[%s215 + $0x98] sm:$0xff] %vm879, %v1592
        %1663 = vst.msk [vmem:[%s215 + $0xa0] sm:$0xff] %vm879, %v1597
        %1664 = vst.msk [vmem:[%s215 + $0xa8] sm:$0xff] %vm879, %v1600
        %1665 = vst.msk [vmem:[%s215 + $0xb0] sm:$0xff] %vm879, %v1605
        %1666 = vst.msk [vmem:[%s215 + $0xb8] sm:$0xff] %vm879, %v1608
        %1667 = vst.msk [vmem:[%s215 + $0xc0] sm:$0xff] %vm879, %v1613
        %1668 = vst.msk [vmem:[%s215 + $0xc8] sm:$0xff] %vm879, %v1616
        %1669 = vst.msk [vmem:[%s215 + $0xd0] sm:$0xff] %vm879, %v1621
        %1670 = vst.msk [vmem:[%s215 + $0xd8] sm:$0xff] %vm879, %v1624
        %1671 = vst.msk [vmem:[%s215 + $0xe0] sm:$0xff] %vm879, %v1629
        %1672 = vst.msk [vmem:[%s215 + $0xe8] sm:$0xff] %vm879, %v1632
        %1673 = vst.msk [vmem:[%s215 + $0xf0] sm:$0xff] %vm879, %v1637
        %1674 = vst.msk [vmem:[%s215 + $0xf8] sm:$0xff] %vm879, %v1640
        %s1675 = sand.u32 %s97, 1
        %s1676 = scalar_lea.sflag [#allocation4], %s1675
        %s1677 = sand.u32 %s97, 1
        %s1678 = smul.addr %s1677, 256
        %s1679 = scalar_lea.vmem [#allocation8], %s1678
        // Predicated region
        $region45: #{transformer_forward.7} parent=31 // pred_check
          %p1680 = pneg %p107
        $region46: #{transformer_forward.7} parent=31 // pred_check_branch
          %1682 = sbr.rel (%p1680) target = $region48
        $region47: #{transformer_forward.7} parent=31 // pred_region
          %s1684 = ssub.s32 4096, 4096
          %1685 = vsyncadd %s1676, %s1684
          %s1686 = smul.addr %s21, 32
          %s1687 = smul.addr %s1686, 128
          %s1688 = scalar_lea.hbm %s3, %s1687
          %s1689 = sshll.u32 %s1679, 4
          %s1690 = int_to_ptr.vmem [resolvable:$true] %s1689
          %1695 = dma.vmem_to_hbm [thread:$0]  %s1690, 4096, %s1688, %s1676, 128, 128, 8
        $region48: #{transformer_forward.7} parent=31 // pred_fallthru
          _
      $region32: #{transformer_forward.7} parent=5 // pred_fallthru
        _
      %p1696 = scmp.le.s32.totalorder 2, %s16
      // Predicated region
      $region49: #{transformer_forward.7} parent=5 // pred_check
        %p1697 = pneg %p1696
      $region50: #{transformer_forward.7} parent=5 // pred_check_branch
        %1699 = sbr.rel (%p1697) target = $region52
      $region51: #{transformer_forward.7} parent=5 // pred_region
        %s1700 = ssub.s32 %s16, 2
        // Predicated region
        $region53: #{transformer_forward.7} parent=51 // pred_check
          %p1701 = pneg %p113
        $region54: #{transformer_forward.7} parent=51 // pred_check_branch
          %1703 = sbr.rel (%p1701) target = $region56
        $region55: #{transformer_forward.7} parent=51 // pred_region
          %s1704 = sand.u32 %s98, 1
          %s1705 = scalar_lea.sflag [#allocation4], %s1704
          %s1706 = sand.u32 %s98, 1
          %s1707 = smul.addr %s1706, 256
          %s1708 = scalar_lea.vmem [#allocation8], %s1707
          %1709 = dma.done %s1705, 4096
        $region56: #{transformer_forward.7} parent=51 // pred_fallthru
          _
      $region52: #{transformer_forward.7} parent=5 // pred_fallthru
        _
    $region6: #{transformer_forward.7} parent=1 // loop_footer
      %s20 = sadd.s32 1, %s16
    $region7: #{transformer_forward.7} parent=1 // loop_footer_branch
      %15 = sbr.rel target = $region3
    $region8: #{transformer_forward.7} parent=1 // loop_exit
      _
    %1710 = vsyncpa [#allocation3], 1
    %s1711 = scalar_lea.sflag [#allocation3], 1
    %1712 = vsyncpa %s1711, 1
    %1713 = vsyncpa [#allocation6], 1
    %1714 = vsyncpa [#allocation4], 1
    %s1715 = scalar_lea.sflag [#allocation4], 1
    %1716 = vsyncpa %s1715, 1

</llo_original>
